<compile_context>
chip_gen: v5e
topology: v5e:2x2
jax: 0.10.0
libtpu: 0.0.40
codegen_flags: <defaults>
</compile_context>

<pallas_src>
import jax
import jax.numpy as jnp
from jax.experimental import pallas as pl
from jax.experimental.pallas import tpu as pltpu


_VMEM = pl.BlockSpec(memory_space=pltpu.MemorySpace.VMEM)


# ----------------------------- Pallas kernels ------------------------------

def _mm_bias_relu_kernel(x_ref, w_ref, b_ref, o_ref):
    """o = relu(x @ w + b); whole arrays resident in VMEM, single invocation."""
    y = jnp.dot(x_ref[...], w_ref[...], preferred_element_type=jnp.float32)
    o_ref[...] = jnp.maximum(y + b_ref[...], 0.0)


def matmul_bias_relu(x, w, b2d):
    """x: (M, K), w: (K, N), b2d: (1, N) -> (M, N). One grid step (M, K, N all
    fit VMEM comfortably for this workload)."""
    M, K = x.shape
    Kw, N = w.shape
    assert K == Kw
    return pl.pallas_call(
        _mm_bias_relu_kernel,
        out_shape=jax.ShapeDtypeStruct((M, N), jnp.float32),
        in_specs=[_VMEM, _VMEM, _VMEM],
        out_specs=_VMEM,
    )(x, w, b2d)


def _head_kernel(x_ref, s_ref, m_ref,
                 w1_ref, b1_ref,
                 wih_ref, whh_ref, bih_ref, bhh_ref,
                 wc_ref, bc_ref,
                 v_ref, h_ref):
    """Fused linear1(+ReLU) -> GRUCell -> critic_linear.

    All weights (~5.5 MiB f32) + activations live in VMEM for the whole call;
    PyTorch GRUCell semantics, gate order (reset, update, new)."""
    x = jnp.dot(x_ref[...], w1_ref[...],
                preferred_element_type=jnp.float32) + b1_ref[...]
    x = jnp.maximum(x, 0.0)                                   # linear1 + relu

    h = s_ref[...] * m_ref[...]                               # states * masks
    gi = jnp.dot(x, wih_ref[...],
                 preferred_element_type=jnp.float32) + bih_ref[...]
    gh = jnp.dot(h, whh_ref[...],
                 preferred_element_type=jnp.float32) + bhh_ref[...]
    H = h_ref.shape[1]
    r = jax.nn.sigmoid(gi[:, 0:H] + gh[:, 0:H])
    z = jax.nn.sigmoid(gi[:, H:2 * H] + gh[:, H:2 * H])
    n = jnp.tanh(gi[:, 2 * H:3 * H] + r * gh[:, 2 * H:3 * H])
    hnew = (1.0 - z) * n + z * h

    h_ref[...] = hnew
    v_ref[...] = jnp.dot(hnew, wc_ref[...],
                         preferred_element_type=jnp.float32) + bc_ref[...]


def linear_gru_critic(x, states, masks, pp):
    B, H = states.shape
    return pl.pallas_call(
        _head_kernel,
        out_shape=(jax.ShapeDtypeStruct((B, 1), jnp.float32),   # critic value
                   jax.ShapeDtypeStruct((B, H), jnp.float32)),  # new hidden
        in_specs=[_VMEM] * 11,
        out_specs=(_VMEM, _VMEM),
    )(x, states, masks,
      pp['lin1_w'], pp['lin1_b'],
      pp['gru_wih'], pp['gru_whh'], pp['gru_bih'], pp['gru_bhh'],
      pp['critic_w'], pp['critic_b'])


# ------------------------- conv via static-slice im2col ---------------------

def _im2col_nhwc(x, kh, kw, stride):
    """x: (B, H, W, C) NHWC -> patches (B*oh*ow, kh*kw*C) using only static
    strided slices + one concat (no XLA gather, no transpose)."""
    B, H, W, C = x.shape
    oh = (H - kh) // stride + 1
    ow = (W - kw) // stride + 1
    cols = []
    for dh in range(kh):
        for dw in range(kw):
            cols.append(jax.lax.slice(
                x,
                (0, dh, dw, 0),
                (B, dh + (oh - 1) * stride + 1, dw + (ow - 1) * stride + 1, C),
                (1, stride, stride, 1)))                      # (B, oh, ow, C)
    patches = jnp.concatenate(cols, axis=-1)                  # (B, oh, ow, kh*kw*C)
    return patches.reshape(B * oh * ow, kh * kw * C), oh, ow


def conv2d_relu(x_nhwc, wmat, b2d, kh, kw, stride):
    """Valid conv in NHWC as im2col + fused Pallas matmul/bias/relu."""
    B = x_nhwc.shape[0]
    patches, oh, ow = _im2col_nhwc(x_nhwc, kh, kw, stride)
    y = matmul_bias_relu(patches, wmat, b2d)                  # (B*oh*ow, Cout)
    return y.reshape(B, oh, ow, wmat.shape[1])                # NHWC, free view


# ----------------------------- parameters ----------------------------------

def init_params(key, num_inputs=4, hidden=256):
    # TODO(synk): orthogonal init (as in reset_parameters) replaced by scaled
    # normal init; forward semantics are unaffected.
    ks = jax.random.split(key, 8)
    w = lambda k, shape, s=0.05: jax.random.normal(k, shape, jnp.float32) * s
    return dict(
        conv1_w=w(ks[0], (32, num_inputs, 8, 8)),
        conv1_b=jnp.zeros((32,), jnp.float32),
        conv2_w=w(ks[1], (64, 32, 4, 4)),
        conv2_b=jnp.zeros((64,), jnp.float32),
        conv3_w=w(ks[2], (32, 64, 3, 3)),
        conv3_b=jnp.zeros((32,), jnp.float32),
        lin1_w=w(ks[3], (512, 32 * 7 * 7)),
        lin1_b=jnp.zeros((512,), jnp.float32),
        gru_wih=w(ks[4], (3 * hidden, 512)),
        gru_whh=w(ks[5], (3 * hidden, hidden)),
        gru_bih=jnp.zeros((3 * hidden,), jnp.float32),
        gru_bhh=jnp.zeros((3 * hidden,), jnp.float32),
        critic_w=w(ks[6], (1, hidden)),
        critic_b=jnp.zeros((1,), jnp.float32),
    )


def prepare_params(p):
    """One-time weight re-layout so the per-step forward never pads/transposes.

    * conv weights (Cout, Cin, kh, kw) -> (kh*kw*Cin, Cout) im2col matrices in
      the NHWC patch order (dh, dw, c); the 1/255 input scale folded into conv1.
    * lin1 weight columns permuted from NCHW-flatten order to NHWC-flatten.
    * GRU / critic weights pre-transposed; all biases stored as (1, N).
    """
    def conv_mat(w):
        cout = w.shape[0]
        return jnp.transpose(w, (2, 3, 1, 0)).reshape(-1, cout)

    lw = p['lin1_w'].reshape(512, 32, 7, 7)                    # (out, c, h, w)
    lin1_w = jnp.transpose(lw, (2, 3, 1, 0)).reshape(32 * 7 * 7, 512)

    return dict(
        conv1_w=conv_mat(p['conv1_w']) * (1.0 / 255.0),
        conv1_b=p['conv1_b'].reshape(1, -1),
        conv2_w=conv_mat(p['conv2_w']),
        conv2_b=p['conv2_b'].reshape(1, -1),
        conv3_w=conv_mat(p['conv3_w']),
        conv3_b=p['conv3_b'].reshape(1, -1),
        lin1_w=lin1_w,
        lin1_b=p['lin1_b'].reshape(1, -1),
        gru_wih=p['gru_wih'].T,                                # (512, 768)
        gru_whh=p['gru_whh'].T,                                # (256, 768)
        gru_bih=p['gru_bih'].reshape(1, -1),
        gru_bhh=p['gru_bhh'].reshape(1, -1),
        critic_w=p['critic_w'].T,                              # (256, 1)
        critic_b=p['critic_b'].reshape(1, -1),
    )


# ----------------------------- forward --------------------------------------

def cnn_policy_forward(pp, inputs, states, masks):
    """CNNPolicy.forward with use_gru=True, use_att not in {spatial,temporal}.

    `pp` are prepare_params() outputs.  Returns (critic_value, x, states) just
    like the PyTorch module."""
    B = inputs.shape[0]
    x = jnp.transpose(inputs, (0, 2, 3, 1))                    # NCHW -> NHWC, once
    x = conv2d_relu(x, pp['conv1_w'], pp['conv1_b'], 8, 8, 4)  # (B,20,20,32), /255 in W
    x = conv2d_relu(x, pp['conv2_w'], pp['conv2_b'], 4, 4, 2)  # (B, 9, 9,64)
    x = conv2d_relu(x, pp['conv3_w'], pp['conv3_b'], 3, 3, 1)  # (B, 7, 7,32)
    x = x.reshape(B, 7 * 7 * 32)                               # free view (lin1_w permuted to match)
    value, h = linear_gru_critic(x, states, masks, pp)         # fused lin1+GRU+critic
    return value, h, h
    # TODO(synk): self.dist (Categorical/DiagGaussian head used by act()) is
    # not part of forward() and is not implemented here.


# ----------------------------- reference (plain JAX) ------------------------

def ref_forward(params, inputs, states, masks):
    hp = jax.lax.Precision.HIGHEST

    def conv(x, w, b, stride):
        y = jax.lax.conv_general_dilated(
            x, w, (stride, stride), 'VALID',
            dimension_numbers=('NCHW', 'OIHW', 'NCHW'), precision=hp)
        return jax.nn.relu(y + b[None, :, None, None])

    x = conv(inputs / 255.0, params['conv1_w'], params['conv1_b'], 4)
    x = conv(x, params['conv2_w'], params['conv2_b'], 2)
    x = conv(x, params['conv3_w'], params['conv3_b'], 1)
    x = x.reshape(x.shape[0], -1)
    x = jax.nn.relu(jnp.dot(x, params['lin1_w'].T, precision=hp)
                    + params['lin1_b'])
    h = states * masks
    gi = jnp.dot(x, params['gru_wih'].T, precision=hp) + params['gru_bih']
    gh = jnp.dot(h, params['gru_whh'].T, precision=hp) + params['gru_bhh']
    H = h.shape[1]
    r = jax.nn.sigmoid(gi[:, :H] + gh[:, :H])
    z = jax.nn.sigmoid(gi[:, H:2 * H] + gh[:, H:2 * H])
    n = jnp.tanh(gi[:, 2 * H:] + r * gh[:, 2 * H:])
    hnew = (1.0 - z) * n + z * h
    value = jnp.dot(hnew, params['critic_w'].T, precision=hp) + params['critic_b']
    return value, hnew, hnew


# ----------------------------- main ------------------------------------------

if __name__ == "__main__":
    key = jax.random.PRNGKey(0)
    kp, kx, kh = jax.random.split(key, 3)
    params = init_params(kp)
    pp = prepare_params(params)        # one-time weight re-layout, not per step

    B = 2
    inputs = jax.random.uniform(kx, (B, 4, 84, 84), jnp.float32, 0.0, 255.0)
    states = jax.random.normal(kh, (B, 256), jnp.float32)
    masks = jnp.ones((B, 1), jnp.float32)

    fwd = jax.jit(cnn_policy_forward)
    value, x, states_out = jax.block_until_ready(
        fwd(pp, inputs, states, masks))

    v_ref, x_ref, _ = ref_forward(params, inputs, states, masks)
    assert value.shape == (B, 1) and x.shape == (B, 256)
    assert states_out.shape == (B, 256)
    # Kernels use default MXU precision (single bf16 pass) while the reference
    # runs f32/HIGHEST, so allow a slightly wider tolerance than pure-f32.
    assert float(jnp.max(jnp.abs(value - v_ref))) < 2e-2
    assert float(jnp.max(jnp.abs(x - x_ref))) < 2e-2

    print("KERNEL_OK")
</pallas_src>

<mosaic_0001>
module attributes {stable_mosaic.version = 11 : i64} {
  func.func @_mm_bias_relu_kernel(%arg0: memref<800x256xf32, #tpu.memory_space<vmem>>, %arg1: memref<256x32xf32, #tpu.memory_space<vmem>>, %arg2: memref<1x32xf32, #tpu.memory_space<vmem>>, %arg3: memref<800x32xf32, #tpu.memory_space<vmem>>) attributes {dimension_semantics = [], scalar_prefetch = 0 : i64, scratch_operands = 0 : i64, tpu.core_type = #tpu.core_type<tc>} {
    %c0 = arith.constant 0 : index
    %c0_0 = arith.constant 0 : index
    %0 = vector.load %arg0[%c0, %c0_0] : memref<800x256xf32, #tpu.memory_space<vmem>>, vector<800x256xf32>
    %c0_1 = arith.constant 0 : index
    %c0_2 = arith.constant 0 : index
    %1 = vector.load %arg1[%c0_1, %c0_2] : memref<256x32xf32, #tpu.memory_space<vmem>>, vector<256x32xf32>
    %cst = arith.constant dense<0.000000e+00> : vector<800x32xf32>
    %2 = tpu.matmul %0, %1, %cst {dimension_numbers = #tpu.dot_dimension_numbers<[1], [0], [0], [1], [0, 0, 1, 1], [], []>} : vector<800x256xf32>, vector<256x32xf32>, vector<800x32xf32> -> vector<800x32xf32>
    %c0_3 = arith.constant 0 : index
    %c0_4 = arith.constant 0 : index
    %3 = vector.load %arg2[%c0_3, %c0_4] : memref<1x32xf32, #tpu.memory_space<vmem>>, vector<1x32xf32>
    %4 = vector.broadcast %3 : vector<1x32xf32> to vector<800x32xf32>
    %5 = arith.addf %2, %4 : vector<800x32xf32>
    %cst_5 = arith.constant 0.000000e+00 : f32
    %6 = vector.broadcast %cst_5 : f32 to vector<800x32xf32>
    %7 = arith.maximumf %5, %6 : vector<800x32xf32>
    %c0_6 = arith.constant 0 : index
    %c0_7 = arith.constant 0 : index
    %8 = vector.load %arg3[%c0_6, %c0_7] : memref<800x32xf32, #tpu.memory_space<vmem>>, vector<800x32xf32>
    tpu.vector_store %arg3[%c0_6, %c0_7], %7 {strides = array<i32>} : memref<800x32xf32, #tpu.memory_space<vmem>>, vector<800x32xf32>,
    return
  }
}

module attributes {stable_mosaic.version = 11 : i64} {
  func.func @_mm_bias_relu_kernel(%arg0: memref<162x512xf32, #tpu.memory_space<vmem>>, %arg1: memref<512x64xf32, #tpu.memory_space<vmem>>, %arg2: memref<1x64xf32, #tpu.memory_space<vmem>>, %arg3: memref<162x64xf32, #tpu.memory_space<vmem>>) attributes {dimension_semantics = [], scalar_prefetch = 0 : i64, scratch_operands = 0 : i64, tpu.core_type = #tpu.core_type<tc>} {
    %c0 = arith.constant 0 : index
    %c0_0 = arith.constant 0 : index
    %0 = vector.load %arg0[%c0, %c0_0] : memref<162x512xf32, #tpu.memory_space<vmem>>, vector<162x512xf32>
    %c0_1 = arith.constant 0 : index
    %c0_2 = arith.constant 0 : index
    %1 = vector.load %arg1[%c0_1, %c0_2] : memref<512x64xf32, #tpu.memory_space<vmem>>, vector<512x64xf32>
    %cst = arith.constant dense<0.000000e+00> : vector<162x64xf32>
    %2 = tpu.matmul %0, %1, %cst {dimension_numbers = #tpu.dot_dimension_numbers<[1], [0], [0], [1], [0, 0, 1, 1], [], []>} : vector<162x512xf32>, vector<512x64xf32>, vector<162x64xf32> -> vector<162x64xf32>
    %c0_3 = arith.constant 0 : index
    %c0_4 = arith.constant 0 : index
    %3 = vector.load %arg2[%c0_3, %c0_4] : memref<1x64xf32, #tpu.memory_space<vmem>>, vector<1x64xf32>
    %4 = vector.broadcast %3 : vector<1x64xf32> to vector<162x64xf32>
    %5 = arith.addf %2, %4 : vector<162x64xf32>
    %cst_5 = arith.constant 0.000000e+00 : f32
    %6 = vector.broadcast %cst_5 : f32 to vector<162x64xf32>
    %7 = arith.maximumf %5, %6 : vector<162x64xf32>
    %c0_6 = arith.constant 0 : index
    %c0_7 = arith.constant 0 : index
    %8 = vector.load %arg3[%c0_6, %c0_7] : memref<162x64xf32, #tpu.memory_space<vmem>>, vector<162x64xf32>
    tpu.vector_store %arg3[%c0_6, %c0_7], %7 {strides = array<i32>} : memref<162x64xf32, #tpu.memory_space<vmem>>, vector<162x64xf32>,
    return
  }
}

module attributes {stable_mosaic.version = 11 : i64} {
  func.func @_mm_bias_relu_kernel(%arg0: memref<98x576xf32, #tpu.memory_space<vmem>>, %arg1: memref<576x32xf32, #tpu.memory_space<vmem>>, %arg2: memref<1x32xf32, #tpu.memory_space<vmem>>, %arg3: memref<98x32xf32, #tpu.memory_space<vmem>>) attributes {dimension_semantics = [], scalar_prefetch = 0 : i64, scratch_operands = 0 : i64, tpu.core_type = #tpu.core_type<tc>} {
    %c0 = arith.constant 0 : index
    %c0_0 = arith.constant 0 : index
    %0 = vector.load %arg0[%c0, %c0_0] : memref<98x576xf32, #tpu.memory_space<vmem>>, vector<98x576xf32>
    %c0_1 = arith.constant 0 : index
    %c0_2 = arith.constant 0 : index
    %1 = vector.load %arg1[%c0_1, %c0_2] : memref<576x32xf32, #tpu.memory_space<vmem>>, vector<576x32xf32>
    %cst = arith.constant dense<0.000000e+00> : vector<98x32xf32>
    %2 = tpu.matmul %0, %1, %cst {dimension_numbers = #tpu.dot_dimension_numbers<[1], [0], [0], [1], [0, 0, 1, 1], [], []>} : vector<98x576xf32>, vector<576x32xf32>, vector<98x32xf32> -> vector<98x32xf32>
    %c0_3 = arith.constant 0 : index
    %c0_4 = arith.constant 0 : index
    %3 = vector.load %arg2[%c0_3, %c0_4] : memref<1x32xf32, #tpu.memory_space<vmem>>, vector<1x32xf32>
    %4 = vector.broadcast %3 : vector<1x32xf32> to vector<98x32xf32>
    %5 = arith.addf %2, %4 : vector<98x32xf32>
    %cst_5 = arith.constant 0.000000e+00 : f32
    %6 = vector.broadcast %cst_5 : f32 to vector<98x32xf32>
    %7 = arith.maximumf %5, %6 : vector<98x32xf32>
    %c0_6 = arith.constant 0 : index
    %c0_7 = arith.constant 0 : index
    %8 = vector.load %arg3[%c0_6, %c0_7] : memref<98x32xf32, #tpu.memory_space<vmem>>, vector<98x32xf32>
    tpu.vector_store %arg3[%c0_6, %c0_7], %7 {strides = array<i32>} : memref<98x32xf32, #tpu.memory_space<vmem>>, vector<98x32xf32>,
    return
  }
}

module attributes {stable_mosaic.version = 11 : i64} {
  func.func @_head_kernel(%arg0: memref<2x1568xf32, #tpu.memory_space<vmem>>, %arg1: memref<2x256xf32, #tpu.memory_space<vmem>>, %arg2: memref<2x1xf32, #tpu.memory_space<vmem>>, %arg3: memref<1568x512xf32, #tpu.memory_space<vmem>>, %arg4: memref<1x512xf32, #tpu.memory_space<vmem>>, %arg5: memref<512x768xf32, #tpu.memory_space<vmem>>, %arg6: memref<256x768xf32, #tpu.memory_space<vmem>>, %arg7: memref<1x768xf32, #tpu.memory_space<vmem>>, %arg8: memref<1x768xf32, #tpu.memory_space<vmem>>, %arg9: memref<256x1xf32, #tpu.memory_space<vmem>>, %arg10: memref<1x1xf32, #tpu.memory_space<vmem>>, %arg11: memref<2x1xf32, #tpu.memory_space<vmem>>, %arg12: memref<2x256xf32, #tpu.memory_space<vmem>>) attributes {dimension_semantics = [], scalar_prefetch = 0 : i64, scratch_operands = 0 : i64, tpu.core_type = #tpu.core_type<tc>} {
    %c0 = arith.constant 0 : index
    %c0_0 = arith.constant 0 : index
    %0 = vector.load %arg0[%c0, %c0_0] : memref<2x1568xf32, #tpu.memory_space<vmem>>, vector<2x1568xf32>
    %c0_1 = arith.constant 0 : index
    %c0_2 = arith.constant 0 : index
    %1 = vector.load %arg3[%c0_1, %c0_2] : memref<1568x512xf32, #tpu.memory_space<vmem>>, vector<1568x512xf32>
    %cst = arith.constant dense<0.000000e+00> : vector<2x512xf32>
    %2 = tpu.matmul %0, %1, %cst {dimension_numbers = #tpu.dot_dimension_numbers<[1], [0], [0], [1], [0, 0, 1, 1], [], []>} : vector<2x1568xf32>, vector<1568x512xf32>, vector<2x512xf32> -> vector<2x512xf32>
    %c0_3 = arith.constant 0 : index
    %c0_4 = arith.constant 0 : index
    %3 = vector.load %arg4[%c0_3, %c0_4] : memref<1x512xf32, #tpu.memory_space<vmem>>, vector<1x512xf32>
    %4 = vector.broadcast %3 : vector<1x512xf32> to vector<2x512xf32>
    %5 = arith.addf %2, %4 : vector<2x512xf32>
    %cst_5 = arith.constant 0.000000e+00 : f32
    %6 = vector.broadcast %cst_5 : f32 to vector<2x512xf32>
    %7 = arith.maximumf %5, %6 : vector<2x512xf32>
    %c0_6 = arith.constant 0 : index
    %c0_7 = arith.constant 0 : index
    %8 = vector.load %arg1[%c0_6, %c0_7] : memref<2x256xf32, #tpu.memory_space<vmem>>, vector<2x256xf32>
    %c0_8 = arith.constant 0 : index
    %c0_9 = arith.constant 0 : index
    %9 = vector.load %arg2[%c0_8, %c0_9] : memref<2x1xf32, #tpu.memory_space<vmem>>, vector<2x1xf32>
    %10 = vector.broadcast %9 : vector<2x1xf32> to vector<2x256xf32>
    %11 = arith.mulf %8, %10 : vector<2x256xf32>
    %c0_10 = arith.constant 0 : index
    %c0_11 = arith.constant 0 : index
    %12 = vector.load %arg5[%c0_10, %c0_11] : memref<512x768xf32, #tpu.memory_space<vmem>>, vector<512x768xf32>
    %cst_12 = arith.constant dense<0.000000e+00> : vector<2x768xf32>
    %13 = tpu.matmul %7, %12, %cst_12 {dimension_numbers = #tpu.dot_dimension_numbers<[1], [0], [0], [1], [0, 0, 1, 1], [], []>} : vector<2x512xf32>, vector<512x768xf32>, vector<2x768xf32> -> vector<2x768xf32>
    %c0_13 = arith.constant 0 : index
    %c0_14 = arith.constant 0 : index
    %14 = vector.load %arg7[%c0_13, %c0_14] : memref<1x768xf32, #tpu.memory_space<vmem>>, vector<1x768xf32>
    %15 = vector.broadcast %14 : vector<1x768xf32> to vector<2x768xf32>
    %16 = arith.addf %13, %15 : vector<2x768xf32>
    %c0_15 = arith.constant 0 : index
    %c0_16 = arith.constant 0 : index
    %17 = vector.load %arg6[%c0_15, %c0_16] : memref<256x768xf32, #tpu.memory_space<vmem>>, vector<256x768xf32>
    %cst_17 = arith.constant dense<0.000000e+00> : vector<2x768xf32>
    %18 = tpu.matmul %11, %17, %cst_17 {dimension_numbers = #tpu.dot_dimension_numbers<[1], [0], [0], [1], [0, 0, 1, 1], [], []>} : vector<2x256xf32>, vector<256x768xf32>, vector<2x768xf32> -> vector<2x768xf32>
    %c0_18 = arith.constant 0 : index
    %c0_19 = arith.constant 0 : index
    %19 = vector.load %arg8[%c0_18, %c0_19] : memref<1x768xf32, #tpu.memory_space<vmem>>, vector<1x768xf32>
    %20 = vector.broadcast %19 : vector<1x768xf32> to vector<2x768xf32>
    %21 = arith.addf %18, %20 : vector<2x768xf32>
    %22 = vector.extract_strided_slice %16 {offsets = [0, 0], sizes = [2, 256], strides = [1, 1]} : vector<2x768xf32> to vector<2x256xf32>
    %23 = vector.extract_strided_slice %21 {offsets = [0, 0], sizes = [2, 256], strides = [1, 1]} : vector<2x768xf32> to vector<2x256xf32>
    %24 = arith.addf %22, %23 : vector<2x256xf32>
    %25 = arith.negf %24 : vector<2x256xf32>
    %26 = math.exp %25 : vector<2x256xf32>
    %cst_20 = arith.constant 1.000000e+00 : f32
    %27 = vector.broadcast %cst_20 : f32 to vector<2x256xf32>
    %28 = arith.addf %27, %26 : vector<2x256xf32>
    %29 = arith.divf %27, %28 : vector<2x256xf32>
    %30 = vector.extract_strided_slice %16 {offsets = [0, 256], sizes = [2, 256], strides = [1, 1]} : vector<2x768xf32> to vector<2x256xf32>
    %31 = vector.extract_strided_slice %21 {offsets = [0, 256], sizes = [2, 256], strides = [1, 1]} : vector<2x768xf32> to vector<2x256xf32>
    %32 = arith.addf %30, %31 : vector<2x256xf32>
    %33 = arith.negf %32 : vector<2x256xf32>
    %34 = math.exp %33 : vector<2x256xf32>
    %cst_21 = arith.constant 1.000000e+00 : f32
    %35 = vector.broadcast %cst_21 : f32 to vector<2x256xf32>
    %36 = arith.addf %35, %34 : vector<2x256xf32>
    %37 = arith.divf %35, %36 : vector<2x256xf32>
    %38 = vector.extract_strided_slice %16 {offsets = [0, 512], sizes = [2, 256], strides = [1, 1]} : vector<2x768xf32> to vector<2x256xf32>
    %39 = vector.extract_strided_slice %21 {offsets = [0, 512], sizes = [2, 256], strides = [1, 1]} : vector<2x768xf32> to vector<2x256xf32>
    %40 = arith.mulf %29, %39 : vector<2x256xf32>
    %41 = arith.addf %38, %40 : vector<2x256xf32>
    %42 = math.tanh %41 : vector<2x256xf32>
    %cst_22 = arith.constant 1.000000e+00 : f32
    %43 = vector.broadcast %cst_22 : f32 to vector<2x256xf32>
    %44 = arith.subf %43, %37 : vector<2x256xf32>
    %45 = arith.mulf %44, %42 : vector<2x256xf32>
    %46 = arith.mulf %37, %11 : vector<2x256xf32>
    %47 = arith.addf %45, %46 : vector<2x256xf32>
    %c0_23 = arith.constant 0 : index
    %c0_24 = arith.constant 0 : index
    %48 = vector.load %arg12[%c0_23, %c0_24] : memref<2x256xf32, #tpu.memory_space<vmem>>, vector<2x256xf32>
    tpu.vector_store %arg12[%c0_23, %c0_24], %47 {strides = array<i32>} : memref<2x256xf32, #tpu.memory_space<vmem>>, vector<2x256xf32>,
    %c0_25 = arith.constant 0 : index
    %c0_26 = arith.constant 0 : index
    %49 = vector.load %arg9[%c0_25, %c0_26] : memref<256x1xf32, #tpu.memory_space<vmem>>, vector<256x1xf32>
    %cst_27 = arith.constant dense<0.000000e+00> : vector<2x1xf32>
    %50 = tpu.matmul %47, %49, %cst_27 {dimension_numbers = #tpu.dot_dimension_numbers<[1], [0], [0], [1], [0, 0, 1, 1], [], []>} : vector<2x256xf32>, vector<256x1xf32>, vector<2x1xf32> -> vector<2x1xf32>
    %c0_28 = arith.constant 0 : index
    %c0_29 = arith.constant 0 : index
    %51 = vector.load %arg10[%c0_28, %c0_29] : memref<1x1xf32, #tpu.memory_space<vmem>>, vector<1x1xf32>
    %52 = vector.broadcast %51 : vector<1x1xf32> to vector<2x1xf32>
    %53 = arith.addf %50, %52 : vector<2x1xf32>
    %c0_30 = arith.constant 0 : index
    %c0_31 = arith.constant 0 : index
    %54 = vector.load %arg11[%c0_30, %c0_31] : memref<2x1xf32, #tpu.memory_space<vmem>>, vector<2x1xf32>
    tpu.vector_store %arg11[%c0_30, %c0_31], %53 {strides = array<i32>} : memref<2x1xf32, #tpu.memory_space<vmem>>, vector<2x1xf32>,
    return
  }
}

</mosaic_0001>

<llo_original>
// kernel: cnn_policy_forward.4
$region0: #{cnn_policy_forward.4}
  #allocation0 [shape = 'u32[]', space=smem, size = 0x4, offset = 0x4, fixed_abs, tag = 'smem constant byte address 0x4 - core index']
  #allocation1 [shape = 'u32[72,128]{1,0:T(1,128)}', space=vmem, size = 0x9000, scoped, tag = 'internal scratch']
  %s0 = inlined_call_operand.vmem [shape: f32[800,256], index: 0, kind: input, shape index: {}]
  %s1 = inlined_call_operand.vmem [shape: f32[256,32], index: 1, kind: input, shape index: {}]
  %s2 = inlined_call_operand.vmem [shape: f32[1,32], index: 2, kind: input, shape index: {}]
  %s3 = inlined_call_operand.vmem [shape: f32[800,32], index: 3, kind: output, shape index: {}]
  %s4 = sld [smem:[#allocation0]]
  $region22: #{cnn_policy_forward.4} parent=0
    _
  %s6 = ssub.s32 1, %s4
  %s7 = scalar_select 0, %s6, %s4
  // Predicated region
  $region2: #{cnn_policy_forward.4} parent=0 // pred_check
    _
  $region3: #{cnn_policy_forward.4} parent=0 // pred_check_branch
    %9 = sbr.rel (0) target = $region5
  $region4: #{cnn_policy_forward.4} parent=0 // pred_region
    _
  $region5: #{cnn_policy_forward.4} parent=0 // pred_fallthru
    _
  // Predicated region
  $region6: #{cnn_policy_forward.4} parent=0 // pred_check
    _
  $region7: #{cnn_policy_forward.4} parent=0 // pred_check_branch
    %11 = sbr.rel (0) target = $region9
  $region8: #{cnn_policy_forward.4} parent=0 // pred_region
    _
  $region9: #{cnn_policy_forward.4} parent=0 // pred_fallthru
    _
  // Predicated region
  $region10: #{cnn_policy_forward.4} parent=0 // pred_check
    _
  $region11: #{cnn_policy_forward.4} parent=0 // pred_check_branch
    %13 = sbr.rel (0) target = $region13
  $region12: #{cnn_policy_forward.4} parent=0 // pred_region
    _
  $region13: #{cnn_policy_forward.4} parent=0 // pred_fallthru
    _
  %v14 = vld [vmem:[%s0] sm:$0xff]
  %v15 = vld [vmem:[%s0 + $0x8] sm:$0xff]
  %v16 = vld [vmem:[%s0 + $0x10] sm:$0xff]
  %v17 = vld [vmem:[%s0 + $0x18] sm:$0xff]
  %v18 = vld [vmem:[%s0 + $0x20] sm:$0xff]
  %v19 = vld [vmem:[%s0 + $0x28] sm:$0xff]
  %v20 = vld [vmem:[%s0 + $0x30] sm:$0xff]
  %v21 = vld [vmem:[%s0 + $0x38] sm:$0xff]
  %v22 = vld [vmem:[%s0 + $0x40] sm:$0xff]
  %v23 = vld [vmem:[%s0 + $0x48] sm:$0xff]
  %v24 = vld [vmem:[%s0 + $0x50] sm:$0xff]
  %v25 = vld [vmem:[%s0 + $0x58] sm:$0xff]
  %v26 = vld [vmem:[%s0 + $0x60] sm:$0xff]
  %v27 = vld [vmem:[%s0 + $0x68] sm:$0xff]
  %v28 = vld [vmem:[%s0 + $0x70] sm:$0xff]
  %v29 = vld [vmem:[%s0 + $0x78] sm:$0xff]
  %v30 = vld [vmem:[%s0 + $0x80] sm:$0xff]
  %v31 = vld [vmem:[%s0 + $0x88] sm:$0xff]
  %v32 = vld [vmem:[%s0 + $0x90] sm:$0xff]
  %v33 = vld [vmem:[%s0 + $0x98] sm:$0xff]
  %v34 = vld [vmem:[%s0 + $0xa0] sm:$0xff]
  %v35 = vld [vmem:[%s0 + $0xa8] sm:$0xff]
  %v36 = vld [vmem:[%s0 + $0xb0] sm:$0xff]
  %v37 = vld [vmem:[%s0 + $0xb8] sm:$0xff]
  %v38 = vld [vmem:[%s0 + $0xc0] sm:$0xff]
  %v39 = vld [vmem:[%s0 + $0xc8] sm:$0xff]
  %v40 = vld [vmem:[%s0 + $0xd0] sm:$0xff]
  %v41 = vld [vmem:[%s0 + $0xd8] sm:$0xff]
  %v42 = vld [vmem:[%s0 + $0xe0] sm:$0xff]
  %v43 = vld [vmem:[%s0 + $0xe8] sm:$0xff]
  %v44 = vld [vmem:[%s0 + $0xf0] sm:$0xff]
  %v45 = vld [vmem:[%s0 + $0xf8] sm:$0xff]
  %v46 = vld [vmem:[%s0 + $0x100] sm:$0xff]
  %v47 = vld [vmem:[%s0 + $0x108] sm:$0xff]
  %v48 = vld [vmem:[%s0 + $0x110] sm:$0xff]
  %v49 = vld [vmem:[%s0 + $0x118] sm:$0xff]
  %v50 = vld [vmem:[%s0 + $0x120] sm:$0xff]
  %v51 = vld [vmem:[%s0 + $0x128] sm:$0xff]
  %v52 = vld [vmem:[%s0 + $0x130] sm:$0xff]
  %v53 = vld [vmem:[%s0 + $0x138] sm:$0xff]
  %v54 = vld [vmem:[%s0 + $0x140] sm:$0xff]
  %v55 = vld [vmem:[%s0 + $0x148] sm:$0xff]
  %v56 = vld [vmem:[%s0 + $0x150] sm:$0xff]
  %v57 = vld [vmem:[%s0 + $0x158] sm:$0xff]
  %v58 = vld [vmem:[%s0 + $0x160] sm:$0xff]
  %v59 = vld [vmem:[%s0 + $0x168] sm:$0xff]
  %v60 = vld [vmem:[%s0 + $0x170] sm:$0xff]
  %v61 = vld [vmem:[%s0 + $0x178] sm:$0xff]
  %v62 = vld [vmem:[%s0 + $0x180] sm:$0xff]
  %v63 = vld [vmem:[%s0 + $0x188] sm:$0xff]
  %v64 = vld [vmem:[%s0 + $0x190] sm:$0xff]
  %v65 = vld [vmem:[%s0 + $0x198] sm:$0xff]
  %v66 = vld [vmem:[%s0 + $0x1a0] sm:$0xff]
  %v67 = vld [vmem:[%s0 + $0x1a8] sm:$0xff]
  %v68 = vld [vmem:[%s0 + $0x1b0] sm:$0xff]
  %v69 = vld [vmem:[%s0 + $0x1b8] sm:$0xff]
  %v70 = vld [vmem:[%s0 + $0x1c0] sm:$0xff]
  %v71 = vld [vmem:[%s0 + $0x1c8] sm:$0xff]
  %v72 = vld [vmem:[%s0 + $0x1d0] sm:$0xff]
  %v73 = vld [vmem:[%s0 + $0x1d8] sm:$0xff]
  %v74 = vld [vmem:[%s0 + $0x1e0] sm:$0xff]
  %v75 = vld [vmem:[%s0 + $0x1e8] sm:$0xff]
  %v76 = vld [vmem:[%s0 + $0x1f0] sm:$0xff]
  %v77 = vld [vmem:[%s0 + $0x1f8] sm:$0xff]
  %v78 = vld [vmem:[%s0 + $0x200] sm:$0xff]
  %v79 = vld [vmem:[%s0 + $0x208] sm:$0xff]
  %v80 = vld [vmem:[%s0 + $0x210] sm:$0xff]
  %v81 = vld [vmem:[%s0 + $0x218] sm:$0xff]
  %v82 = vld [vmem:[%s0 + $0x220] sm:$0xff]
  %v83 = vld [vmem:[%s0 + $0x228] sm:$0xff]
  %v84 = vld [vmem:[%s0 + $0x230] sm:$0xff]
  %v85 = vld [vmem:[%s0 + $0x238] sm:$0xff]
  %v86 = vld [vmem:[%s0 + $0x240] sm:$0xff]
  %v87 = vld [vmem:[%s0 + $0x248] sm:$0xff]
  %v88 = vld [vmem:[%s0 + $0x250] sm:$0xff]
  %v89 = vld [vmem:[%s0 + $0x258] sm:$0xff]
  %v90 = vld [vmem:[%s0 + $0x260] sm:$0xff]
  %v91 = vld [vmem:[%s0 + $0x268] sm:$0xff]
  %v92 = vld [vmem:[%s0 + $0x270] sm:$0xff]
  %v93 = vld [vmem:[%s0 + $0x278] sm:$0xff]
  %v94 = vld [vmem:[%s0 + $0x280] sm:$0xff]
  %v95 = vld [vmem:[%s0 + $0x288] sm:$0xff]
  %v96 = vld [vmem:[%s0 + $0x290] sm:$0xff]
  %v97 = vld [vmem:[%s0 + $0x298] sm:$0xff]
  %v98 = vld [vmem:[%s0 + $0x2a0] sm:$0xff]
  %v99 = vld [vmem:[%s0 + $0x2a8] sm:$0xff]
  %v100 = vld [vmem:[%s0 + $0x2b0] sm:$0xff]
  %v101 = vld [vmem:[%s0 + $0x2b8] sm:$0xff]
  %v102 = vld [vmem:[%s0 + $0x2c0] sm:$0xff]
  %v103 = vld [vmem:[%s0 + $0x2c8] sm:$0xff]
  %v104 = vld [vmem:[%s0 + $0x2d0] sm:$0xff]
  %v105 = vld [vmem:[%s0 + $0x2d8] sm:$0xff]
  %v106 = vld [vmem:[%s0 + $0x2e0] sm:$0xff]
  %v107 = vld [vmem:[%s0 + $0x2e8] sm:$0xff]
  %v108 = vld [vmem:[%s0 + $0x2f0] sm:$0xff]
  %v109 = vld [vmem:[%s0 + $0x2f8] sm:$0xff]
  %v110 = vld [vmem:[%s0 + $0x300] sm:$0xff]
  %v111 = vld [vmem:[%s0 + $0x308] sm:$0xff]
  %v112 = vld [vmem:[%s0 + $0x310] sm:$0xff]
  %v113 = vld [vmem:[%s0 + $0x318] sm:$0xff]
  %v114 = vld [vmem:[%s0 + $0x320] sm:$0xff]
  %v115 = vld [vmem:[%s0 + $0x328] sm:$0xff]
  %v116 = vld [vmem:[%s0 + $0x330] sm:$0xff]
  %v117 = vld [vmem:[%s0 + $0x338] sm:$0xff]
  %v118 = vld [vmem:[%s0 + $0x340] sm:$0xff]
  %v119 = vld [vmem:[%s0 + $0x348] sm:$0xff]
  %v120 = vld [vmem:[%s0 + $0x350] sm:$0xff]
  %v121 = vld [vmem:[%s0 + $0x358] sm:$0xff]
  %v122 = vld [vmem:[%s0 + $0x360] sm:$0xff]
  %v123 = vld [vmem:[%s0 + $0x368] sm:$0xff]
  %v124 = vld [vmem:[%s0 + $0x370] sm:$0xff]
  %v125 = vld [vmem:[%s0 + $0x378] sm:$0xff]
  %v126 = vld [vmem:[%s0 + $0x380] sm:$0xff]
  %v127 = vld [vmem:[%s0 + $0x388] sm:$0xff]
  %v128 = vld [vmem:[%s0 + $0x390] sm:$0xff]
  %v129 = vld [vmem:[%s0 + $0x398] sm:$0xff]
  %v130 = vld [vmem:[%s0 + $0x3a0] sm:$0xff]
  %v131 = vld [vmem:[%s0 + $0x3a8] sm:$0xff]
  %v132 = vld [vmem:[%s0 + $0x3b0] sm:$0xff]
  %v133 = vld [vmem:[%s0 + $0x3b8] sm:$0xff]
  %v134 = vld [vmem:[%s0 + $0x3c0] sm:$0xff]
  %v135 = vld [vmem:[%s0 + $0x3c8] sm:$0xff]
  %v136 = vld [vmem:[%s0 + $0x3d0] sm:$0xff]
  %v137 = vld [vmem:[%s0 + $0x3d8] sm:$0xff]
  %v138 = vld [vmem:[%s0 + $0x3e0] sm:$0xff]
  %v139 = vld [vmem:[%s0 + $0x3e8] sm:$0xff]
  %v140 = vld [vmem:[%s0 + $0x3f0] sm:$0xff]
  %v141 = vld [vmem:[%s0 + $0x3f8] sm:$0xff]
  %v142 = vld [vmem:[%s0 + $0x400] sm:$0xff]
  %v143 = vld [vmem:[%s0 + $0x408] sm:$0xff]
  %v144 = vld [vmem:[%s0 + $0x410] sm:$0xff]
  %v145 = vld [vmem:[%s0 + $0x418] sm:$0xff]
  %v146 = vld [vmem:[%s0 + $0x420] sm:$0xff]
  %v147 = vld [vmem:[%s0 + $0x428] sm:$0xff]
  %v148 = vld [vmem:[%s0 + $0x430] sm:$0xff]
  %v149 = vld [vmem:[%s0 + $0x438] sm:$0xff]
  %v150 = vld [vmem:[%s0 + $0x440] sm:$0xff]
  %v151 = vld [vmem:[%s0 + $0x448] sm:$0xff]
  %v152 = vld [vmem:[%s0 + $0x450] sm:$0xff]
  %v153 = vld [vmem:[%s0 + $0x458] sm:$0xff]
  %v154 = vld [vmem:[%s0 + $0x460] sm:$0xff]
  %v155 = vld [vmem:[%s0 + $0x468] sm:$0xff]
  %v156 = vld [vmem:[%s0 + $0x470] sm:$0xff]
  %v157 = vld [vmem:[%s0 + $0x478] sm:$0xff]
  %v158 = vld [vmem:[%s0 + $0x480] sm:$0xff]
  %v159 = vld [vmem:[%s0 + $0x488] sm:$0xff]
  %v160 = vld [vmem:[%s0 + $0x490] sm:$0xff]
  %v161 = vld [vmem:[%s0 + $0x498] sm:$0xff]
  %v162 = vld [vmem:[%s0 + $0x4a0] sm:$0xff]
  %v163 = vld [vmem:[%s0 + $0x4a8] sm:$0xff]
  %v164 = vld [vmem:[%s0 + $0x4b0] sm:$0xff]
  %v165 = vld [vmem:[%s0 + $0x4b8] sm:$0xff]
  %v166 = vld [vmem:[%s0 + $0x4c0] sm:$0xff]
  %v167 = vld [vmem:[%s0 + $0x4c8] sm:$0xff]
  %v168 = vld [vmem:[%s0 + $0x4d0] sm:$0xff]
  %v169 = vld [vmem:[%s0 + $0x4d8] sm:$0xff]
  %v170 = vld [vmem:[%s0 + $0x4e0] sm:$0xff]
  %v171 = vld [vmem:[%s0 + $0x4e8] sm:$0xff]
  %v172 = vld [vmem:[%s0 + $0x4f0] sm:$0xff]
  %v173 = vld [vmem:[%s0 + $0x4f8] sm:$0xff]
  %v174 = vld [vmem:[%s0 + $0x500] sm:$0xff]
  %v175 = vld [vmem:[%s0 + $0x508] sm:$0xff]
  %v176 = vld [vmem:[%s0 + $0x510] sm:$0xff]
  %v177 = vld [vmem:[%s0 + $0x518] sm:$0xff]
  %v178 = vld [vmem:[%s0 + $0x520] sm:$0xff]
  %v179 = vld [vmem:[%s0 + $0x528] sm:$0xff]
  %v180 = vld [vmem:[%s0 + $0x530] sm:$0xff]
  %v181 = vld [vmem:[%s0 + $0x538] sm:$0xff]
  %v182 = vld [vmem:[%s0 + $0x540] sm:$0xff]
  %v183 = vld [vmem:[%s0 + $0x548] sm:$0xff]
  %v184 = vld [vmem:[%s0 + $0x550] sm:$0xff]
  %v185 = vld [vmem:[%s0 + $0x558] sm:$0xff]
  %v186 = vld [vmem:[%s0 + $0x560] sm:$0xff]
  %v187 = vld [vmem:[%s0 + $0x568] sm:$0xff]
  %v188 = vld [vmem:[%s0 + $0x570] sm:$0xff]
  %v189 = vld [vmem:[%s0 + $0x578] sm:$0xff]
  %v190 = vld [vmem:[%s0 + $0x580] sm:$0xff]
  %v191 = vld [vmem:[%s0 + $0x588] sm:$0xff]
  %v192 = vld [vmem:[%s0 + $0x590] sm:$0xff]
  %v193 = vld [vmem:[%s0 + $0x598] sm:$0xff]
  %v194 = vld [vmem:[%s0 + $0x5a0] sm:$0xff]
  %v195 = vld [vmem:[%s0 + $0x5a8] sm:$0xff]
  %v196 = vld [vmem:[%s0 + $0x5b0] sm:$0xff]
  %v197 = vld [vmem:[%s0 + $0x5b8] sm:$0xff]
  %v198 = vld [vmem:[%s0 + $0x5c0] sm:$0xff]
  %v199 = vld [vmem:[%s0 + $0x5c8] sm:$0xff]
  %v200 = vld [vmem:[%s0 + $0x5d0] sm:$0xff]
  %v201 = vld [vmem:[%s0 + $0x5d8] sm:$0xff]
  %v202 = vld [vmem:[%s0 + $0x5e0] sm:$0xff]
  %v203 = vld [vmem:[%s0 + $0x5e8] sm:$0xff]
  %v204 = vld [vmem:[%s0 + $0x5f0] sm:$0xff]
  %v205 = vld [vmem:[%s0 + $0x5f8] sm:$0xff]
  %v206 = vld [vmem:[%s0 + $0x600] sm:$0xff]
  %v207 = vld [vmem:[%s0 + $0x608] sm:$0xff]
  %v208 = vld [vmem:[%s0 + $0x610] sm:$0xff]
  %v209 = vld [vmem:[%s0 + $0x618] sm:$0xff]
  %v210 = vld [vmem:[%s0 + $0x620] sm:$0xff]
  %v211 = vld [vmem:[%s0 + $0x628] sm:$0xff]
  %v212 = vld [vmem:[%s0 + $0x630] sm:$0xff]
  %v213 = vld [vmem:[%s0 + $0x638] sm:$0xff]
  %v214 = vld [vmem:[%s1] sm:$0xff]
  %v215 = vld [vmem:[%s1 + $0x8] sm:$0xff]
  %v216 = vld [vmem:[%s1 + $0x10] sm:$0xff]
  %v217 = vld [vmem:[%s1 + $0x18] sm:$0xff]
  %v218 = vld [vmem:[%s1 + $0x20] sm:$0xff]
  %v219 = vld [vmem:[%s1 + $0x28] sm:$0xff]
  %v220 = vld [vmem:[%s1 + $0x30] sm:$0xff]
  %v221 = vld [vmem:[%s1 + $0x38] sm:$0xff]
  %v222 = vld [vmem:[%s1 + $0x40] sm:$0xff]
  %v223 = vld [vmem:[%s1 + $0x48] sm:$0xff]
  %v224 = vld [vmem:[%s1 + $0x50] sm:$0xff]
  %v225 = vld [vmem:[%s1 + $0x58] sm:$0xff]
  %v226 = vld [vmem:[%s1 + $0x60] sm:$0xff]
  %v227 = vld [vmem:[%s1 + $0x68] sm:$0xff]
  %v228 = vld [vmem:[%s1 + $0x70] sm:$0xff]
  %v229 = vld [vmem:[%s1 + $0x78] sm:$0xff]
  %v230 = vld [vmem:[%s1 + $0x80] sm:$0xff]
  %v231 = vld [vmem:[%s1 + $0x88] sm:$0xff]
  %v232 = vld [vmem:[%s1 + $0x90] sm:$0xff]
  %v233 = vld [vmem:[%s1 + $0x98] sm:$0xff]
  %v234 = vld [vmem:[%s1 + $0xa0] sm:$0xff]
  %v235 = vld [vmem:[%s1 + $0xa8] sm:$0xff]
  %v236 = vld [vmem:[%s1 + $0xb0] sm:$0xff]
  %v237 = vld [vmem:[%s1 + $0xb8] sm:$0xff]
  %v238 = vld [vmem:[%s1 + $0xc0] sm:$0xff]
  %v239 = vld [vmem:[%s1 + $0xc8] sm:$0xff]
  %v240 = vld [vmem:[%s1 + $0xd0] sm:$0xff]
  %v241 = vld [vmem:[%s1 + $0xd8] sm:$0xff]
  %v242 = vld [vmem:[%s1 + $0xe0] sm:$0xff]
  %v243 = vld [vmem:[%s1 + $0xe8] sm:$0xff]
  %v244 = vld [vmem:[%s1 + $0xf0] sm:$0xff]
  %v245 = vld [vmem:[%s1 + $0xf8] sm:$0xff]
  %v246 = vld [vmem:[%s2] sm:$0x1]
  %v248 = vperm.slane %v246, 0
  %250 = vmatpush.msra.mxu0 %v229
  %251 = vmatpush.msra.mxu0 %v228
  %252 = vmatpush.msra.mxu0 %v227
  %253 = vmatpush.msra.mxu0 %v226
  %254 = vmatpush.msra.mxu0 %v225
  %255 = vmatpush.msra.mxu0 %v224
  %256 = vmatpush.msra.mxu0 %v223
  %257 = vmatpush.msra.mxu0 %v222
  %258 = vmatpush.msra.mxu0 %v221
  %259 = vmatpush.msra.mxu0 %v220
  %260 = vmatpush.msra.mxu0 %v219
  %261 = vmatpush.msra.mxu0 %v218
  %262 = vmatpush.msra.mxu0 %v217
  %263 = vmatpush.msra.mxu0 %v216
  %264 = vmatpush.msra.mxu0 %v215
  %265 = vmatpush.msra.mxu0 %v214
  %266 = vmatmul.f32.gmra.mxu0 %v14
  %v267 = vpop.f32.mrf.mxu0
  %v268 = vadd.f32 %v248, %v267
  %269 = vmatmul.f32.gmra.mxu0 %v16
  %v270 = vpop.f32.mrf.mxu0
  %v271 = vadd.f32 %v248, %v270
  %272 = vmatmul.f32.gmra.mxu0 %v18
  %v273 = vpop.f32.mrf.mxu0
  %v274 = vadd.f32 %v248, %v273
  %275 = vmatmul.f32.gmra.mxu0 %v20
  %v276 = vpop.f32.mrf.mxu0
  %v277 = vadd.f32 %v248, %v276
  %278 = vmatmul.f32.gmra.mxu0 %v22
  %v279 = vpop.f32.mrf.mxu0
  %v280 = vadd.f32 %v248, %v279
  %281 = vmatmul.f32.gmra.mxu0 %v24
  %v282 = vpop.f32.mrf.mxu0
  %v283 = vadd.f32 %v248, %v282
  %284 = vmatmul.f32.gmra.mxu0 %v26
  %v285 = vpop.f32.mrf.mxu0
  %v286 = vadd.f32 %v248, %v285
  %287 = vmatmul.f32.gmra.mxu0 %v28
  %v288 = vpop.f32.mrf.mxu0
  %v289 = vadd.f32 %v248, %v288
  %290 = vmatmul.f32.gmra.mxu0 %v30
  %v291 = vpop.f32.mrf.mxu0
  %v292 = vadd.f32 %v248, %v291
  %293 = vmatmul.f32.gmra.mxu0 %v32
  %v294 = vpop.f32.mrf.mxu0
  %v295 = vadd.f32 %v248, %v294
  %296 = vmatmul.f32.gmra.mxu0 %v34
  %v297 = vpop.f32.mrf.mxu0
  %v298 = vadd.f32 %v248, %v297
  %299 = vmatmul.f32.gmra.mxu0 %v36
  %v300 = vpop.f32.mrf.mxu0
  %v301 = vadd.f32 %v248, %v300
  %302 = vmatmul.f32.gmra.mxu0 %v38
  %v303 = vpop.f32.mrf.mxu0
  %v304 = vadd.f32 %v248, %v303
  %305 = vmatmul.f32.gmra.mxu0 %v40
  %v306 = vpop.f32.mrf.mxu0
  %v307 = vadd.f32 %v248, %v306
  %308 = vmatmul.f32.gmra.mxu0 %v42
  %v309 = vpop.f32.mrf.mxu0
  %v310 = vadd.f32 %v248, %v309
  %311 = vmatmul.f32.gmra.mxu0 %v44
  %v312 = vpop.f32.mrf.mxu0
  %v313 = vadd.f32 %v248, %v312
  %314 = vmatmul.f32.gmra.mxu0 %v46
  %v315 = vpop.f32.mrf.mxu0
  %v316 = vadd.f32 %v248, %v315
  %317 = vmatmul.f32.gmra.mxu0 %v48
  %v318 = vpop.f32.mrf.mxu0
  %v319 = vadd.f32 %v248, %v318
  %320 = vmatmul.f32.gmra.mxu0 %v50
  %v321 = vpop.f32.mrf.mxu0
  %v322 = vadd.f32 %v248, %v321
  %323 = vmatmul.f32.gmra.mxu0 %v52
  %v324 = vpop.f32.mrf.mxu0
  %v325 = vadd.f32 %v248, %v324
  %326 = vmatmul.f32.gmra.mxu0 %v54
  %v327 = vpop.f32.mrf.mxu0
  %v328 = vadd.f32 %v248, %v327
  %329 = vmatmul.f32.gmra.mxu0 %v56
  %v330 = vpop.f32.mrf.mxu0
  %v331 = vadd.f32 %v248, %v330
  %332 = vmatmul.f32.gmra.mxu0 %v58
  %v333 = vpop.f32.mrf.mxu0
  %v334 = vadd.f32 %v248, %v333
  %335 = vmatmul.f32.gmra.mxu0 %v60
  %v336 = vpop.f32.mrf.mxu0
  %v337 = vadd.f32 %v248, %v336
  %338 = vmatmul.f32.gmra.mxu0 %v62
  %v339 = vpop.f32.mrf.mxu0
  %v340 = vadd.f32 %v248, %v339
  %341 = vmatmul.f32.gmra.mxu0 %v64
  %v342 = vpop.f32.mrf.mxu0
  %v343 = vadd.f32 %v248, %v342
  %344 = vmatmul.f32.gmra.mxu0 %v66
  %v345 = vpop.f32.mrf.mxu0
  %v346 = vadd.f32 %v248, %v345
  %347 = vmatmul.f32.gmra.mxu0 %v68
  %v348 = vpop.f32.mrf.mxu0
  %v349 = vadd.f32 %v248, %v348
  %350 = vmatmul.f32.gmra.mxu0 %v70
  %v351 = vpop.f32.mrf.mxu0
  %v352 = vadd.f32 %v248, %v351
  %353 = vmatmul.f32.gmra.mxu0 %v72
  %v354 = vpop.f32.mrf.mxu0
  %v355 = vadd.f32 %v248, %v354
  %356 = vmatmul.f32.gmra.mxu0 %v74
  %v357 = vpop.f32.mrf.mxu0
  %v358 = vadd.f32 %v248, %v357
  %359 = vmatmul.f32.gmra.mxu0 %v76
  %v360 = vpop.f32.mrf.mxu0
  %v361 = vadd.f32 %v248, %v360
  %362 = vmatmul.f32.gmra.mxu0 %v78
  %v363 = vpop.f32.mrf.mxu0
  %v364 = vadd.f32 %v248, %v363
  %365 = vmatmul.f32.gmra.mxu0 %v80
  %v366 = vpop.f32.mrf.mxu0
  %v367 = vadd.f32 %v248, %v366
  %368 = vmatmul.f32.gmra.mxu0 %v82
  %v369 = vpop.f32.mrf.mxu0
  %v370 = vadd.f32 %v248, %v369
  %371 = vmatmul.f32.gmra.mxu0 %v84
  %v372 = vpop.f32.mrf.mxu0
  %v373 = vadd.f32 %v248, %v372
  %374 = vmatmul.f32.gmra.mxu0 %v86
  %v375 = vpop.f32.mrf.mxu0
  %v376 = vadd.f32 %v248, %v375
  %377 = vmatmul.f32.gmra.mxu0 %v88
  %v378 = vpop.f32.mrf.mxu0
  %v379 = vadd.f32 %v248, %v378
  %380 = vmatmul.f32.gmra.mxu0 %v90
  %v381 = vpop.f32.mrf.mxu0
  %v382 = vadd.f32 %v248, %v381
  %383 = vmatmul.f32.gmra.mxu0 %v92
  %v384 = vpop.f32.mrf.mxu0
  %v385 = vadd.f32 %v248, %v384
  %386 = vmatmul.f32.gmra.mxu0 %v94
  %v387 = vpop.f32.mrf.mxu0
  %v388 = vadd.f32 %v248, %v387
  %389 = vmatmul.f32.gmra.mxu0 %v96
  %v390 = vpop.f32.mrf.mxu0
  %v391 = vadd.f32 %v248, %v390
  %392 = vmatmul.f32.gmra.mxu0 %v98
  %v393 = vpop.f32.mrf.mxu0
  %v394 = vadd.f32 %v248, %v393
  %395 = vmatmul.f32.gmra.mxu0 %v100
  %v396 = vpop.f32.mrf.mxu0
  %v397 = vadd.f32 %v248, %v396
  %398 = vmatmul.f32.gmra.mxu0 %v102
  %v399 = vpop.f32.mrf.mxu0
  %v400 = vadd.f32 %v248, %v399
  %401 = vmatmul.f32.gmra.mxu0 %v104
  %v402 = vpop.f32.mrf.mxu0
  %v403 = vadd.f32 %v248, %v402
  %404 = vmatmul.f32.gmra.mxu0 %v106
  %v405 = vpop.f32.mrf.mxu0
  %v406 = vadd.f32 %v248, %v405
  %407 = vmatmul.f32.gmra.mxu0 %v108
  %v408 = vpop.f32.mrf.mxu0
  %v409 = vadd.f32 %v248, %v408
  %410 = vmatmul.f32.gmra.mxu0 %v110
  %v411 = vpop.f32.mrf.mxu0
  %v412 = vadd.f32 %v248, %v411
  %413 = vmatmul.f32.gmra.mxu0 %v112
  %v414 = vpop.f32.mrf.mxu0
  %v415 = vadd.f32 %v248, %v414
  %416 = vmatmul.f32.gmra.mxu0 %v114
  %v417 = vpop.f32.mrf.mxu0
  %v418 = vadd.f32 %v248, %v417
  %419 = vmatmul.f32.gmra.mxu0 %v116
  %v420 = vpop.f32.mrf.mxu0
  %v421 = vadd.f32 %v248, %v420
  %422 = vmatmul.f32.gmra.mxu0 %v118
  %v423 = vpop.f32.mrf.mxu0
  %v424 = vadd.f32 %v248, %v423
  %425 = vmatmul.f32.gmra.mxu0 %v120
  %v426 = vpop.f32.mrf.mxu0
  %v427 = vadd.f32 %v248, %v426
  %428 = vmatmul.f32.gmra.mxu0 %v122
  %v429 = vpop.f32.mrf.mxu0
  %v430 = vadd.f32 %v248, %v429
  %431 = vmatmul.f32.gmra.mxu0 %v124
  %v432 = vpop.f32.mrf.mxu0
  %v433 = vadd.f32 %v248, %v432
  %434 = vmatmul.f32.gmra.mxu0 %v126
  %v435 = vpop.f32.mrf.mxu0
  %v436 = vadd.f32 %v248, %v435
  %437 = vmatmul.f32.gmra.mxu0 %v128
  %v438 = vpop.f32.mrf.mxu0
  %v439 = vadd.f32 %v248, %v438
  %440 = vmatmul.f32.gmra.mxu0 %v130
  %v441 = vpop.f32.mrf.mxu0
  %v442 = vadd.f32 %v248, %v441
  %443 = vmatmul.f32.gmra.mxu0 %v132
  %v444 = vpop.f32.mrf.mxu0
  %v445 = vadd.f32 %v248, %v444
  %446 = vmatmul.f32.gmra.mxu0 %v134
  %v447 = vpop.f32.mrf.mxu0
  %v448 = vadd.f32 %v248, %v447
  %449 = vmatmul.f32.gmra.mxu0 %v136
  %v450 = vpop.f32.mrf.mxu0
  %v451 = vadd.f32 %v248, %v450
  %452 = vmatmul.f32.gmra.mxu0 %v138
  %v453 = vpop.f32.mrf.mxu0
  %v454 = vadd.f32 %v248, %v453
  %455 = vmatmul.f32.gmra.mxu0 %v140
  %v456 = vpop.f32.mrf.mxu0
  %v457 = vadd.f32 %v248, %v456
  %458 = vmatmul.f32.gmra.mxu0 %v142
  %v459 = vpop.f32.mrf.mxu0
  %v460 = vadd.f32 %v248, %v459
  %461 = vmatmul.f32.gmra.mxu0 %v144
  %v462 = vpop.f32.mrf.mxu0
  %v463 = vadd.f32 %v248, %v462
  %464 = vmatmul.f32.gmra.mxu0 %v146
  %v465 = vpop.f32.mrf.mxu0
  %v466 = vadd.f32 %v248, %v465
  %467 = vmatmul.f32.gmra.mxu0 %v148
  %v468 = vpop.f32.mrf.mxu0
  %v469 = vadd.f32 %v248, %v468
  %470 = vmatmul.f32.gmra.mxu0 %v150
  %v471 = vpop.f32.mrf.mxu0
  %v472 = vadd.f32 %v248, %v471
  %473 = vmatmul.f32.gmra.mxu0 %v152
  %v474 = vpop.f32.mrf.mxu0
  %v475 = vadd.f32 %v248, %v474
  %476 = vmatmul.f32.gmra.mxu0 %v154
  %v477 = vpop.f32.mrf.mxu0
  %v478 = vadd.f32 %v248, %v477
  %479 = vmatmul.f32.gmra.mxu0 %v156
  %v480 = vpop.f32.mrf.mxu0
  %v481 = vadd.f32 %v248, %v480
  %482 = vmatmul.f32.gmra.mxu0 %v158
  %v483 = vpop.f32.mrf.mxu0
  %v484 = vadd.f32 %v248, %v483
  %485 = vmatmul.f32.gmra.mxu0 %v160
  %v486 = vpop.f32.mrf.mxu0
  %v487 = vadd.f32 %v248, %v486
  %488 = vmatmul.f32.gmra.mxu0 %v162
  %v489 = vpop.f32.mrf.mxu0
  %v490 = vadd.f32 %v248, %v489
  %491 = vmatmul.f32.gmra.mxu0 %v164
  %v492 = vpop.f32.mrf.mxu0
  %v493 = vadd.f32 %v248, %v492
  %494 = vmatmul.f32.gmra.mxu0 %v166
  %v495 = vpop.f32.mrf.mxu0
  %v496 = vadd.f32 %v248, %v495
  %497 = vmatmul.f32.gmra.mxu0 %v168
  %v498 = vpop.f32.mrf.mxu0
  %v499 = vadd.f32 %v248, %v498
  %500 = vmatmul.f32.gmra.mxu0 %v170
  %v501 = vpop.f32.mrf.mxu0
  %v502 = vadd.f32 %v248, %v501
  %503 = vmatmul.f32.gmra.mxu0 %v172
  %v504 = vpop.f32.mrf.mxu0
  %v505 = vadd.f32 %v248, %v504
  %506 = vmatmul.f32.gmra.mxu0 %v174
  %v507 = vpop.f32.mrf.mxu0
  %v508 = vadd.f32 %v248, %v507
  %509 = vmatmul.f32.gmra.mxu0 %v176
  %v510 = vpop.f32.mrf.mxu0
  %v511 = vadd.f32 %v248, %v510
  %512 = vmatmul.f32.gmra.mxu0 %v178
  %v513 = vpop.f32.mrf.mxu0
  %v514 = vadd.f32 %v248, %v513
  %515 = vmatmul.f32.gmra.mxu0 %v180
  %v516 = vpop.f32.mrf.mxu0
  %v517 = vadd.f32 %v248, %v516
  %518 = vmatmul.f32.gmra.mxu0 %v182
  %v519 = vpop.f32.mrf.mxu0
  %v520 = vadd.f32 %v248, %v519
  %521 = vmatmul.f32.gmra.mxu0 %v184
  %v522 = vpop.f32.mrf.mxu0
  %v523 = vadd.f32 %v248, %v522
  %524 = vmatmul.f32.gmra.mxu0 %v186
  %v525 = vpop.f32.mrf.mxu0
  %v526 = vadd.f32 %v248, %v525
  %527 = vmatmul.f32.gmra.mxu0 %v188
  %v528 = vpop.f32.mrf.mxu0
  %v529 = vadd.f32 %v248, %v528
  %530 = vmatmul.f32.gmra.mxu0 %v190
  %v531 = vpop.f32.mrf.mxu0
  %v532 = vadd.f32 %v248, %v531
  %533 = vmatmul.f32.gmra.mxu0 %v192
  %v534 = vpop.f32.mrf.mxu0
  %v535 = vadd.f32 %v248, %v534
  %536 = vmatmul.f32.gmra.mxu0 %v194
  %v537 = vpop.f32.mrf.mxu0
  %v538 = vadd.f32 %v248, %v537
  %539 = vmatmul.f32.gmra.mxu0 %v196
  %v540 = vpop.f32.mrf.mxu0
  %v541 = vadd.f32 %v248, %v540
  %542 = vmatmul.f32.gmra.mxu0 %v198
  %v543 = vpop.f32.mrf.mxu0
  %v544 = vadd.f32 %v248, %v543
  %545 = vmatmul.f32.gmra.mxu0 %v200
  %v546 = vpop.f32.mrf.mxu0
  %v547 = vadd.f32 %v248, %v546
  %548 = vmatmul.f32.gmra.mxu0 %v202
  %v549 = vpop.f32.mrf.mxu0
  %v550 = vadd.f32 %v248, %v549
  %551 = vmatmul.f32.gmra.mxu0 %v204
  %v552 = vpop.f32.mrf.mxu0
  %v553 = vadd.f32 %v248, %v552
  %554 = vmatmul.f32.gmra.mxu0 %v206
  %v555 = vpop.f32.mrf.mxu0
  %v556 = vadd.f32 %v248, %v555
  %557 = vmatmul.f32.gmra.mxu0 %v208
  %v558 = vpop.f32.mrf.mxu0
  %v559 = vadd.f32 %v248, %v558
  %560 = vmatmul.f32.gmra.mxu0 %v210
  %v561 = vpop.f32.mrf.mxu0
  %v562 = vadd.f32 %v248, %v561
  %563 = vmatmul.f32.gmra.mxu0 %v212
  %v564 = vpop.f32.mrf.mxu0
  %v565 = vadd.f32 %v248, %v564
  %566 = vdwg.mxu0
  %567 = vmatpush.msra.mxu0 %v245
  %568 = vmatpush.msra.mxu0 %v244
  %569 = vmatpush.msra.mxu0 %v243
  %570 = vmatpush.msra.mxu0 %v242
  %571 = vmatpush.msra.mxu0 %v241
  %572 = vmatpush.msra.mxu0 %v240
  %573 = vmatpush.msra.mxu0 %v239
  %574 = vmatpush.msra.mxu0 %v238
  %575 = vmatpush.msra.mxu0 %v237
  %576 = vmatpush.msra.mxu0 %v236
  %577 = vmatpush.msra.mxu0 %v235
  %578 = vmatpush.msra.mxu0 %v234
  %579 = vmatpush.msra.mxu0 %v233
  %580 = vmatpush.msra.mxu0 %v232
  %581 = vmatpush.msra.mxu0 %v231
  %582 = vmatpush.msra.mxu0 %v230
  %583 = vmatmul.f32.gmra.mxu0 %v15
  %v584 = vpop.f32.mrf.mxu0
  %v585 = vadd.f32 %v268, %v584
  %586 = vmatmul.f32.gmra.mxu0 %v17
  %v587 = vpop.f32.mrf.mxu0
  %v588 = vadd.f32 %v271, %v587
  %589 = vmatmul.f32.gmra.mxu0 %v19
  %v590 = vpop.f32.mrf.mxu0
  %v591 = vadd.f32 %v274, %v590
  %592 = vmatmul.f32.gmra.mxu0 %v21
  %v593 = vpop.f32.mrf.mxu0
  %v594 = vadd.f32 %v277, %v593
  %595 = vmatmul.f32.gmra.mxu0 %v23
  %v596 = vpop.f32.mrf.mxu0
  %v597 = vadd.f32 %v280, %v596
  %598 = vmatmul.f32.gmra.mxu0 %v25
  %v599 = vpop.f32.mrf.mxu0
  %v600 = vadd.f32 %v283, %v599
  %601 = vmatmul.f32.gmra.mxu0 %v27
  %v602 = vpop.f32.mrf.mxu0
  %v603 = vadd.f32 %v286, %v602
  %604 = vmatmul.f32.gmra.mxu0 %v29
  %v605 = vpop.f32.mrf.mxu0
  %v606 = vadd.f32 %v289, %v605
  %607 = vmatmul.f32.gmra.mxu0 %v31
  %v608 = vpop.f32.mrf.mxu0
  %v609 = vadd.f32 %v292, %v608
  %610 = vmatmul.f32.gmra.mxu0 %v33
  %v611 = vpop.f32.mrf.mxu0
  %v612 = vadd.f32 %v295, %v611
  %613 = vmatmul.f32.gmra.mxu0 %v35
  %v614 = vpop.f32.mrf.mxu0
  %v615 = vadd.f32 %v298, %v614
  %616 = vmatmul.f32.gmra.mxu0 %v37
  %v617 = vpop.f32.mrf.mxu0
  %v618 = vadd.f32 %v301, %v617
  %619 = vmatmul.f32.gmra.mxu0 %v39
  %v620 = vpop.f32.mrf.mxu0
  %v621 = vadd.f32 %v304, %v620
  %622 = vmatmul.f32.gmra.mxu0 %v41
  %v623 = vpop.f32.mrf.mxu0
  %v624 = vadd.f32 %v307, %v623
  %625 = vmatmul.f32.gmra.mxu0 %v43
  %v626 = vpop.f32.mrf.mxu0
  %v627 = vadd.f32 %v310, %v626
  %628 = vmatmul.f32.gmra.mxu0 %v45
  %v629 = vpop.f32.mrf.mxu0
  %v630 = vadd.f32 %v313, %v629
  %631 = vmatmul.f32.gmra.mxu0 %v47
  %v632 = vpop.f32.mrf.mxu0
  %v633 = vadd.f32 %v316, %v632
  %634 = vmatmul.f32.gmra.mxu0 %v49
  %v635 = vpop.f32.mrf.mxu0
  %v636 = vadd.f32 %v319, %v635
  %637 = vmatmul.f32.gmra.mxu0 %v51
  %v638 = vpop.f32.mrf.mxu0
  %v639 = vadd.f32 %v322, %v638
  %640 = vmatmul.f32.gmra.mxu0 %v53
  %v641 = vpop.f32.mrf.mxu0
  %v642 = vadd.f32 %v325, %v641
  %643 = vmatmul.f32.gmra.mxu0 %v55
  %v644 = vpop.f32.mrf.mxu0
  %v645 = vadd.f32 %v328, %v644
  %646 = vmatmul.f32.gmra.mxu0 %v57
  %v647 = vpop.f32.mrf.mxu0
  %v648 = vadd.f32 %v331, %v647
  %649 = vmatmul.f32.gmra.mxu0 %v59
  %v650 = vpop.f32.mrf.mxu0
  %v651 = vadd.f32 %v334, %v650
  %652 = vmatmul.f32.gmra.mxu0 %v61
  %v653 = vpop.f32.mrf.mxu0
  %v654 = vadd.f32 %v337, %v653
  %655 = vmatmul.f32.gmra.mxu0 %v63
  %v656 = vpop.f32.mrf.mxu0
  %v657 = vadd.f32 %v340, %v656
  %658 = vmatmul.f32.gmra.mxu0 %v65
  %v659 = vpop.f32.mrf.mxu0
  %v660 = vadd.f32 %v343, %v659
  %661 = vmatmul.f32.gmra.mxu0 %v67
  %v662 = vpop.f32.mrf.mxu0
  %v663 = vadd.f32 %v346, %v662
  %664 = vmatmul.f32.gmra.mxu0 %v69
  %v665 = vpop.f32.mrf.mxu0
  %v666 = vadd.f32 %v349, %v665
  %667 = vmatmul.f32.gmra.mxu0 %v71
  %v668 = vpop.f32.mrf.mxu0
  %v669 = vadd.f32 %v352, %v668
  %670 = vmatmul.f32.gmra.mxu0 %v73
  %v671 = vpop.f32.mrf.mxu0
  %v672 = vadd.f32 %v355, %v671
  %673 = vmatmul.f32.gmra.mxu0 %v75
  %v674 = vpop.f32.mrf.mxu0
  %v675 = vadd.f32 %v358, %v674
  %676 = vmatmul.f32.gmra.mxu0 %v77
  %v677 = vpop.f32.mrf.mxu0
  %v678 = vadd.f32 %v361, %v677
  %679 = vmatmul.f32.gmra.mxu0 %v79
  %v680 = vpop.f32.mrf.mxu0
  %v681 = vadd.f32 %v364, %v680
  %682 = vmatmul.f32.gmra.mxu0 %v81
  %v683 = vpop.f32.mrf.mxu0
  %v684 = vadd.f32 %v367, %v683
  %685 = vmatmul.f32.gmra.mxu0 %v83
  %v686 = vpop.f32.mrf.mxu0
  %v687 = vadd.f32 %v370, %v686
  %688 = vmatmul.f32.gmra.mxu0 %v85
  %v689 = vpop.f32.mrf.mxu0
  %v690 = vadd.f32 %v373, %v689
  %691 = vmatmul.f32.gmra.mxu0 %v87
  %v692 = vpop.f32.mrf.mxu0
  %v693 = vadd.f32 %v376, %v692
  %694 = vmatmul.f32.gmra.mxu0 %v89
  %v695 = vpop.f32.mrf.mxu0
  %v696 = vadd.f32 %v379, %v695
  %697 = vmatmul.f32.gmra.mxu0 %v91
  %v698 = vpop.f32.mrf.mxu0
  %v699 = vadd.f32 %v382, %v698
  %700 = vmatmul.f32.gmra.mxu0 %v93
  %v701 = vpop.f32.mrf.mxu0
  %v702 = vadd.f32 %v385, %v701
  %703 = vmatmul.f32.gmra.mxu0 %v95
  %v704 = vpop.f32.mrf.mxu0
  %v705 = vadd.f32 %v388, %v704
  %706 = vmatmul.f32.gmra.mxu0 %v97
  %v707 = vpop.f32.mrf.mxu0
  %v708 = vadd.f32 %v391, %v707
  %709 = vmatmul.f32.gmra.mxu0 %v99
  %v710 = vpop.f32.mrf.mxu0
  %v711 = vadd.f32 %v394, %v710
  %712 = vmatmul.f32.gmra.mxu0 %v101
  %v713 = vpop.f32.mrf.mxu0
  %v714 = vadd.f32 %v397, %v713
  %715 = vmatmul.f32.gmra.mxu0 %v103
  %v716 = vpop.f32.mrf.mxu0
  %v717 = vadd.f32 %v400, %v716
  %718 = vmatmul.f32.gmra.mxu0 %v105
  %v719 = vpop.f32.mrf.mxu0
  %v720 = vadd.f32 %v403, %v719
  %721 = vmatmul.f32.gmra.mxu0 %v107
  %v722 = vpop.f32.mrf.mxu0
  %v723 = vadd.f32 %v406, %v722
  %724 = vmatmul.f32.gmra.mxu0 %v109
  %v725 = vpop.f32.mrf.mxu0
  %v726 = vadd.f32 %v409, %v725
  %727 = vmatmul.f32.gmra.mxu0 %v111
  %v728 = vpop.f32.mrf.mxu0
  %v729 = vadd.f32 %v412, %v728
  %730 = vmatmul.f32.gmra.mxu0 %v113
  %v731 = vpop.f32.mrf.mxu0
  %v732 = vadd.f32 %v415, %v731
  %733 = vmatmul.f32.gmra.mxu0 %v115
  %v734 = vpop.f32.mrf.mxu0
  %v735 = vadd.f32 %v418, %v734
  %736 = vmatmul.f32.gmra.mxu0 %v117
  %v737 = vpop.f32.mrf.mxu0
  %v738 = vadd.f32 %v421, %v737
  %739 = vmatmul.f32.gmra.mxu0 %v119
  %v740 = vpop.f32.mrf.mxu0
  %v741 = vadd.f32 %v424, %v740
  %742 = vmatmul.f32.gmra.mxu0 %v121
  %v743 = vpop.f32.mrf.mxu0
  %v744 = vadd.f32 %v427, %v743
  %745 = vmatmul.f32.gmra.mxu0 %v123
  %v746 = vpop.f32.mrf.mxu0
  %v747 = vadd.f32 %v430, %v746
  %748 = vmatmul.f32.gmra.mxu0 %v125
  %v749 = vpop.f32.mrf.mxu0
  %v750 = vadd.f32 %v433, %v749
  %751 = vmatmul.f32.gmra.mxu0 %v127
  %v752 = vpop.f32.mrf.mxu0
  %v753 = vadd.f32 %v436, %v752
  %754 = vmatmul.f32.gmra.mxu0 %v129
  %v755 = vpop.f32.mrf.mxu0
  %v756 = vadd.f32 %v439, %v755
  %757 = vmatmul.f32.gmra.mxu0 %v131
  %v758 = vpop.f32.mrf.mxu0
  %v759 = vadd.f32 %v442, %v758
  %760 = vmatmul.f32.gmra.mxu0 %v133
  %v761 = vpop.f32.mrf.mxu0
  %v762 = vadd.f32 %v445, %v761
  %763 = vmatmul.f32.gmra.mxu0 %v135
  %v764 = vpop.f32.mrf.mxu0
  %v765 = vadd.f32 %v448, %v764
  %766 = vmatmul.f32.gmra.mxu0 %v137
  %v767 = vpop.f32.mrf.mxu0
  %v768 = vadd.f32 %v451, %v767
  %769 = vmatmul.f32.gmra.mxu0 %v139
  %v770 = vpop.f32.mrf.mxu0
  %v771 = vadd.f32 %v454, %v770
  %772 = vmatmul.f32.gmra.mxu0 %v141
  %v773 = vpop.f32.mrf.mxu0
  %v774 = vadd.f32 %v457, %v773
  %775 = vmatmul.f32.gmra.mxu0 %v143
  %v776 = vpop.f32.mrf.mxu0
  %v777 = vadd.f32 %v460, %v776
  %778 = vmatmul.f32.gmra.mxu0 %v145
  %v779 = vpop.f32.mrf.mxu0
  %v780 = vadd.f32 %v463, %v779
  %781 = vmatmul.f32.gmra.mxu0 %v147
  %v782 = vpop.f32.mrf.mxu0
  %v783 = vadd.f32 %v466, %v782
  %784 = vmatmul.f32.gmra.mxu0 %v149
  %v785 = vpop.f32.mrf.mxu0
  %v786 = vadd.f32 %v469, %v785
  %787 = vmatmul.f32.gmra.mxu0 %v151
  %v788 = vpop.f32.mrf.mxu0
  %v789 = vadd.f32 %v472, %v788
  %790 = vmatmul.f32.gmra.mxu0 %v153
  %v791 = vpop.f32.mrf.mxu0
  %v792 = vadd.f32 %v475, %v791
  %793 = vmatmul.f32.gmra.mxu0 %v155
  %v794 = vpop.f32.mrf.mxu0
  %v795 = vadd.f32 %v478, %v794
  %796 = vmatmul.f32.gmra.mxu0 %v157
  %v797 = vpop.f32.mrf.mxu0
  %v798 = vadd.f32 %v481, %v797
  %799 = vmatmul.f32.gmra.mxu0 %v159
  %v800 = vpop.f32.mrf.mxu0
  %v801 = vadd.f32 %v484, %v800
  %802 = vmatmul.f32.gmra.mxu0 %v161
  %v803 = vpop.f32.mrf.mxu0
  %v804 = vadd.f32 %v487, %v803
  %805 = vmatmul.f32.gmra.mxu0 %v163
  %v806 = vpop.f32.mrf.mxu0
  %v807 = vadd.f32 %v490, %v806
  %808 = vmatmul.f32.gmra.mxu0 %v165
  %v809 = vpop.f32.mrf.mxu0
  %v810 = vadd.f32 %v493, %v809
  %811 = vmatmul.f32.gmra.mxu0 %v167
  %v812 = vpop.f32.mrf.mxu0
  %v813 = vadd.f32 %v496, %v812
  %814 = vmatmul.f32.gmra.mxu0 %v169
  %v815 = vpop.f32.mrf.mxu0
  %v816 = vadd.f32 %v499, %v815
  %817 = vmatmul.f32.gmra.mxu0 %v171
  %v818 = vpop.f32.mrf.mxu0
  %v819 = vadd.f32 %v502, %v818
  %820 = vmatmul.f32.gmra.mxu0 %v173
  %v821 = vpop.f32.mrf.mxu0
  %v822 = vadd.f32 %v505, %v821
  %823 = vmatmul.f32.gmra.mxu0 %v175
  %v824 = vpop.f32.mrf.mxu0
  %v825 = vadd.f32 %v508, %v824
  %826 = vmatmul.f32.gmra.mxu0 %v177
  %v827 = vpop.f32.mrf.mxu0
  %v828 = vadd.f32 %v511, %v827
  %829 = vmatmul.f32.gmra.mxu0 %v179
  %v830 = vpop.f32.mrf.mxu0
  %v831 = vadd.f32 %v514, %v830
  %832 = vmatmul.f32.gmra.mxu0 %v181
  %v833 = vpop.f32.mrf.mxu0
  %v834 = vadd.f32 %v517, %v833
  %835 = vmatmul.f32.gmra.mxu0 %v183
  %v836 = vpop.f32.mrf.mxu0
  %v837 = vadd.f32 %v520, %v836
  %838 = vmatmul.f32.gmra.mxu0 %v185
  %v839 = vpop.f32.mrf.mxu0
  %v840 = vadd.f32 %v523, %v839
  %841 = vmatmul.f32.gmra.mxu0 %v187
  %v842 = vpop.f32.mrf.mxu0
  %v843 = vadd.f32 %v526, %v842
  %844 = vmatmul.f32.gmra.mxu0 %v189
  %v845 = vpop.f32.mrf.mxu0
  %v846 = vadd.f32 %v529, %v845
  %847 = vmatmul.f32.gmra.mxu0 %v191
  %v848 = vpop.f32.mrf.mxu0
  %v849 = vadd.f32 %v532, %v848
  %850 = vmatmul.f32.gmra.mxu0 %v193
  %v851 = vpop.f32.mrf.mxu0
  %v852 = vadd.f32 %v535, %v851
  %853 = vmatmul.f32.gmra.mxu0 %v195
  %v854 = vpop.f32.mrf.mxu0
  %v855 = vadd.f32 %v538, %v854
  %856 = vmatmul.f32.gmra.mxu0 %v197
  %v857 = vpop.f32.mrf.mxu0
  %v858 = vadd.f32 %v541, %v857
  %859 = vmatmul.f32.gmra.mxu0 %v199
  %v860 = vpop.f32.mrf.mxu0
  %v861 = vadd.f32 %v544, %v860
  %862 = vmatmul.f32.gmra.mxu0 %v201
  %v863 = vpop.f32.mrf.mxu0
  %v864 = vadd.f32 %v547, %v863
  %865 = vmatmul.f32.gmra.mxu0 %v203
  %v866 = vpop.f32.mrf.mxu0
  %v867 = vadd.f32 %v550, %v866
  %868 = vmatmul.f32.gmra.mxu0 %v205
  %v869 = vpop.f32.mrf.mxu0
  %v870 = vadd.f32 %v553, %v869
  %871 = vmatmul.f32.gmra.mxu0 %v207
  %v872 = vpop.f32.mrf.mxu0
  %v873 = vadd.f32 %v556, %v872
  %874 = vmatmul.f32.gmra.mxu0 %v209
  %v875 = vpop.f32.mrf.mxu0
  %v876 = vadd.f32 %v559, %v875
  %877 = vmatmul.f32.gmra.mxu0 %v211
  %v878 = vpop.f32.mrf.mxu0
  %v879 = vadd.f32 %v562, %v878
  %880 = vmatmul.f32.gmra.mxu0 %v213
  %v881 = vpop.f32.mrf.mxu0
  %v882 = vadd.f32 %v565, %v881
  %883 = vdwg.mxu0
  %v884 = vmax.f32 %v585, 0.0
  %v885 = vmax.f32 %v588, 0.0
  %v886 = vmax.f32 %v591, 0.0
  %v887 = vmax.f32 %v594, 0.0
  %v888 = vmax.f32 %v597, 0.0
  %v889 = vmax.f32 %v600, 0.0
  %v890 = vmax.f32 %v603, 0.0
  %v891 = vmax.f32 %v606, 0.0
  %v892 = vmax.f32 %v609, 0.0
  %v893 = vmax.f32 %v612, 0.0
  %v894 = vmax.f32 %v615, 0.0
  %v895 = vmax.f32 %v618, 0.0
  %v896 = vmax.f32 %v621, 0.0
  %v897 = vmax.f32 %v624, 0.0
  %v898 = vmax.f32 %v627, 0.0
  %v899 = vmax.f32 %v630, 0.0
  %v900 = vmax.f32 %v633, 0.0
  %v901 = vmax.f32 %v636, 0.0
  %v902 = vmax.f32 %v639, 0.0
  %v903 = vmax.f32 %v642, 0.0
  %v904 = vmax.f32 %v645, 0.0
  %v905 = vmax.f32 %v648, 0.0
  %v906 = vmax.f32 %v651, 0.0
  %v907 = vmax.f32 %v654, 0.0
  %v908 = vmax.f32 %v657, 0.0
  %v909 = vmax.f32 %v660, 0.0
  %v910 = vmax.f32 %v663, 0.0
  %v911 = vmax.f32 %v666, 0.0
  %v912 = vmax.f32 %v669, 0.0
  %v913 = vmax.f32 %v672, 0.0
  %v914 = vmax.f32 %v675, 0.0
  %v915 = vmax.f32 %v678, 0.0
  %v916 = vmax.f32 %v681, 0.0
  %v917 = vmax.f32 %v684, 0.0
  %v918 = vmax.f32 %v687, 0.0
  %v919 = vmax.f32 %v690, 0.0
  %v920 = vmax.f32 %v693, 0.0
  %v921 = vmax.f32 %v696, 0.0
  %v922 = vmax.f32 %v699, 0.0
  %v923 = vmax.f32 %v702, 0.0
  %v924 = vmax.f32 %v705, 0.0
  %v925 = vmax.f32 %v708, 0.0
  %v926 = vmax.f32 %v711, 0.0
  %v927 = vmax.f32 %v714, 0.0
  %v928 = vmax.f32 %v717, 0.0
  %v929 = vmax.f32 %v720, 0.0
  %v930 = vmax.f32 %v723, 0.0
  %v931 = vmax.f32 %v726, 0.0
  %v932 = vmax.f32 %v729, 0.0
  %v933 = vmax.f32 %v732, 0.0
  %v934 = vmax.f32 %v735, 0.0
  %v935 = vmax.f32 %v738, 0.0
  %v936 = vmax.f32 %v741, 0.0
  %v937 = vmax.f32 %v744, 0.0
  %v938 = vmax.f32 %v747, 0.0
  %v939 = vmax.f32 %v750, 0.0
  %v940 = vmax.f32 %v753, 0.0
  %v941 = vmax.f32 %v756, 0.0
  %v942 = vmax.f32 %v759, 0.0
  %v943 = vmax.f32 %v762, 0.0
  %v944 = vmax.f32 %v765, 0.0
  %v945 = vmax.f32 %v768, 0.0
  %v946 = vmax.f32 %v771, 0.0
  %v947 = vmax.f32 %v774, 0.0
  %v948 = vmax.f32 %v777, 0.0
  %v949 = vmax.f32 %v780, 0.0
  %v950 = vmax.f32 %v783, 0.0
  %v951 = vmax.f32 %v786, 0.0
  %v952 = vmax.f32 %v789, 0.0
  %v953 = vmax.f32 %v792, 0.0
  %v954 = vmax.f32 %v795, 0.0
  %v955 = vmax.f32 %v798, 0.0
  %v956 = vmax.f32 %v801, 0.0
  %v957 = vmax.f32 %v804, 0.0
  %v958 = vmax.f32 %v807, 0.0
  %v959 = vmax.f32 %v810, 0.0
  %v960 = vmax.f32 %v813, 0.0
  %v961 = vmax.f32 %v816, 0.0
  %v962 = vmax.f32 %v819, 0.0
  %v963 = vmax.f32 %v822, 0.0
  %v964 = vmax.f32 %v825, 0.0
  %v965 = vmax.f32 %v828, 0.0
  %v966 = vmax.f32 %v831, 0.0
  %v967 = vmax.f32 %v834, 0.0
  %v968 = vmax.f32 %v837, 0.0
  %v969 = vmax.f32 %v840, 0.0
  %v970 = vmax.f32 %v843, 0.0
  %v971 = vmax.f32 %v846, 0.0
  %v972 = vmax.f32 %v849, 0.0
  %v973 = vmax.f32 %v852, 0.0
  %v974 = vmax.f32 %v855, 0.0
  %v975 = vmax.f32 %v858, 0.0
  %v976 = vmax.f32 %v861, 0.0
  %v977 = vmax.f32 %v864, 0.0
  %v978 = vmax.f32 %v867, 0.0
  %v979 = vmax.f32 %v870, 0.0
  %v980 = vmax.f32 %v873, 0.0
  %v981 = vmax.f32 %v876, 0.0
  %v982 = vmax.f32 %v879, 0.0
  %v983 = vmax.f32 %v882, 0.0
  %vm984 = vcmask 261120
  %985 = vst.msk [vmem:[%s3] sm:$0xff] %vm984, %v884
  %986 = vst.msk [vmem:[%s3 + $0x8] sm:$0xff] %vm984, %v885
  %987 = vst.msk [vmem:[%s3 + $0x10] sm:$0xff] %vm984, %v886
  %988 = vst.msk [vmem:[%s3 + $0x18] sm:$0xff] %vm984, %v887
  %989 = vst.msk [vmem:[%s3 + $0x20] sm:$0xff] %vm984, %v888
  %990 = vst.msk [vmem:[%s3 + $0x28] sm:$0xff] %vm984, %v889
  %991 = vst.msk [vmem:[%s3 + $0x30] sm:$0xff] %vm984, %v890
  %992 = vst.msk [vmem:[%s3 + $0x38] sm:$0xff] %vm984, %v891
  %993 = vst.msk [vmem:[%s3 + $0x40] sm:$0xff] %vm984, %v892
  %994 = vst.msk [vmem:[%s3 + $0x48] sm:$0xff] %vm984, %v893
  %995 = vst.msk [vmem:[%s3 + $0x50] sm:$0xff] %vm984, %v894
  %996 = vst.msk [vmem:[%s3 + $0x58] sm:$0xff] %vm984, %v895
  %997 = vst.msk [vmem:[%s3 + $0x60] sm:$0xff] %vm984, %v896
  %998 = vst.msk [vmem:[%s3 + $0x68] sm:$0xff] %vm984, %v897
  %999 = vst.msk [vmem:[%s3 + $0x70] sm:$0xff] %vm984, %v898
  %1000 = vst.msk [vmem:[%s3 + $0x78] sm:$0xff] %vm984, %v899
  %1001 = vst.msk [vmem:[%s3 + $0x80] sm:$0xff] %vm984, %v900
  %1002 = vst.msk [vmem:[%s3 + $0x88] sm:$0xff] %vm984, %v901
  %1003 = vst.msk [vmem:[%s3 + $0x90] sm:$0xff] %vm984, %v902
  %1004 = vst.msk [vmem:[%s3 + $0x98] sm:$0xff] %vm984, %v903
  %1005 = vst.msk [vmem:[%s3 + $0xa0] sm:$0xff] %vm984, %v904
  %1006 = vst.msk [vmem:[%s3 + $0xa8] sm:$0xff] %vm984, %v905
  %1007 = vst.msk [vmem:[%s3 + $0xb0] sm:$0xff] %vm984, %v906
  %1008 = vst.msk [vmem:[%s3 + $0xb8] sm:$0xff] %vm984, %v907
  %1009 = vst.msk [vmem:[%s3 + $0xc0] sm:$0xff] %vm984, %v908
  %1010 = vst.msk [vmem:[%s3 + $0xc8] sm:$0xff] %vm984, %v909
  %1011 = vst.msk [vmem:[%s3 + $0xd0] sm:$0xff] %vm984, %v910
  %1012 = vst.msk [vmem:[%s3 + $0xd8] sm:$0xff] %vm984, %v911
  %1013 = vst.msk [vmem:[%s3 + $0xe0] sm:$0xff] %vm984, %v912
  %1014 = vst.msk [vmem:[%s3 + $0xe8] sm:$0xff] %vm984, %v913
  %1015 = vst.msk [vmem:[%s3 + $0xf0] sm:$0xff] %vm984, %v914
  %1016 = vst.msk [vmem:[%s3 + $0xf8] sm:$0xff] %vm984, %v915
  %1017 = vst.msk [vmem:[%s3 + $0x100] sm:$0xff] %vm984, %v916
  %1018 = vst.msk [vmem:[%s3 + $0x108] sm:$0xff] %vm984, %v917
  %1019 = vst.msk [vmem:[%s3 + $0x110] sm:$0xff] %vm984, %v918
  %1020 = vst.msk [vmem:[%s3 + $0x118] sm:$0xff] %vm984, %v919
  %1021 = vst.msk [vmem:[%s3 + $0x120] sm:$0xff] %vm984, %v920
  %1022 = vst.msk [vmem:[%s3 + $0x128] sm:$0xff] %vm984, %v921
  %1023 = vst.msk [vmem:[%s3 + $0x130] sm:$0xff] %vm984, %v922
  %1024 = vst.msk [vmem:[%s3 + $0x138] sm:$0xff] %vm984, %v923
  %1025 = vst.msk [vmem:[%s3 + $0x140] sm:$0xff] %vm984, %v924
  %1026 = vst.msk [vmem:[%s3 + $0x148] sm:$0xff] %vm984, %v925
  %1027 = vst.msk [vmem:[%s3 + $0x150] sm:$0xff] %vm984, %v926
  %1028 = vst.msk [vmem:[%s3 + $0x158] sm:$0xff] %vm984, %v927
  %1029 = vst.msk [vmem:[%s3 + $0x160] sm:$0xff] %vm984, %v928
  %1030 = vst.msk [vmem:[%s3 + $0x168] sm:$0xff] %vm984, %v929
  %1031 = vst.msk [vmem:[%s3 + $0x170] sm:$0xff] %vm984, %v930
  %1032 = vst.msk [vmem:[%s3 + $0x178] sm:$0xff] %vm984, %v931
  %1033 = vst.msk [vmem:[%s3 + $0x180] sm:$0xff] %vm984, %v932
  %1034 = vst.msk [vmem:[%s3 + $0x188] sm:$0xff] %vm984, %v933
  %1035 = vst.msk [vmem:[%s3 + $0x190] sm:$0xff] %vm984, %v934
  %1036 = vst.msk [vmem:[%s3 + $0x198] sm:$0xff] %vm984, %v935
  %1037 = vst.msk [vmem:[%s3 + $0x1a0] sm:$0xff] %vm984, %v936
  %1038 = vst.msk [vmem:[%s3 + $0x1a8] sm:$0xff] %vm984, %v937
  %1039 = vst.msk [vmem:[%s3 + $0x1b0] sm:$0xff] %vm984, %v938
  %1040 = vst.msk [vmem:[%s3 + $0x1b8] sm:$0xff] %vm984, %v939
  %1041 = vst.msk [vmem:[%s3 + $0x1c0] sm:$0xff] %vm984, %v940
  %1042 = vst.msk [vmem:[%s3 + $0x1c8] sm:$0xff] %vm984, %v941
  %1043 = vst.msk [vmem:[%s3 + $0x1d0] sm:$0xff] %vm984, %v942
  %1044 = vst.msk [vmem:[%s3 + $0x1d8] sm:$0xff] %vm984, %v943
  %1045 = vst.msk [vmem:[%s3 + $0x1e0] sm:$0xff] %vm984, %v944
  %1046 = vst.msk [vmem:[%s3 + $0x1e8] sm:$0xff] %vm984, %v945
  %1047 = vst.msk [vmem:[%s3 + $0x1f0] sm:$0xff] %vm984, %v946
  %1048 = vst.msk [vmem:[%s3 + $0x1f8] sm:$0xff] %vm984, %v947
  %1049 = vst.msk [vmem:[%s3 + $0x200] sm:$0xff] %vm984, %v948
  %1050 = vst.msk [vmem:[%s3 + $0x208] sm:$0xff] %vm984, %v949
  %1051 = vst.msk [vmem:[%s3 + $0x210] sm:$0xff] %vm984, %v950
  %1052 = vst.msk [vmem:[%s3 + $0x218] sm:$0xff] %vm984, %v951
  %1053 = vst.msk [vmem:[%s3 + $0x220] sm:$0xff] %vm984, %v952
  %1054 = vst.msk [vmem:[%s3 + $0x228] sm:$0xff] %vm984, %v953
  %1055 = vst.msk [vmem:[%s3 + $0x230] sm:$0xff] %vm984, %v954
  %1056 = vst.msk [vmem:[%s3 + $0x238] sm:$0xff] %vm984, %v955
  %1057 = vst.msk [vmem:[%s3 + $0x240] sm:$0xff] %vm984, %v956
  %1058 = vst.msk [vmem:[%s3 + $0x248] sm:$0xff] %vm984, %v957
  %1059 = vst.msk [vmem:[%s3 + $0x250] sm:$0xff] %vm984, %v958
  %1060 = vst.msk [vmem:[%s3 + $0x258] sm:$0xff] %vm984, %v959
  %1061 = vst.msk [vmem:[%s3 + $0x260] sm:$0xff] %vm984, %v960
  %1062 = vst.msk [vmem:[%s3 + $0x268] sm:$0xff] %vm984, %v961
  %1063 = vst.msk [vmem:[%s3 + $0x270] sm:$0xff] %vm984, %v962
  %1064 = vst.msk [vmem:[%s3 + $0x278] sm:$0xff] %vm984, %v963
  %1065 = vst.msk [vmem:[%s3 + $0x280] sm:$0xff] %vm984, %v964
  %1066 = vst.msk [vmem:[%s3 + $0x288] sm:$0xff] %vm984, %v965
  %1067 = vst.msk [vmem:[%s3 + $0x290] sm:$0xff] %vm984, %v966
  %1068 = vst.msk [vmem:[%s3 + $0x298] sm:$0xff] %vm984, %v967
  %1069 = vst.msk [vmem:[%s3 + $0x2a0] sm:$0xff] %vm984, %v968
  %1070 = vst.msk [vmem:[%s3 + $0x2a8] sm:$0xff] %vm984, %v969
  %1071 = vst.msk [vmem:[%s3 + $0x2b0] sm:$0xff] %vm984, %v970
  %1072 = vst.msk [vmem:[%s3 + $0x2b8] sm:$0xff] %vm984, %v971
  %1073 = vst.msk [vmem:[%s3 + $0x2c0] sm:$0xff] %vm984, %v972
  %1074 = vst.msk [vmem:[%s3 + $0x2c8] sm:$0xff] %vm984, %v973
  %1075 = vst.msk [vmem:[%s3 + $0x2d0] sm:$0xff] %vm984, %v974
  %1076 = vst.msk [vmem:[%s3 + $0x2d8] sm:$0xff] %vm984, %v975
  %1077 = vst.msk [vmem:[%s3 + $0x2e0] sm:$0xff] %vm984, %v976
  %1078 = vst.msk [vmem:[%s3 + $0x2e8] sm:$0xff] %vm984, %v977
  %1079 = vst.msk [vmem:[%s3 + $0x2f0] sm:$0xff] %vm984, %v978
  %1080 = vst.msk [vmem:[%s3 + $0x2f8] sm:$0xff] %vm984, %v979
  %1081 = vst.msk [vmem:[%s3 + $0x300] sm:$0xff] %vm984, %v980
  %1082 = vst.msk [vmem:[%s3 + $0x308] sm:$0xff] %vm984, %v981
  %1083 = vst.msk [vmem:[%s3 + $0x310] sm:$0xff] %vm984, %v982
  %1084 = vst.msk [vmem:[%s3 + $0x318] sm:$0xff] %vm984, %v983
  // Predicated region
  $region14: #{cnn_policy_forward.4} parent=0 // pred_check
    _
  $region15: #{cnn_policy_forward.4} parent=0 // pred_check_branch
    %1086 = sbr.rel (0) target = $region17
  $region16: #{cnn_policy_forward.4} parent=0 // pred_region
    _
  $region17: #{cnn_policy_forward.4} parent=0 // pred_fallthru
    _
  // Predicated region
  $region18: #{cnn_policy_forward.4} parent=0 // pred_check
    _
  $region19: #{cnn_policy_forward.4} parent=0 // pred_check_branch
    %1088 = sbr.rel (0) target = $region21
  $region20: #{cnn_policy_forward.4} parent=0 // pred_region
    _
  $region21: #{cnn_policy_forward.4} parent=0 // pred_fallthru
    _

// kernel: cnn_policy_forward.5
$region0: #{cnn_policy_forward.5}
  #allocation0 [shape = 'u32[]', space=smem, size = 0x4, offset = 0x4, fixed_abs, tag = 'smem constant byte address 0x4 - core index']
  #allocation1 [shape = 'u32[72,128]{1,0:T(1,128)}', space=vmem, size = 0x9000, scoped, tag = 'internal scratch']
  %s0 = inlined_call_operand.vmem [shape: f32[162,512], index: 0, kind: input, shape index: {}]
  %s1 = inlined_call_operand.vmem [shape: f32[512,64], index: 1, kind: input, shape index: {}]
  %s2 = inlined_call_operand.vmem [shape: f32[1,64], index: 2, kind: input, shape index: {}]
  %s3 = inlined_call_operand.vmem [shape: f32[162,64], index: 3, kind: output, shape index: {}]
  %s4 = sld [smem:[#allocation0]]
  $region22: #{cnn_policy_forward.5} parent=0
    _
  %s6 = ssub.s32 1, %s4
  %s7 = scalar_select 0, %s6, %s4
  // Predicated region
  $region2: #{cnn_policy_forward.5} parent=0 // pred_check
    _
  $region3: #{cnn_policy_forward.5} parent=0 // pred_check_branch
    %9 = sbr.rel (0) target = $region5
  $region4: #{cnn_policy_forward.5} parent=0 // pred_region
    _
  $region5: #{cnn_policy_forward.5} parent=0 // pred_fallthru
    _
  // Predicated region
  $region6: #{cnn_policy_forward.5} parent=0 // pred_check
    _
  $region7: #{cnn_policy_forward.5} parent=0 // pred_check_branch
    %11 = sbr.rel (0) target = $region9
  $region8: #{cnn_policy_forward.5} parent=0 // pred_region
    _
  $region9: #{cnn_policy_forward.5} parent=0 // pred_fallthru
    _
  // Predicated region
  $region10: #{cnn_policy_forward.5} parent=0 // pred_check
    _
  $region11: #{cnn_policy_forward.5} parent=0 // pred_check_branch
    %13 = sbr.rel (0) target = $region13
  $region12: #{cnn_policy_forward.5} parent=0 // pred_region
    _
  $region13: #{cnn_policy_forward.5} parent=0 // pred_fallthru
    _
  %v14 = vld [vmem:[%s0] sm:$0xff]
  %v15 = vld [vmem:[%s0 + $0x8] sm:$0xff]
  %v16 = vld [vmem:[%s0 + $0x10] sm:$0xff]
  %v17 = vld [vmem:[%s0 + $0x18] sm:$0xff]
  %v18 = vld [vmem:[%s0 + $0x20] sm:$0xff]
  %v19 = vld [vmem:[%s0 + $0x28] sm:$0xff]
  %v20 = vld [vmem:[%s0 + $0x30] sm:$0xff]
  %v21 = vld [vmem:[%s0 + $0x38] sm:$0xff]
  %v22 = vld [vmem:[%s0 + $0x40] sm:$0xff]
  %v23 = vld [vmem:[%s0 + $0x48] sm:$0xff]
  %v24 = vld [vmem:[%s0 + $0x50] sm:$0xff]
  %v25 = vld [vmem:[%s0 + $0x58] sm:$0xff]
  %v26 = vld [vmem:[%s0 + $0x60] sm:$0xff]
  %v27 = vld [vmem:[%s0 + $0x68] sm:$0xff]
  %v28 = vld [vmem:[%s0 + $0x70] sm:$0xff]
  %v29 = vld [vmem:[%s0 + $0x78] sm:$0xff]
  %v30 = vld [vmem:[%s0 + $0x80] sm:$0xff]
  %v31 = vld [vmem:[%s0 + $0x88] sm:$0xff]
  %v32 = vld [vmem:[%s0 + $0x90] sm:$0xff]
  %v33 = vld [vmem:[%s0 + $0x98] sm:$0xff]
  %v34 = vld [vmem:[%s0 + $0xa0] sm:$0xff]
  %v35 = vld [vmem:[%s0 + $0xa8] sm:$0xff]
  %v36 = vld [vmem:[%s0 + $0xb0] sm:$0xff]
  %v37 = vld [vmem:[%s0 + $0xb8] sm:$0xff]
  %v38 = vld [vmem:[%s0 + $0xc0] sm:$0xff]
  %v39 = vld [vmem:[%s0 + $0xc8] sm:$0xff]
  %v40 = vld [vmem:[%s0 + $0xd0] sm:$0xff]
  %v41 = vld [vmem:[%s0 + $0xd8] sm:$0xff]
  %v42 = vld [vmem:[%s0 + $0xe0] sm:$0xff]
  %v43 = vld [vmem:[%s0 + $0xe8] sm:$0xff]
  %v44 = vld [vmem:[%s0 + $0xf0] sm:$0xff]
  %v45 = vld [vmem:[%s0 + $0xf8] sm:$0xff]
  %v46 = vld [vmem:[%s0 + $0x100] sm:$0xff]
  %v47 = vld [vmem:[%s0 + $0x108] sm:$0xff]
  %v48 = vld [vmem:[%s0 + $0x110] sm:$0xff]
  %v49 = vld [vmem:[%s0 + $0x118] sm:$0xff]
  %v50 = vld [vmem:[%s0 + $0x120] sm:$0xff]
  %v51 = vld [vmem:[%s0 + $0x128] sm:$0xff]
  %v52 = vld [vmem:[%s0 + $0x130] sm:$0xff]
  %v53 = vld [vmem:[%s0 + $0x138] sm:$0xff]
  %v54 = vld [vmem:[%s0 + $0x140] sm:$0xff]
  %v55 = vld [vmem:[%s0 + $0x148] sm:$0xff]
  %v56 = vld [vmem:[%s0 + $0x150] sm:$0xff]
  %v57 = vld [vmem:[%s0 + $0x158] sm:$0xff]
  %v58 = vld [vmem:[%s0 + $0x160] sm:$0xff]
  %v59 = vld [vmem:[%s0 + $0x168] sm:$0xff]
  %v60 = vld [vmem:[%s0 + $0x170] sm:$0xff]
  %v61 = vld [vmem:[%s0 + $0x178] sm:$0xff]
  %v62 = vld [vmem:[%s0 + $0x180] sm:$0xff]
  %v63 = vld [vmem:[%s0 + $0x188] sm:$0xff]
  %v64 = vld [vmem:[%s0 + $0x190] sm:$0xff]
  %v65 = vld [vmem:[%s0 + $0x198] sm:$0xff]
  %v66 = vld [vmem:[%s0 + $0x1a0] sm:$0xff]
  %v67 = vld [vmem:[%s0 + $0x1a8] sm:$0xff]
  %v68 = vld [vmem:[%s0 + $0x1b0] sm:$0xff]
  %v69 = vld [vmem:[%s0 + $0x1b8] sm:$0xff]
  %v70 = vld [vmem:[%s0 + $0x1c0] sm:$0xff]
  %v71 = vld [vmem:[%s0 + $0x1c8] sm:$0xff]
  %v72 = vld [vmem:[%s0 + $0x1d0] sm:$0xff]
  %v73 = vld [vmem:[%s0 + $0x1d8] sm:$0xff]
  %v74 = vld [vmem:[%s0 + $0x1e0] sm:$0xff]
  %v75 = vld [vmem:[%s0 + $0x1e8] sm:$0xff]
  %v76 = vld [vmem:[%s0 + $0x1f0] sm:$0xff]
  %v77 = vld [vmem:[%s0 + $0x1f8] sm:$0xff]
  %v78 = vld [vmem:[%s0 + $0x200] sm:$0xff]
  %v79 = vld [vmem:[%s0 + $0x208] sm:$0xff]
  %v80 = vld [vmem:[%s0 + $0x210] sm:$0xff]
  %v81 = vld [vmem:[%s0 + $0x218] sm:$0xff]
  %v82 = vld [vmem:[%s0 + $0x220] sm:$0xff]
  %v83 = vld [vmem:[%s0 + $0x228] sm:$0xff]
  %v84 = vld [vmem:[%s0 + $0x230] sm:$0xff]
  %v85 = vld [vmem:[%s0 + $0x238] sm:$0xff]
  %v86 = vld [vmem:[%s0 + $0x240] sm:$0xff]
  %v87 = vld [vmem:[%s0 + $0x248] sm:$0xff]
  %v88 = vld [vmem:[%s0 + $0x250] sm:$0xff]
  %v89 = vld [vmem:[%s0 + $0x258] sm:$0xff]
  %v90 = vld [vmem:[%s0 + $0x260] sm:$0xff]
  %v91 = vld [vmem:[%s0 + $0x268] sm:$0xff]
  %v92 = vld [vmem:[%s0 + $0x270] sm:$0xff]
  %v93 = vld [vmem:[%s0 + $0x278] sm:$0xff]
  %v94 = vld [vmem:[%s0 + $0x280] sm:$0x3]
  %v95 = vld [vmem:[%s0 + $0x288] sm:$0x3]
  %v96 = vld [vmem:[%s0 + $0x290] sm:$0x3]
  %v97 = vld [vmem:[%s0 + $0x298] sm:$0x3]
  %v98 = vld [vmem:[%s1] sm:$0xff]
  %v99 = vld [vmem:[%s1 + $0x8] sm:$0xff]
  %v100 = vld [vmem:[%s1 + $0x10] sm:$0xff]
  %v101 = vld [vmem:[%s1 + $0x18] sm:$0xff]
  %v102 = vld [vmem:[%s1 + $0x20] sm:$0xff]
  %v103 = vld [vmem:[%s1 + $0x28] sm:$0xff]
  %v104 = vld [vmem:[%s1 + $0x30] sm:$0xff]
  %v105 = vld [vmem:[%s1 + $0x38] sm:$0xff]
  %v106 = vld [vmem:[%s1 + $0x40] sm:$0xff]
  %v107 = vld [vmem:[%s1 + $0x48] sm:$0xff]
  %v108 = vld [vmem:[%s1 + $0x50] sm:$0xff]
  %v109 = vld [vmem:[%s1 + $0x58] sm:$0xff]
  %v110 = vld [vmem:[%s1 + $0x60] sm:$0xff]
  %v111 = vld [vmem:[%s1 + $0x68] sm:$0xff]
  %v112 = vld [vmem:[%s1 + $0x70] sm:$0xff]
  %v113 = vld [vmem:[%s1 + $0x78] sm:$0xff]
  %v114 = vld [vmem:[%s1 + $0x80] sm:$0xff]
  %v115 = vld [vmem:[%s1 + $0x88] sm:$0xff]
  %v116 = vld [vmem:[%s1 + $0x90] sm:$0xff]
  %v117 = vld [vmem:[%s1 + $0x98] sm:$0xff]
  %v118 = vld [vmem:[%s1 + $0xa0] sm:$0xff]
  %v119 = vld [vmem:[%s1 + $0xa8] sm:$0xff]
  %v120 = vld [vmem:[%s1 + $0xb0] sm:$0xff]
  %v121 = vld [vmem:[%s1 + $0xb8] sm:$0xff]
  %v122 = vld [vmem:[%s1 + $0xc0] sm:$0xff]
  %v123 = vld [vmem:[%s1 + $0xc8] sm:$0xff]
  %v124 = vld [vmem:[%s1 + $0xd0] sm:$0xff]
  %v125 = vld [vmem:[%s1 + $0xd8] sm:$0xff]
  %v126 = vld [vmem:[%s1 + $0xe0] sm:$0xff]
  %v127 = vld [vmem:[%s1 + $0xe8] sm:$0xff]
  %v128 = vld [vmem:[%s1 + $0xf0] sm:$0xff]
  %v129 = vld [vmem:[%s1 + $0xf8] sm:$0xff]
  %v130 = vld [vmem:[%s1 + $0x100] sm:$0xff]
  %v131 = vld [vmem:[%s1 + $0x108] sm:$0xff]
  %v132 = vld [vmem:[%s1 + $0x110] sm:$0xff]
  %v133 = vld [vmem:[%s1 + $0x118] sm:$0xff]
  %v134 = vld [vmem:[%s1 + $0x120] sm:$0xff]
  %v135 = vld [vmem:[%s1 + $0x128] sm:$0xff]
  %v136 = vld [vmem:[%s1 + $0x130] sm:$0xff]
  %v137 = vld [vmem:[%s1 + $0x138] sm:$0xff]
  %v138 = vld [vmem:[%s1 + $0x140] sm:$0xff]
  %v139 = vld [vmem:[%s1 + $0x148] sm:$0xff]
  %v140 = vld [vmem:[%s1 + $0x150] sm:$0xff]
  %v141 = vld [vmem:[%s1 + $0x158] sm:$0xff]
  %v142 = vld [vmem:[%s1 + $0x160] sm:$0xff]
  %v143 = vld [vmem:[%s1 + $0x168] sm:$0xff]
  %v144 = vld [vmem:[%s1 + $0x170] sm:$0xff]
  %v145 = vld [vmem:[%s1 + $0x178] sm:$0xff]
  %v146 = vld [vmem:[%s1 + $0x180] sm:$0xff]
  %v147 = vld [vmem:[%s1 + $0x188] sm:$0xff]
  %v148 = vld [vmem:[%s1 + $0x190] sm:$0xff]
  %v149 = vld [vmem:[%s1 + $0x198] sm:$0xff]
  %v150 = vld [vmem:[%s1 + $0x1a0] sm:$0xff]
  %v151 = vld [vmem:[%s1 + $0x1a8] sm:$0xff]
  %v152 = vld [vmem:[%s1 + $0x1b0] sm:$0xff]
  %v153 = vld [vmem:[%s1 + $0x1b8] sm:$0xff]
  %v154 = vld [vmem:[%s1 + $0x1c0] sm:$0xff]
  %v155 = vld [vmem:[%s1 + $0x1c8] sm:$0xff]
  %v156 = vld [vmem:[%s1 + $0x1d0] sm:$0xff]
  %v157 = vld [vmem:[%s1 + $0x1d8] sm:$0xff]
  %v158 = vld [vmem:[%s1 + $0x1e0] sm:$0xff]
  %v159 = vld [vmem:[%s1 + $0x1e8] sm:$0xff]
  %v160 = vld [vmem:[%s1 + $0x1f0] sm:$0xff]
  %v161 = vld [vmem:[%s1 + $0x1f8] sm:$0xff]
  %v162 = vld [vmem:[%s2] sm:$0x1]
  %v164 = vperm.slane %v162, 0
  %166 = vmatpush.msra.mxu0 %v113
  %167 = vmatpush.msra.mxu0 %v112
  %168 = vmatpush.msra.mxu0 %v111
  %169 = vmatpush.msra.mxu0 %v110
  %170 = vmatpush.msra.mxu0 %v109
  %171 = vmatpush.msra.mxu0 %v108
  %172 = vmatpush.msra.mxu0 %v107
  %173 = vmatpush.msra.mxu0 %v106
  %174 = vmatpush.msra.mxu0 %v105
  %175 = vmatpush.msra.mxu0 %v104
  %176 = vmatpush.msra.mxu0 %v103
  %177 = vmatpush.msra.mxu0 %v102
  %178 = vmatpush.msra.mxu0 %v101
  %179 = vmatpush.msra.mxu0 %v100
  %180 = vmatpush.msra.mxu0 %v99
  %181 = vmatpush.msra.mxu0 %v98
  %182 = vmatmul.f32.gmra.mxu0 %v14
  %v183 = vpop.f32.mrf.mxu0
  %v184 = vadd.f32 %v164, %v183
  %185 = vmatmul.f32.gmra.mxu0 %v18
  %v186 = vpop.f32.mrf.mxu0
  %v187 = vadd.f32 %v164, %v186
  %188 = vmatmul.f32.gmra.mxu0 %v22
  %v189 = vpop.f32.mrf.mxu0
  %v190 = vadd.f32 %v164, %v189
  %191 = vmatmul.f32.gmra.mxu0 %v26
  %v192 = vpop.f32.mrf.mxu0
  %v193 = vadd.f32 %v164, %v192
  %194 = vmatmul.f32.gmra.mxu0 %v30
  %v195 = vpop.f32.mrf.mxu0
  %v196 = vadd.f32 %v164, %v195
  %197 = vmatmul.f32.gmra.mxu0 %v34
  %v198 = vpop.f32.mrf.mxu0
  %v199 = vadd.f32 %v164, %v198
  %200 = vmatmul.f32.gmra.mxu0 %v38
  %v201 = vpop.f32.mrf.mxu0
  %v202 = vadd.f32 %v164, %v201
  %203 = vmatmul.f32.gmra.mxu0 %v42
  %v204 = vpop.f32.mrf.mxu0
  %v205 = vadd.f32 %v164, %v204
  %206 = vmatmul.f32.gmra.mxu0 %v46
  %v207 = vpop.f32.mrf.mxu0
  %v208 = vadd.f32 %v164, %v207
  %209 = vmatmul.f32.gmra.mxu0 %v50
  %v210 = vpop.f32.mrf.mxu0
  %v211 = vadd.f32 %v164, %v210
  %212 = vmatmul.f32.gmra.mxu0 %v54
  %v213 = vpop.f32.mrf.mxu0
  %v214 = vadd.f32 %v164, %v213
  %215 = vmatmul.f32.gmra.mxu0 %v58
  %v216 = vpop.f32.mrf.mxu0
  %v217 = vadd.f32 %v164, %v216
  %218 = vmatmul.f32.gmra.mxu0 %v62
  %v219 = vpop.f32.mrf.mxu0
  %v220 = vadd.f32 %v164, %v219
  %221 = vmatmul.f32.gmra.mxu0 %v66
  %v222 = vpop.f32.mrf.mxu0
  %v223 = vadd.f32 %v164, %v222
  %224 = vmatmul.f32.gmra.mxu0 %v70
  %v225 = vpop.f32.mrf.mxu0
  %v226 = vadd.f32 %v164, %v225
  %227 = vmatmul.f32.gmra.mxu0 %v74
  %v228 = vpop.f32.mrf.mxu0
  %v229 = vadd.f32 %v164, %v228
  %230 = vmatmul.f32.gmra.mxu0 %v78
  %v231 = vpop.f32.mrf.mxu0
  %v232 = vadd.f32 %v164, %v231
  %233 = vmatmul.f32.gmra.mxu0 %v82
  %v234 = vpop.f32.mrf.mxu0
  %v235 = vadd.f32 %v164, %v234
  %236 = vmatmul.f32.gmra.mxu0 %v86
  %v237 = vpop.f32.mrf.mxu0
  %v238 = vadd.f32 %v164, %v237
  %239 = vmatmul.f32.gmra.mxu0 %v90
  %v240 = vpop.f32.mrf.mxu0
  %v241 = vadd.f32 %v164, %v240
  %242 = vmatmul.f32.gmra.mxu0 %v94
  %v243 = vpop.f32.mrf.mxu0
  %v244 = vadd.f32 %v164, %v243
  %245 = vdwg.mxu0
  %246 = vmatpush.msra.mxu0 %v129
  %247 = vmatpush.msra.mxu0 %v128
  %248 = vmatpush.msra.mxu0 %v127
  %249 = vmatpush.msra.mxu0 %v126
  %250 = vmatpush.msra.mxu0 %v125
  %251 = vmatpush.msra.mxu0 %v124
  %252 = vmatpush.msra.mxu0 %v123
  %253 = vmatpush.msra.mxu0 %v122
  %254 = vmatpush.msra.mxu0 %v121
  %255 = vmatpush.msra.mxu0 %v120
  %256 = vmatpush.msra.mxu0 %v119
  %257 = vmatpush.msra.mxu0 %v118
  %258 = vmatpush.msra.mxu0 %v117
  %259 = vmatpush.msra.mxu0 %v116
  %260 = vmatpush.msra.mxu0 %v115
  %261 = vmatpush.msra.mxu0 %v114
  %262 = vmatmul.f32.gmra.mxu0 %v15
  %v263 = vpop.f32.mrf.mxu0
  %v264 = vadd.f32 %v184, %v263
  %265 = vmatmul.f32.gmra.mxu0 %v19
  %v266 = vpop.f32.mrf.mxu0
  %v267 = vadd.f32 %v187, %v266
  %268 = vmatmul.f32.gmra.mxu0 %v23
  %v269 = vpop.f32.mrf.mxu0
  %v270 = vadd.f32 %v190, %v269
  %271 = vmatmul.f32.gmra.mxu0 %v27
  %v272 = vpop.f32.mrf.mxu0
  %v273 = vadd.f32 %v193, %v272
  %274 = vmatmul.f32.gmra.mxu0 %v31
  %v275 = vpop.f32.mrf.mxu0
  %v276 = vadd.f32 %v196, %v275
  %277 = vmatmul.f32.gmra.mxu0 %v35
  %v278 = vpop.f32.mrf.mxu0
  %v279 = vadd.f32 %v199, %v278
  %280 = vmatmul.f32.gmra.mxu0 %v39
  %v281 = vpop.f32.mrf.mxu0
  %v282 = vadd.f32 %v202, %v281
  %283 = vmatmul.f32.gmra.mxu0 %v43
  %v284 = vpop.f32.mrf.mxu0
  %v285 = vadd.f32 %v205, %v284
  %286 = vmatmul.f32.gmra.mxu0 %v47
  %v287 = vpop.f32.mrf.mxu0
  %v288 = vadd.f32 %v208, %v287
  %289 = vmatmul.f32.gmra.mxu0 %v51
  %v290 = vpop.f32.mrf.mxu0
  %v291 = vadd.f32 %v211, %v290
  %292 = vmatmul.f32.gmra.mxu0 %v55
  %v293 = vpop.f32.mrf.mxu0
  %v294 = vadd.f32 %v214, %v293
  %295 = vmatmul.f32.gmra.mxu0 %v59
  %v296 = vpop.f32.mrf.mxu0
  %v297 = vadd.f32 %v217, %v296
  %298 = vmatmul.f32.gmra.mxu0 %v63
  %v299 = vpop.f32.mrf.mxu0
  %v300 = vadd.f32 %v220, %v299
  %301 = vmatmul.f32.gmra.mxu0 %v67
  %v302 = vpop.f32.mrf.mxu0
  %v303 = vadd.f32 %v223, %v302
  %304 = vmatmul.f32.gmra.mxu0 %v71
  %v305 = vpop.f32.mrf.mxu0
  %v306 = vadd.f32 %v226, %v305
  %307 = vmatmul.f32.gmra.mxu0 %v75
  %v308 = vpop.f32.mrf.mxu0
  %v309 = vadd.f32 %v229, %v308
  %310 = vmatmul.f32.gmra.mxu0 %v79
  %v311 = vpop.f32.mrf.mxu0
  %v312 = vadd.f32 %v232, %v311
  %313 = vmatmul.f32.gmra.mxu0 %v83
  %v314 = vpop.f32.mrf.mxu0
  %v315 = vadd.f32 %v235, %v314
  %316 = vmatmul.f32.gmra.mxu0 %v87
  %v317 = vpop.f32.mrf.mxu0
  %v318 = vadd.f32 %v238, %v317
  %319 = vmatmul.f32.gmra.mxu0 %v91
  %v320 = vpop.f32.mrf.mxu0
  %v321 = vadd.f32 %v241, %v320
  %322 = vmatmul.f32.gmra.mxu0 %v95
  %v323 = vpop.f32.mrf.mxu0
  %v324 = vadd.f32 %v244, %v323
  %325 = vdwg.mxu0
  %326 = vmatpush.msra.mxu0 %v145
  %327 = vmatpush.msra.mxu0 %v144
  %328 = vmatpush.msra.mxu0 %v143
  %329 = vmatpush.msra.mxu0 %v142
  %330 = vmatpush.msra.mxu0 %v141
  %331 = vmatpush.msra.mxu0 %v140
  %332 = vmatpush.msra.mxu0 %v139
  %333 = vmatpush.msra.mxu0 %v138
  %334 = vmatpush.msra.mxu0 %v137
  %335 = vmatpush.msra.mxu0 %v136
  %336 = vmatpush.msra.mxu0 %v135
  %337 = vmatpush.msra.mxu0 %v134
  %338 = vmatpush.msra.mxu0 %v133
  %339 = vmatpush.msra.mxu0 %v132
  %340 = vmatpush.msra.mxu0 %v131
  %341 = vmatpush.msra.mxu0 %v130
  %342 = vmatmul.f32.gmra.mxu0 %v16
  %v343 = vpop.f32.mrf.mxu0
  %v344 = vadd.f32 %v264, %v343
  %345 = vmatmul.f32.gmra.mxu0 %v20
  %v346 = vpop.f32.mrf.mxu0
  %v347 = vadd.f32 %v267, %v346
  %348 = vmatmul.f32.gmra.mxu0 %v24
  %v349 = vpop.f32.mrf.mxu0
  %v350 = vadd.f32 %v270, %v349
  %351 = vmatmul.f32.gmra.mxu0 %v28
  %v352 = vpop.f32.mrf.mxu0
  %v353 = vadd.f32 %v273, %v352
  %354 = vmatmul.f32.gmra.mxu0 %v32
  %v355 = vpop.f32.mrf.mxu0
  %v356 = vadd.f32 %v276, %v355
  %357 = vmatmul.f32.gmra.mxu0 %v36
  %v358 = vpop.f32.mrf.mxu0
  %v359 = vadd.f32 %v279, %v358
  %360 = vmatmul.f32.gmra.mxu0 %v40
  %v361 = vpop.f32.mrf.mxu0
  %v362 = vadd.f32 %v282, %v361
  %363 = vmatmul.f32.gmra.mxu0 %v44
  %v364 = vpop.f32.mrf.mxu0
  %v365 = vadd.f32 %v285, %v364
  %366 = vmatmul.f32.gmra.mxu0 %v48
  %v367 = vpop.f32.mrf.mxu0
  %v368 = vadd.f32 %v288, %v367
  %369 = vmatmul.f32.gmra.mxu0 %v52
  %v370 = vpop.f32.mrf.mxu0
  %v371 = vadd.f32 %v291, %v370
  %372 = vmatmul.f32.gmra.mxu0 %v56
  %v373 = vpop.f32.mrf.mxu0
  %v374 = vadd.f32 %v294, %v373
  %375 = vmatmul.f32.gmra.mxu0 %v60
  %v376 = vpop.f32.mrf.mxu0
  %v377 = vadd.f32 %v297, %v376
  %378 = vmatmul.f32.gmra.mxu0 %v64
  %v379 = vpop.f32.mrf.mxu0
  %v380 = vadd.f32 %v300, %v379
  %381 = vmatmul.f32.gmra.mxu0 %v68
  %v382 = vpop.f32.mrf.mxu0
  %v383 = vadd.f32 %v303, %v382
  %384 = vmatmul.f32.gmra.mxu0 %v72
  %v385 = vpop.f32.mrf.mxu0
  %v386 = vadd.f32 %v306, %v385
  %387 = vmatmul.f32.gmra.mxu0 %v76
  %v388 = vpop.f32.mrf.mxu0
  %v389 = vadd.f32 %v309, %v388
  %390 = vmatmul.f32.gmra.mxu0 %v80
  %v391 = vpop.f32.mrf.mxu0
  %v392 = vadd.f32 %v312, %v391
  %393 = vmatmul.f32.gmra.mxu0 %v84
  %v394 = vpop.f32.mrf.mxu0
  %v395 = vadd.f32 %v315, %v394
  %396 = vmatmul.f32.gmra.mxu0 %v88
  %v397 = vpop.f32.mrf.mxu0
  %v398 = vadd.f32 %v318, %v397
  %399 = vmatmul.f32.gmra.mxu0 %v92
  %v400 = vpop.f32.mrf.mxu0
  %v401 = vadd.f32 %v321, %v400
  %402 = vmatmul.f32.gmra.mxu0 %v96
  %v403 = vpop.f32.mrf.mxu0
  %v404 = vadd.f32 %v324, %v403
  %405 = vdwg.mxu0
  %406 = vmatpush.msra.mxu0 %v161
  %407 = vmatpush.msra.mxu0 %v160
  %408 = vmatpush.msra.mxu0 %v159
  %409 = vmatpush.msra.mxu0 %v158
  %410 = vmatpush.msra.mxu0 %v157
  %411 = vmatpush.msra.mxu0 %v156
  %412 = vmatpush.msra.mxu0 %v155
  %413 = vmatpush.msra.mxu0 %v154
  %414 = vmatpush.msra.mxu0 %v153
  %415 = vmatpush.msra.mxu0 %v152
  %416 = vmatpush.msra.mxu0 %v151
  %417 = vmatpush.msra.mxu0 %v150
  %418 = vmatpush.msra.mxu0 %v149
  %419 = vmatpush.msra.mxu0 %v148
  %420 = vmatpush.msra.mxu0 %v147
  %421 = vmatpush.msra.mxu0 %v146
  %422 = vmatmul.f32.gmra.mxu0 %v17
  %v423 = vpop.f32.mrf.mxu0
  %v424 = vadd.f32 %v344, %v423
  %425 = vmatmul.f32.gmra.mxu0 %v21
  %v426 = vpop.f32.mrf.mxu0
  %v427 = vadd.f32 %v347, %v426
  %428 = vmatmul.f32.gmra.mxu0 %v25
  %v429 = vpop.f32.mrf.mxu0
  %v430 = vadd.f32 %v350, %v429
  %431 = vmatmul.f32.gmra.mxu0 %v29
  %v432 = vpop.f32.mrf.mxu0
  %v433 = vadd.f32 %v353, %v432
  %434 = vmatmul.f32.gmra.mxu0 %v33
  %v435 = vpop.f32.mrf.mxu0
  %v436 = vadd.f32 %v356, %v435
  %437 = vmatmul.f32.gmra.mxu0 %v37
  %v438 = vpop.f32.mrf.mxu0
  %v439 = vadd.f32 %v359, %v438
  %440 = vmatmul.f32.gmra.mxu0 %v41
  %v441 = vpop.f32.mrf.mxu0
  %v442 = vadd.f32 %v362, %v441
  %443 = vmatmul.f32.gmra.mxu0 %v45
  %v444 = vpop.f32.mrf.mxu0
  %v445 = vadd.f32 %v365, %v444
  %446 = vmatmul.f32.gmra.mxu0 %v49
  %v447 = vpop.f32.mrf.mxu0
  %v448 = vadd.f32 %v368, %v447
  %449 = vmatmul.f32.gmra.mxu0 %v53
  %v450 = vpop.f32.mrf.mxu0
  %v451 = vadd.f32 %v371, %v450
  %452 = vmatmul.f32.gmra.mxu0 %v57
  %v453 = vpop.f32.mrf.mxu0
  %v454 = vadd.f32 %v374, %v453
  %455 = vmatmul.f32.gmra.mxu0 %v61
  %v456 = vpop.f32.mrf.mxu0
  %v457 = vadd.f32 %v377, %v456
  %458 = vmatmul.f32.gmra.mxu0 %v65
  %v459 = vpop.f32.mrf.mxu0
  %v460 = vadd.f32 %v380, %v459
  %461 = vmatmul.f32.gmra.mxu0 %v69
  %v462 = vpop.f32.mrf.mxu0
  %v463 = vadd.f32 %v383, %v462
  %464 = vmatmul.f32.gmra.mxu0 %v73
  %v465 = vpop.f32.mrf.mxu0
  %v466 = vadd.f32 %v386, %v465
  %467 = vmatmul.f32.gmra.mxu0 %v77
  %v468 = vpop.f32.mrf.mxu0
  %v469 = vadd.f32 %v389, %v468
  %470 = vmatmul.f32.gmra.mxu0 %v81
  %v471 = vpop.f32.mrf.mxu0
  %v472 = vadd.f32 %v392, %v471
  %473 = vmatmul.f32.gmra.mxu0 %v85
  %v474 = vpop.f32.mrf.mxu0
  %v475 = vadd.f32 %v395, %v474
  %476 = vmatmul.f32.gmra.mxu0 %v89
  %v477 = vpop.f32.mrf.mxu0
  %v478 = vadd.f32 %v398, %v477
  %479 = vmatmul.f32.gmra.mxu0 %v93
  %v480 = vpop.f32.mrf.mxu0
  %v481 = vadd.f32 %v401, %v480
  %482 = vmatmul.f32.gmra.mxu0 %v97
  %v483 = vpop.f32.mrf.mxu0
  %v484 = vadd.f32 %v404, %v483
  %485 = vdwg.mxu0
  %v486 = vmax.f32 %v424, 0.0
  %v487 = vmax.f32 %v427, 0.0
  %v488 = vmax.f32 %v430, 0.0
  %v489 = vmax.f32 %v433, 0.0
  %v490 = vmax.f32 %v436, 0.0
  %v491 = vmax.f32 %v439, 0.0
  %v492 = vmax.f32 %v442, 0.0
  %v493 = vmax.f32 %v445, 0.0
  %v494 = vmax.f32 %v448, 0.0
  %v495 = vmax.f32 %v451, 0.0
  %v496 = vmax.f32 %v454, 0.0
  %v497 = vmax.f32 %v457, 0.0
  %v498 = vmax.f32 %v460, 0.0
  %v499 = vmax.f32 %v463, 0.0
  %v500 = vmax.f32 %v466, 0.0
  %v501 = vmax.f32 %v469, 0.0
  %v502 = vmax.f32 %v472, 0.0
  %v503 = vmax.f32 %v475, 0.0
  %v504 = vmax.f32 %v478, 0.0
  %v505 = vmax.f32 %v481, 0.0
  %v506 = vmax.f32 %v484, 0.0
  %vm507 = vcmask 523264
  %508 = vst.msk [vmem:[%s3] sm:$0xff] %vm507, %v486
  %509 = vst.msk [vmem:[%s3 + $0x8] sm:$0xff] %vm507, %v487
  %510 = vst.msk [vmem:[%s3 + $0x10] sm:$0xff] %vm507, %v488
  %511 = vst.msk [vmem:[%s3 + $0x18] sm:$0xff] %vm507, %v489
  %512 = vst.msk [vmem:[%s3 + $0x20] sm:$0xff] %vm507, %v490
  %513 = vst.msk [vmem:[%s3 + $0x28] sm:$0xff] %vm507, %v491
  %514 = vst.msk [vmem:[%s3 + $0x30] sm:$0xff] %vm507, %v492
  %515 = vst.msk [vmem:[%s3 + $0x38] sm:$0xff] %vm507, %v493
  %516 = vst.msk [vmem:[%s3 + $0x40] sm:$0xff] %vm507, %v494
  %517 = vst.msk [vmem:[%s3 + $0x48] sm:$0xff] %vm507, %v495
  %518 = vst.msk [vmem:[%s3 + $0x50] sm:$0xff] %vm507, %v496
  %519 = vst.msk [vmem:[%s3 + $0x58] sm:$0xff] %vm507, %v497
  %520 = vst.msk [vmem:[%s3 + $0x60] sm:$0xff] %vm507, %v498
  %521 = vst.msk [vmem:[%s3 + $0x68] sm:$0xff] %vm507, %v499
  %522 = vst.msk [vmem:[%s3 + $0x70] sm:$0xff] %vm507, %v500
  %523 = vst.msk [vmem:[%s3 + $0x78] sm:$0xff] %vm507, %v501
  %524 = vst.msk [vmem:[%s3 + $0x80] sm:$0xff] %vm507, %v502
  %525 = vst.msk [vmem:[%s3 + $0x88] sm:$0xff] %vm507, %v503
  %526 = vst.msk [vmem:[%s3 + $0x90] sm:$0xff] %vm507, %v504
  %527 = vst.msk [vmem:[%s3 + $0x98] sm:$0xff] %vm507, %v505
  %vm528 = vcmask 517120
  %529 = vst.msk [vmem:[%s3 + $0xa0] sm:$0x3] %vm528, %v506
  // Predicated region
  $region14: #{cnn_policy_forward.5} parent=0 // pred_check
    _
  $region15: #{cnn_policy_forward.5} parent=0 // pred_check_branch
    %531 = sbr.rel (0) target = $region17
  $region16: #{cnn_policy_forward.5} parent=0 // pred_region
    _
  $region17: #{cnn_policy_forward.5} parent=0 // pred_fallthru
    _
  // Predicated region
  $region18: #{cnn_policy_forward.5} parent=0 // pred_check
    _
  $region19: #{cnn_policy_forward.5} parent=0 // pred_check_branch
    %533 = sbr.rel (0) target = $region21
  $region20: #{cnn_policy_forward.5} parent=0 // pred_region
    _
  $region21: #{cnn_policy_forward.5} parent=0 // pred_fallthru
    _

// kernel: cnn_policy_forward.6
$region0: #{cnn_policy_forward.6}
  #allocation0 [shape = 'u32[]', space=smem, size = 0x4, offset = 0x4, fixed_abs, tag = 'smem constant byte address 0x4 - core index']
  #allocation1 [shape = 'u32[72,128]{1,0:T(1,128)}', space=vmem, size = 0x9000, scoped, tag = 'internal scratch']
  %s0 = inlined_call_operand.vmem [shape: f32[98,576], index: 0, kind: input, shape index: {}]
  %s1 = inlined_call_operand.vmem [shape: f32[576,32], index: 1, kind: input, shape index: {}]
  %s2 = inlined_call_operand.vmem [shape: f32[1,32], index: 2, kind: input, shape index: {}]
  %s3 = inlined_call_operand.vmem [shape: f32[98,32], index: 3, kind: output, shape index: {}]
  %s4 = sld [smem:[#allocation0]]
  $region22: #{cnn_policy_forward.6} parent=0
    _
  %s6 = ssub.s32 1, %s4
  %s7 = scalar_select 0, %s6, %s4
  // Predicated region
  $region2: #{cnn_policy_forward.6} parent=0 // pred_check
    _
  $region3: #{cnn_policy_forward.6} parent=0 // pred_check_branch
    %9 = sbr.rel (0) target = $region5
  $region4: #{cnn_policy_forward.6} parent=0 // pred_region
    _
  $region5: #{cnn_policy_forward.6} parent=0 // pred_fallthru
    _
  // Predicated region
  $region6: #{cnn_policy_forward.6} parent=0 // pred_check
    _
  $region7: #{cnn_policy_forward.6} parent=0 // pred_check_branch
    %11 = sbr.rel (0) target = $region9
  $region8: #{cnn_policy_forward.6} parent=0 // pred_region
    _
  $region9: #{cnn_policy_forward.6} parent=0 // pred_fallthru
    _
  // Predicated region
  $region10: #{cnn_policy_forward.6} parent=0 // pred_check
    _
  $region11: #{cnn_policy_forward.6} parent=0 // pred_check_branch
    %13 = sbr.rel (0) target = $region13
  $region12: #{cnn_policy_forward.6} parent=0 // pred_region
    _
  $region13: #{cnn_policy_forward.6} parent=0 // pred_fallthru
    _
  %v14 = vld [vmem:[%s0] sm:$0xff]
  %v15 = vld [vmem:[%s0 + $0x8] sm:$0xff]
  %v16 = vld [vmem:[%s0 + $0x10] sm:$0xff]
  %v17 = vld [vmem:[%s0 + $0x18] sm:$0xff]
  %v18 = vld [vmem:[%s0 + $0x20] sm:$0xff]
  %v19 = vld [vmem:[%s0 + $0x28] sm:$0xff]
  %v20 = vld [vmem:[%s0 + $0x30] sm:$0xff]
  %v21 = vld [vmem:[%s0 + $0x38] sm:$0xff]
  %v22 = vld [vmem:[%s0 + $0x40] sm:$0xff]
  %v23 = vld [vmem:[%s0 + $0x48] sm:$0xff]
  %v24 = vld [vmem:[%s0 + $0x50] sm:$0xff]
  %v25 = vld [vmem:[%s0 + $0x58] sm:$0xff]
  %v26 = vld [vmem:[%s0 + $0x60] sm:$0xff]
  %v27 = vld [vmem:[%s0 + $0x68] sm:$0xff]
  %v28 = vld [vmem:[%s0 + $0x70] sm:$0xff]
  %v29 = vld [vmem:[%s0 + $0x78] sm:$0xff]
  %v30 = vld [vmem:[%s0 + $0x80] sm:$0xff]
  %v31 = vld [vmem:[%s0 + $0x88] sm:$0xff]
  %v32 = vld [vmem:[%s0 + $0x90] sm:$0xff]
  %v33 = vld [vmem:[%s0 + $0x98] sm:$0xff]
  %v34 = vld [vmem:[%s0 + $0xa0] sm:$0xff]
  %v35 = vld [vmem:[%s0 + $0xa8] sm:$0xff]
  %v36 = vld [vmem:[%s0 + $0xb0] sm:$0xff]
  %v37 = vld [vmem:[%s0 + $0xb8] sm:$0xff]
  %v38 = vld [vmem:[%s0 + $0xc0] sm:$0xff]
  %v39 = vld [vmem:[%s0 + $0xc8] sm:$0xff]
  %v40 = vld [vmem:[%s0 + $0xd0] sm:$0xff]
  %v41 = vld [vmem:[%s0 + $0xd8] sm:$0xff]
  %v42 = vld [vmem:[%s0 + $0xe0] sm:$0xff]
  %v43 = vld [vmem:[%s0 + $0xe8] sm:$0xff]
  %v44 = vld [vmem:[%s0 + $0xf0] sm:$0xff]
  %v45 = vld [vmem:[%s0 + $0xf8] sm:$0xff]
  %v46 = vld [vmem:[%s0 + $0x100] sm:$0xff]
  %v47 = vld [vmem:[%s0 + $0x108] sm:$0xff]
  %v48 = vld [vmem:[%s0 + $0x110] sm:$0xff]
  %v49 = vld [vmem:[%s0 + $0x118] sm:$0xff]
  %v50 = vld [vmem:[%s0 + $0x120] sm:$0xff]
  %v51 = vld [vmem:[%s0 + $0x128] sm:$0xff]
  %v52 = vld [vmem:[%s0 + $0x130] sm:$0xff]
  %v53 = vld [vmem:[%s0 + $0x138] sm:$0xff]
  %v54 = vld [vmem:[%s0 + $0x140] sm:$0xff]
  %v55 = vld [vmem:[%s0 + $0x148] sm:$0xff]
  %v56 = vld [vmem:[%s0 + $0x150] sm:$0xff]
  %v57 = vld [vmem:[%s0 + $0x158] sm:$0xff]
  %v58 = vld [vmem:[%s0 + $0x160] sm:$0xff]
  %v59 = vld [vmem:[%s0 + $0x168] sm:$0xff]
  %v60 = vld [vmem:[%s0 + $0x170] sm:$0xff]
  %v61 = vld [vmem:[%s0 + $0x178] sm:$0xff]
  %v62 = vld [vmem:[%s0 + $0x180] sm:$0xff]
  %v63 = vld [vmem:[%s0 + $0x188] sm:$0xff]
  %v64 = vld [vmem:[%s0 + $0x190] sm:$0xff]
  %v65 = vld [vmem:[%s0 + $0x198] sm:$0xff]
  %v66 = vld [vmem:[%s0 + $0x1a0] sm:$0xff]
  %v67 = vld [vmem:[%s0 + $0x1a8] sm:$0xff]
  %v68 = vld [vmem:[%s0 + $0x1b0] sm:$0xff]
  %v69 = vld [vmem:[%s0 + $0x1b8] sm:$0xff]
  %v70 = vld [vmem:[%s0 + $0x1c0] sm:$0xff]
  %v71 = vld [vmem:[%s0 + $0x1c8] sm:$0xff]
  %v72 = vld [vmem:[%s0 + $0x1d0] sm:$0xff]
  %v73 = vld [vmem:[%s0 + $0x1d8] sm:$0xff]
  %v74 = vld [vmem:[%s0 + $0x1e0] sm:$0x3]
  %v75 = vld [vmem:[%s0 + $0x1e8] sm:$0x3]
  %v76 = vld [vmem:[%s0 + $0x1f0] sm:$0x3]
  %v77 = vld [vmem:[%s0 + $0x1f8] sm:$0x3]
  %v78 = vld [vmem:[%s0 + $0x200] sm:$0x3]
  %v79 = vld [vmem:[%s1] sm:$0xff]
  %v80 = vld [vmem:[%s1 + $0x8] sm:$0xff]
  %v81 = vld [vmem:[%s1 + $0x10] sm:$0xff]
  %v82 = vld [vmem:[%s1 + $0x18] sm:$0xff]
  %v83 = vld [vmem:[%s1 + $0x20] sm:$0xff]
  %v84 = vld [vmem:[%s1 + $0x28] sm:$0xff]
  %v85 = vld [vmem:[%s1 + $0x30] sm:$0xff]
  %v86 = vld [vmem:[%s1 + $0x38] sm:$0xff]
  %v87 = vld [vmem:[%s1 + $0x40] sm:$0xff]
  %v88 = vld [vmem:[%s1 + $0x48] sm:$0xff]
  %v89 = vld [vmem:[%s1 + $0x50] sm:$0xff]
  %v90 = vld [vmem:[%s1 + $0x58] sm:$0xff]
  %v91 = vld [vmem:[%s1 + $0x60] sm:$0xff]
  %v92 = vld [vmem:[%s1 + $0x68] sm:$0xff]
  %v93 = vld [vmem:[%s1 + $0x70] sm:$0xff]
  %v94 = vld [vmem:[%s1 + $0x78] sm:$0xff]
  %v95 = vld [vmem:[%s1 + $0x80] sm:$0xff]
  %v96 = vld [vmem:[%s1 + $0x88] sm:$0xff]
  %v97 = vld [vmem:[%s1 + $0x90] sm:$0xff]
  %v98 = vld [vmem:[%s1 + $0x98] sm:$0xff]
  %v99 = vld [vmem:[%s1 + $0xa0] sm:$0xff]
  %v100 = vld [vmem:[%s1 + $0xa8] sm:$0xff]
  %v101 = vld [vmem:[%s1 + $0xb0] sm:$0xff]
  %v102 = vld [vmem:[%s1 + $0xb8] sm:$0xff]
  %v103 = vld [vmem:[%s1 + $0xc0] sm:$0xff]
  %v104 = vld [vmem:[%s1 + $0xc8] sm:$0xff]
  %v105 = vld [vmem:[%s1 + $0xd0] sm:$0xff]
  %v106 = vld [vmem:[%s1 + $0xd8] sm:$0xff]
  %v107 = vld [vmem:[%s1 + $0xe0] sm:$0xff]
  %v108 = vld [vmem:[%s1 + $0xe8] sm:$0xff]
  %v109 = vld [vmem:[%s1 + $0xf0] sm:$0xff]
  %v110 = vld [vmem:[%s1 + $0xf8] sm:$0xff]
  %v111 = vld [vmem:[%s1 + $0x100] sm:$0xff]
  %v112 = vld [vmem:[%s1 + $0x108] sm:$0xff]
  %v113 = vld [vmem:[%s1 + $0x110] sm:$0xff]
  %v114 = vld [vmem:[%s1 + $0x118] sm:$0xff]
  %v115 = vld [vmem:[%s1 + $0x120] sm:$0xff]
  %v116 = vld [vmem:[%s1 + $0x128] sm:$0xff]
  %v117 = vld [vmem:[%s1 + $0x130] sm:$0xff]
  %v118 = vld [vmem:[%s1 + $0x138] sm:$0xff]
  %v119 = vld [vmem:[%s1 + $0x140] sm:$0xff]
  %v120 = vld [vmem:[%s1 + $0x148] sm:$0xff]
  %v121 = vld [vmem:[%s1 + $0x150] sm:$0xff]
  %v122 = vld [vmem:[%s1 + $0x158] sm:$0xff]
  %v123 = vld [vmem:[%s1 + $0x160] sm:$0xff]
  %v124 = vld [vmem:[%s1 + $0x168] sm:$0xff]
  %v125 = vld [vmem:[%s1 + $0x170] sm:$0xff]
  %v126 = vld [vmem:[%s1 + $0x178] sm:$0xff]
  %v127 = vld [vmem:[%s1 + $0x180] sm:$0xff]
  %v128 = vld [vmem:[%s1 + $0x188] sm:$0xff]
  %v129 = vld [vmem:[%s1 + $0x190] sm:$0xff]
  %v130 = vld [vmem:[%s1 + $0x198] sm:$0xff]
  %v131 = vld [vmem:[%s1 + $0x1a0] sm:$0xff]
  %v132 = vld [vmem:[%s1 + $0x1a8] sm:$0xff]
  %v133 = vld [vmem:[%s1 + $0x1b0] sm:$0xff]
  %v134 = vld [vmem:[%s1 + $0x1b8] sm:$0xff]
  %v135 = vld [vmem:[%s1 + $0x1c0] sm:$0xff]
  %v136 = vld [vmem:[%s1 + $0x1c8] sm:$0xff]
  %v137 = vld [vmem:[%s1 + $0x1d0] sm:$0xff]
  %v138 = vld [vmem:[%s1 + $0x1d8] sm:$0xff]
  %v139 = vld [vmem:[%s1 + $0x1e0] sm:$0xff]
  %v140 = vld [vmem:[%s1 + $0x1e8] sm:$0xff]
  %v141 = vld [vmem:[%s1 + $0x1f0] sm:$0xff]
  %v142 = vld [vmem:[%s1 + $0x1f8] sm:$0xff]
  %v143 = vld [vmem:[%s1 + $0x200] sm:$0xff]
  %v144 = vld [vmem:[%s1 + $0x208] sm:$0xff]
  %v145 = vld [vmem:[%s1 + $0x210] sm:$0xff]
  %v146 = vld [vmem:[%s1 + $0x218] sm:$0xff]
  %v147 = vld [vmem:[%s1 + $0x220] sm:$0xff]
  %v148 = vld [vmem:[%s1 + $0x228] sm:$0xff]
  %v149 = vld [vmem:[%s1 + $0x230] sm:$0xff]
  %v150 = vld [vmem:[%s1 + $0x238] sm:$0xff]
  %v151 = vld [vmem:[%s2] sm:$0x1]
  %v153 = vperm.slane %v151, 0
  %vm155 = vcmask 523264
  %v157 = vsel %vm155, %v18, 0
  %v160 = vsel %vm155, %v23, 0
  %v163 = vsel %vm155, %v28, 0
  %v166 = vsel %vm155, %v33, 0
  %v169 = vsel %vm155, %v38, 0
  %v172 = vsel %vm155, %v43, 0
  %v175 = vsel %vm155, %v48, 0
  %v178 = vsel %vm155, %v53, 0
  %v181 = vsel %vm155, %v58, 0
  %v184 = vsel %vm155, %v63, 0
  %v187 = vsel %vm155, %v68, 0
  %v190 = vsel %vm155, %v73, 0
  %v193 = vsel %vm155, %v78, 0
  %195 = vmatpush.msra.mxu0 %v94
  %196 = vmatpush.msra.mxu0 %v93
  %197 = vmatpush.msra.mxu0 %v92
  %198 = vmatpush.msra.mxu0 %v91
  %199 = vmatpush.msra.mxu0 %v90
  %200 = vmatpush.msra.mxu0 %v89
  %201 = vmatpush.msra.mxu0 %v88
  %202 = vmatpush.msra.mxu0 %v87
  %203 = vmatpush.msra.mxu0 %v86
  %204 = vmatpush.msra.mxu0 %v85
  %205 = vmatpush.msra.mxu0 %v84
  %206 = vmatpush.msra.mxu0 %v83
  %207 = vmatpush.msra.mxu0 %v82
  %208 = vmatpush.msra.mxu0 %v81
  %209 = vmatpush.msra.mxu0 %v80
  %210 = vmatpush.msra.mxu0 %v79
  %211 = vmatmul.f32.gmra.mxu0 %v14
  %v212 = vpop.f32.mrf.mxu0
  %v213 = vadd.f32 %v153, %v212
  %214 = vmatmul.f32.gmra.mxu0 %v19
  %v215 = vpop.f32.mrf.mxu0
  %v216 = vadd.f32 %v153, %v215
  %217 = vmatmul.f32.gmra.mxu0 %v24
  %v218 = vpop.f32.mrf.mxu0
  %v219 = vadd.f32 %v153, %v218
  %220 = vmatmul.f32.gmra.mxu0 %v29
  %v221 = vpop.f32.mrf.mxu0
  %v222 = vadd.f32 %v153, %v221
  %223 = vmatmul.f32.gmra.mxu0 %v34
  %v224 = vpop.f32.mrf.mxu0
  %v225 = vadd.f32 %v153, %v224
  %226 = vmatmul.f32.gmra.mxu0 %v39
  %v227 = vpop.f32.mrf.mxu0
  %v228 = vadd.f32 %v153, %v227
  %229 = vmatmul.f32.gmra.mxu0 %v44
  %v230 = vpop.f32.mrf.mxu0
  %v231 = vadd.f32 %v153, %v230
  %232 = vmatmul.f32.gmra.mxu0 %v49
  %v233 = vpop.f32.mrf.mxu0
  %v234 = vadd.f32 %v153, %v233
  %235 = vmatmul.f32.gmra.mxu0 %v54
  %v236 = vpop.f32.mrf.mxu0
  %v237 = vadd.f32 %v153, %v236
  %238 = vmatmul.f32.gmra.mxu0 %v59
  %v239 = vpop.f32.mrf.mxu0
  %v240 = vadd.f32 %v153, %v239
  %241 = vmatmul.f32.gmra.mxu0 %v64
  %v242 = vpop.f32.mrf.mxu0
  %v243 = vadd.f32 %v153, %v242
  %244 = vmatmul.f32.gmra.mxu0 %v69
  %v245 = vpop.f32.mrf.mxu0
  %v246 = vadd.f32 %v153, %v245
  %247 = vmatmul.f32.gmra.mxu0 %v74
  %v248 = vpop.f32.mrf.mxu0
  %v249 = vadd.f32 %v153, %v248
  %250 = vdwg.mxu0
  %251 = vmatpush.msra.mxu0 %v110
  %252 = vmatpush.msra.mxu0 %v109
  %253 = vmatpush.msra.mxu0 %v108
  %254 = vmatpush.msra.mxu0 %v107
  %255 = vmatpush.msra.mxu0 %v106
  %256 = vmatpush.msra.mxu0 %v105
  %257 = vmatpush.msra.mxu0 %v104
  %258 = vmatpush.msra.mxu0 %v103
  %259 = vmatpush.msra.mxu0 %v102
  %260 = vmatpush.msra.mxu0 %v101
  %261 = vmatpush.msra.mxu0 %v100
  %262 = vmatpush.msra.mxu0 %v99
  %263 = vmatpush.msra.mxu0 %v98
  %264 = vmatpush.msra.mxu0 %v97
  %265 = vmatpush.msra.mxu0 %v96
  %266 = vmatpush.msra.mxu0 %v95
  %267 = vmatmul.f32.gmra.mxu0 %v15
  %v268 = vpop.f32.mrf.mxu0
  %v269 = vadd.f32 %v213, %v268
  %270 = vmatmul.f32.gmra.mxu0 %v20
  %v271 = vpop.f32.mrf.mxu0
  %v272 = vadd.f32 %v216, %v271
  %273 = vmatmul.f32.gmra.mxu0 %v25
  %v274 = vpop.f32.mrf.mxu0
  %v275 = vadd.f32 %v219, %v274
  %276 = vmatmul.f32.gmra.mxu0 %v30
  %v277 = vpop.f32.mrf.mxu0
  %v278 = vadd.f32 %v222, %v277
  %279 = vmatmul.f32.gmra.mxu0 %v35
  %v280 = vpop.f32.mrf.mxu0
  %v281 = vadd.f32 %v225, %v280
  %282 = vmatmul.f32.gmra.mxu0 %v40
  %v283 = vpop.f32.mrf.mxu0
  %v284 = vadd.f32 %v228, %v283
  %285 = vmatmul.f32.gmra.mxu0 %v45
  %v286 = vpop.f32.mrf.mxu0
  %v287 = vadd.f32 %v231, %v286
  %288 = vmatmul.f32.gmra.mxu0 %v50
  %v289 = vpop.f32.mrf.mxu0
  %v290 = vadd.f32 %v234, %v289
  %291 = vmatmul.f32.gmra.mxu0 %v55
  %v292 = vpop.f32.mrf.mxu0
  %v293 = vadd.f32 %v237, %v292
  %294 = vmatmul.f32.gmra.mxu0 %v60
  %v295 = vpop.f32.mrf.mxu0
  %v296 = vadd.f32 %v240, %v295
  %297 = vmatmul.f32.gmra.mxu0 %v65
  %v298 = vpop.f32.mrf.mxu0
  %v299 = vadd.f32 %v243, %v298
  %300 = vmatmul.f32.gmra.mxu0 %v70
  %v301 = vpop.f32.mrf.mxu0
  %v302 = vadd.f32 %v246, %v301
  %303 = vmatmul.f32.gmra.mxu0 %v75
  %v304 = vpop.f32.mrf.mxu0
  %v305 = vadd.f32 %v249, %v304
  %306 = vdwg.mxu0
  %307 = vmatpush.msra.mxu0 %v126
  %308 = vmatpush.msra.mxu0 %v125
  %309 = vmatpush.msra.mxu0 %v124
  %310 = vmatpush.msra.mxu0 %v123
  %311 = vmatpush.msra.mxu0 %v122
  %312 = vmatpush.msra.mxu0 %v121
  %313 = vmatpush.msra.mxu0 %v120
  %314 = vmatpush.msra.mxu0 %v119
  %315 = vmatpush.msra.mxu0 %v118
  %316 = vmatpush.msra.mxu0 %v117
  %317 = vmatpush.msra.mxu0 %v116
  %318 = vmatpush.msra.mxu0 %v115
  %319 = vmatpush.msra.mxu0 %v114
  %320 = vmatpush.msra.mxu0 %v113
  %321 = vmatpush.msra.mxu0 %v112
  %322 = vmatpush.msra.mxu0 %v111
  %323 = vmatmul.f32.gmra.mxu0 %v16
  %v324 = vpop.f32.mrf.mxu0
  %v325 = vadd.f32 %v269, %v324
  %326 = vmatmul.f32.gmra.mxu0 %v21
  %v327 = vpop.f32.mrf.mxu0
  %v328 = vadd.f32 %v272, %v327
  %329 = vmatmul.f32.gmra.mxu0 %v26
  %v330 = vpop.f32.mrf.mxu0
  %v331 = vadd.f32 %v275, %v330
  %332 = vmatmul.f32.gmra.mxu0 %v31
  %v333 = vpop.f32.mrf.mxu0
  %v334 = vadd.f32 %v278, %v333
  %335 = vmatmul.f32.gmra.mxu0 %v36
  %v336 = vpop.f32.mrf.mxu0
  %v337 = vadd.f32 %v281, %v336
  %338 = vmatmul.f32.gmra.mxu0 %v41
  %v339 = vpop.f32.mrf.mxu0
  %v340 = vadd.f32 %v284, %v339
  %341 = vmatmul.f32.gmra.mxu0 %v46
  %v342 = vpop.f32.mrf.mxu0
  %v343 = vadd.f32 %v287, %v342
  %344 = vmatmul.f32.gmra.mxu0 %v51
  %v345 = vpop.f32.mrf.mxu0
  %v346 = vadd.f32 %v290, %v345
  %347 = vmatmul.f32.gmra.mxu0 %v56
  %v348 = vpop.f32.mrf.mxu0
  %v349 = vadd.f32 %v293, %v348
  %350 = vmatmul.f32.gmra.mxu0 %v61
  %v351 = vpop.f32.mrf.mxu0
  %v352 = vadd.f32 %v296, %v351
  %353 = vmatmul.f32.gmra.mxu0 %v66
  %v354 = vpop.f32.mrf.mxu0
  %v355 = vadd.f32 %v299, %v354
  %356 = vmatmul.f32.gmra.mxu0 %v71
  %v357 = vpop.f32.mrf.mxu0
  %v358 = vadd.f32 %v302, %v357
  %359 = vmatmul.f32.gmra.mxu0 %v76
  %v360 = vpop.f32.mrf.mxu0
  %v361 = vadd.f32 %v305, %v360
  %362 = vdwg.mxu0
  %363 = vmatpush.msra.mxu0 %v142
  %364 = vmatpush.msra.mxu0 %v141
  %365 = vmatpush.msra.mxu0 %v140
  %366 = vmatpush.msra.mxu0 %v139
  %367 = vmatpush.msra.mxu0 %v138
  %368 = vmatpush.msra.mxu0 %v137
  %369 = vmatpush.msra.mxu0 %v136
  %370 = vmatpush.msra.mxu0 %v135
  %371 = vmatpush.msra.mxu0 %v134
  %372 = vmatpush.msra.mxu0 %v133
  %373 = vmatpush.msra.mxu0 %v132
  %374 = vmatpush.msra.mxu0 %v131
  %375 = vmatpush.msra.mxu0 %v130
  %376 = vmatpush.msra.mxu0 %v129
  %377 = vmatpush.msra.mxu0 %v128
  %378 = vmatpush.msra.mxu0 %v127
  %379 = vmatmul.f32.gmra.mxu0 %v17
  %v380 = vpop.f32.mrf.mxu0
  %v381 = vadd.f32 %v325, %v380
  %382 = vmatmul.f32.gmra.mxu0 %v22
  %v383 = vpop.f32.mrf.mxu0
  %v384 = vadd.f32 %v328, %v383
  %385 = vmatmul.f32.gmra.mxu0 %v27
  %v386 = vpop.f32.mrf.mxu0
  %v387 = vadd.f32 %v331, %v386
  %388 = vmatmul.f32.gmra.mxu0 %v32
  %v389 = vpop.f32.mrf.mxu0
  %v390 = vadd.f32 %v334, %v389
  %391 = vmatmul.f32.gmra.mxu0 %v37
  %v392 = vpop.f32.mrf.mxu0
  %v393 = vadd.f32 %v337, %v392
  %394 = vmatmul.f32.gmra.mxu0 %v42
  %v395 = vpop.f32.mrf.mxu0
  %v396 = vadd.f32 %v340, %v395
  %397 = vmatmul.f32.gmra.mxu0 %v47
  %v398 = vpop.f32.mrf.mxu0
  %v399 = vadd.f32 %v343, %v398
  %400 = vmatmul.f32.gmra.mxu0 %v52
  %v401 = vpop.f32.mrf.mxu0
  %v402 = vadd.f32 %v346, %v401
  %403 = vmatmul.f32.gmra.mxu0 %v57
  %v404 = vpop.f32.mrf.mxu0
  %v405 = vadd.f32 %v349, %v404
  %406 = vmatmul.f32.gmra.mxu0 %v62
  %v407 = vpop.f32.mrf.mxu0
  %v408 = vadd.f32 %v352, %v407
  %409 = vmatmul.f32.gmra.mxu0 %v67
  %v410 = vpop.f32.mrf.mxu0
  %v411 = vadd.f32 %v355, %v410
  %412 = vmatmul.f32.gmra.mxu0 %v72
  %v413 = vpop.f32.mrf.mxu0
  %v414 = vadd.f32 %v358, %v413
  %415 = vmatmul.f32.gmra.mxu0 %v77
  %v416 = vpop.f32.mrf.mxu0
  %v417 = vadd.f32 %v361, %v416
  %418 = vdwg.mxu0
  %419 = vmatpush.msra.mxu0 0.0
  %420 = vmatpush.msra.mxu0 0.0
  %421 = vmatpush.msra.mxu0 0.0
  %422 = vmatpush.msra.mxu0 0.0
  %423 = vmatpush.msra.mxu0 0.0
  %424 = vmatpush.msra.mxu0 0.0
  %425 = vmatpush.msra.mxu0 0.0
  %426 = vmatpush.msra.mxu0 0.0
  %427 = vmatpush.msra.mxu0 %v150
  %428 = vmatpush.msra.mxu0 %v149
  %429 = vmatpush.msra.mxu0 %v148
  %430 = vmatpush.msra.mxu0 %v147
  %431 = vmatpush.msra.mxu0 %v146
  %432 = vmatpush.msra.mxu0 %v145
  %433 = vmatpush.msra.mxu0 %v144
  %434 = vmatpush.msra.mxu0 %v143
  %435 = vmatmul.f32.gmra.mxu0 %v157
  %v436 = vpop.f32.mrf.mxu0
  %v437 = vadd.f32 %v381, %v436
  %438 = vmatmul.f32.gmra.mxu0 %v160
  %v439 = vpop.f32.mrf.mxu0
  %v440 = vadd.f32 %v384, %v439
  %441 = vmatmul.f32.gmra.mxu0 %v163
  %v442 = vpop.f32.mrf.mxu0
  %v443 = vadd.f32 %v387, %v442
  %444 = vmatmul.f32.gmra.mxu0 %v166
  %v445 = vpop.f32.mrf.mxu0
  %v446 = vadd.f32 %v390, %v445
  %447 = vmatmul.f32.gmra.mxu0 %v169
  %v448 = vpop.f32.mrf.mxu0
  %v449 = vadd.f32 %v393, %v448
  %450 = vmatmul.f32.gmra.mxu0 %v172
  %v451 = vpop.f32.mrf.mxu0
  %v452 = vadd.f32 %v396, %v451
  %453 = vmatmul.f32.gmra.mxu0 %v175
  %v454 = vpop.f32.mrf.mxu0
  %v455 = vadd.f32 %v399, %v454
  %456 = vmatmul.f32.gmra.mxu0 %v178
  %v457 = vpop.f32.mrf.mxu0
  %v458 = vadd.f32 %v402, %v457
  %459 = vmatmul.f32.gmra.mxu0 %v181
  %v460 = vpop.f32.mrf.mxu0
  %v461 = vadd.f32 %v405, %v460
  %462 = vmatmul.f32.gmra.mxu0 %v184
  %v463 = vpop.f32.mrf.mxu0
  %v464 = vadd.f32 %v408, %v463
  %465 = vmatmul.f32.gmra.mxu0 %v187
  %v466 = vpop.f32.mrf.mxu0
  %v467 = vadd.f32 %v411, %v466
  %468 = vmatmul.f32.gmra.mxu0 %v190
  %v469 = vpop.f32.mrf.mxu0
  %v470 = vadd.f32 %v414, %v469
  %471 = vmatmul.f32.gmra.mxu0 %v193
  %v472 = vpop.f32.mrf.mxu0
  %v473 = vadd.f32 %v417, %v472
  %474 = vdwg.mxu0
  %v475 = vmax.f32 %v437, 0.0
  %v476 = vmax.f32 %v440, 0.0
  %v477 = vmax.f32 %v443, 0.0
  %v478 = vmax.f32 %v446, 0.0
  %v479 = vmax.f32 %v449, 0.0
  %v480 = vmax.f32 %v452, 0.0
  %v481 = vmax.f32 %v455, 0.0
  %v482 = vmax.f32 %v458, 0.0
  %v483 = vmax.f32 %v461, 0.0
  %v484 = vmax.f32 %v464, 0.0
  %v485 = vmax.f32 %v467, 0.0
  %v486 = vmax.f32 %v470, 0.0
  %v487 = vmax.f32 %v473, 0.0
  %vm488 = vcmask 261120
  %489 = vst.msk [vmem:[%s3] sm:$0xff] %vm488, %v475
  %490 = vst.msk [vmem:[%s3 + $0x8] sm:$0xff] %vm488, %v476
  %491 = vst.msk [vmem:[%s3 + $0x10] sm:$0xff] %vm488, %v477
  %492 = vst.msk [vmem:[%s3 + $0x18] sm:$0xff] %vm488, %v478
  %493 = vst.msk [vmem:[%s3 + $0x20] sm:$0xff] %vm488, %v479
  %494 = vst.msk [vmem:[%s3 + $0x28] sm:$0xff] %vm488, %v480
  %495 = vst.msk [vmem:[%s3 + $0x30] sm:$0xff] %vm488, %v481
  %496 = vst.msk [vmem:[%s3 + $0x38] sm:$0xff] %vm488, %v482
  %497 = vst.msk [vmem:[%s3 + $0x40] sm:$0xff] %vm488, %v483
  %498 = vst.msk [vmem:[%s3 + $0x48] sm:$0xff] %vm488, %v484
  %499 = vst.msk [vmem:[%s3 + $0x50] sm:$0xff] %vm488, %v485
  %500 = vst.msk [vmem:[%s3 + $0x58] sm:$0xff] %vm488, %v486
  %vm501 = vcmask 254976
  %502 = vst.msk [vmem:[%s3 + $0x60] sm:$0x3] %vm501, %v487
  // Predicated region
  $region14: #{cnn_policy_forward.6} parent=0 // pred_check
    _
  $region15: #{cnn_policy_forward.6} parent=0 // pred_check_branch
    %504 = sbr.rel (0) target = $region17
  $region16: #{cnn_policy_forward.6} parent=0 // pred_region
    _
  $region17: #{cnn_policy_forward.6} parent=0 // pred_fallthru
    _
  // Predicated region
  $region18: #{cnn_policy_forward.6} parent=0 // pred_check
    _
  $region19: #{cnn_policy_forward.6} parent=0 // pred_check_branch
    %506 = sbr.rel (0) target = $region21
  $region20: #{cnn_policy_forward.6} parent=0 // pred_region
    _
  $region21: #{cnn_policy_forward.6} parent=0 // pred_fallthru
    _

// kernel: cnn_policy_forward.7
$region0: #{cnn_policy_forward.7}
  #allocation0 [shape = 'u32[]', space=smem, size = 0x4, offset = 0x4, fixed_abs, tag = 'smem constant byte address 0x4 - core index']
  #allocation1 [shape = 'u32[72,128]{1,0:T(1,128)}', space=vmem, size = 0x9000, scoped, tag = 'internal scratch']
  #allocation2 [shape = 'f32[1,1]{1,0:T(1,128)S(1)}', space=vmem, size = 0x200, scoped, tag = 'scoped memory for cnn_policy_forward.7']
  %s0 = inlined_call_operand.vmem [shape: f32[2,1568], index: 0, kind: input, shape index: {}]
  %s1 = inlined_call_operand.vmem [shape: f32[2,256], index: 1, kind: input, shape index: {}]
  %s2 = inlined_call_operand.vmem [shape: f32[2,1], index: 2, kind: input, shape index: {}]
  %s3 = inlined_call_operand.vmem [shape: f32[1568,512], index: 3, kind: input, shape index: {}]
  %s4 = inlined_call_operand.vmem [shape: f32[1,512], index: 4, kind: input, shape index: {}]
  %s5 = inlined_call_operand.vmem [shape: f32[512,768], index: 5, kind: input, shape index: {}]
  %s6 = inlined_call_operand.vmem [shape: f32[256,768], index: 6, kind: input, shape index: {}]
  %s7 = inlined_call_operand.vmem [shape: f32[1,768], index: 7, kind: input, shape index: {}]
  %s8 = inlined_call_operand.vmem [shape: f32[1,768], index: 8, kind: input, shape index: {}]
  %s9 = inlined_call_operand.vmem [shape: f32[256,1], index: 9, kind: input, shape index: {}]
  %s10 = inlined_call_operand.<no memory space> [shape: f32[1,1], index: 10, kind: input, shape index: {}]
  %s11 = inlined_call_operand.vmem [shape: f32[2,1], index: 11, kind: output, shape index: {0}]
  %s12 = inlined_call_operand.vmem [shape: f32[2,256], index: 12, kind: output, shape index: {1}]
  %13 = xla_tuple %s11, %s12
  %s14 = sld [smem:[#allocation0]]
  $region62: #{cnn_policy_forward.7} parent=0
    _
  %s16 = ssub.s32 1, %s14
  %s17 = scalar_select 0, %s16, %s14
  %v18 = vstv %s10
  %19 = vst [vmem:[#allocation2] sm:$0x1] %v18
  // Predicated region
  $region2: #{cnn_policy_forward.7} parent=0 // pred_check
    _
  $region3: #{cnn_policy_forward.7} parent=0 // pred_check_branch
    %21 = sbr.rel (0) target = $region5
  $region4: #{cnn_policy_forward.7} parent=0 // pred_region
    _
  $region5: #{cnn_policy_forward.7} parent=0 // pred_fallthru
    _
  // Predicated region
  $region6: #{cnn_policy_forward.7} parent=0 // pred_check
    _
  $region7: #{cnn_policy_forward.7} parent=0 // pred_check_branch
    %23 = sbr.rel (0) target = $region9
  $region8: #{cnn_policy_forward.7} parent=0 // pred_region
    _
  $region9: #{cnn_policy_forward.7} parent=0 // pred_fallthru
    _
  // Predicated region
  $region10: #{cnn_policy_forward.7} parent=0 // pred_check
    _
  $region11: #{cnn_policy_forward.7} parent=0 // pred_check_branch
    %25 = sbr.rel (0) target = $region13
  $region12: #{cnn_policy_forward.7} parent=0 // pred_region
    _
  $region13: #{cnn_policy_forward.7} parent=0 // pred_fallthru
    _
  // Predicated region
  $region14: #{cnn_policy_forward.7} parent=0 // pred_check
    _
  $region15: #{cnn_policy_forward.7} parent=0 // pred_check_branch
    %27 = sbr.rel (0) target = $region17
  $region16: #{cnn_policy_forward.7} parent=0 // pred_region
    _
  $region17: #{cnn_policy_forward.7} parent=0 // pred_fallthru
    _
  // Predicated region
  $region18: #{cnn_policy_forward.7} parent=0 // pred_check
    _
  $region19: #{cnn_policy_forward.7} parent=0 // pred_check_branch
    %29 = sbr.rel (0) target = $region21
  $region20: #{cnn_policy_forward.7} parent=0 // pred_region
    _
  $region21: #{cnn_policy_forward.7} parent=0 // pred_fallthru
    _
  // Predicated region
  $region22: #{cnn_policy_forward.7} parent=0 // pred_check
    _
  $region23: #{cnn_policy_forward.7} parent=0 // pred_check_branch
    %31 = sbr.rel (0) target = $region25
  $region24: #{cnn_policy_forward.7} parent=0 // pred_region
    _
  $region25: #{cnn_policy_forward.7} parent=0 // pred_fallthru
    _
  // Predicated region
  $region26: #{cnn_policy_forward.7} parent=0 // pred_check
    _
  $region27: #{cnn_policy_forward.7} parent=0 // pred_check_branch
    %33 = sbr.rel (0) target = $region29
  $region28: #{cnn_policy_forward.7} parent=0 // pred_region
    _
  $region29: #{cnn_policy_forward.7} parent=0 // pred_fallthru
    _
  // Predicated region
  $region30: #{cnn_policy_forward.7} parent=0 // pred_check
    _
  $region31: #{cnn_policy_forward.7} parent=0 // pred_check_branch
    %35 = sbr.rel (0) target = $region33
  $region32: #{cnn_policy_forward.7} parent=0 // pred_region
    _
  $region33: #{cnn_policy_forward.7} parent=0 // pred_fallthru
    _
  // Predicated region
  $region34: #{cnn_policy_forward.7} parent=0 // pred_check
    _
  $region35: #{cnn_policy_forward.7} parent=0 // pred_check_branch
    %37 = sbr.rel (0) target = $region37
  $region36: #{cnn_policy_forward.7} parent=0 // pred_region
    _
  $region37: #{cnn_policy_forward.7} parent=0 // pred_fallthru
    _
  // Predicated region
  $region38: #{cnn_policy_forward.7} parent=0 // pred_check
    _
  $region39: #{cnn_policy_forward.7} parent=0 // pred_check_branch
    %39 = sbr.rel (0) target = $region41
  $region40: #{cnn_policy_forward.7} parent=0 // pred_region
    _
  $region41: #{cnn_policy_forward.7} parent=0 // pred_fallthru
    _
  // Predicated region
  $region42: #{cnn_policy_forward.7} parent=0 // pred_check
    _
  $region43: #{cnn_policy_forward.7} parent=0 // pred_check_branch
    %41 = sbr.rel (0) target = $region45
  $region44: #{cnn_policy_forward.7} parent=0 // pred_region
    _
  $region45: #{cnn_policy_forward.7} parent=0 // pred_fallthru
    _
  %v42 = vld [vmem:[%s0] sm:$0xff]
  %v43 = vld [vmem:[%s0 + $0x8] sm:$0xff]
  %v44 = vld [vmem:[%s0 + $0x10] sm:$0xff]
  %v45 = vld [vmem:[%s0 + $0x18] sm:$0x3]
  %v46 = vld [vmem:[%s3] sm:$0xff]
  %v47 = vld [vmem:[%s3 + $0x8] sm:$0xff]
  %v48 = vld [vmem:[%s3 + $0x10] sm:$0xff]
  %v49 = vld [vmem:[%s3 + $0x18] sm:$0xff]
  %v50 = vld [vmem:[%s3 + $0x20] sm:$0xff]
  %v51 = vld [vmem:[%s3 + $0x28] sm:$0xff]
  %v52 = vld [vmem:[%s3 + $0x30] sm:$0xff]
  %v53 = vld [vmem:[%s3 + $0x38] sm:$0xff]
  %v54 = vld [vmem:[%s3 + $0x40] sm:$0xff]
  %v55 = vld [vmem:[%s3 + $0x48] sm:$0xff]
  %v56 = vld [vmem:[%s3 + $0x50] sm:$0xff]
  %v57 = vld [vmem:[%s3 + $0x58] sm:$0xff]
  %v58 = vld [vmem:[%s3 + $0x60] sm:$0xff]
  %v59 = vld [vmem:[%s3 + $0x68] sm:$0xff]
  %v60 = vld [vmem:[%s3 + $0x70] sm:$0xff]
  %v61 = vld [vmem:[%s3 + $0x78] sm:$0xff]
  %v62 = vld [vmem:[%s3 + $0x80] sm:$0xff]
  %v63 = vld [vmem:[%s3 + $0x88] sm:$0xff]
  %v64 = vld [vmem:[%s3 + $0x90] sm:$0xff]
  %v65 = vld [vmem:[%s3 + $0x98] sm:$0xff]
  %v66 = vld [vmem:[%s3 + $0xa0] sm:$0xff]
  %v67 = vld [vmem:[%s3 + $0xa8] sm:$0xff]
  %v68 = vld [vmem:[%s3 + $0xb0] sm:$0xff]
  %v69 = vld [vmem:[%s3 + $0xb8] sm:$0xff]
  %v70 = vld [vmem:[%s3 + $0xc0] sm:$0xff]
  %v71 = vld [vmem:[%s3 + $0xc8] sm:$0xff]
  %v72 = vld [vmem:[%s3 + $0xd0] sm:$0xff]
  %v73 = vld [vmem:[%s3 + $0xd8] sm:$0xff]
  %v74 = vld [vmem:[%s3 + $0xe0] sm:$0xff]
  %v75 = vld [vmem:[%s3 + $0xe8] sm:$0xff]
  %v76 = vld [vmem:[%s3 + $0xf0] sm:$0xff]
  %v77 = vld [vmem:[%s3 + $0xf8] sm:$0xff]
  %v78 = vld [vmem:[%s3 + $0x100] sm:$0xff]
  %v79 = vld [vmem:[%s3 + $0x108] sm:$0xff]
  %v80 = vld [vmem:[%s3 + $0x110] sm:$0xff]
  %v81 = vld [vmem:[%s3 + $0x118] sm:$0xff]
  %v82 = vld [vmem:[%s3 + $0x120] sm:$0xff]
  %v83 = vld [vmem:[%s3 + $0x128] sm:$0xff]
  %v84 = vld [vmem:[%s3 + $0x130] sm:$0xff]
  %v85 = vld [vmem:[%s3 + $0x138] sm:$0xff]
  %v86 = vld [vmem:[%s3 + $0x140] sm:$0xff]
  %v87 = vld [vmem:[%s3 + $0x148] sm:$0xff]
  %v88 = vld [vmem:[%s3 + $0x150] sm:$0xff]
  %v89 = vld [vmem:[%s3 + $0x158] sm:$0xff]
  %v90 = vld [vmem:[%s3 + $0x160] sm:$0xff]
  %v91 = vld [vmem:[%s3 + $0x168] sm:$0xff]
  %v92 = vld [vmem:[%s3 + $0x170] sm:$0xff]
  %v93 = vld [vmem:[%s3 + $0x178] sm:$0xff]
  %v94 = vld [vmem:[%s3 + $0x180] sm:$0xff]
  %v95 = vld [vmem:[%s3 + $0x188] sm:$0xff]
  %v96 = vld [vmem:[%s3 + $0x190] sm:$0xff]
  %v97 = vld [vmem:[%s3 + $0x198] sm:$0xff]
  %v98 = vld [vmem:[%s3 + $0x1a0] sm:$0xff]
  %v99 = vld [vmem:[%s3 + $0x1a8] sm:$0xff]
  %v100 = vld [vmem:[%s3 + $0x1b0] sm:$0xff]
  %v101 = vld [vmem:[%s3 + $0x1b8] sm:$0xff]
  %v102 = vld [vmem:[%s3 + $0x1c0] sm:$0xff]
  %v103 = vld [vmem:[%s3 + $0x1c8] sm:$0xff]
  %v104 = vld [vmem:[%s3 + $0x1d0] sm:$0xff]
  %v105 = vld [vmem:[%s3 + $0x1d8] sm:$0xff]
  %v106 = vld [vmem:[%s3 + $0x1e0] sm:$0xff]
  %v107 = vld [vmem:[%s3 + $0x1e8] sm:$0xff]
  %v108 = vld [vmem:[%s3 + $0x1f0] sm:$0xff]
  %v109 = vld [vmem:[%s3 + $0x1f8] sm:$0xff]
  %v110 = vld [vmem:[%s3 + $0x200] sm:$0xff]
  %v111 = vld [vmem:[%s3 + $0x208] sm:$0xff]
  %v112 = vld [vmem:[%s3 + $0x210] sm:$0xff]
  %v113 = vld [vmem:[%s3 + $0x218] sm:$0xff]
  %v114 = vld [vmem:[%s3 + $0x220] sm:$0xff]
  %v115 = vld [vmem:[%s3 + $0x228] sm:$0xff]
  %v116 = vld [vmem:[%s3 + $0x230] sm:$0xff]
  %v117 = vld [vmem:[%s3 + $0x238] sm:$0xff]
  %v118 = vld [vmem:[%s3 + $0x240] sm:$0xff]
  %v119 = vld [vmem:[%s3 + $0x248] sm:$0xff]
  %v120 = vld [vmem:[%s3 + $0x250] sm:$0xff]
  %v121 = vld [vmem:[%s3 + $0x258] sm:$0xff]
  %v122 = vld [vmem:[%s3 + $0x260] sm:$0xff]
  %v123 = vld [vmem:[%s3 + $0x268] sm:$0xff]
  %v124 = vld [vmem:[%s3 + $0x270] sm:$0xff]
  %v125 = vld [vmem:[%s3 + $0x278] sm:$0xff]
  %v126 = vld [vmem:[%s3 + $0x280] sm:$0xff]
  %v127 = vld [vmem:[%s3 + $0x288] sm:$0xff]
  %v128 = vld [vmem:[%s3 + $0x290] sm:$0xff]
  %v129 = vld [vmem:[%s3 + $0x298] sm:$0xff]
  %v130 = vld [vmem:[%s3 + $0x2a0] sm:$0xff]
  %v131 = vld [vmem:[%s3 + $0x2a8] sm:$0xff]
  %v132 = vld [vmem:[%s3 + $0x2b0] sm:$0xff]
  %v133 = vld [vmem:[%s3 + $0x2b8] sm:$0xff]
  %v134 = vld [vmem:[%s3 + $0x2c0] sm:$0xff]
  %v135 = vld [vmem:[%s3 + $0x2c8] sm:$0xff]
  %v136 = vld [vmem:[%s3 + $0x2d0] sm:$0xff]
  %v137 = vld [vmem:[%s3 + $0x2d8] sm:$0xff]
  %v138 = vld [vmem:[%s3 + $0x2e0] sm:$0xff]
  %v139 = vld [vmem:[%s3 + $0x2e8] sm:$0xff]
  %v140 = vld [vmem:[%s3 + $0x2f0] sm:$0xff]
  %v141 = vld [vmem:[%s3 + $0x2f8] sm:$0xff]
  %v142 = vld [vmem:[%s3 + $0x300] sm:$0xff]
  %v143 = vld [vmem:[%s3 + $0x308] sm:$0xff]
  %v144 = vld [vmem:[%s3 + $0x310] sm:$0xff]
  %v145 = vld [vmem:[%s3 + $0x318] sm:$0xff]
  %v146 = vld [vmem:[%s3 + $0x320] sm:$0xff]
  %v147 = vld [vmem:[%s3 + $0x328] sm:$0xff]
  %v148 = vld [vmem:[%s3 + $0x330] sm:$0xff]
  %v149 = vld [vmem:[%s3 + $0x338] sm:$0xff]
  %v150 = vld [vmem:[%s3 + $0x340] sm:$0xff]
  %v151 = vld [vmem:[%s3 + $0x348] sm:$0xff]
  %v152 = vld [vmem:[%s3 + $0x350] sm:$0xff]
  %v153 = vld [vmem:[%s3 + $0x358] sm:$0xff]
  %v154 = vld [vmem:[%s3 + $0x360] sm:$0xff]
  %v155 = vld [vmem:[%s3 + $0x368] sm:$0xff]
  %v156 = vld [vmem:[%s3 + $0x370] sm:$0xff]
  %v157 = vld [vmem:[%s3 + $0x378] sm:$0xff]
  %v158 = vld [vmem:[%s3 + $0x380] sm:$0xff]
  %v159 = vld [vmem:[%s3 + $0x388] sm:$0xff]
  %v160 = vld [vmem:[%s3 + $0x390] sm:$0xff]
  %v161 = vld [vmem:[%s3 + $0x398] sm:$0xff]
  %v162 = vld [vmem:[%s3 + $0x3a0] sm:$0xff]
  %v163 = vld [vmem:[%s3 + $0x3a8] sm:$0xff]
  %v164 = vld [vmem:[%s3 + $0x3b0] sm:$0xff]
  %v165 = vld [vmem:[%s3 + $0x3b8] sm:$0xff]
  %v166 = vld [vmem:[%s3 + $0x3c0] sm:$0xff]
  %v167 = vld [vmem:[%s3 + $0x3c8] sm:$0xff]
  %v168 = vld [vmem:[%s3 + $0x3d0] sm:$0xff]
  %v169 = vld [vmem:[%s3 + $0x3d8] sm:$0xff]
  %v170 = vld [vmem:[%s3 + $0x3e0] sm:$0xff]
  %v171 = vld [vmem:[%s3 + $0x3e8] sm:$0xff]
  %v172 = vld [vmem:[%s3 + $0x3f0] sm:$0xff]
  %v173 = vld [vmem:[%s3 + $0x3f8] sm:$0xff]
  %v174 = vld [vmem:[%s3 + $0x400] sm:$0xff]
  %v175 = vld [vmem:[%s3 + $0x408] sm:$0xff]
  %v176 = vld [vmem:[%s3 + $0x410] sm:$0xff]
  %v177 = vld [vmem:[%s3 + $0x418] sm:$0xff]
  %v178 = vld [vmem:[%s3 + $0x420] sm:$0xff]
  %v179 = vld [vmem:[%s3 + $0x428] sm:$0xff]
  %v180 = vld [vmem:[%s3 + $0x430] sm:$0xff]
  %v181 = vld [vmem:[%s3 + $0x438] sm:$0xff]
  %v182 = vld [vmem:[%s3 + $0x440] sm:$0xff]
  %v183 = vld [vmem:[%s3 + $0x448] sm:$0xff]
  %v184 = vld [vmem:[%s3 + $0x450] sm:$0xff]
  %v185 = vld [vmem:[%s3 + $0x458] sm:$0xff]
  %v186 = vld [vmem:[%s3 + $0x460] sm:$0xff]
  %v187 = vld [vmem:[%s3 + $0x468] sm:$0xff]
  %v188 = vld [vmem:[%s3 + $0x470] sm:$0xff]
  %v189 = vld [vmem:[%s3 + $0x478] sm:$0xff]
  %v190 = vld [vmem:[%s3 + $0x480] sm:$0xff]
  %v191 = vld [vmem:[%s3 + $0x488] sm:$0xff]
  %v192 = vld [vmem:[%s3 + $0x490] sm:$0xff]
  %v193 = vld [vmem:[%s3 + $0x498] sm:$0xff]
  %v194 = vld [vmem:[%s3 + $0x4a0] sm:$0xff]
  %v195 = vld [vmem:[%s3 + $0x4a8] sm:$0xff]
  %v196 = vld [vmem:[%s3 + $0x4b0] sm:$0xff]
  %v197 = vld [vmem:[%s3 + $0x4b8] sm:$0xff]
  %v198 = vld [vmem:[%s3 + $0x4c0] sm:$0xff]
  %v199 = vld [vmem:[%s3 + $0x4c8] sm:$0xff]
  %v200 = vld [vmem:[%s3 + $0x4d0] sm:$0xff]
  %v201 = vld [vmem:[%s3 + $0x4d8] sm:$0xff]
  %v202 = vld [vmem:[%s3 + $0x4e0] sm:$0xff]
  %v203 = vld [vmem:[%s3 + $0x4e8] sm:$0xff]
  %v204 = vld [vmem:[%s3 + $0x4f0] sm:$0xff]
  %v205 = vld [vmem:[%s3 + $0x4f8] sm:$0xff]
  %v206 = vld [vmem:[%s3 + $0x500] sm:$0xff]
  %v207 = vld [vmem:[%s3 + $0x508] sm:$0xff]
  %v208 = vld [vmem:[%s3 + $0x510] sm:$0xff]
  %v209 = vld [vmem:[%s3 + $0x518] sm:$0xff]
  %v210 = vld [vmem:[%s3 + $0x520] sm:$0xff]
  %v211 = vld [vmem:[%s3 + $0x528] sm:$0xff]
  %v212 = vld [vmem:[%s3 + $0x530] sm:$0xff]
  %v213 = vld [vmem:[%s3 + $0x538] sm:$0xff]
  %v214 = vld [vmem:[%s3 + $0x540] sm:$0xff]
  %v215 = vld [vmem:[%s3 + $0x548] sm:$0xff]
  %v216 = vld [vmem:[%s3 + $0x550] sm:$0xff]
  %v217 = vld [vmem:[%s3 + $0x558] sm:$0xff]
  %v218 = vld [vmem:[%s3 + $0x560] sm:$0xff]
  %v219 = vld [vmem:[%s3 + $0x568] sm:$0xff]
  %v220 = vld [vmem:[%s3 + $0x570] sm:$0xff]
  %v221 = vld [vmem:[%s3 + $0x578] sm:$0xff]
  %v222 = vld [vmem:[%s3 + $0x580] sm:$0xff]
  %v223 = vld [vmem:[%s3 + $0x588] sm:$0xff]
  %v224 = vld [vmem:[%s3 + $0x590] sm:$0xff]
  %v225 = vld [vmem:[%s3 + $0x598] sm:$0xff]
  %v226 = vld [vmem:[%s3 + $0x5a0] sm:$0xff]
  %v227 = vld [vmem:[%s3 + $0x5a8] sm:$0xff]
  %v228 = vld [vmem:[%s3 + $0x5b0] sm:$0xff]
  %v229 = vld [vmem:[%s3 + $0x5b8] sm:$0xff]
  %v230 = vld [vmem:[%s3 + $0x5c0] sm:$0xff]
  %v231 = vld [vmem:[%s3 + $0x5c8] sm:$0xff]
  %v232 = vld [vmem:[%s3 + $0x5d0] sm:$0xff]
  %v233 = vld [vmem:[%s3 + $0x5d8] sm:$0xff]
  %v234 = vld [vmem:[%s3 + $0x5e0] sm:$0xff]
  %v235 = vld [vmem:[%s3 + $0x5e8] sm:$0xff]
  %v236 = vld [vmem:[%s3 + $0x5f0] sm:$0xff]
  %v237 = vld [vmem:[%s3 + $0x5f8] sm:$0xff]
  %v238 = vld [vmem:[%s3 + $0x600] sm:$0xff]
  %v239 = vld [vmem:[%s3 + $0x608] sm:$0xff]
  %v240 = vld [vmem:[%s3 + $0x610] sm:$0xff]
  %v241 = vld [vmem:[%s3 + $0x618] sm:$0xff]
  %v242 = vld [vmem:[%s3 + $0x620] sm:$0xff]
  %v243 = vld [vmem:[%s3 + $0x628] sm:$0xff]
  %v244 = vld [vmem:[%s3 + $0x630] sm:$0xff]
  %v245 = vld [vmem:[%s3 + $0x638] sm:$0xff]
  %v246 = vld [vmem:[%s3 + $0x640] sm:$0xff]
  %v247 = vld [vmem:[%s3 + $0x648] sm:$0xff]
  %v248 = vld [vmem:[%s3 + $0x650] sm:$0xff]
  %v249 = vld [vmem:[%s3 + $0x658] sm:$0xff]
  %v250 = vld [vmem:[%s3 + $0x660] sm:$0xff]
  %v251 = vld [vmem:[%s3 + $0x668] sm:$0xff]
  %v252 = vld [vmem:[%s3 + $0x670] sm:$0xff]
  %v253 = vld [vmem:[%s3 + $0x678] sm:$0xff]
  %v254 = vld [vmem:[%s3 + $0x680] sm:$0xff]
  %v255 = vld [vmem:[%s3 + $0x688] sm:$0xff]
  %v256 = vld [vmem:[%s3 + $0x690] sm:$0xff]
  %v257 = vld [vmem:[%s3 + $0x698] sm:$0xff]
  %v258 = vld [vmem:[%s3 + $0x6a0] sm:$0xff]
  %v259 = vld [vmem:[%s3 + $0x6a8] sm:$0xff]
  %v260 = vld [vmem:[%s3 + $0x6b0] sm:$0xff]
  %v261 = vld [vmem:[%s3 + $0x6b8] sm:$0xff]
  %v262 = vld [vmem:[%s3 + $0x6c0] sm:$0xff]
  %v263 = vld [vmem:[%s3 + $0x6c8] sm:$0xff]
  %v264 = vld [vmem:[%s3 + $0x6d0] sm:$0xff]
  %v265 = vld [vmem:[%s3 + $0x6d8] sm:$0xff]
  %v266 = vld [vmem:[%s3 + $0x6e0] sm:$0xff]
  %v267 = vld [vmem:[%s3 + $0x6e8] sm:$0xff]
  %v268 = vld [vmem:[%s3 + $0x6f0] sm:$0xff]
  %v269 = vld [vmem:[%s3 + $0x6f8] sm:$0xff]
  %v270 = vld [vmem:[%s3 + $0x700] sm:$0xff]
  %v271 = vld [vmem:[%s3 + $0x708] sm:$0xff]
  %v272 = vld [vmem:[%s3 + $0x710] sm:$0xff]
  %v273 = vld [vmem:[%s3 + $0x718] sm:$0xff]
  %v274 = vld [vmem:[%s3 + $0x720] sm:$0xff]
  %v275 = vld [vmem:[%s3 + $0x728] sm:$0xff]
  %v276 = vld [vmem:[%s3 + $0x730] sm:$0xff]
  %v277 = vld [vmem:[%s3 + $0x738] sm:$0xff]
  %v278 = vld [vmem:[%s3 + $0x740] sm:$0xff]
  %v279 = vld [vmem:[%s3 + $0x748] sm:$0xff]
  %v280 = vld [vmem:[%s3 + $0x750] sm:$0xff]
  %v281 = vld [vmem:[%s3 + $0x758] sm:$0xff]
  %v282 = vld [vmem:[%s3 + $0x760] sm:$0xff]
  %v283 = vld [vmem:[%s3 + $0x768] sm:$0xff]
  %v284 = vld [vmem:[%s3 + $0x770] sm:$0xff]
  %v285 = vld [vmem:[%s3 + $0x778] sm:$0xff]
  %v286 = vld [vmem:[%s3 + $0x780] sm:$0xff]
  %v287 = vld [vmem:[%s3 + $0x788] sm:$0xff]
  %v288 = vld [vmem:[%s3 + $0x790] sm:$0xff]
  %v289 = vld [vmem:[%s3 + $0x798] sm:$0xff]
  %v290 = vld [vmem:[%s3 + $0x7a0] sm:$0xff]
  %v291 = vld [vmem:[%s3 + $0x7a8] sm:$0xff]
  %v292 = vld [vmem:[%s3 + $0x7b0] sm:$0xff]
  %v293 = vld [vmem:[%s3 + $0x7b8] sm:$0xff]
  %v294 = vld [vmem:[%s3 + $0x7c0] sm:$0xff]
  %v295 = vld [vmem:[%s3 + $0x7c8] sm:$0xff]
  %v296 = vld [vmem:[%s3 + $0x7d0] sm:$0xff]
  %v297 = vld [vmem:[%s3 + $0x7d8] sm:$0xff]
  %v298 = vld [vmem:[%s3 + $0x7e0] sm:$0xff]
  %v299 = vld [vmem:[%s3 + $0x7e8] sm:$0xff]
  %v300 = vld [vmem:[%s3 + $0x7f0] sm:$0xff]
  %v301 = vld [vmem:[%s3 + $0x7f8] sm:$0xff]
  %v302 = vld [vmem:[%s3 + $0x800] sm:$0xff]
  %v303 = vld [vmem:[%s3 + $0x808] sm:$0xff]
  %v304 = vld [vmem:[%s3 + $0x810] sm:$0xff]
  %v305 = vld [vmem:[%s3 + $0x818] sm:$0xff]
  %v306 = vld [vmem:[%s3 + $0x820] sm:$0xff]
  %v307 = vld [vmem:[%s3 + $0x828] sm:$0xff]
  %v308 = vld [vmem:[%s3 + $0x830] sm:$0xff]
  %v309 = vld [vmem:[%s3 + $0x838] sm:$0xff]
  %v310 = vld [vmem:[%s3 + $0x840] sm:$0xff]
  %v311 = vld [vmem:[%s3 + $0x848] sm:$0xff]
  %v312 = vld [vmem:[%s3 + $0x850] sm:$0xff]
  %v313 = vld [vmem:[%s3 + $0x858] sm:$0xff]
  %v314 = vld [vmem:[%s3 + $0x860] sm:$0xff]
  %v315 = vld [vmem:[%s3 + $0x868] sm:$0xff]
  %v316 = vld [vmem:[%s3 + $0x870] sm:$0xff]
  %v317 = vld [vmem:[%s3 + $0x878] sm:$0xff]
  %v318 = vld [vmem:[%s3 + $0x880] sm:$0xff]
  %v319 = vld [vmem:[%s3 + $0x888] sm:$0xff]
  %v320 = vld [vmem:[%s3 + $0x890] sm:$0xff]
  %v321 = vld [vmem:[%s3 + $0x898] sm:$0xff]
  %v322 = vld [vmem:[%s3 + $0x8a0] sm:$0xff]
  %v323 = vld [vmem:[%s3 + $0x8a8] sm:$0xff]
  %v324 = vld [vmem:[%s3 + $0x8b0] sm:$0xff]
  %v325 = vld [vmem:[%s3 + $0x8b8] sm:$0xff]
  %v326 = vld [vmem:[%s3 + $0x8c0] sm:$0xff]
  %v327 = vld [vmem:[%s3 + $0x8c8] sm:$0xff]
  %v328 = vld [vmem:[%s3 + $0x8d0] sm:$0xff]
  %v329 = vld [vmem:[%s3 + $0x8d8] sm:$0xff]
  %v330 = vld [vmem:[%s3 + $0x8e0] sm:$0xff]
  %v331 = vld [vmem:[%s3 + $0x8e8] sm:$0xff]
  %v332 = vld [vmem:[%s3 + $0x8f0] sm:$0xff]
  %v333 = vld [vmem:[%s3 + $0x8f8] sm:$0xff]
  %v334 = vld [vmem:[%s3 + $0x900] sm:$0xff]
  %v335 = vld [vmem:[%s3 + $0x908] sm:$0xff]
  %v336 = vld [vmem:[%s3 + $0x910] sm:$0xff]
  %v337 = vld [vmem:[%s3 + $0x918] sm:$0xff]
  %v338 = vld [vmem:[%s3 + $0x920] sm:$0xff]
  %v339 = vld [vmem:[%s3 + $0x928] sm:$0xff]
  %v340 = vld [vmem:[%s3 + $0x930] sm:$0xff]
  %v341 = vld [vmem:[%s3 + $0x938] sm:$0xff]
  %v342 = vld [vmem:[%s3 + $0x940] sm:$0xff]
  %v343 = vld [vmem:[%s3 + $0x948] sm:$0xff]
  %v344 = vld [vmem:[%s3 + $0x950] sm:$0xff]
  %v345 = vld [vmem:[%s3 + $0x958] sm:$0xff]
  %v346 = vld [vmem:[%s3 + $0x960] sm:$0xff]
  %v347 = vld [vmem:[%s3 + $0x968] sm:$0xff]
  %v348 = vld [vmem:[%s3 + $0x970] sm:$0xff]
  %v349 = vld [vmem:[%s3 + $0x978] sm:$0xff]
  %v350 = vld [vmem:[%s3 + $0x980] sm:$0xff]
  %v351 = vld [vmem:[%s3 + $0x988] sm:$0xff]
  %v352 = vld [vmem:[%s3 + $0x990] sm:$0xff]
  %v353 = vld [vmem:[%s3 + $0x998] sm:$0xff]
  %v354 = vld [vmem:[%s3 + $0x9a0] sm:$0xff]
  %v355 = vld [vmem:[%s3 + $0x9a8] sm:$0xff]
  %v356 = vld [vmem:[%s3 + $0x9b0] sm:$0xff]
  %v357 = vld [vmem:[%s3 + $0x9b8] sm:$0xff]
  %v358 = vld [vmem:[%s3 + $0x9c0] sm:$0xff]
  %v359 = vld [vmem:[%s3 + $0x9c8] sm:$0xff]
  %v360 = vld [vmem:[%s3 + $0x9d0] sm:$0xff]
  %v361 = vld [vmem:[%s3 + $0x9d8] sm:$0xff]
  %v362 = vld [vmem:[%s3 + $0x9e0] sm:$0xff]
  %v363 = vld [vmem:[%s3 + $0x9e8] sm:$0xff]
  %v364 = vld [vmem:[%s3 + $0x9f0] sm:$0xff]
  %v365 = vld [vmem:[%s3 + $0x9f8] sm:$0xff]
  %v366 = vld [vmem:[%s3 + $0xa00] sm:$0xff]
  %v367 = vld [vmem:[%s3 + $0xa08] sm:$0xff]
  %v368 = vld [vmem:[%s3 + $0xa10] sm:$0xff]
  %v369 = vld [vmem:[%s3 + $0xa18] sm:$0xff]
  %v370 = vld [vmem:[%s3 + $0xa20] sm:$0xff]
  %v371 = vld [vmem:[%s3 + $0xa28] sm:$0xff]
  %v372 = vld [vmem:[%s3 + $0xa30] sm:$0xff]
  %v373 = vld [vmem:[%s3 + $0xa38] sm:$0xff]
  %v374 = vld [vmem:[%s3 + $0xa40] sm:$0xff]
  %v375 = vld [vmem:[%s3 + $0xa48] sm:$0xff]
  %v376 = vld [vmem:[%s3 + $0xa50] sm:$0xff]
  %v377 = vld [vmem:[%s3 + $0xa58] sm:$0xff]
  %v378 = vld [vmem:[%s3 + $0xa60] sm:$0xff]
  %v379 = vld [vmem:[%s3 + $0xa68] sm:$0xff]
  %v380 = vld [vmem:[%s3 + $0xa70] sm:$0xff]
  %v381 = vld [vmem:[%s3 + $0xa78] sm:$0xff]
  %v382 = vld [vmem:[%s3 + $0xa80] sm:$0xff]
  %v383 = vld [vmem:[%s3 + $0xa88] sm:$0xff]
  %v384 = vld [vmem:[%s3 + $0xa90] sm:$0xff]
  %v385 = vld [vmem:[%s3 + $0xa98] sm:$0xff]
  %v386 = vld [vmem:[%s3 + $0xaa0] sm:$0xff]
  %v387 = vld [vmem:[%s3 + $0xaa8] sm:$0xff]
  %v388 = vld [vmem:[%s3 + $0xab0] sm:$0xff]
  %v389 = vld [vmem:[%s3 + $0xab8] sm:$0xff]
  %v390 = vld [vmem:[%s3 + $0xac0] sm:$0xff]
  %v391 = vld [vmem:[%s3 + $0xac8] sm:$0xff]
  %v392 = vld [vmem:[%s3 + $0xad0] sm:$0xff]
  %v393 = vld [vmem:[%s3 + $0xad8] sm:$0xff]
  %v394 = vld [vmem:[%s3 + $0xae0] sm:$0xff]
  %v395 = vld [vmem:[%s3 + $0xae8] sm:$0xff]
  %v396 = vld [vmem:[%s3 + $0xaf0] sm:$0xff]
  %v397 = vld [vmem:[%s3 + $0xaf8] sm:$0xff]
  %v398 = vld [vmem:[%s3 + $0xb00] sm:$0xff]
  %v399 = vld [vmem:[%s3 + $0xb08] sm:$0xff]
  %v400 = vld [vmem:[%s3 + $0xb10] sm:$0xff]
  %v401 = vld [vmem:[%s3 + $0xb18] sm:$0xff]
  %v402 = vld [vmem:[%s3 + $0xb20] sm:$0xff]
  %v403 = vld [vmem:[%s3 + $0xb28] sm:$0xff]
  %v404 = vld [vmem:[%s3 + $0xb30] sm:$0xff]
  %v405 = vld [vmem:[%s3 + $0xb38] sm:$0xff]
  %v406 = vld [vmem:[%s3 + $0xb40] sm:$0xff]
  %v407 = vld [vmem:[%s3 + $0xb48] sm:$0xff]
  %v408 = vld [vmem:[%s3 + $0xb50] sm:$0xff]
  %v409 = vld [vmem:[%s3 + $0xb58] sm:$0xff]
  %v410 = vld [vmem:[%s3 + $0xb60] sm:$0xff]
  %v411 = vld [vmem:[%s3 + $0xb68] sm:$0xff]
  %v412 = vld [vmem:[%s3 + $0xb70] sm:$0xff]
  %v413 = vld [vmem:[%s3 + $0xb78] sm:$0xff]
  %v414 = vld [vmem:[%s3 + $0xb80] sm:$0xff]
  %v415 = vld [vmem:[%s3 + $0xb88] sm:$0xff]
  %v416 = vld [vmem:[%s3 + $0xb90] sm:$0xff]
  %v417 = vld [vmem:[%s3 + $0xb98] sm:$0xff]
  %v418 = vld [vmem:[%s3 + $0xba0] sm:$0xff]
  %v419 = vld [vmem:[%s3 + $0xba8] sm:$0xff]
  %v420 = vld [vmem:[%s3 + $0xbb0] sm:$0xff]
  %v421 = vld [vmem:[%s3 + $0xbb8] sm:$0xff]
  %v422 = vld [vmem:[%s3 + $0xbc0] sm:$0xff]
  %v423 = vld [vmem:[%s3 + $0xbc8] sm:$0xff]
  %v424 = vld [vmem:[%s3 + $0xbd0] sm:$0xff]
  %v425 = vld [vmem:[%s3 + $0xbd8] sm:$0xff]
  %v426 = vld [vmem:[%s3 + $0xbe0] sm:$0xff]
  %v427 = vld [vmem:[%s3 + $0xbe8] sm:$0xff]
  %v428 = vld [vmem:[%s3 + $0xbf0] sm:$0xff]
  %v429 = vld [vmem:[%s3 + $0xbf8] sm:$0xff]
  %v430 = vld [vmem:[%s3 + $0xc00] sm:$0xff]
  %v431 = vld [vmem:[%s3 + $0xc08] sm:$0xff]
  %v432 = vld [vmem:[%s3 + $0xc10] sm:$0xff]
  %v433 = vld [vmem:[%s3 + $0xc18] sm:$0xff]
  %v434 = vld [vmem:[%s3 + $0xc20] sm:$0xff]
  %v435 = vld [vmem:[%s3 + $0xc28] sm:$0xff]
  %v436 = vld [vmem:[%s3 + $0xc30] sm:$0xff]
  %v437 = vld [vmem:[%s3 + $0xc38] sm:$0xff]
  %v438 = vld [vmem:[%s3 + $0xc40] sm:$0xff]
  %v439 = vld [vmem:[%s3 + $0xc48] sm:$0xff]
  %v440 = vld [vmem:[%s3 + $0xc50] sm:$0xff]
  %v441 = vld [vmem:[%s3 + $0xc58] sm:$0xff]
  %v442 = vld [vmem:[%s3 + $0xc60] sm:$0xff]
  %v443 = vld [vmem:[%s3 + $0xc68] sm:$0xff]
  %v444 = vld [vmem:[%s3 + $0xc70] sm:$0xff]
  %v445 = vld [vmem:[%s3 + $0xc78] sm:$0xff]
  %v446 = vld [vmem:[%s3 + $0xc80] sm:$0xff]
  %v447 = vld [vmem:[%s3 + $0xc88] sm:$0xff]
  %v448 = vld [vmem:[%s3 + $0xc90] sm:$0xff]
  %v449 = vld [vmem:[%s3 + $0xc98] sm:$0xff]
  %v450 = vld [vmem:[%s3 + $0xca0] sm:$0xff]
  %v451 = vld [vmem:[%s3 + $0xca8] sm:$0xff]
  %v452 = vld [vmem:[%s3 + $0xcb0] sm:$0xff]
  %v453 = vld [vmem:[%s3 + $0xcb8] sm:$0xff]
  %v454 = vld [vmem:[%s3 + $0xcc0] sm:$0xff]
  %v455 = vld [vmem:[%s3 + $0xcc8] sm:$0xff]
  %v456 = vld [vmem:[%s3 + $0xcd0] sm:$0xff]
  %v457 = vld [vmem:[%s3 + $0xcd8] sm:$0xff]
  %v458 = vld [vmem:[%s3 + $0xce0] sm:$0xff]
  %v459 = vld [vmem:[%s3 + $0xce8] sm:$0xff]
  %v460 = vld [vmem:[%s3 + $0xcf0] sm:$0xff]
  %v461 = vld [vmem:[%s3 + $0xcf8] sm:$0xff]
  %v462 = vld [vmem:[%s3 + $0xd00] sm:$0xff]
  %v463 = vld [vmem:[%s3 + $0xd08] sm:$0xff]
  %v464 = vld [vmem:[%s3 + $0xd10] sm:$0xff]
  %v465 = vld [vmem:[%s3 + $0xd18] sm:$0xff]
  %v466 = vld [vmem:[%s3 + $0xd20] sm:$0xff]
  %v467 = vld [vmem:[%s3 + $0xd28] sm:$0xff]
  %v468 = vld [vmem:[%s3 + $0xd30] sm:$0xff]
  %v469 = vld [vmem:[%s3 + $0xd38] sm:$0xff]
  %v470 = vld [vmem:[%s3 + $0xd40] sm:$0xff]
  %v471 = vld [vmem:[%s3 + $0xd48] sm:$0xff]
  %v472 = vld [vmem:[%s3 + $0xd50] sm:$0xff]
  %v473 = vld [vmem:[%s3 + $0xd58] sm:$0xff]
  %v474 = vld [vmem:[%s3 + $0xd60] sm:$0xff]
  %v475 = vld [vmem:[%s3 + $0xd68] sm:$0xff]
  %v476 = vld [vmem:[%s3 + $0xd70] sm:$0xff]
  %v477 = vld [vmem:[%s3 + $0xd78] sm:$0xff]
  %v478 = vld [vmem:[%s3 + $0xd80] sm:$0xff]
  %v479 = vld [vmem:[%s3 + $0xd88] sm:$0xff]
  %v480 = vld [vmem:[%s3 + $0xd90] sm:$0xff]
  %v481 = vld [vmem:[%s3 + $0xd98] sm:$0xff]
  %v482 = vld [vmem:[%s3 + $0xda0] sm:$0xff]
  %v483 = vld [vmem:[%s3 + $0xda8] sm:$0xff]
  %v484 = vld [vmem:[%s3 + $0xdb0] sm:$0xff]
  %v485 = vld [vmem:[%s3 + $0xdb8] sm:$0xff]
  %v486 = vld [vmem:[%s3 + $0xdc0] sm:$0xff]
  %v487 = vld [vmem:[%s3 + $0xdc8] sm:$0xff]
  %v488 = vld [vmem:[%s3 + $0xdd0] sm:$0xff]
  %v489 = vld [vmem:[%s3 + $0xdd8] sm:$0xff]
  %v490 = vld [vmem:[%s3 + $0xde0] sm:$0xff]
  %v491 = vld [vmem:[%s3 + $0xde8] sm:$0xff]
  %v492 = vld [vmem:[%s3 + $0xdf0] sm:$0xff]
  %v493 = vld [vmem:[%s3 + $0xdf8] sm:$0xff]
  %v494 = vld [vmem:[%s3 + $0xe00] sm:$0xff]
  %v495 = vld [vmem:[%s3 + $0xe08] sm:$0xff]
  %v496 = vld [vmem:[%s3 + $0xe10] sm:$0xff]
  %v497 = vld [vmem:[%s3 + $0xe18] sm:$0xff]
  %v498 = vld [vmem:[%s3 + $0xe20] sm:$0xff]
  %v499 = vld [vmem:[%s3 + $0xe28] sm:$0xff]
  %v500 = vld [vmem:[%s3 + $0xe30] sm:$0xff]
  %v501 = vld [vmem:[%s3 + $0xe38] sm:$0xff]
  %v502 = vld [vmem:[%s3 + $0xe40] sm:$0xff]
  %v503 = vld [vmem:[%s3 + $0xe48] sm:$0xff]
  %v504 = vld [vmem:[%s3 + $0xe50] sm:$0xff]
  %v505 = vld [vmem:[%s3 + $0xe58] sm:$0xff]
  %v506 = vld [vmem:[%s3 + $0xe60] sm:$0xff]
  %v507 = vld [vmem:[%s3 + $0xe68] sm:$0xff]
  %v508 = vld [vmem:[%s3 + $0xe70] sm:$0xff]
  %v509 = vld [vmem:[%s3 + $0xe78] sm:$0xff]
  %v510 = vld [vmem:[%s3 + $0xe80] sm:$0xff]
  %v511 = vld [vmem:[%s3 + $0xe88] sm:$0xff]
  %v512 = vld [vmem:[%s3 + $0xe90] sm:$0xff]
  %v513 = vld [vmem:[%s3 + $0xe98] sm:$0xff]
  %v514 = vld [vmem:[%s3 + $0xea0] sm:$0xff]
  %v515 = vld [vmem:[%s3 + $0xea8] sm:$0xff]
  %v516 = vld [vmem:[%s3 + $0xeb0] sm:$0xff]
  %v517 = vld [vmem:[%s3 + $0xeb8] sm:$0xff]
  %v518 = vld [vmem:[%s3 + $0xec0] sm:$0xff]
  %v519 = vld [vmem:[%s3 + $0xec8] sm:$0xff]
  %v520 = vld [vmem:[%s3 + $0xed0] sm:$0xff]
  %v521 = vld [vmem:[%s3 + $0xed8] sm:$0xff]
  %v522 = vld [vmem:[%s3 + $0xee0] sm:$0xff]
  %v523 = vld [vmem:[%s3 + $0xee8] sm:$0xff]
  %v524 = vld [vmem:[%s3 + $0xef0] sm:$0xff]
  %v525 = vld [vmem:[%s3 + $0xef8] sm:$0xff]
  %v526 = vld [vmem:[%s3 + $0xf00] sm:$0xff]
  %v527 = vld [vmem:[%s3 + $0xf08] sm:$0xff]
  %v528 = vld [vmem:[%s3 + $0xf10] sm:$0xff]
  %v529 = vld [vmem:[%s3 + $0xf18] sm:$0xff]
  %v530 = vld [vmem:[%s3 + $0xf20] sm:$0xff]
  %v531 = vld [vmem:[%s3 + $0xf28] sm:$0xff]
  %v532 = vld [vmem:[%s3 + $0xf30] sm:$0xff]
  %v533 = vld [vmem:[%s3 + $0xf38] sm:$0xff]
  %v534 = vld [vmem:[%s3 + $0xf40] sm:$0xff]
  %v535 = vld [vmem:[%s3 + $0xf48] sm:$0xff]
  %v536 = vld [vmem:[%s3 + $0xf50] sm:$0xff]
  %v537 = vld [vmem:[%s3 + $0xf58] sm:$0xff]
  %v538 = vld [vmem:[%s3 + $0xf60] sm:$0xff]
  %v539 = vld [vmem:[%s3 + $0xf68] sm:$0xff]
  %v540 = vld [vmem:[%s3 + $0xf70] sm:$0xff]
  %v541 = vld [vmem:[%s3 + $0xf78] sm:$0xff]
  %v542 = vld [vmem:[%s3 + $0xf80] sm:$0xff]
  %v543 = vld [vmem:[%s3 + $0xf88] sm:$0xff]
  %v544 = vld [vmem:[%s3 + $0xf90] sm:$0xff]
  %v545 = vld [vmem:[%s3 + $0xf98] sm:$0xff]
  %v546 = vld [vmem:[%s3 + $0xfa0] sm:$0xff]
  %v547 = vld [vmem:[%s3 + $0xfa8] sm:$0xff]
  %v548 = vld [vmem:[%s3 + $0xfb0] sm:$0xff]
  %v549 = vld [vmem:[%s3 + $0xfb8] sm:$0xff]
  %v550 = vld [vmem:[%s3 + $0xfc0] sm:$0xff]
  %v551 = vld [vmem:[%s3 + $0xfc8] sm:$0xff]
  %v552 = vld [vmem:[%s3 + $0xfd0] sm:$0xff]
  %v553 = vld [vmem:[%s3 + $0xfd8] sm:$0xff]
  %v554 = vld [vmem:[%s3 + $0xfe0] sm:$0xff]
  %v555 = vld [vmem:[%s3 + $0xfe8] sm:$0xff]
  %v556 = vld [vmem:[%s3 + $0xff0] sm:$0xff]
  %v557 = vld [vmem:[%s3 + $0xff8] sm:$0xff]
  %v558 = vld [vmem:[%s3 + $0x1000] sm:$0xff]
  %v559 = vld [vmem:[%s3 + $0x1008] sm:$0xff]
  %v560 = vld [vmem:[%s3 + $0x1010] sm:$0xff]
  %v561 = vld [vmem:[%s3 + $0x1018] sm:$0xff]
  %v562 = vld [vmem:[%s3 + $0x1020] sm:$0xff]
  %v563 = vld [vmem:[%s3 + $0x1028] sm:$0xff]
  %v564 = vld [vmem:[%s3 + $0x1030] sm:$0xff]
  %v565 = vld [vmem:[%s3 + $0x1038] sm:$0xff]
  %v566 = vld [vmem:[%s3 + $0x1040] sm:$0xff]
  %v567 = vld [vmem:[%s3 + $0x1048] sm:$0xff]
  %v568 = vld [vmem:[%s3 + $0x1050] sm:$0xff]
  %v569 = vld [vmem:[%s3 + $0x1058] sm:$0xff]
  %v570 = vld [vmem:[%s3 + $0x1060] sm:$0xff]
  %v571 = vld [vmem:[%s3 + $0x1068] sm:$0xff]
  %v572 = vld [vmem:[%s3 + $0x1070] sm:$0xff]
  %v573 = vld [vmem:[%s3 + $0x1078] sm:$0xff]
  %v574 = vld [vmem:[%s3 + $0x1080] sm:$0xff]
  %v575 = vld [vmem:[%s3 + $0x1088] sm:$0xff]
  %v576 = vld [vmem:[%s3 + $0x1090] sm:$0xff]
  %v577 = vld [vmem:[%s3 + $0x1098] sm:$0xff]
  %v578 = vld [vmem:[%s3 + $0x10a0] sm:$0xff]
  %v579 = vld [vmem:[%s3 + $0x10a8] sm:$0xff]
  %v580 = vld [vmem:[%s3 + $0x10b0] sm:$0xff]
  %v581 = vld [vmem:[%s3 + $0x10b8] sm:$0xff]
  %v582 = vld [vmem:[%s3 + $0x10c0] sm:$0xff]
  %v583 = vld [vmem:[%s3 + $0x10c8] sm:$0xff]
  %v584 = vld [vmem:[%s3 + $0x10d0] sm:$0xff]
  %v585 = vld [vmem:[%s3 + $0x10d8] sm:$0xff]
  %v586 = vld [vmem:[%s3 + $0x10e0] sm:$0xff]
  %v587 = vld [vmem:[%s3 + $0x10e8] sm:$0xff]
  %v588 = vld [vmem:[%s3 + $0x10f0] sm:$0xff]
  %v589 = vld [vmem:[%s3 + $0x10f8] sm:$0xff]
  %v590 = vld [vmem:[%s3 + $0x1100] sm:$0xff]
  %v591 = vld [vmem:[%s3 + $0x1108] sm:$0xff]
  %v592 = vld [vmem:[%s3 + $0x1110] sm:$0xff]
  %v593 = vld [vmem:[%s3 + $0x1118] sm:$0xff]
  %v594 = vld [vmem:[%s3 + $0x1120] sm:$0xff]
  %v595 = vld [vmem:[%s3 + $0x1128] sm:$0xff]
  %v596 = vld [vmem:[%s3 + $0x1130] sm:$0xff]
  %v597 = vld [vmem:[%s3 + $0x1138] sm:$0xff]
  %v598 = vld [vmem:[%s3 + $0x1140] sm:$0xff]
  %v599 = vld [vmem:[%s3 + $0x1148] sm:$0xff]
  %v600 = vld [vmem:[%s3 + $0x1150] sm:$0xff]
  %v601 = vld [vmem:[%s3 + $0x1158] sm:$0xff]
  %v602 = vld [vmem:[%s3 + $0x1160] sm:$0xff]
  %v603 = vld [vmem:[%s3 + $0x1168] sm:$0xff]
  %v604 = vld [vmem:[%s3 + $0x1170] sm:$0xff]
  %v605 = vld [vmem:[%s3 + $0x1178] sm:$0xff]
  %v606 = vld [vmem:[%s3 + $0x1180] sm:$0xff]
  %v607 = vld [vmem:[%s3 + $0x1188] sm:$0xff]
  %v608 = vld [vmem:[%s3 + $0x1190] sm:$0xff]
  %v609 = vld [vmem:[%s3 + $0x1198] sm:$0xff]
  %v610 = vld [vmem:[%s3 + $0x11a0] sm:$0xff]
  %v611 = vld [vmem:[%s3 + $0x11a8] sm:$0xff]
  %v612 = vld [vmem:[%s3 + $0x11b0] sm:$0xff]
  %v613 = vld [vmem:[%s3 + $0x11b8] sm:$0xff]
  %v614 = vld [vmem:[%s3 + $0x11c0] sm:$0xff]
  %v615 = vld [vmem:[%s3 + $0x11c8] sm:$0xff]
  %v616 = vld [vmem:[%s3 + $0x11d0] sm:$0xff]
  %v617 = vld [vmem:[%s3 + $0x11d8] sm:$0xff]
  %v618 = vld [vmem:[%s3 + $0x11e0] sm:$0xff]
  %v619 = vld [vmem:[%s3 + $0x11e8] sm:$0xff]
  %v620 = vld [vmem:[%s3 + $0x11f0] sm:$0xff]
  %v621 = vld [vmem:[%s3 + $0x11f8] sm:$0xff]
  %v622 = vld [vmem:[%s3 + $0x1200] sm:$0xff]
  %v623 = vld [vmem:[%s3 + $0x1208] sm:$0xff]
  %v624 = vld [vmem:[%s3 + $0x1210] sm:$0xff]
  %v625 = vld [vmem:[%s3 + $0x1218] sm:$0xff]
  %v626 = vld [vmem:[%s3 + $0x1220] sm:$0xff]
  %v627 = vld [vmem:[%s3 + $0x1228] sm:$0xff]
  %v628 = vld [vmem:[%s3 + $0x1230] sm:$0xff]
  %v629 = vld [vmem:[%s3 + $0x1238] sm:$0xff]
  %v630 = vld [vmem:[%s3 + $0x1240] sm:$0xff]
  %v631 = vld [vmem:[%s3 + $0x1248] sm:$0xff]
  %v632 = vld [vmem:[%s3 + $0x1250] sm:$0xff]
  %v633 = vld [vmem:[%s3 + $0x1258] sm:$0xff]
  %v634 = vld [vmem:[%s3 + $0x1260] sm:$0xff]
  %v635 = vld [vmem:[%s3 + $0x1268] sm:$0xff]
  %v636 = vld [vmem:[%s3 + $0x1270] sm:$0xff]
  %v637 = vld [vmem:[%s3 + $0x1278] sm:$0xff]
  %v638 = vld [vmem:[%s3 + $0x1280] sm:$0xff]
  %v639 = vld [vmem:[%s3 + $0x1288] sm:$0xff]
  %v640 = vld [vmem:[%s3 + $0x1290] sm:$0xff]
  %v641 = vld [vmem:[%s3 + $0x1298] sm:$0xff]
  %v642 = vld [vmem:[%s3 + $0x12a0] sm:$0xff]
  %v643 = vld [vmem:[%s3 + $0x12a8] sm:$0xff]
  %v644 = vld [vmem:[%s3 + $0x12b0] sm:$0xff]
  %v645 = vld [vmem:[%s3 + $0x12b8] sm:$0xff]
  %v646 = vld [vmem:[%s3 + $0x12c0] sm:$0xff]
  %v647 = vld [vmem:[%s3 + $0x12c8] sm:$0xff]
  %v648 = vld [vmem:[%s3 + $0x12d0] sm:$0xff]
  %v649 = vld [vmem:[%s3 + $0x12d8] sm:$0xff]
  %v650 = vld [vmem:[%s3 + $0x12e0] sm:$0xff]
  %v651 = vld [vmem:[%s3 + $0x12e8] sm:$0xff]
  %v652 = vld [vmem:[%s3 + $0x12f0] sm:$0xff]
  %v653 = vld [vmem:[%s3 + $0x12f8] sm:$0xff]
  %v654 = vld [vmem:[%s3 + $0x1300] sm:$0xff]
  %v655 = vld [vmem:[%s3 + $0x1308] sm:$0xff]
  %v656 = vld [vmem:[%s3 + $0x1310] sm:$0xff]
  %v657 = vld [vmem:[%s3 + $0x1318] sm:$0xff]
  %v658 = vld [vmem:[%s3 + $0x1320] sm:$0xff]
  %v659 = vld [vmem:[%s3 + $0x1328] sm:$0xff]
  %v660 = vld [vmem:[%s3 + $0x1330] sm:$0xff]
  %v661 = vld [vmem:[%s3 + $0x1338] sm:$0xff]
  %v662 = vld [vmem:[%s3 + $0x1340] sm:$0xff]
  %v663 = vld [vmem:[%s3 + $0x1348] sm:$0xff]
  %v664 = vld [vmem:[%s3 + $0x1350] sm:$0xff]
  %v665 = vld [vmem:[%s3 + $0x1358] sm:$0xff]
  %v666 = vld [vmem:[%s3 + $0x1360] sm:$0xff]
  %v667 = vld [vmem:[%s3 + $0x1368] sm:$0xff]
  %v668 = vld [vmem:[%s3 + $0x1370] sm:$0xff]
  %v669 = vld [vmem:[%s3 + $0x1378] sm:$0xff]
  %v670 = vld [vmem:[%s3 + $0x1380] sm:$0xff]
  %v671 = vld [vmem:[%s3 + $0x1388] sm:$0xff]
  %v672 = vld [vmem:[%s3 + $0x1390] sm:$0xff]
  %v673 = vld [vmem:[%s3 + $0x1398] sm:$0xff]
  %v674 = vld [vmem:[%s3 + $0x13a0] sm:$0xff]
  %v675 = vld [vmem:[%s3 + $0x13a8] sm:$0xff]
  %v676 = vld [vmem:[%s3 + $0x13b0] sm:$0xff]
  %v677 = vld [vmem:[%s3 + $0x13b8] sm:$0xff]
  %v678 = vld [vmem:[%s3 + $0x13c0] sm:$0xff]
  %v679 = vld [vmem:[%s3 + $0x13c8] sm:$0xff]
  %v680 = vld [vmem:[%s3 + $0x13d0] sm:$0xff]
  %v681 = vld [vmem:[%s3 + $0x13d8] sm:$0xff]
  %v682 = vld [vmem:[%s3 + $0x13e0] sm:$0xff]
  %v683 = vld [vmem:[%s3 + $0x13e8] sm:$0xff]
  %v684 = vld [vmem:[%s3 + $0x13f0] sm:$0xff]
  %v685 = vld [vmem:[%s3 + $0x13f8] sm:$0xff]
  %v686 = vld [vmem:[%s3 + $0x1400] sm:$0xff]
  %v687 = vld [vmem:[%s3 + $0x1408] sm:$0xff]
  %v688 = vld [vmem:[%s3 + $0x1410] sm:$0xff]
  %v689 = vld [vmem:[%s3 + $0x1418] sm:$0xff]
  %v690 = vld [vmem:[%s3 + $0x1420] sm:$0xff]
  %v691 = vld [vmem:[%s3 + $0x1428] sm:$0xff]
  %v692 = vld [vmem:[%s3 + $0x1430] sm:$0xff]
  %v693 = vld [vmem:[%s3 + $0x1438] sm:$0xff]
  %v694 = vld [vmem:[%s3 + $0x1440] sm:$0xff]
  %v695 = vld [vmem:[%s3 + $0x1448] sm:$0xff]
  %v696 = vld [vmem:[%s3 + $0x1450] sm:$0xff]
  %v697 = vld [vmem:[%s3 + $0x1458] sm:$0xff]
  %v698 = vld [vmem:[%s3 + $0x1460] sm:$0xff]
  %v699 = vld [vmem:[%s3 + $0x1468] sm:$0xff]
  %v700 = vld [vmem:[%s3 + $0x1470] sm:$0xff]
  %v701 = vld [vmem:[%s3 + $0x1478] sm:$0xff]
  %v702 = vld [vmem:[%s3 + $0x1480] sm:$0xff]
  %v703 = vld [vmem:[%s3 + $0x1488] sm:$0xff]
  %v704 = vld [vmem:[%s3 + $0x1490] sm:$0xff]
  %v705 = vld [vmem:[%s3 + $0x1498] sm:$0xff]
  %v706 = vld [vmem:[%s3 + $0x14a0] sm:$0xff]
  %v707 = vld [vmem:[%s3 + $0x14a8] sm:$0xff]
  %v708 = vld [vmem:[%s3 + $0x14b0] sm:$0xff]
  %v709 = vld [vmem:[%s3 + $0x14b8] sm:$0xff]
  %v710 = vld [vmem:[%s3 + $0x14c0] sm:$0xff]
  %v711 = vld [vmem:[%s3 + $0x14c8] sm:$0xff]
  %v712 = vld [vmem:[%s3 + $0x14d0] sm:$0xff]
  %v713 = vld [vmem:[%s3 + $0x14d8] sm:$0xff]
  %v714 = vld [vmem:[%s3 + $0x14e0] sm:$0xff]
  %v715 = vld [vmem:[%s3 + $0x14e8] sm:$0xff]
  %v716 = vld [vmem:[%s3 + $0x14f0] sm:$0xff]
  %v717 = vld [vmem:[%s3 + $0x14f8] sm:$0xff]
  %v718 = vld [vmem:[%s3 + $0x1500] sm:$0xff]
  %v719 = vld [vmem:[%s3 + $0x1508] sm:$0xff]
  %v720 = vld [vmem:[%s3 + $0x1510] sm:$0xff]
  %v721 = vld [vmem:[%s3 + $0x1518] sm:$0xff]
  %v722 = vld [vmem:[%s3 + $0x1520] sm:$0xff]
  %v723 = vld [vmem:[%s3 + $0x1528] sm:$0xff]
  %v724 = vld [vmem:[%s3 + $0x1530] sm:$0xff]
  %v725 = vld [vmem:[%s3 + $0x1538] sm:$0xff]
  %v726 = vld [vmem:[%s3 + $0x1540] sm:$0xff]
  %v727 = vld [vmem:[%s3 + $0x1548] sm:$0xff]
  %v728 = vld [vmem:[%s3 + $0x1550] sm:$0xff]
  %v729 = vld [vmem:[%s3 + $0x1558] sm:$0xff]
  %v730 = vld [vmem:[%s3 + $0x1560] sm:$0xff]
  %v731 = vld [vmem:[%s3 + $0x1568] sm:$0xff]
  %v732 = vld [vmem:[%s3 + $0x1570] sm:$0xff]
  %v733 = vld [vmem:[%s3 + $0x1578] sm:$0xff]
  %v734 = vld [vmem:[%s3 + $0x1580] sm:$0xff]
  %v735 = vld [vmem:[%s3 + $0x1588] sm:$0xff]
  %v736 = vld [vmem:[%s3 + $0x1590] sm:$0xff]
  %v737 = vld [vmem:[%s3 + $0x1598] sm:$0xff]
  %v738 = vld [vmem:[%s3 + $0x15a0] sm:$0xff]
  %v739 = vld [vmem:[%s3 + $0x15a8] sm:$0xff]
  %v740 = vld [vmem:[%s3 + $0x15b0] sm:$0xff]
  %v741 = vld [vmem:[%s3 + $0x15b8] sm:$0xff]
  %v742 = vld [vmem:[%s3 + $0x15c0] sm:$0xff]
  %v743 = vld [vmem:[%s3 + $0x15c8] sm:$0xff]
  %v744 = vld [vmem:[%s3 + $0x15d0] sm:$0xff]
  %v745 = vld [vmem:[%s3 + $0x15d8] sm:$0xff]
  %v746 = vld [vmem:[%s3 + $0x15e0] sm:$0xff]
  %v747 = vld [vmem:[%s3 + $0x15e8] sm:$0xff]
  %v748 = vld [vmem:[%s3 + $0x15f0] sm:$0xff]
  %v749 = vld [vmem:[%s3 + $0x15f8] sm:$0xff]
  %v750 = vld [vmem:[%s3 + $0x1600] sm:$0xff]
  %v751 = vld [vmem:[%s3 + $0x1608] sm:$0xff]
  %v752 = vld [vmem:[%s3 + $0x1610] sm:$0xff]
  %v753 = vld [vmem:[%s3 + $0x1618] sm:$0xff]
  %v754 = vld [vmem:[%s3 + $0x1620] sm:$0xff]
  %v755 = vld [vmem:[%s3 + $0x1628] sm:$0xff]
  %v756 = vld [vmem:[%s3 + $0x1630] sm:$0xff]
  %v757 = vld [vmem:[%s3 + $0x1638] sm:$0xff]
  %v758 = vld [vmem:[%s3 + $0x1640] sm:$0xff]
  %v759 = vld [vmem:[%s3 + $0x1648] sm:$0xff]
  %v760 = vld [vmem:[%s3 + $0x1650] sm:$0xff]
  %v761 = vld [vmem:[%s3 + $0x1658] sm:$0xff]
  %v762 = vld [vmem:[%s3 + $0x1660] sm:$0xff]
  %v763 = vld [vmem:[%s3 + $0x1668] sm:$0xff]
  %v764 = vld [vmem:[%s3 + $0x1670] sm:$0xff]
  %v765 = vld [vmem:[%s3 + $0x1678] sm:$0xff]
  %v766 = vld [vmem:[%s3 + $0x1680] sm:$0xff]
  %v767 = vld [vmem:[%s3 + $0x1688] sm:$0xff]
  %v768 = vld [vmem:[%s3 + $0x1690] sm:$0xff]
  %v769 = vld [vmem:[%s3 + $0x1698] sm:$0xff]
  %v770 = vld [vmem:[%s3 + $0x16a0] sm:$0xff]
  %v771 = vld [vmem:[%s3 + $0x16a8] sm:$0xff]
  %v772 = vld [vmem:[%s3 + $0x16b0] sm:$0xff]
  %v773 = vld [vmem:[%s3 + $0x16b8] sm:$0xff]
  %v774 = vld [vmem:[%s3 + $0x16c0] sm:$0xff]
  %v775 = vld [vmem:[%s3 + $0x16c8] sm:$0xff]
  %v776 = vld [vmem:[%s3 + $0x16d0] sm:$0xff]
  %v777 = vld [vmem:[%s3 + $0x16d8] sm:$0xff]
  %v778 = vld [vmem:[%s3 + $0x16e0] sm:$0xff]
  %v779 = vld [vmem:[%s3 + $0x16e8] sm:$0xff]
  %v780 = vld [vmem:[%s3 + $0x16f0] sm:$0xff]
  %v781 = vld [vmem:[%s3 + $0x16f8] sm:$0xff]
  %v782 = vld [vmem:[%s3 + $0x1700] sm:$0xff]
  %v783 = vld [vmem:[%s3 + $0x1708] sm:$0xff]
  %v784 = vld [vmem:[%s3 + $0x1710] sm:$0xff]
  %v785 = vld [vmem:[%s3 + $0x1718] sm:$0xff]
  %v786 = vld [vmem:[%s3 + $0x1720] sm:$0xff]
  %v787 = vld [vmem:[%s3 + $0x1728] sm:$0xff]
  %v788 = vld [vmem:[%s3 + $0x1730] sm:$0xff]
  %v789 = vld [vmem:[%s3 + $0x1738] sm:$0xff]
  %v790 = vld [vmem:[%s3 + $0x1740] sm:$0xff]
  %v791 = vld [vmem:[%s3 + $0x1748] sm:$0xff]
  %v792 = vld [vmem:[%s3 + $0x1750] sm:$0xff]
  %v793 = vld [vmem:[%s3 + $0x1758] sm:$0xff]
  %v794 = vld [vmem:[%s3 + $0x1760] sm:$0xff]
  %v795 = vld [vmem:[%s3 + $0x1768] sm:$0xff]
  %v796 = vld [vmem:[%s3 + $0x1770] sm:$0xff]
  %v797 = vld [vmem:[%s3 + $0x1778] sm:$0xff]
  %v798 = vld [vmem:[%s3 + $0x1780] sm:$0xff]
  %v799 = vld [vmem:[%s3 + $0x1788] sm:$0xff]
  %v800 = vld [vmem:[%s3 + $0x1790] sm:$0xff]
  %v801 = vld [vmem:[%s3 + $0x1798] sm:$0xff]
  %v802 = vld [vmem:[%s3 + $0x17a0] sm:$0xff]
  %v803 = vld [vmem:[%s3 + $0x17a8] sm:$0xff]
  %v804 = vld [vmem:[%s3 + $0x17b0] sm:$0xff]
  %v805 = vld [vmem:[%s3 + $0x17b8] sm:$0xff]
  %v806 = vld [vmem:[%s3 + $0x17c0] sm:$0xff]
  %v807 = vld [vmem:[%s3 + $0x17c8] sm:$0xff]
  %v808 = vld [vmem:[%s3 + $0x17d0] sm:$0xff]
  %v809 = vld [vmem:[%s3 + $0x17d8] sm:$0xff]
  %v810 = vld [vmem:[%s3 + $0x17e0] sm:$0xff]
  %v811 = vld [vmem:[%s3 + $0x17e8] sm:$0xff]
  %v812 = vld [vmem:[%s3 + $0x17f0] sm:$0xff]
  %v813 = vld [vmem:[%s3 + $0x17f8] sm:$0xff]
  %v814 = vld [vmem:[%s3 + $0x1800] sm:$0xff]
  %v815 = vld [vmem:[%s3 + $0x1808] sm:$0xff]
  %v816 = vld [vmem:[%s3 + $0x1810] sm:$0xff]
  %v817 = vld [vmem:[%s3 + $0x1818] sm:$0xff]
  %v818 = vld [vmem:[%s3 + $0x1820] sm:$0xff]
  %v819 = vld [vmem:[%s3 + $0x1828] sm:$0xff]
  %v820 = vld [vmem:[%s3 + $0x1830] sm:$0xff]
  %v821 = vld [vmem:[%s3 + $0x1838] sm:$0xff]
  %v822 = vld [vmem:[%s3 + $0x1840] sm:$0xff]
  %v823 = vld [vmem:[%s3 + $0x1848] sm:$0xff]
  %v824 = vld [vmem:[%s3 + $0x1850] sm:$0xff]
  %v825 = vld [vmem:[%s3 + $0x1858] sm:$0xff]
  %v826 = vld [vmem:[%s3 + $0x1860] sm:$0xff]
  %v827 = vld [vmem:[%s3 + $0x1868] sm:$0xff]
  %v828 = vld [vmem:[%s3 + $0x1870] sm:$0xff]
  %v829 = vld [vmem:[%s3 + $0x1878] sm:$0xff]
  %v830 = vld [vmem:[%s4] sm:$0xf]
  %v832 = vperm.slane %v830, 0
  %v833 = vperm.slane %v830, 1
  %v834 = vperm.slane %v830, 2
  %v835 = vperm.slane %v830, 3
  %844 = vst [vmem:[#allocation1] ss:$4 sm:$0xff] %v42
  %s845 = scalar_lea.vmem [#allocation1], 32
  %846 = vst [vmem:[%s845] ss:$4 sm:$0xff] %v43
  %v847 = vld.sshfl [vmem:[#allocation1] sm:$0xff pattern:$0x73625140]
  %v848 = vld.sshfl [vmem:[#allocation1 + $0x8] sm:$0xff pattern:$0x73625140]
  %v849 = vld.sshfl [vmem:[#allocation1 + $0x10] sm:$0xff pattern:$0x73625140]
  %v850 = vld.sshfl [vmem:[#allocation1 + $0x18] sm:$0xff pattern:$0x73625140]
  %v851 = vld.sshfl [vmem:[#allocation1 + $0x20] sm:$0xff pattern:$0x73625140]
  %v852 = vld.sshfl [vmem:[#allocation1 + $0x28] sm:$0xff pattern:$0x73625140]
  %v853 = vld.sshfl [vmem:[#allocation1 + $0x30] sm:$0xff pattern:$0x73625140]
  %v854 = vld.sshfl [vmem:[#allocation1 + $0x38] sm:$0xff pattern:$0x73625140]
  %855 = vst [vmem:[#allocation1] ss:$4 sm:$0xff] %v44
  %856 = vst [vmem:[%s845] ss:$4 sm:$0xff] %v45
  %v857 = vld.sshfl [vmem:[#allocation1] sm:$0xff pattern:$0x73625140]
  %v858 = vld.sshfl [vmem:[#allocation1 + $0x8] sm:$0xff pattern:$0x73625140]
  %v859 = vld.sshfl [vmem:[#allocation1 + $0x10] sm:$0xff pattern:$0x73625140]
  %v860 = vld.sshfl [vmem:[#allocation1 + $0x18] sm:$0xff pattern:$0x73625140]
  %v861 = vld.sshfl [vmem:[#allocation1 + $0x20] sm:$0xff pattern:$0x73625140]
  %vm874 = vcmask 261120
  %v875 = vsel %vm874, %v861, 0
  %877 = vmatpush.msra.mxu0 %v106
  %878 = vmatpush.msra.mxu0 %v102
  %879 = vmatpush.msra.mxu0 %v98
  %880 = vmatpush.msra.mxu0 %v94
  %881 = vmatpush.msra.mxu0 %v90
  %882 = vmatpush.msra.mxu0 %v86
  %883 = vmatpush.msra.mxu0 %v82
  %884 = vmatpush.msra.mxu0 %v78
  %885 = vmatpush.msra.mxu0 %v74
  %886 = vmatpush.msra.mxu0 %v70
  %887 = vmatpush.msra.mxu0 %v66
  %888 = vmatpush.msra.mxu0 %v62
  %889 = vmatpush.msra.mxu0 %v58
  %890 = vmatpush.msra.mxu0 %v54
  %891 = vmatpush.msra.mxu0 %v50
  %892 = vmatpush.msra.mxu0 %v46
  %893 = vmatmul.f32.gmra.mxu0 %v847
  %v894 = vpop.f32.mrf.mxu0
  %v895 = vadd.f32 %v832, %v894
  %896 = vdwg.mxu0
  %897 = vmatpush.msra.mxu0 %v170
  %898 = vmatpush.msra.mxu0 %v166
  %899 = vmatpush.msra.mxu0 %v162
  %900 = vmatpush.msra.mxu0 %v158
  %901 = vmatpush.msra.mxu0 %v154
  %902 = vmatpush.msra.mxu0 %v150
  %903 = vmatpush.msra.mxu0 %v146
  %904 = vmatpush.msra.mxu0 %v142
  %905 = vmatpush.msra.mxu0 %v138
  %906 = vmatpush.msra.mxu0 %v134
  %907 = vmatpush.msra.mxu0 %v130
  %908 = vmatpush.msra.mxu0 %v126
  %909 = vmatpush.msra.mxu0 %v122
  %910 = vmatpush.msra.mxu0 %v118
  %911 = vmatpush.msra.mxu0 %v114
  %912 = vmatpush.msra.mxu0 %v110
  %913 = vmatmul.f32.gmra.mxu0 %v848
  %v914 = vpop.f32.mrf.mxu0
  %v915 = vadd.f32 %v895, %v914
  %916 = vdwg.mxu0
  %917 = vmatpush.msra.mxu0 %v234
  %918 = vmatpush.msra.mxu0 %v230
  %919 = vmatpush.msra.mxu0 %v226
  %920 = vmatpush.msra.mxu0 %v222
  %921 = vmatpush.msra.mxu0 %v218
  %922 = vmatpush.msra.mxu0 %v214
  %923 = vmatpush.msra.mxu0 %v210
  %924 = vmatpush.msra.mxu0 %v206
  %925 = vmatpush.msra.mxu0 %v202
  %926 = vmatpush.msra.mxu0 %v198
  %927 = vmatpush.msra.mxu0 %v194
  %928 = vmatpush.msra.mxu0 %v190
  %929 = vmatpush.msra.mxu0 %v186
  %930 = vmatpush.msra.mxu0 %v182
  %931 = vmatpush.msra.mxu0 %v178
  %932 = vmatpush.msra.mxu0 %v174
  %933 = vmatmul.f32.gmra.mxu0 %v849
  %v934 = vpop.f32.mrf.mxu0
  %v935 = vadd.f32 %v915, %v934
  %936 = vdwg.mxu0
  %937 = vmatpush.msra.mxu0 %v298
  %938 = vmatpush.msra.mxu0 %v294
  %939 = vmatpush.msra.mxu0 %v290
  %940 = vmatpush.msra.mxu0 %v286
  %941 = vmatpush.msra.mxu0 %v282
  %942 = vmatpush.msra.mxu0 %v278
  %943 = vmatpush.msra.mxu0 %v274
  %944 = vmatpush.msra.mxu0 %v270
  %945 = vmatpush.msra.mxu0 %v266
  %946 = vmatpush.msra.mxu0 %v262
  %947 = vmatpush.msra.mxu0 %v258
  %948 = vmatpush.msra.mxu0 %v254
  %949 = vmatpush.msra.mxu0 %v250
  %950 = vmatpush.msra.mxu0 %v246
  %951 = vmatpush.msra.mxu0 %v242
  %952 = vmatpush.msra.mxu0 %v238
  %953 = vmatmul.f32.gmra.mxu0 %v850
  %v954 = vpop.f32.mrf.mxu0
  %v955 = vadd.f32 %v935, %v954
  %956 = vdwg.mxu0
  %957 = vmatpush.msra.mxu0 %v362
  %958 = vmatpush.msra.mxu0 %v358
  %959 = vmatpush.msra.mxu0 %v354
  %960 = vmatpush.msra.mxu0 %v350
  %961 = vmatpush.msra.mxu0 %v346
  %962 = vmatpush.msra.mxu0 %v342
  %963 = vmatpush.msra.mxu0 %v338
  %964 = vmatpush.msra.mxu0 %v334
  %965 = vmatpush.msra.mxu0 %v330
  %966 = vmatpush.msra.mxu0 %v326
  %967 = vmatpush.msra.mxu0 %v322
  %968 = vmatpush.msra.mxu0 %v318
  %969 = vmatpush.msra.mxu0 %v314
  %970 = vmatpush.msra.mxu0 %v310
  %971 = vmatpush.msra.mxu0 %v306
  %972 = vmatpush.msra.mxu0 %v302
  %973 = vmatmul.f32.gmra.mxu0 %v851
  %v974 = vpop.f32.mrf.mxu0
  %v975 = vadd.f32 %v955, %v974
  %976 = vdwg.mxu0
  %977 = vmatpush.msra.mxu0 %v426
  %978 = vmatpush.msra.mxu0 %v422
  %979 = vmatpush.msra.mxu0 %v418
  %980 = vmatpush.msra.mxu0 %v414
  %981 = vmatpush.msra.mxu0 %v410
  %982 = vmatpush.msra.mxu0 %v406
  %983 = vmatpush.msra.mxu0 %v402
  %984 = vmatpush.msra.mxu0 %v398
  %985 = vmatpush.msra.mxu0 %v394
  %986 = vmatpush.msra.mxu0 %v390
  %987 = vmatpush.msra.mxu0 %v386
  %988 = vmatpush.msra.mxu0 %v382
  %989 = vmatpush.msra.mxu0 %v378
  %990 = vmatpush.msra.mxu0 %v374
  %991 = vmatpush.msra.mxu0 %v370
  %992 = vmatpush.msra.mxu0 %v366
  %993 = vmatmul.f32.gmra.mxu0 %v852
  %v994 = vpop.f32.mrf.mxu0
  %v995 = vadd.f32 %v975, %v994
  %996 = vdwg.mxu0
  %997 = vmatpush.msra.mxu0 %v490
  %998 = vmatpush.msra.mxu0 %v486
  %999 = vmatpush.msra.mxu0 %v482
  %1000 = vmatpush.msra.mxu0 %v478
  %1001 = vmatpush.msra.mxu0 %v474
  %1002 = vmatpush.msra.mxu0 %v470
  %1003 = vmatpush.msra.mxu0 %v466
  %1004 = vmatpush.msra.mxu0 %v462
  %1005 = vmatpush.msra.mxu0 %v458
  %1006 = vmatpush.msra.mxu0 %v454
  %1007 = vmatpush.msra.mxu0 %v450
  %1008 = vmatpush.msra.mxu0 %v446
  %1009 = vmatpush.msra.mxu0 %v442
  %1010 = vmatpush.msra.mxu0 %v438
  %1011 = vmatpush.msra.mxu0 %v434
  %1012 = vmatpush.msra.mxu0 %v430
  %1013 = vmatmul.f32.gmra.mxu0 %v853
  %v1014 = vpop.f32.mrf.mxu0
  %v1015 = vadd.f32 %v995, %v1014
  %1016 = vdwg.mxu0
  %1017 = vmatpush.msra.mxu0 %v554
  %1018 = vmatpush.msra.mxu0 %v550
  %1019 = vmatpush.msra.mxu0 %v546
  %1020 = vmatpush.msra.mxu0 %v542
  %1021 = vmatpush.msra.mxu0 %v538
  %1022 = vmatpush.msra.mxu0 %v534
  %1023 = vmatpush.msra.mxu0 %v530
  %1024 = vmatpush.msra.mxu0 %v526
  %1025 = vmatpush.msra.mxu0 %v522
  %1026 = vmatpush.msra.mxu0 %v518
  %1027 = vmatpush.msra.mxu0 %v514
  %1028 = vmatpush.msra.mxu0 %v510
  %1029 = vmatpush.msra.mxu0 %v506
  %1030 = vmatpush.msra.mxu0 %v502
  %1031 = vmatpush.msra.mxu0 %v498
  %1032 = vmatpush.msra.mxu0 %v494
  %1033 = vmatmul.f32.gmra.mxu0 %v854
  %v1034 = vpop.f32.mrf.mxu0
  %v1035 = vadd.f32 %v1015, %v1034
  %1036 = vdwg.mxu0
  %1037 = vmatpush.msra.mxu0 %v618
  %1038 = vmatpush.msra.mxu0 %v614
  %1039 = vmatpush.msra.mxu0 %v610
  %1040 = vmatpush.msra.mxu0 %v606
  %1041 = vmatpush.msra.mxu0 %v602
  %1042 = vmatpush.msra.mxu0 %v598
  %1043 = vmatpush.msra.mxu0 %v594
  %1044 = vmatpush.msra.mxu0 %v590
  %1045 = vmatpush.msra.mxu0 %v586
  %1046 = vmatpush.msra.mxu0 %v582
  %1047 = vmatpush.msra.mxu0 %v578
  %1048 = vmatpush.msra.mxu0 %v574
  %1049 = vmatpush.msra.mxu0 %v570
  %1050 = vmatpush.msra.mxu0 %v566
  %1051 = vmatpush.msra.mxu0 %v562
  %1052 = vmatpush.msra.mxu0 %v558
  %1053 = vmatmul.f32.gmra.mxu0 %v857
  %v1054 = vpop.f32.mrf.mxu0
  %v1055 = vadd.f32 %v1035, %v1054
  %1056 = vdwg.mxu0
  %1057 = vmatpush.msra.mxu0 %v682
  %1058 = vmatpush.msra.mxu0 %v678
  %1059 = vmatpush.msra.mxu0 %v674
  %1060 = vmatpush.msra.mxu0 %v670
  %1061 = vmatpush.msra.mxu0 %v666
  %1062 = vmatpush.msra.mxu0 %v662
  %1063 = vmatpush.msra.mxu0 %v658
  %1064 = vmatpush.msra.mxu0 %v654
  %1065 = vmatpush.msra.mxu0 %v650
  %1066 = vmatpush.msra.mxu0 %v646
  %1067 = vmatpush.msra.mxu0 %v642
  %1068 = vmatpush.msra.mxu0 %v638
  %1069 = vmatpush.msra.mxu0 %v634
  %1070 = vmatpush.msra.mxu0 %v630
  %1071 = vmatpush.msra.mxu0 %v626
  %1072 = vmatpush.msra.mxu0 %v622
  %1073 = vmatmul.f32.gmra.mxu0 %v858
  %v1074 = vpop.f32.mrf.mxu0
  %v1075 = vadd.f32 %v1055, %v1074
  %1076 = vdwg.mxu0
  %1077 = vmatpush.msra.mxu0 %v746
  %1078 = vmatpush.msra.mxu0 %v742
  %1079 = vmatpush.msra.mxu0 %v738
  %1080 = vmatpush.msra.mxu0 %v734
  %1081 = vmatpush.msra.mxu0 %v730
  %1082 = vmatpush.msra.mxu0 %v726
  %1083 = vmatpush.msra.mxu0 %v722
  %1084 = vmatpush.msra.mxu0 %v718
  %1085 = vmatpush.msra.mxu0 %v714
  %1086 = vmatpush.msra.mxu0 %v710
  %1087 = vmatpush.msra.mxu0 %v706
  %1088 = vmatpush.msra.mxu0 %v702
  %1089 = vmatpush.msra.mxu0 %v698
  %1090 = vmatpush.msra.mxu0 %v694
  %1091 = vmatpush.msra.mxu0 %v690
  %1092 = vmatpush.msra.mxu0 %v686
  %1093 = vmatmul.f32.gmra.mxu0 %v859
  %v1094 = vpop.f32.mrf.mxu0
  %v1095 = vadd.f32 %v1075, %v1094
  %1096 = vdwg.mxu0
  %1097 = vmatpush.msra.mxu0 %v810
  %1098 = vmatpush.msra.mxu0 %v806
  %1099 = vmatpush.msra.mxu0 %v802
  %1100 = vmatpush.msra.mxu0 %v798
  %1101 = vmatpush.msra.mxu0 %v794
  %1102 = vmatpush.msra.mxu0 %v790
  %1103 = vmatpush.msra.mxu0 %v786
  %1104 = vmatpush.msra.mxu0 %v782
  %1105 = vmatpush.msra.mxu0 %v778
  %1106 = vmatpush.msra.mxu0 %v774
  %1107 = vmatpush.msra.mxu0 %v770
  %1108 = vmatpush.msra.mxu0 %v766
  %1109 = vmatpush.msra.mxu0 %v762
  %1110 = vmatpush.msra.mxu0 %v758
  %1111 = vmatpush.msra.mxu0 %v754
  %1112 = vmatpush.msra.mxu0 %v750
  %1113 = vmatmul.f32.gmra.mxu0 %v860
  %v1114 = vpop.f32.mrf.mxu0
  %v1115 = vadd.f32 %v1095, %v1114
  %1116 = vdwg.mxu0
  %1117 = vmatpush.msra.mxu0 0.0
  %1118 = vmatpush.msra.mxu0 0.0
  %1119 = vmatpush.msra.mxu0 0.0
  %1120 = vmatpush.msra.mxu0 0.0
  %1121 = vmatpush.msra.mxu0 0.0
  %1122 = vmatpush.msra.mxu0 0.0
  %1123 = vmatpush.msra.mxu0 0.0
  %1124 = vmatpush.msra.mxu0 0.0
  %1125 = vmatpush.msra.mxu0 0.0
  %1126 = vmatpush.msra.mxu0 0.0
  %1127 = vmatpush.msra.mxu0 0.0
  %1128 = vmatpush.msra.mxu0 0.0
  %1129 = vmatpush.msra.mxu0 %v826
  %1130 = vmatpush.msra.mxu0 %v822
  %1131 = vmatpush.msra.mxu0 %v818
  %1132 = vmatpush.msra.mxu0 %v814
  %1133 = vmatmul.f32.gmra.mxu0 %v875
  %v1134 = vpop.f32.mrf.mxu0
  %v1135 = vadd.f32 %v1115, %v1134
  %1136 = vdwg.mxu0
  %1137 = vmatpush.msra.mxu0 %v107
  %1138 = vmatpush.msra.mxu0 %v103
  %1139 = vmatpush.msra.mxu0 %v99
  %1140 = vmatpush.msra.mxu0 %v95
  %1141 = vmatpush.msra.mxu0 %v91
  %1142 = vmatpush.msra.mxu0 %v87
  %1143 = vmatpush.msra.mxu0 %v83
  %1144 = vmatpush.msra.mxu0 %v79
  %1145 = vmatpush.msra.mxu0 %v75
  %1146 = vmatpush.msra.mxu0 %v71
  %1147 = vmatpush.msra.mxu0 %v67
  %1148 = vmatpush.msra.mxu0 %v63
  %1149 = vmatpush.msra.mxu0 %v59
  %1150 = vmatpush.msra.mxu0 %v55
  %1151 = vmatpush.msra.mxu0 %v51
  %1152 = vmatpush.msra.mxu0 %v47
  %1153 = vmatmul.f32.gmra.mxu0 %v847
  %v1154 = vpop.f32.mrf.mxu0
  %v1155 = vadd.f32 %v833, %v1154
  %1156 = vdwg.mxu0
  %1157 = vmatpush.msra.mxu0 %v171
  %1158 = vmatpush.msra.mxu0 %v167
  %1159 = vmatpush.msra.mxu0 %v163
  %1160 = vmatpush.msra.mxu0 %v159
  %1161 = vmatpush.msra.mxu0 %v155
  %1162 = vmatpush.msra.mxu0 %v151
  %1163 = vmatpush.msra.mxu0 %v147
  %1164 = vmatpush.msra.mxu0 %v143
  %1165 = vmatpush.msra.mxu0 %v139
  %1166 = vmatpush.msra.mxu0 %v135
  %1167 = vmatpush.msra.mxu0 %v131
  %1168 = vmatpush.msra.mxu0 %v127
  %1169 = vmatpush.msra.mxu0 %v123
  %1170 = vmatpush.msra.mxu0 %v119
  %1171 = vmatpush.msra.mxu0 %v115
  %1172 = vmatpush.msra.mxu0 %v111
  %1173 = vmatmul.f32.gmra.mxu0 %v848
  %v1174 = vpop.f32.mrf.mxu0
  %v1175 = vadd.f32 %v1155, %v1174
  %1176 = vdwg.mxu0
  %1177 = vmatpush.msra.mxu0 %v235
  %1178 = vmatpush.msra.mxu0 %v231
  %1179 = vmatpush.msra.mxu0 %v227
  %1180 = vmatpush.msra.mxu0 %v223
  %1181 = vmatpush.msra.mxu0 %v219
  %1182 = vmatpush.msra.mxu0 %v215
  %1183 = vmatpush.msra.mxu0 %v211
  %1184 = vmatpush.msra.mxu0 %v207
  %1185 = vmatpush.msra.mxu0 %v203
  %1186 = vmatpush.msra.mxu0 %v199
  %1187 = vmatpush.msra.mxu0 %v195
  %1188 = vmatpush.msra.mxu0 %v191
  %1189 = vmatpush.msra.mxu0 %v187
  %1190 = vmatpush.msra.mxu0 %v183
  %1191 = vmatpush.msra.mxu0 %v179
  %1192 = vmatpush.msra.mxu0 %v175
  %1193 = vmatmul.f32.gmra.mxu0 %v849
  %v1194 = vpop.f32.mrf.mxu0
  %v1195 = vadd.f32 %v1175, %v1194
  %1196 = vdwg.mxu0
  %1197 = vmatpush.msra.mxu0 %v299
  %1198 = vmatpush.msra.mxu0 %v295
  %1199 = vmatpush.msra.mxu0 %v291
  %1200 = vmatpush.msra.mxu0 %v287
  %1201 = vmatpush.msra.mxu0 %v283
  %1202 = vmatpush.msra.mxu0 %v279
  %1203 = vmatpush.msra.mxu0 %v275
  %1204 = vmatpush.msra.mxu0 %v271
  %1205 = vmatpush.msra.mxu0 %v267
  %1206 = vmatpush.msra.mxu0 %v263
  %1207 = vmatpush.msra.mxu0 %v259
  %1208 = vmatpush.msra.mxu0 %v255
  %1209 = vmatpush.msra.mxu0 %v251
  %1210 = vmatpush.msra.mxu0 %v247
  %1211 = vmatpush.msra.mxu0 %v243
  %1212 = vmatpush.msra.mxu0 %v239
  %1213 = vmatmul.f32.gmra.mxu0 %v850
  %v1214 = vpop.f32.mrf.mxu0
  %v1215 = vadd.f32 %v1195, %v1214
  %1216 = vdwg.mxu0
  %1217 = vmatpush.msra.mxu0 %v363
  %1218 = vmatpush.msra.mxu0 %v359
  %1219 = vmatpush.msra.mxu0 %v355
  %1220 = vmatpush.msra.mxu0 %v351
  %1221 = vmatpush.msra.mxu0 %v347
  %1222 = vmatpush.msra.mxu0 %v343
  %1223 = vmatpush.msra.mxu0 %v339
  %1224 = vmatpush.msra.mxu0 %v335
  %1225 = vmatpush.msra.mxu0 %v331
  %1226 = vmatpush.msra.mxu0 %v327
  %1227 = vmatpush.msra.mxu0 %v323
  %1228 = vmatpush.msra.mxu0 %v319
  %1229 = vmatpush.msra.mxu0 %v315
  %1230 = vmatpush.msra.mxu0 %v311
  %1231 = vmatpush.msra.mxu0 %v307
  %1232 = vmatpush.msra.mxu0 %v303
  %1233 = vmatmul.f32.gmra.mxu0 %v851
  %v1234 = vpop.f32.mrf.mxu0
  %v1235 = vadd.f32 %v1215, %v1234
  %1236 = vdwg.mxu0
  %1237 = vmatpush.msra.mxu0 %v427
  %1238 = vmatpush.msra.mxu0 %v423
  %1239 = vmatpush.msra.mxu0 %v419
  %1240 = vmatpush.msra.mxu0 %v415
  %1241 = vmatpush.msra.mxu0 %v411
  %1242 = vmatpush.msra.mxu0 %v407
  %1243 = vmatpush.msra.mxu0 %v403
  %1244 = vmatpush.msra.mxu0 %v399
  %1245 = vmatpush.msra.mxu0 %v395
  %1246 = vmatpush.msra.mxu0 %v391
  %1247 = vmatpush.msra.mxu0 %v387
  %1248 = vmatpush.msra.mxu0 %v383
  %1249 = vmatpush.msra.mxu0 %v379
  %1250 = vmatpush.msra.mxu0 %v375
  %1251 = vmatpush.msra.mxu0 %v371
  %1252 = vmatpush.msra.mxu0 %v367
  %1253 = vmatmul.f32.gmra.mxu0 %v852
  %v1254 = vpop.f32.mrf.mxu0
  %v1255 = vadd.f32 %v1235, %v1254
  %1256 = vdwg.mxu0
  %1257 = vmatpush.msra.mxu0 %v491
  %1258 = vmatpush.msra.mxu0 %v487
  %1259 = vmatpush.msra.mxu0 %v483
  %1260 = vmatpush.msra.mxu0 %v479
  %1261 = vmatpush.msra.mxu0 %v475
  %1262 = vmatpush.msra.mxu0 %v471
  %1263 = vmatpush.msra.mxu0 %v467
  %1264 = vmatpush.msra.mxu0 %v463
  %1265 = vmatpush.msra.mxu0 %v459
  %1266 = vmatpush.msra.mxu0 %v455
  %1267 = vmatpush.msra.mxu0 %v451
  %1268 = vmatpush.msra.mxu0 %v447
  %1269 = vmatpush.msra.mxu0 %v443
  %1270 = vmatpush.msra.mxu0 %v439
  %1271 = vmatpush.msra.mxu0 %v435
  %1272 = vmatpush.msra.mxu0 %v431
  %1273 = vmatmul.f32.gmra.mxu0 %v853
  %v1274 = vpop.f32.mrf.mxu0
  %v1275 = vadd.f32 %v1255, %v1274
  %1276 = vdwg.mxu0
  %1277 = vmatpush.msra.mxu0 %v555
  %1278 = vmatpush.msra.mxu0 %v551
  %1279 = vmatpush.msra.mxu0 %v547
  %1280 = vmatpush.msra.mxu0 %v543
  %1281 = vmatpush.msra.mxu0 %v539
  %1282 = vmatpush.msra.mxu0 %v535
  %1283 = vmatpush.msra.mxu0 %v531
  %1284 = vmatpush.msra.mxu0 %v527
  %1285 = vmatpush.msra.mxu0 %v523
  %1286 = vmatpush.msra.mxu0 %v519
  %1287 = vmatpush.msra.mxu0 %v515
  %1288 = vmatpush.msra.mxu0 %v511
  %1289 = vmatpush.msra.mxu0 %v507
  %1290 = vmatpush.msra.mxu0 %v503
  %1291 = vmatpush.msra.mxu0 %v499
  %1292 = vmatpush.msra.mxu0 %v495
  %1293 = vmatmul.f32.gmra.mxu0 %v854
  %v1294 = vpop.f32.mrf.mxu0
  %v1295 = vadd.f32 %v1275, %v1294
  %1296 = vdwg.mxu0
  %1297 = vmatpush.msra.mxu0 %v619
  %1298 = vmatpush.msra.mxu0 %v615
  %1299 = vmatpush.msra.mxu0 %v611
  %1300 = vmatpush.msra.mxu0 %v607
  %1301 = vmatpush.msra.mxu0 %v603
  %1302 = vmatpush.msra.mxu0 %v599
  %1303 = vmatpush.msra.mxu0 %v595
  %1304 = vmatpush.msra.mxu0 %v591
  %1305 = vmatpush.msra.mxu0 %v587
  %1306 = vmatpush.msra.mxu0 %v583
  %1307 = vmatpush.msra.mxu0 %v579
  %1308 = vmatpush.msra.mxu0 %v575
  %1309 = vmatpush.msra.mxu0 %v571
  %1310 = vmatpush.msra.mxu0 %v567
  %1311 = vmatpush.msra.mxu0 %v563
  %1312 = vmatpush.msra.mxu0 %v559
  %1313 = vmatmul.f32.gmra.mxu0 %v857
  %v1314 = vpop.f32.mrf.mxu0
  %v1315 = vadd.f32 %v1295, %v1314
  %1316 = vdwg.mxu0
  %1317 = vmatpush.msra.mxu0 %v683
  %1318 = vmatpush.msra.mxu0 %v679
  %1319 = vmatpush.msra.mxu0 %v675
  %1320 = vmatpush.msra.mxu0 %v671
  %1321 = vmatpush.msra.mxu0 %v667
  %1322 = vmatpush.msra.mxu0 %v663
  %1323 = vmatpush.msra.mxu0 %v659
  %1324 = vmatpush.msra.mxu0 %v655
  %1325 = vmatpush.msra.mxu0 %v651
  %1326 = vmatpush.msra.mxu0 %v647
  %1327 = vmatpush.msra.mxu0 %v643
  %1328 = vmatpush.msra.mxu0 %v639
  %1329 = vmatpush.msra.mxu0 %v635
  %1330 = vmatpush.msra.mxu0 %v631
  %1331 = vmatpush.msra.mxu0 %v627
  %1332 = vmatpush.msra.mxu0 %v623
  %1333 = vmatmul.f32.gmra.mxu0 %v858
  %v1334 = vpop.f32.mrf.mxu0
  %v1335 = vadd.f32 %v1315, %v1334
  %1336 = vdwg.mxu0
  %1337 = vmatpush.msra.mxu0 %v747
  %1338 = vmatpush.msra.mxu0 %v743
  %1339 = vmatpush.msra.mxu0 %v739
  %1340 = vmatpush.msra.mxu0 %v735
  %1341 = vmatpush.msra.mxu0 %v731
  %1342 = vmatpush.msra.mxu0 %v727
  %1343 = vmatpush.msra.mxu0 %v723
  %1344 = vmatpush.msra.mxu0 %v719
  %1345 = vmatpush.msra.mxu0 %v715
  %1346 = vmatpush.msra.mxu0 %v711
  %1347 = vmatpush.msra.mxu0 %v707
  %1348 = vmatpush.msra.mxu0 %v703
  %1349 = vmatpush.msra.mxu0 %v699
  %1350 = vmatpush.msra.mxu0 %v695
  %1351 = vmatpush.msra.mxu0 %v691
  %1352 = vmatpush.msra.mxu0 %v687
  %1353 = vmatmul.f32.gmra.mxu0 %v859
  %v1354 = vpop.f32.mrf.mxu0
  %v1355 = vadd.f32 %v1335, %v1354
  %1356 = vdwg.mxu0
  %1357 = vmatpush.msra.mxu0 %v811
  %1358 = vmatpush.msra.mxu0 %v807
  %1359 = vmatpush.msra.mxu0 %v803
  %1360 = vmatpush.msra.mxu0 %v799
  %1361 = vmatpush.msra.mxu0 %v795
  %1362 = vmatpush.msra.mxu0 %v791
  %1363 = vmatpush.msra.mxu0 %v787
  %1364 = vmatpush.msra.mxu0 %v783
  %1365 = vmatpush.msra.mxu0 %v779
  %1366 = vmatpush.msra.mxu0 %v775
  %1367 = vmatpush.msra.mxu0 %v771
  %1368 = vmatpush.msra.mxu0 %v767
  %1369 = vmatpush.msra.mxu0 %v763
  %1370 = vmatpush.msra.mxu0 %v759
  %1371 = vmatpush.msra.mxu0 %v755
  %1372 = vmatpush.msra.mxu0 %v751
  %1373 = vmatmul.f32.gmra.mxu0 %v860
  %v1374 = vpop.f32.mrf.mxu0
  %v1375 = vadd.f32 %v1355, %v1374
  %1376 = vdwg.mxu0
  %1377 = vmatpush.msra.mxu0 0.0
  %1378 = vmatpush.msra.mxu0 0.0
  %1379 = vmatpush.msra.mxu0 0.0
  %1380 = vmatpush.msra.mxu0 0.0
  %1381 = vmatpush.msra.mxu0 0.0
  %1382 = vmatpush.msra.mxu0 0.0
  %1383 = vmatpush.msra.mxu0 0.0
  %1384 = vmatpush.msra.mxu0 0.0
  %1385 = vmatpush.msra.mxu0 0.0
  %1386 = vmatpush.msra.mxu0 0.0
  %1387 = vmatpush.msra.mxu0 0.0
  %1388 = vmatpush.msra.mxu0 0.0
  %1389 = vmatpush.msra.mxu0 %v827
  %1390 = vmatpush.msra.mxu0 %v823
  %1391 = vmatpush.msra.mxu0 %v819
  %1392 = vmatpush.msra.mxu0 %v815
  %1393 = vmatmul.f32.gmra.mxu0 %v875
  %v1394 = vpop.f32.mrf.mxu0
  %v1395 = vadd.f32 %v1375, %v1394
  %1396 = vdwg.mxu0
  %1397 = vmatpush.msra.mxu0 %v108
  %1398 = vmatpush.msra.mxu0 %v104
  %1399 = vmatpush.msra.mxu0 %v100
  %1400 = vmatpush.msra.mxu0 %v96
  %1401 = vmatpush.msra.mxu0 %v92
  %1402 = vmatpush.msra.mxu0 %v88
  %1403 = vmatpush.msra.mxu0 %v84
  %1404 = vmatpush.msra.mxu0 %v80
  %1405 = vmatpush.msra.mxu0 %v76
  %1406 = vmatpush.msra.mxu0 %v72
  %1407 = vmatpush.msra.mxu0 %v68
  %1408 = vmatpush.msra.mxu0 %v64
  %1409 = vmatpush.msra.mxu0 %v60
  %1410 = vmatpush.msra.mxu0 %v56
  %1411 = vmatpush.msra.mxu0 %v52
  %1412 = vmatpush.msra.mxu0 %v48
  %1413 = vmatmul.f32.gmra.mxu0 %v847
  %v1414 = vpop.f32.mrf.mxu0
  %v1415 = vadd.f32 %v834, %v1414
  %1416 = vdwg.mxu0
  %1417 = vmatpush.msra.mxu0 %v172
  %1418 = vmatpush.msra.mxu0 %v168
  %1419 = vmatpush.msra.mxu0 %v164
  %1420 = vmatpush.msra.mxu0 %v160
  %1421 = vmatpush.msra.mxu0 %v156
  %1422 = vmatpush.msra.mxu0 %v152
  %1423 = vmatpush.msra.mxu0 %v148
  %1424 = vmatpush.msra.mxu0 %v144
  %1425 = vmatpush.msra.mxu0 %v140
  %1426 = vmatpush.msra.mxu0 %v136
  %1427 = vmatpush.msra.mxu0 %v132
  %1428 = vmatpush.msra.mxu0 %v128
  %1429 = vmatpush.msra.mxu0 %v124
  %1430 = vmatpush.msra.mxu0 %v120
  %1431 = vmatpush.msra.mxu0 %v116
  %1432 = vmatpush.msra.mxu0 %v112
  %1433 = vmatmul.f32.gmra.mxu0 %v848
  %v1434 = vpop.f32.mrf.mxu0
  %v1435 = vadd.f32 %v1415, %v1434
  %1436 = vdwg.mxu0
  %1437 = vmatpush.msra.mxu0 %v236
  %1438 = vmatpush.msra.mxu0 %v232
  %1439 = vmatpush.msra.mxu0 %v228
  %1440 = vmatpush.msra.mxu0 %v224
  %1441 = vmatpush.msra.mxu0 %v220
  %1442 = vmatpush.msra.mxu0 %v216
  %1443 = vmatpush.msra.mxu0 %v212
  %1444 = vmatpush.msra.mxu0 %v208
  %1445 = vmatpush.msra.mxu0 %v204
  %1446 = vmatpush.msra.mxu0 %v200
  %1447 = vmatpush.msra.mxu0 %v196
  %1448 = vmatpush.msra.mxu0 %v192
  %1449 = vmatpush.msra.mxu0 %v188
  %1450 = vmatpush.msra.mxu0 %v184
  %1451 = vmatpush.msra.mxu0 %v180
  %1452 = vmatpush.msra.mxu0 %v176
  %1453 = vmatmul.f32.gmra.mxu0 %v849
  %v1454 = vpop.f32.mrf.mxu0
  %v1455 = vadd.f32 %v1435, %v1454
  %1456 = vdwg.mxu0
  %1457 = vmatpush.msra.mxu0 %v300
  %1458 = vmatpush.msra.mxu0 %v296
  %1459 = vmatpush.msra.mxu0 %v292
  %1460 = vmatpush.msra.mxu0 %v288
  %1461 = vmatpush.msra.mxu0 %v284
  %1462 = vmatpush.msra.mxu0 %v280
  %1463 = vmatpush.msra.mxu0 %v276
  %1464 = vmatpush.msra.mxu0 %v272
  %1465 = vmatpush.msra.mxu0 %v268
  %1466 = vmatpush.msra.mxu0 %v264
  %1467 = vmatpush.msra.mxu0 %v260
  %1468 = vmatpush.msra.mxu0 %v256
  %1469 = vmatpush.msra.mxu0 %v252
  %1470 = vmatpush.msra.mxu0 %v248
  %1471 = vmatpush.msra.mxu0 %v244
  %1472 = vmatpush.msra.mxu0 %v240
  %1473 = vmatmul.f32.gmra.mxu0 %v850
  %v1474 = vpop.f32.mrf.mxu0
  %v1475 = vadd.f32 %v1455, %v1474
  %1476 = vdwg.mxu0
  %1477 = vmatpush.msra.mxu0 %v364
  %1478 = vmatpush.msra.mxu0 %v360
  %1479 = vmatpush.msra.mxu0 %v356
  %1480 = vmatpush.msra.mxu0 %v352
  %1481 = vmatpush.msra.mxu0 %v348
  %1482 = vmatpush.msra.mxu0 %v344
  %1483 = vmatpush.msra.mxu0 %v340
  %1484 = vmatpush.msra.mxu0 %v336
  %1485 = vmatpush.msra.mxu0 %v332
  %1486 = vmatpush.msra.mxu0 %v328
  %1487 = vmatpush.msra.mxu0 %v324
  %1488 = vmatpush.msra.mxu0 %v320
  %1489 = vmatpush.msra.mxu0 %v316
  %1490 = vmatpush.msra.mxu0 %v312
  %1491 = vmatpush.msra.mxu0 %v308
  %1492 = vmatpush.msra.mxu0 %v304
  %1493 = vmatmul.f32.gmra.mxu0 %v851
  %v1494 = vpop.f32.mrf.mxu0
  %v1495 = vadd.f32 %v1475, %v1494
  %1496 = vdwg.mxu0
  %1497 = vmatpush.msra.mxu0 %v428
  %1498 = vmatpush.msra.mxu0 %v424
  %1499 = vmatpush.msra.mxu0 %v420
  %1500 = vmatpush.msra.mxu0 %v416
  %1501 = vmatpush.msra.mxu0 %v412
  %1502 = vmatpush.msra.mxu0 %v408
  %1503 = vmatpush.msra.mxu0 %v404
  %1504 = vmatpush.msra.mxu0 %v400
  %1505 = vmatpush.msra.mxu0 %v396
  %1506 = vmatpush.msra.mxu0 %v392
  %1507 = vmatpush.msra.mxu0 %v388
  %1508 = vmatpush.msra.mxu0 %v384
  %1509 = vmatpush.msra.mxu0 %v380
  %1510 = vmatpush.msra.mxu0 %v376
  %1511 = vmatpush.msra.mxu0 %v372
  %1512 = vmatpush.msra.mxu0 %v368
  %1513 = vmatmul.f32.gmra.mxu0 %v852
  %v1514 = vpop.f32.mrf.mxu0
  %v1515 = vadd.f32 %v1495, %v1514
  %1516 = vdwg.mxu0
  %1517 = vmatpush.msra.mxu0 %v492
  %1518 = vmatpush.msra.mxu0 %v488
  %1519 = vmatpush.msra.mxu0 %v484
  %1520 = vmatpush.msra.mxu0 %v480
  %1521 = vmatpush.msra.mxu0 %v476
  %1522 = vmatpush.msra.mxu0 %v472
  %1523 = vmatpush.msra.mxu0 %v468
  %1524 = vmatpush.msra.mxu0 %v464
  %1525 = vmatpush.msra.mxu0 %v460
  %1526 = vmatpush.msra.mxu0 %v456
  %1527 = vmatpush.msra.mxu0 %v452
  %1528 = vmatpush.msra.mxu0 %v448
  %1529 = vmatpush.msra.mxu0 %v444
  %1530 = vmatpush.msra.mxu0 %v440
  %1531 = vmatpush.msra.mxu0 %v436
  %1532 = vmatpush.msra.mxu0 %v432
  %1533 = vmatmul.f32.gmra.mxu0 %v853
  %v1534 = vpop.f32.mrf.mxu0
  %v1535 = vadd.f32 %v1515, %v1534
  %1536 = vdwg.mxu0
  %1537 = vmatpush.msra.mxu0 %v556
  %1538 = vmatpush.msra.mxu0 %v552
  %1539 = vmatpush.msra.mxu0 %v548
  %1540 = vmatpush.msra.mxu0 %v544
  %1541 = vmatpush.msra.mxu0 %v540
  %1542 = vmatpush.msra.mxu0 %v536
  %1543 = vmatpush.msra.mxu0 %v532
  %1544 = vmatpush.msra.mxu0 %v528
  %1545 = vmatpush.msra.mxu0 %v524
  %1546 = vmatpush.msra.mxu0 %v520
  %1547 = vmatpush.msra.mxu0 %v516
  %1548 = vmatpush.msra.mxu0 %v512
  %1549 = vmatpush.msra.mxu0 %v508
  %1550 = vmatpush.msra.mxu0 %v504
  %1551 = vmatpush.msra.mxu0 %v500
  %1552 = vmatpush.msra.mxu0 %v496
  %1553 = vmatmul.f32.gmra.mxu0 %v854
  %v1554 = vpop.f32.mrf.mxu0
  %v1555 = vadd.f32 %v1535, %v1554
  %1556 = vdwg.mxu0
  %1557 = vmatpush.msra.mxu0 %v620
  %1558 = vmatpush.msra.mxu0 %v616
  %1559 = vmatpush.msra.mxu0 %v612
  %1560 = vmatpush.msra.mxu0 %v608
  %1561 = vmatpush.msra.mxu0 %v604
  %1562 = vmatpush.msra.mxu0 %v600
  %1563 = vmatpush.msra.mxu0 %v596
  %1564 = vmatpush.msra.mxu0 %v592
  %1565 = vmatpush.msra.mxu0 %v588
  %1566 = vmatpush.msra.mxu0 %v584
  %1567 = vmatpush.msra.mxu0 %v580
  %1568 = vmatpush.msra.mxu0 %v576
  %1569 = vmatpush.msra.mxu0 %v572
  %1570 = vmatpush.msra.mxu0 %v568
  %1571 = vmatpush.msra.mxu0 %v564
  %1572 = vmatpush.msra.mxu0 %v560
  %1573 = vmatmul.f32.gmra.mxu0 %v857
  %v1574 = vpop.f32.mrf.mxu0
  %v1575 = vadd.f32 %v1555, %v1574
  %1576 = vdwg.mxu0
  %1577 = vmatpush.msra.mxu0 %v684
  %1578 = vmatpush.msra.mxu0 %v680
  %1579 = vmatpush.msra.mxu0 %v676
  %1580 = vmatpush.msra.mxu0 %v672
  %1581 = vmatpush.msra.mxu0 %v668
  %1582 = vmatpush.msra.mxu0 %v664
  %1583 = vmatpush.msra.mxu0 %v660
  %1584 = vmatpush.msra.mxu0 %v656
  %1585 = vmatpush.msra.mxu0 %v652
  %1586 = vmatpush.msra.mxu0 %v648
  %1587 = vmatpush.msra.mxu0 %v644
  %1588 = vmatpush.msra.mxu0 %v640
  %1589 = vmatpush.msra.mxu0 %v636
  %1590 = vmatpush.msra.mxu0 %v632
  %1591 = vmatpush.msra.mxu0 %v628
  %1592 = vmatpush.msra.mxu0 %v624
  %1593 = vmatmul.f32.gmra.mxu0 %v858
  %v1594 = vpop.f32.mrf.mxu0
  %v1595 = vadd.f32 %v1575, %v1594
  %1596 = vdwg.mxu0
  %1597 = vmatpush.msra.mxu0 %v748
  %1598 = vmatpush.msra.mxu0 %v744
  %1599 = vmatpush.msra.mxu0 %v740
  %1600 = vmatpush.msra.mxu0 %v736
  %1601 = vmatpush.msra.mxu0 %v732
  %1602 = vmatpush.msra.mxu0 %v728
  %1603 = vmatpush.msra.mxu0 %v724
  %1604 = vmatpush.msra.mxu0 %v720
  %1605 = vmatpush.msra.mxu0 %v716
  %1606 = vmatpush.msra.mxu0 %v712
  %1607 = vmatpush.msra.mxu0 %v708
  %1608 = vmatpush.msra.mxu0 %v704
  %1609 = vmatpush.msra.mxu0 %v700
  %1610 = vmatpush.msra.mxu0 %v696
  %1611 = vmatpush.msra.mxu0 %v692
  %1612 = vmatpush.msra.mxu0 %v688
  %1613 = vmatmul.f32.gmra.mxu0 %v859
  %v1614 = vpop.f32.mrf.mxu0
  %v1615 = vadd.f32 %v1595, %v1614
  %1616 = vdwg.mxu0
  %1617 = vmatpush.msra.mxu0 %v812
  %1618 = vmatpush.msra.mxu0 %v808
  %1619 = vmatpush.msra.mxu0 %v804
  %1620 = vmatpush.msra.mxu0 %v800
  %1621 = vmatpush.msra.mxu0 %v796
  %1622 = vmatpush.msra.mxu0 %v792
  %1623 = vmatpush.msra.mxu0 %v788
  %1624 = vmatpush.msra.mxu0 %v784
  %1625 = vmatpush.msra.mxu0 %v780
  %1626 = vmatpush.msra.mxu0 %v776
  %1627 = vmatpush.msra.mxu0 %v772
  %1628 = vmatpush.msra.mxu0 %v768
  %1629 = vmatpush.msra.mxu0 %v764
  %1630 = vmatpush.msra.mxu0 %v760
  %1631 = vmatpush.msra.mxu0 %v756
  %1632 = vmatpush.msra.mxu0 %v752
  %1633 = vmatmul.f32.gmra.mxu0 %v860
  %v1634 = vpop.f32.mrf.mxu0
  %v1635 = vadd.f32 %v1615, %v1634
  %1636 = vdwg.mxu0
  %1637 = vmatpush.msra.mxu0 0.0
  %1638 = vmatpush.msra.mxu0 0.0
  %1639 = vmatpush.msra.mxu0 0.0
  %1640 = vmatpush.msra.mxu0 0.0
  %1641 = vmatpush.msra.mxu0 0.0
  %1642 = vmatpush.msra.mxu0 0.0
  %1643 = vmatpush.msra.mxu0 0.0
  %1644 = vmatpush.msra.mxu0 0.0
  %1645 = vmatpush.msra.mxu0 0.0
  %1646 = vmatpush.msra.mxu0 0.0
  %1647 = vmatpush.msra.mxu0 0.0
  %1648 = vmatpush.msra.mxu0 0.0
  %1649 = vmatpush.msra.mxu0 %v828
  %1650 = vmatpush.msra.mxu0 %v824
  %1651 = vmatpush.msra.mxu0 %v820
  %1652 = vmatpush.msra.mxu0 %v816
  %1653 = vmatmul.f32.gmra.mxu0 %v875
  %v1654 = vpop.f32.mrf.mxu0
  %v1655 = vadd.f32 %v1635, %v1654
  %1656 = vdwg.mxu0
  %1657 = vmatpush.msra.mxu0 %v109
  %1658 = vmatpush.msra.mxu0 %v105
  %1659 = vmatpush.msra.mxu0 %v101
  %1660 = vmatpush.msra.mxu0 %v97
  %1661 = vmatpush.msra.mxu0 %v93
  %1662 = vmatpush.msra.mxu0 %v89
  %1663 = vmatpush.msra.mxu0 %v85
  %1664 = vmatpush.msra.mxu0 %v81
  %1665 = vmatpush.msra.mxu0 %v77
  %1666 = vmatpush.msra.mxu0 %v73
  %1667 = vmatpush.msra.mxu0 %v69
  %1668 = vmatpush.msra.mxu0 %v65
  %1669 = vmatpush.msra.mxu0 %v61
  %1670 = vmatpush.msra.mxu0 %v57
  %1671 = vmatpush.msra.mxu0 %v53
  %1672 = vmatpush.msra.mxu0 %v49
  %1673 = vmatmul.f32.gmra.mxu0 %v847
  %v1674 = vpop.f32.mrf.mxu0
  %v1675 = vadd.f32 %v835, %v1674
  %1676 = vdwg.mxu0
  %1677 = vmatpush.msra.mxu0 %v173
  %1678 = vmatpush.msra.mxu0 %v169
  %1679 = vmatpush.msra.mxu0 %v165
  %1680 = vmatpush.msra.mxu0 %v161
  %1681 = vmatpush.msra.mxu0 %v157
  %1682 = vmatpush.msra.mxu0 %v153
  %1683 = vmatpush.msra.mxu0 %v149
  %1684 = vmatpush.msra.mxu0 %v145
  %1685 = vmatpush.msra.mxu0 %v141
  %1686 = vmatpush.msra.mxu0 %v137
  %1687 = vmatpush.msra.mxu0 %v133
  %1688 = vmatpush.msra.mxu0 %v129
  %1689 = vmatpush.msra.mxu0 %v125
  %1690 = vmatpush.msra.mxu0 %v121
  %1691 = vmatpush.msra.mxu0 %v117
  %1692 = vmatpush.msra.mxu0 %v113
  %1693 = vmatmul.f32.gmra.mxu0 %v848
  %v1694 = vpop.f32.mrf.mxu0
  %v1695 = vadd.f32 %v1675, %v1694
  %1696 = vdwg.mxu0
  %1697 = vmatpush.msra.mxu0 %v237
  %1698 = vmatpush.msra.mxu0 %v233
  %1699 = vmatpush.msra.mxu0 %v229
  %1700 = vmatpush.msra.mxu0 %v225
  %1701 = vmatpush.msra.mxu0 %v221
  %1702 = vmatpush.msra.mxu0 %v217
  %1703 = vmatpush.msra.mxu0 %v213
  %1704 = vmatpush.msra.mxu0 %v209
  %1705 = vmatpush.msra.mxu0 %v205
  %1706 = vmatpush.msra.mxu0 %v201
  %1707 = vmatpush.msra.mxu0 %v197
  %1708 = vmatpush.msra.mxu0 %v193
  %1709 = vmatpush.msra.mxu0 %v189
  %1710 = vmatpush.msra.mxu0 %v185
  %1711 = vmatpush.msra.mxu0 %v181
  %1712 = vmatpush.msra.mxu0 %v177
  %1713 = vmatmul.f32.gmra.mxu0 %v849
  %v1714 = vpop.f32.mrf.mxu0
  %v1715 = vadd.f32 %v1695, %v1714
  %1716 = vdwg.mxu0
  %1717 = vmatpush.msra.mxu0 %v301
  %1718 = vmatpush.msra.mxu0 %v297
  %1719 = vmatpush.msra.mxu0 %v293
  %1720 = vmatpush.msra.mxu0 %v289
  %1721 = vmatpush.msra.mxu0 %v285
  %1722 = vmatpush.msra.mxu0 %v281
  %1723 = vmatpush.msra.mxu0 %v277
  %1724 = vmatpush.msra.mxu0 %v273
  %1725 = vmatpush.msra.mxu0 %v269
  %1726 = vmatpush.msra.mxu0 %v265
  %1727 = vmatpush.msra.mxu0 %v261
  %1728 = vmatpush.msra.mxu0 %v257
  %1729 = vmatpush.msra.mxu0 %v253
  %1730 = vmatpush.msra.mxu0 %v249
  %1731 = vmatpush.msra.mxu0 %v245
  %1732 = vmatpush.msra.mxu0 %v241
  %1733 = vmatmul.f32.gmra.mxu0 %v850
  %v1734 = vpop.f32.mrf.mxu0
  %v1735 = vadd.f32 %v1715, %v1734
  %1736 = vdwg.mxu0
  %1737 = vmatpush.msra.mxu0 %v365
  %1738 = vmatpush.msra.mxu0 %v361
  %1739 = vmatpush.msra.mxu0 %v357
  %1740 = vmatpush.msra.mxu0 %v353
  %1741 = vmatpush.msra.mxu0 %v349
  %1742 = vmatpush.msra.mxu0 %v345
  %1743 = vmatpush.msra.mxu0 %v341
  %1744 = vmatpush.msra.mxu0 %v337
  %1745 = vmatpush.msra.mxu0 %v333
  %1746 = vmatpush.msra.mxu0 %v329
  %1747 = vmatpush.msra.mxu0 %v325
  %1748 = vmatpush.msra.mxu0 %v321
  %1749 = vmatpush.msra.mxu0 %v317
  %1750 = vmatpush.msra.mxu0 %v313
  %1751 = vmatpush.msra.mxu0 %v309
  %1752 = vmatpush.msra.mxu0 %v305
  %1753 = vmatmul.f32.gmra.mxu0 %v851
  %v1754 = vpop.f32.mrf.mxu0
  %v1755 = vadd.f32 %v1735, %v1754
  %1756 = vdwg.mxu0
  %1757 = vmatpush.msra.mxu0 %v429
  %1758 = vmatpush.msra.mxu0 %v425
  %1759 = vmatpush.msra.mxu0 %v421
  %1760 = vmatpush.msra.mxu0 %v417
  %1761 = vmatpush.msra.mxu0 %v413
  %1762 = vmatpush.msra.mxu0 %v409
  %1763 = vmatpush.msra.mxu0 %v405
  %1764 = vmatpush.msra.mxu0 %v401
  %1765 = vmatpush.msra.mxu0 %v397
  %1766 = vmatpush.msra.mxu0 %v393
  %1767 = vmatpush.msra.mxu0 %v389
  %1768 = vmatpush.msra.mxu0 %v385
  %1769 = vmatpush.msra.mxu0 %v381
  %1770 = vmatpush.msra.mxu0 %v377
  %1771 = vmatpush.msra.mxu0 %v373
  %1772 = vmatpush.msra.mxu0 %v369
  %1773 = vmatmul.f32.gmra.mxu0 %v852
  %v1774 = vpop.f32.mrf.mxu0
  %v1775 = vadd.f32 %v1755, %v1774
  %1776 = vdwg.mxu0
  %1777 = vmatpush.msra.mxu0 %v493
  %1778 = vmatpush.msra.mxu0 %v489
  %1779 = vmatpush.msra.mxu0 %v485
  %1780 = vmatpush.msra.mxu0 %v481
  %1781 = vmatpush.msra.mxu0 %v477
  %1782 = vmatpush.msra.mxu0 %v473
  %1783 = vmatpush.msra.mxu0 %v469
  %1784 = vmatpush.msra.mxu0 %v465
  %1785 = vmatpush.msra.mxu0 %v461
  %1786 = vmatpush.msra.mxu0 %v457
  %1787 = vmatpush.msra.mxu0 %v453
  %1788 = vmatpush.msra.mxu0 %v449
  %1789 = vmatpush.msra.mxu0 %v445
  %1790 = vmatpush.msra.mxu0 %v441
  %1791 = vmatpush.msra.mxu0 %v437
  %1792 = vmatpush.msra.mxu0 %v433
  %1793 = vmatmul.f32.gmra.mxu0 %v853
  %v1794 = vpop.f32.mrf.mxu0
  %v1795 = vadd.f32 %v1775, %v1794
  %1796 = vdwg.mxu0
  %1797 = vmatpush.msra.mxu0 %v557
  %1798 = vmatpush.msra.mxu0 %v553
  %1799 = vmatpush.msra.mxu0 %v549
  %1800 = vmatpush.msra.mxu0 %v545
  %1801 = vmatpush.msra.mxu0 %v541
  %1802 = vmatpush.msra.mxu0 %v537
  %1803 = vmatpush.msra.mxu0 %v533
  %1804 = vmatpush.msra.mxu0 %v529
  %1805 = vmatpush.msra.mxu0 %v525
  %1806 = vmatpush.msra.mxu0 %v521
  %1807 = vmatpush.msra.mxu0 %v517
  %1808 = vmatpush.msra.mxu0 %v513
  %1809 = vmatpush.msra.mxu0 %v509
  %1810 = vmatpush.msra.mxu0 %v505
  %1811 = vmatpush.msra.mxu0 %v501
  %1812 = vmatpush.msra.mxu0 %v497
  %1813 = vmatmul.f32.gmra.mxu0 %v854
  %v1814 = vpop.f32.mrf.mxu0
  %v1815 = vadd.f32 %v1795, %v1814
  %1816 = vdwg.mxu0
  %1817 = vmatpush.msra.mxu0 %v621
  %1818 = vmatpush.msra.mxu0 %v617
  %1819 = vmatpush.msra.mxu0 %v613
  %1820 = vmatpush.msra.mxu0 %v609
  %1821 = vmatpush.msra.mxu0 %v605
  %1822 = vmatpush.msra.mxu0 %v601
  %1823 = vmatpush.msra.mxu0 %v597
  %1824 = vmatpush.msra.mxu0 %v593
  %1825 = vmatpush.msra.mxu0 %v589
  %1826 = vmatpush.msra.mxu0 %v585
  %1827 = vmatpush.msra.mxu0 %v581
  %1828 = vmatpush.msra.mxu0 %v577
  %1829 = vmatpush.msra.mxu0 %v573
  %1830 = vmatpush.msra.mxu0 %v569
  %1831 = vmatpush.msra.mxu0 %v565
  %1832 = vmatpush.msra.mxu0 %v561
  %1833 = vmatmul.f32.gmra.mxu0 %v857
  %v1834 = vpop.f32.mrf.mxu0
  %v1835 = vadd.f32 %v1815, %v1834
  %1836 = vdwg.mxu0
  %1837 = vmatpush.msra.mxu0 %v685
  %1838 = vmatpush.msra.mxu0 %v681
  %1839 = vmatpush.msra.mxu0 %v677
  %1840 = vmatpush.msra.mxu0 %v673
  %1841 = vmatpush.msra.mxu0 %v669
  %1842 = vmatpush.msra.mxu0 %v665
  %1843 = vmatpush.msra.mxu0 %v661
  %1844 = vmatpush.msra.mxu0 %v657
  %1845 = vmatpush.msra.mxu0 %v653
  %1846 = vmatpush.msra.mxu0 %v649
  %1847 = vmatpush.msra.mxu0 %v645
  %1848 = vmatpush.msra.mxu0 %v641
  %1849 = vmatpush.msra.mxu0 %v637
  %1850 = vmatpush.msra.mxu0 %v633
  %1851 = vmatpush.msra.mxu0 %v629
  %1852 = vmatpush.msra.mxu0 %v625
  %1853 = vmatmul.f32.gmra.mxu0 %v858
  %v1854 = vpop.f32.mrf.mxu0
  %v1855 = vadd.f32 %v1835, %v1854
  %1856 = vdwg.mxu0
  %1857 = vmatpush.msra.mxu0 %v749
  %1858 = vmatpush.msra.mxu0 %v745
  %1859 = vmatpush.msra.mxu0 %v741
  %1860 = vmatpush.msra.mxu0 %v737
  %1861 = vmatpush.msra.mxu0 %v733
  %1862 = vmatpush.msra.mxu0 %v729
  %1863 = vmatpush.msra.mxu0 %v725
  %1864 = vmatpush.msra.mxu0 %v721
  %1865 = vmatpush.msra.mxu0 %v717
  %1866 = vmatpush.msra.mxu0 %v713
  %1867 = vmatpush.msra.mxu0 %v709
  %1868 = vmatpush.msra.mxu0 %v705
  %1869 = vmatpush.msra.mxu0 %v701
  %1870 = vmatpush.msra.mxu0 %v697
  %1871 = vmatpush.msra.mxu0 %v693
  %1872 = vmatpush.msra.mxu0 %v689
  %1873 = vmatmul.f32.gmra.mxu0 %v859
  %v1874 = vpop.f32.mrf.mxu0
  %v1875 = vadd.f32 %v1855, %v1874
  %1876 = vdwg.mxu0
  %1877 = vmatpush.msra.mxu0 %v813
  %1878 = vmatpush.msra.mxu0 %v809
  %1879 = vmatpush.msra.mxu0 %v805
  %1880 = vmatpush.msra.mxu0 %v801
  %1881 = vmatpush.msra.mxu0 %v797
  %1882 = vmatpush.msra.mxu0 %v793
  %1883 = vmatpush.msra.mxu0 %v789
  %1884 = vmatpush.msra.mxu0 %v785
  %1885 = vmatpush.msra.mxu0 %v781
  %1886 = vmatpush.msra.mxu0 %v777
  %1887 = vmatpush.msra.mxu0 %v773
  %1888 = vmatpush.msra.mxu0 %v769
  %1889 = vmatpush.msra.mxu0 %v765
  %1890 = vmatpush.msra.mxu0 %v761
  %1891 = vmatpush.msra.mxu0 %v757
  %1892 = vmatpush.msra.mxu0 %v753
  %1893 = vmatmul.f32.gmra.mxu0 %v860
  %v1894 = vpop.f32.mrf.mxu0
  %v1895 = vadd.f32 %v1875, %v1894
  %1896 = vdwg.mxu0
  %1897 = vmatpush.msra.mxu0 0.0
  %1898 = vmatpush.msra.mxu0 0.0
  %1899 = vmatpush.msra.mxu0 0.0
  %1900 = vmatpush.msra.mxu0 0.0
  %1901 = vmatpush.msra.mxu0 0.0
  %1902 = vmatpush.msra.mxu0 0.0
  %1903 = vmatpush.msra.mxu0 0.0
  %1904 = vmatpush.msra.mxu0 0.0
  %1905 = vmatpush.msra.mxu0 0.0
  %1906 = vmatpush.msra.mxu0 0.0
  %1907 = vmatpush.msra.mxu0 0.0
  %1908 = vmatpush.msra.mxu0 0.0
  %1909 = vmatpush.msra.mxu0 %v829
  %1910 = vmatpush.msra.mxu0 %v825
  %1911 = vmatpush.msra.mxu0 %v821
  %1912 = vmatpush.msra.mxu0 %v817
  %1913 = vmatmul.f32.gmra.mxu0 %v875
  %v1914 = vpop.f32.mrf.mxu0
  %v1915 = vadd.f32 %v1895, %v1914
  %1916 = vdwg.mxu0
  %v1917 = vmax.f32 %v1135, 0.0
  %v1918 = vmax.f32 %v1395, 0.0
  %v1919 = vmax.f32 %v1655, 0.0
  %v1920 = vmax.f32 %v1915, 0.0
  %v1921 = vld [vmem:[%s1] sm:$0xf]
  %v1922 = vld [vmem:[%s2] sm:$0x3]
  %1924 = vset.pattern.permute.xlu0 0
  %1925 = vperm.xlu0 %1924, %v1922
  %v1926 = vpop.permute.xlu0 %1925
  %v1928 = vunpack.c.l.s4 269488144
  %v1929 = vunpack.c.0.s8 %v1928
  %v1930 = vperm.slane %v1926, %v1929
  %v1932 = vmul.f32 %v1921, %v1930
  %v1933 = vld [vmem:[%s5] sm:$0xff]
  %v1934 = vld [vmem:[%s5 + $0x8] sm:$0xff]
  %v1935 = vld [vmem:[%s5 + $0x10] sm:$0xff]
  %v1936 = vld [vmem:[%s5 + $0x18] sm:$0xff]
  %v1937 = vld [vmem:[%s5 + $0x20] sm:$0xff]
  %v1938 = vld [vmem:[%s5 + $0x28] sm:$0xff]
  %v1939 = vld [vmem:[%s5 + $0x30] sm:$0xff]
  %v1940 = vld [vmem:[%s5 + $0x38] sm:$0xff]
  %v1941 = vld [vmem:[%s5 + $0x40] sm:$0xff]
  %v1942 = vld [vmem:[%s5 + $0x48] sm:$0xff]
  %v1943 = vld [vmem:[%s5 + $0x50] sm:$0xff]
  %v1944 = vld [vmem:[%s5 + $0x58] sm:$0xff]
  %v1945 = vld [vmem:[%s5 + $0x60] sm:$0xff]
  %v1946 = vld [vmem:[%s5 + $0x68] sm:$0xff]
  %v1947 = vld [vmem:[%s5 + $0x70] sm:$0xff]
  %v1948 = vld [vmem:[%s5 + $0x78] sm:$0xff]
  %v1949 = vld [vmem:[%s5 + $0x80] sm:$0xff]
  %v1950 = vld [vmem:[%s5 + $0x88] sm:$0xff]
  %v1951 = vld [vmem:[%s5 + $0x90] sm:$0xff]
  %v1952 = vld [vmem:[%s5 + $0x98] sm:$0xff]
  %v1953 = vld [vmem:[%s5 + $0xa0] sm:$0xff]
  %v1954 = vld [vmem:[%s5 + $0xa8] sm:$0xff]
  %v1955 = vld [vmem:[%s5 + $0xb0] sm:$0xff]
  %v1956 = vld [vmem:[%s5 + $0xb8] sm:$0xff]
  %v1957 = vld [vmem:[%s5 + $0xc0] sm:$0xff]
  %v1958 = vld [vmem:[%s5 + $0xc8] sm:$0xff]
  %v1959 = vld [vmem:[%s5 + $0xd0] sm:$0xff]
  %v1960 = vld [vmem:[%s5 + $0xd8] sm:$0xff]
  %v1961 = vld [vmem:[%s5 + $0xe0] sm:$0xff]
  %v1962 = vld [vmem:[%s5 + $0xe8] sm:$0xff]
  %v1963 = vld [vmem:[%s5 + $0xf0] sm:$0xff]
  %v1964 = vld [vmem:[%s5 + $0xf8] sm:$0xff]
  %v1965 = vld [vmem:[%s5 + $0x100] sm:$0xff]
  %v1966 = vld [vmem:[%s5 + $0x108] sm:$0xff]
  %v1967 = vld [vmem:[%s5 + $0x110] sm:$0xff]
  %v1968 = vld [vmem:[%s5 + $0x118] sm:$0xff]
  %v1969 = vld [vmem:[%s5 + $0x120] sm:$0xff]
  %v1970 = vld [vmem:[%s5 + $0x128] sm:$0xff]
  %v1971 = vld [vmem:[%s5 + $0x130] sm:$0xff]
  %v1972 = vld [vmem:[%s5 + $0x138] sm:$0xff]
  %v1973 = vld [vmem:[%s5 + $0x140] sm:$0xff]
  %v1974 = vld [vmem:[%s5 + $0x148] sm:$0xff]
  %v1975 = vld [vmem:[%s5 + $0x150] sm:$0xff]
  %v1976 = vld [vmem:[%s5 + $0x158] sm:$0xff]
  %v1977 = vld [vmem:[%s5 + $0x160] sm:$0xff]
  %v1978 = vld [vmem:[%s5 + $0x168] sm:$0xff]
  %v1979 = vld [vmem:[%s5 + $0x170] sm:$0xff]
  %v1980 = vld [vmem:[%s5 + $0x178] sm:$0xff]
  %v1981 = vld [vmem:[%s5 + $0x180] sm:$0xff]
  %v1982 = vld [vmem:[%s5 + $0x188] sm:$0xff]
  %v1983 = vld [vmem:[%s5 + $0x190] sm:$0xff]
  %v1984 = vld [vmem:[%s5 + $0x198] sm:$0xff]
  %v1985 = vld [vmem:[%s5 + $0x1a0] sm:$0xff]
  %v1986 = vld [vmem:[%s5 + $0x1a8] sm:$0xff]
  %v1987 = vld [vmem:[%s5 + $0x1b0] sm:$0xff]
  %v1988 = vld [vmem:[%s5 + $0x1b8] sm:$0xff]
  %v1989 = vld [vmem:[%s5 + $0x1c0] sm:$0xff]
  %v1990 = vld [vmem:[%s5 + $0x1c8] sm:$0xff]
  %v1991 = vld [vmem:[%s5 + $0x1d0] sm:$0xff]
  %v1992 = vld [vmem:[%s5 + $0x1d8] sm:$0xff]
  %v1993 = vld [vmem:[%s5 + $0x1e0] sm:$0xff]
  %v1994 = vld [vmem:[%s5 + $0x1e8] sm:$0xff]
  %v1995 = vld [vmem:[%s5 + $0x1f0] sm:$0xff]
  %v1996 = vld [vmem:[%s5 + $0x1f8] sm:$0xff]
  %v1997 = vld [vmem:[%s5 + $0x200] sm:$0xff]
  %v1998 = vld [vmem:[%s5 + $0x208] sm:$0xff]
  %v1999 = vld [vmem:[%s5 + $0x210] sm:$0xff]
  %v2000 = vld [vmem:[%s5 + $0x218] sm:$0xff]
  %v2001 = vld [vmem:[%s5 + $0x220] sm:$0xff]
  %v2002 = vld [vmem:[%s5 + $0x228] sm:$0xff]
  %v2003 = vld [vmem:[%s5 + $0x230] sm:$0xff]
  %v2004 = vld [vmem:[%s5 + $0x238] sm:$0xff]
  %v2005 = vld [vmem:[%s5 + $0x240] sm:$0xff]
  %v2006 = vld [vmem:[%s5 + $0x248] sm:$0xff]
  %v2007 = vld [vmem:[%s5 + $0x250] sm:$0xff]
  %v2008 = vld [vmem:[%s5 + $0x258] sm:$0xff]
  %v2009 = vld [vmem:[%s5 + $0x260] sm:$0xff]
  %v2010 = vld [vmem:[%s5 + $0x268] sm:$0xff]
  %v2011 = vld [vmem:[%s5 + $0x270] sm:$0xff]
  %v2012 = vld [vmem:[%s5 + $0x278] sm:$0xff]
  %v2013 = vld [vmem:[%s5 + $0x280] sm:$0xff]
  %v2014 = vld [vmem:[%s5 + $0x288] sm:$0xff]
  %v2015 = vld [vmem:[%s5 + $0x290] sm:$0xff]
  %v2016 = vld [vmem:[%s5 + $0x298] sm:$0xff]
  %v2017 = vld [vmem:[%s5 + $0x2a0] sm:$0xff]
  %v2018 = vld [vmem:[%s5 + $0x2a8] sm:$0xff]
  %v2019 = vld [vmem:[%s5 + $0x2b0] sm:$0xff]
  %v2020 = vld [vmem:[%s5 + $0x2b8] sm:$0xff]
  %v2021 = vld [vmem:[%s5 + $0x2c0] sm:$0xff]
  %v2022 = vld [vmem:[%s5 + $0x2c8] sm:$0xff]
  %v2023 = vld [vmem:[%s5 + $0x2d0] sm:$0xff]
  %v2024 = vld [vmem:[%s5 + $0x2d8] sm:$0xff]
  %v2025 = vld [vmem:[%s5 + $0x2e0] sm:$0xff]
  %v2026 = vld [vmem:[%s5 + $0x2e8] sm:$0xff]
  %v2027 = vld [vmem:[%s5 + $0x2f0] sm:$0xff]
  %v2028 = vld [vmem:[%s5 + $0x2f8] sm:$0xff]
  %v2029 = vld [vmem:[%s5 + $0x300] sm:$0xff]
  %v2030 = vld [vmem:[%s5 + $0x308] sm:$0xff]
  %v2031 = vld [vmem:[%s5 + $0x310] sm:$0xff]
  %v2032 = vld [vmem:[%s5 + $0x318] sm:$0xff]
  %v2033 = vld [vmem:[%s5 + $0x320] sm:$0xff]
  %v2034 = vld [vmem:[%s5 + $0x328] sm:$0xff]
  %v2035 = vld [vmem:[%s5 + $0x330] sm:$0xff]
  %v2036 = vld [vmem:[%s5 + $0x338] sm:$0xff]
  %v2037 = vld [vmem:[%s5 + $0x340] sm:$0xff]
  %v2038 = vld [vmem:[%s5 + $0x348] sm:$0xff]
  %v2039 = vld [vmem:[%s5 + $0x350] sm:$0xff]
  %v2040 = vld [vmem:[%s5 + $0x358] sm:$0xff]
  %v2041 = vld [vmem:[%s5 + $0x360] sm:$0xff]
  %v2042 = vld [vmem:[%s5 + $0x368] sm:$0xff]
  %v2043 = vld [vmem:[%s5 + $0x370] sm:$0xff]
  %v2044 = vld [vmem:[%s5 + $0x378] sm:$0xff]
  %v2045 = vld [vmem:[%s5 + $0x380] sm:$0xff]
  %v2046 = vld [vmem:[%s5 + $0x388] sm:$0xff]
  %v2047 = vld [vmem:[%s5 + $0x390] sm:$0xff]
  %v2048 = vld [vmem:[%s5 + $0x398] sm:$0xff]
  %v2049 = vld [vmem:[%s5 + $0x3a0] sm:$0xff]
  %v2050 = vld [vmem:[%s5 + $0x3a8] sm:$0xff]
  %v2051 = vld [vmem:[%s5 + $0x3b0] sm:$0xff]
  %v2052 = vld [vmem:[%s5 + $0x3b8] sm:$0xff]
  %v2053 = vld [vmem:[%s5 + $0x3c0] sm:$0xff]
  %v2054 = vld [vmem:[%s5 + $0x3c8] sm:$0xff]
  %v2055 = vld [vmem:[%s5 + $0x3d0] sm:$0xff]
  %v2056 = vld [vmem:[%s5 + $0x3d8] sm:$0xff]
  %v2057 = vld [vmem:[%s5 + $0x3e0] sm:$0xff]
  %v2058 = vld [vmem:[%s5 + $0x3e8] sm:$0xff]
  %v2059 = vld [vmem:[%s5 + $0x3f0] sm:$0xff]
  %v2060 = vld [vmem:[%s5 + $0x3f8] sm:$0xff]
  %v2061 = vld [vmem:[%s5 + $0x400] sm:$0xff]
  %v2062 = vld [vmem:[%s5 + $0x408] sm:$0xff]
  %v2063 = vld [vmem:[%s5 + $0x410] sm:$0xff]
  %v2064 = vld [vmem:[%s5 + $0x418] sm:$0xff]
  %v2065 = vld [vmem:[%s5 + $0x420] sm:$0xff]
  %v2066 = vld [vmem:[%s5 + $0x428] sm:$0xff]
  %v2067 = vld [vmem:[%s5 + $0x430] sm:$0xff]
  %v2068 = vld [vmem:[%s5 + $0x438] sm:$0xff]
  %v2069 = vld [vmem:[%s5 + $0x440] sm:$0xff]
  %v2070 = vld [vmem:[%s5 + $0x448] sm:$0xff]
  %v2071 = vld [vmem:[%s5 + $0x450] sm:$0xff]
  %v2072 = vld [vmem:[%s5 + $0x458] sm:$0xff]
  %v2073 = vld [vmem:[%s5 + $0x460] sm:$0xff]
  %v2074 = vld [vmem:[%s5 + $0x468] sm:$0xff]
  %v2075 = vld [vmem:[%s5 + $0x470] sm:$0xff]
  %v2076 = vld [vmem:[%s5 + $0x478] sm:$0xff]
  %v2077 = vld [vmem:[%s5 + $0x480] sm:$0xff]
  %v2078 = vld [vmem:[%s5 + $0x488] sm:$0xff]
  %v2079 = vld [vmem:[%s5 + $0x490] sm:$0xff]
  %v2080 = vld [vmem:[%s5 + $0x498] sm:$0xff]
  %v2081 = vld [vmem:[%s5 + $0x4a0] sm:$0xff]
  %v2082 = vld [vmem:[%s5 + $0x4a8] sm:$0xff]
  %v2083 = vld [vmem:[%s5 + $0x4b0] sm:$0xff]
  %v2084 = vld [vmem:[%s5 + $0x4b8] sm:$0xff]
  %v2085 = vld [vmem:[%s5 + $0x4c0] sm:$0xff]
  %v2086 = vld [vmem:[%s5 + $0x4c8] sm:$0xff]
  %v2087 = vld [vmem:[%s5 + $0x4d0] sm:$0xff]
  %v2088 = vld [vmem:[%s5 + $0x4d8] sm:$0xff]
  %v2089 = vld [vmem:[%s5 + $0x4e0] sm:$0xff]
  %v2090 = vld [vmem:[%s5 + $0x4e8] sm:$0xff]
  %v2091 = vld [vmem:[%s5 + $0x4f0] sm:$0xff]
  %v2092 = vld [vmem:[%s5 + $0x4f8] sm:$0xff]
  %v2093 = vld [vmem:[%s5 + $0x500] sm:$0xff]
  %v2094 = vld [vmem:[%s5 + $0x508] sm:$0xff]
  %v2095 = vld [vmem:[%s5 + $0x510] sm:$0xff]
  %v2096 = vld [vmem:[%s5 + $0x518] sm:$0xff]
  %v2097 = vld [vmem:[%s5 + $0x520] sm:$0xff]
  %v2098 = vld [vmem:[%s5 + $0x528] sm:$0xff]
  %v2099 = vld [vmem:[%s5 + $0x530] sm:$0xff]
  %v2100 = vld [vmem:[%s5 + $0x538] sm:$0xff]
  %v2101 = vld [vmem:[%s5 + $0x540] sm:$0xff]
  %v2102 = vld [vmem:[%s5 + $0x548] sm:$0xff]
  %v2103 = vld [vmem:[%s5 + $0x550] sm:$0xff]
  %v2104 = vld [vmem:[%s5 + $0x558] sm:$0xff]
  %v2105 = vld [vmem:[%s5 + $0x560] sm:$0xff]
  %v2106 = vld [vmem:[%s5 + $0x568] sm:$0xff]
  %v2107 = vld [vmem:[%s5 + $0x570] sm:$0xff]
  %v2108 = vld [vmem:[%s5 + $0x578] sm:$0xff]
  %v2109 = vld [vmem:[%s5 + $0x580] sm:$0xff]
  %v2110 = vld [vmem:[%s5 + $0x588] sm:$0xff]
  %v2111 = vld [vmem:[%s5 + $0x590] sm:$0xff]
  %v2112 = vld [vmem:[%s5 + $0x598] sm:$0xff]
  %v2113 = vld [vmem:[%s5 + $0x5a0] sm:$0xff]
  %v2114 = vld [vmem:[%s5 + $0x5a8] sm:$0xff]
  %v2115 = vld [vmem:[%s5 + $0x5b0] sm:$0xff]
  %v2116 = vld [vmem:[%s5 + $0x5b8] sm:$0xff]
  %v2117 = vld [vmem:[%s5 + $0x5c0] sm:$0xff]
  %v2118 = vld [vmem:[%s5 + $0x5c8] sm:$0xff]
  %v2119 = vld [vmem:[%s5 + $0x5d0] sm:$0xff]
  %v2120 = vld [vmem:[%s5 + $0x5d8] sm:$0xff]
  %v2121 = vld [vmem:[%s5 + $0x5e0] sm:$0xff]
  %v2122 = vld [vmem:[%s5 + $0x5e8] sm:$0xff]
  %v2123 = vld [vmem:[%s5 + $0x5f0] sm:$0xff]
  %v2124 = vld [vmem:[%s5 + $0x5f8] sm:$0xff]
  %v2125 = vld [vmem:[%s5 + $0x600] sm:$0xff]
  %v2126 = vld [vmem:[%s5 + $0x608] sm:$0xff]
  %v2127 = vld [vmem:[%s5 + $0x610] sm:$0xff]
  %v2128 = vld [vmem:[%s5 + $0x618] sm:$0xff]
  %v2129 = vld [vmem:[%s5 + $0x620] sm:$0xff]
  %v2130 = vld [vmem:[%s5 + $0x628] sm:$0xff]
  %v2131 = vld [vmem:[%s5 + $0x630] sm:$0xff]
  %v2132 = vld [vmem:[%s5 + $0x638] sm:$0xff]
  %v2133 = vld [vmem:[%s5 + $0x640] sm:$0xff]
  %v2134 = vld [vmem:[%s5 + $0x648] sm:$0xff]
  %v2135 = vld [vmem:[%s5 + $0x650] sm:$0xff]
  %v2136 = vld [vmem:[%s5 + $0x658] sm:$0xff]
  %v2137 = vld [vmem:[%s5 + $0x660] sm:$0xff]
  %v2138 = vld [vmem:[%s5 + $0x668] sm:$0xff]
  %v2139 = vld [vmem:[%s5 + $0x670] sm:$0xff]
  %v2140 = vld [vmem:[%s5 + $0x678] sm:$0xff]
  %v2141 = vld [vmem:[%s5 + $0x680] sm:$0xff]
  %v2142 = vld [vmem:[%s5 + $0x688] sm:$0xff]
  %v2143 = vld [vmem:[%s5 + $0x690] sm:$0xff]
  %v2144 = vld [vmem:[%s5 + $0x698] sm:$0xff]
  %v2145 = vld [vmem:[%s5 + $0x6a0] sm:$0xff]
  %v2146 = vld [vmem:[%s5 + $0x6a8] sm:$0xff]
  %v2147 = vld [vmem:[%s5 + $0x6b0] sm:$0xff]
  %v2148 = vld [vmem:[%s5 + $0x6b8] sm:$0xff]
  %v2149 = vld [vmem:[%s5 + $0x6c0] sm:$0xff]
  %v2150 = vld [vmem:[%s5 + $0x6c8] sm:$0xff]
  %v2151 = vld [vmem:[%s5 + $0x6d0] sm:$0xff]
  %v2152 = vld [vmem:[%s5 + $0x6d8] sm:$0xff]
  %v2153 = vld [vmem:[%s5 + $0x6e0] sm:$0xff]
  %v2154 = vld [vmem:[%s5 + $0x6e8] sm:$0xff]
  %v2155 = vld [vmem:[%s5 + $0x6f0] sm:$0xff]
  %v2156 = vld [vmem:[%s5 + $0x6f8] sm:$0xff]
  %v2157 = vld [vmem:[%s5 + $0x700] sm:$0xff]
  %v2158 = vld [vmem:[%s5 + $0x708] sm:$0xff]
  %v2159 = vld [vmem:[%s5 + $0x710] sm:$0xff]
  %v2160 = vld [vmem:[%s5 + $0x718] sm:$0xff]
  %v2161 = vld [vmem:[%s5 + $0x720] sm:$0xff]
  %v2162 = vld [vmem:[%s5 + $0x728] sm:$0xff]
  %v2163 = vld [vmem:[%s5 + $0x730] sm:$0xff]
  %v2164 = vld [vmem:[%s5 + $0x738] sm:$0xff]
  %v2165 = vld [vmem:[%s5 + $0x740] sm:$0xff]
  %v2166 = vld [vmem:[%s5 + $0x748] sm:$0xff]
  %v2167 = vld [vmem:[%s5 + $0x750] sm:$0xff]
  %v2168 = vld [vmem:[%s5 + $0x758] sm:$0xff]
  %v2169 = vld [vmem:[%s5 + $0x760] sm:$0xff]
  %v2170 = vld [vmem:[%s5 + $0x768] sm:$0xff]
  %v2171 = vld [vmem:[%s5 + $0x770] sm:$0xff]
  %v2172 = vld [vmem:[%s5 + $0x778] sm:$0xff]
  %v2173 = vld [vmem:[%s5 + $0x780] sm:$0xff]
  %v2174 = vld [vmem:[%s5 + $0x788] sm:$0xff]
  %v2175 = vld [vmem:[%s5 + $0x790] sm:$0xff]
  %v2176 = vld [vmem:[%s5 + $0x798] sm:$0xff]
  %v2177 = vld [vmem:[%s5 + $0x7a0] sm:$0xff]
  %v2178 = vld [vmem:[%s5 + $0x7a8] sm:$0xff]
  %v2179 = vld [vmem:[%s5 + $0x7b0] sm:$0xff]
  %v2180 = vld [vmem:[%s5 + $0x7b8] sm:$0xff]
  %v2181 = vld [vmem:[%s5 + $0x7c0] sm:$0xff]
  %v2182 = vld [vmem:[%s5 + $0x7c8] sm:$0xff]
  %v2183 = vld [vmem:[%s5 + $0x7d0] sm:$0xff]
  %v2184 = vld [vmem:[%s5 + $0x7d8] sm:$0xff]
  %v2185 = vld [vmem:[%s5 + $0x7e0] sm:$0xff]
  %v2186 = vld [vmem:[%s5 + $0x7e8] sm:$0xff]
  %v2187 = vld [vmem:[%s5 + $0x7f0] sm:$0xff]
  %v2188 = vld [vmem:[%s5 + $0x7f8] sm:$0xff]
  %v2189 = vld [vmem:[%s5 + $0x800] sm:$0xff]
  %v2190 = vld [vmem:[%s5 + $0x808] sm:$0xff]
  %v2191 = vld [vmem:[%s5 + $0x810] sm:$0xff]
  %v2192 = vld [vmem:[%s5 + $0x818] sm:$0xff]
  %v2193 = vld [vmem:[%s5 + $0x820] sm:$0xff]
  %v2194 = vld [vmem:[%s5 + $0x828] sm:$0xff]
  %v2195 = vld [vmem:[%s5 + $0x830] sm:$0xff]
  %v2196 = vld [vmem:[%s5 + $0x838] sm:$0xff]
  %v2197 = vld [vmem:[%s5 + $0x840] sm:$0xff]
  %v2198 = vld [vmem:[%s5 + $0x848] sm:$0xff]
  %v2199 = vld [vmem:[%s5 + $0x850] sm:$0xff]
  %v2200 = vld [vmem:[%s5 + $0x858] sm:$0xff]
  %v2201 = vld [vmem:[%s5 + $0x860] sm:$0xff]
  %v2202 = vld [vmem:[%s5 + $0x868] sm:$0xff]
  %v2203 = vld [vmem:[%s5 + $0x870] sm:$0xff]
  %v2204 = vld [vmem:[%s5 + $0x878] sm:$0xff]
  %v2205 = vld [vmem:[%s5 + $0x880] sm:$0xff]
  %v2206 = vld [vmem:[%s5 + $0x888] sm:$0xff]
  %v2207 = vld [vmem:[%s5 + $0x890] sm:$0xff]
  %v2208 = vld [vmem:[%s5 + $0x898] sm:$0xff]
  %v2209 = vld [vmem:[%s5 + $0x8a0] sm:$0xff]
  %v2210 = vld [vmem:[%s5 + $0x8a8] sm:$0xff]
  %v2211 = vld [vmem:[%s5 + $0x8b0] sm:$0xff]
  %v2212 = vld [vmem:[%s5 + $0x8b8] sm:$0xff]
  %v2213 = vld [vmem:[%s5 + $0x8c0] sm:$0xff]
  %v2214 = vld [vmem:[%s5 + $0x8c8] sm:$0xff]
  %v2215 = vld [vmem:[%s5 + $0x8d0] sm:$0xff]
  %v2216 = vld [vmem:[%s5 + $0x8d8] sm:$0xff]
  %v2217 = vld [vmem:[%s5 + $0x8e0] sm:$0xff]
  %v2218 = vld [vmem:[%s5 + $0x8e8] sm:$0xff]
  %v2219 = vld [vmem:[%s5 + $0x8f0] sm:$0xff]
  %v2220 = vld [vmem:[%s5 + $0x8f8] sm:$0xff]
  %v2221 = vld [vmem:[%s5 + $0x900] sm:$0xff]
  %v2222 = vld [vmem:[%s5 + $0x908] sm:$0xff]
  %v2223 = vld [vmem:[%s5 + $0x910] sm:$0xff]
  %v2224 = vld [vmem:[%s5 + $0x918] sm:$0xff]
  %v2225 = vld [vmem:[%s5 + $0x920] sm:$0xff]
  %v2226 = vld [vmem:[%s5 + $0x928] sm:$0xff]
  %v2227 = vld [vmem:[%s5 + $0x930] sm:$0xff]
  %v2228 = vld [vmem:[%s5 + $0x938] sm:$0xff]
  %v2229 = vld [vmem:[%s5 + $0x940] sm:$0xff]
  %v2230 = vld [vmem:[%s5 + $0x948] sm:$0xff]
  %v2231 = vld [vmem:[%s5 + $0x950] sm:$0xff]
  %v2232 = vld [vmem:[%s5 + $0x958] sm:$0xff]
  %v2233 = vld [vmem:[%s5 + $0x960] sm:$0xff]
  %v2234 = vld [vmem:[%s5 + $0x968] sm:$0xff]
  %v2235 = vld [vmem:[%s5 + $0x970] sm:$0xff]
  %v2236 = vld [vmem:[%s5 + $0x978] sm:$0xff]
  %v2237 = vld [vmem:[%s5 + $0x980] sm:$0xff]
  %v2238 = vld [vmem:[%s5 + $0x988] sm:$0xff]
  %v2239 = vld [vmem:[%s5 + $0x990] sm:$0xff]
  %v2240 = vld [vmem:[%s5 + $0x998] sm:$0xff]
  %v2241 = vld [vmem:[%s5 + $0x9a0] sm:$0xff]
  %v2242 = vld [vmem:[%s5 + $0x9a8] sm:$0xff]
  %v2243 = vld [vmem:[%s5 + $0x9b0] sm:$0xff]
  %v2244 = vld [vmem:[%s5 + $0x9b8] sm:$0xff]
  %v2245 = vld [vmem:[%s5 + $0x9c0] sm:$0xff]
  %v2246 = vld [vmem:[%s5 + $0x9c8] sm:$0xff]
  %v2247 = vld [vmem:[%s5 + $0x9d0] sm:$0xff]
  %v2248 = vld [vmem:[%s5 + $0x9d8] sm:$0xff]
  %v2249 = vld [vmem:[%s5 + $0x9e0] sm:$0xff]
  %v2250 = vld [vmem:[%s5 + $0x9e8] sm:$0xff]
  %v2251 = vld [vmem:[%s5 + $0x9f0] sm:$0xff]
  %v2252 = vld [vmem:[%s5 + $0x9f8] sm:$0xff]
  %v2253 = vld [vmem:[%s5 + $0xa00] sm:$0xff]
  %v2254 = vld [vmem:[%s5 + $0xa08] sm:$0xff]
  %v2255 = vld [vmem:[%s5 + $0xa10] sm:$0xff]
  %v2256 = vld [vmem:[%s5 + $0xa18] sm:$0xff]
  %v2257 = vld [vmem:[%s5 + $0xa20] sm:$0xff]
  %v2258 = vld [vmem:[%s5 + $0xa28] sm:$0xff]
  %v2259 = vld [vmem:[%s5 + $0xa30] sm:$0xff]
  %v2260 = vld [vmem:[%s5 + $0xa38] sm:$0xff]
  %v2261 = vld [vmem:[%s5 + $0xa40] sm:$0xff]
  %v2262 = vld [vmem:[%s5 + $0xa48] sm:$0xff]
  %v2263 = vld [vmem:[%s5 + $0xa50] sm:$0xff]
  %v2264 = vld [vmem:[%s5 + $0xa58] sm:$0xff]
  %v2265 = vld [vmem:[%s5 + $0xa60] sm:$0xff]
  %v2266 = vld [vmem:[%s5 + $0xa68] sm:$0xff]
  %v2267 = vld [vmem:[%s5 + $0xa70] sm:$0xff]
  %v2268 = vld [vmem:[%s5 + $0xa78] sm:$0xff]
  %v2269 = vld [vmem:[%s5 + $0xa80] sm:$0xff]
  %v2270 = vld [vmem:[%s5 + $0xa88] sm:$0xff]
  %v2271 = vld [vmem:[%s5 + $0xa90] sm:$0xff]
  %v2272 = vld [vmem:[%s5 + $0xa98] sm:$0xff]
  %v2273 = vld [vmem:[%s5 + $0xaa0] sm:$0xff]
  %v2274 = vld [vmem:[%s5 + $0xaa8] sm:$0xff]
  %v2275 = vld [vmem:[%s5 + $0xab0] sm:$0xff]
  %v2276 = vld [vmem:[%s5 + $0xab8] sm:$0xff]
  %v2277 = vld [vmem:[%s5 + $0xac0] sm:$0xff]
  %v2278 = vld [vmem:[%s5 + $0xac8] sm:$0xff]
  %v2279 = vld [vmem:[%s5 + $0xad0] sm:$0xff]
  %v2280 = vld [vmem:[%s5 + $0xad8] sm:$0xff]
  %v2281 = vld [vmem:[%s5 + $0xae0] sm:$0xff]
  %v2282 = vld [vmem:[%s5 + $0xae8] sm:$0xff]
  %v2283 = vld [vmem:[%s5 + $0xaf0] sm:$0xff]
  %v2284 = vld [vmem:[%s5 + $0xaf8] sm:$0xff]
  %v2285 = vld [vmem:[%s5 + $0xb00] sm:$0xff]
  %v2286 = vld [vmem:[%s5 + $0xb08] sm:$0xff]
  %v2287 = vld [vmem:[%s5 + $0xb10] sm:$0xff]
  %v2288 = vld [vmem:[%s5 + $0xb18] sm:$0xff]
  %v2289 = vld [vmem:[%s5 + $0xb20] sm:$0xff]
  %v2290 = vld [vmem:[%s5 + $0xb28] sm:$0xff]
  %v2291 = vld [vmem:[%s5 + $0xb30] sm:$0xff]
  %v2292 = vld [vmem:[%s5 + $0xb38] sm:$0xff]
  %v2293 = vld [vmem:[%s5 + $0xb40] sm:$0xff]
  %v2294 = vld [vmem:[%s5 + $0xb48] sm:$0xff]
  %v2295 = vld [vmem:[%s5 + $0xb50] sm:$0xff]
  %v2296 = vld [vmem:[%s5 + $0xb58] sm:$0xff]
  %v2297 = vld [vmem:[%s5 + $0xb60] sm:$0xff]
  %v2298 = vld [vmem:[%s5 + $0xb68] sm:$0xff]
  %v2299 = vld [vmem:[%s5 + $0xb70] sm:$0xff]
  %v2300 = vld [vmem:[%s5 + $0xb78] sm:$0xff]
  %v2301 = vld [vmem:[%s5 + $0xb80] sm:$0xff]
  %v2302 = vld [vmem:[%s5 + $0xb88] sm:$0xff]
  %v2303 = vld [vmem:[%s5 + $0xb90] sm:$0xff]
  %v2304 = vld [vmem:[%s5 + $0xb98] sm:$0xff]
  %v2305 = vld [vmem:[%s5 + $0xba0] sm:$0xff]
  %v2306 = vld [vmem:[%s5 + $0xba8] sm:$0xff]
  %v2307 = vld [vmem:[%s5 + $0xbb0] sm:$0xff]
  %v2308 = vld [vmem:[%s5 + $0xbb8] sm:$0xff]
  %v2309 = vld [vmem:[%s5 + $0xbc0] sm:$0xff]
  %v2310 = vld [vmem:[%s5 + $0xbc8] sm:$0xff]
  %v2311 = vld [vmem:[%s5 + $0xbd0] sm:$0xff]
  %v2312 = vld [vmem:[%s5 + $0xbd8] sm:$0xff]
  %v2313 = vld [vmem:[%s5 + $0xbe0] sm:$0xff]
  %v2314 = vld [vmem:[%s5 + $0xbe8] sm:$0xff]
  %v2315 = vld [vmem:[%s5 + $0xbf0] sm:$0xff]
  %v2316 = vld [vmem:[%s5 + $0xbf8] sm:$0xff]
  %v2317 = vld [vmem:[%s7] sm:$0x3f]
  %v2319 = vperm.slane %v2317, 0
  %v2320 = vperm.slane %v2317, 1
  %v2321 = vperm.slane %v2317, 2
  %v2322 = vperm.slane %v2317, 3
  %v2323 = vperm.slane %v2317, 4
  %v2324 = vperm.slane %v2317, 5
  %2331 = vmatpush.msra.mxu0 %v2023
  %2332 = vmatpush.msra.mxu0 %v2017
  %2333 = vmatpush.msra.mxu0 %v2011
  %2334 = vmatpush.msra.mxu0 %v2005
  %2335 = vmatpush.msra.mxu0 %v1999
  %2336 = vmatpush.msra.mxu0 %v1993
  %2337 = vmatpush.msra.mxu0 %v1987
  %2338 = vmatpush.msra.mxu0 %v1981
  %2339 = vmatpush.msra.mxu0 %v1975
  %2340 = vmatpush.msra.mxu0 %v1969
  %2341 = vmatpush.msra.mxu0 %v1963
  %2342 = vmatpush.msra.mxu0 %v1957
  %2343 = vmatpush.msra.mxu0 %v1951
  %2344 = vmatpush.msra.mxu0 %v1945
  %2345 = vmatpush.msra.mxu0 %v1939
  %2346 = vmatpush.msra.mxu0 %v1933
  %2347 = vmatmul.f32.gmra.mxu0 %v1917
  %v2348 = vpop.f32.mrf.mxu0
  %v2349 = vadd.f32 %v2319, %v2348
  %2350 = vdwg.mxu0
  %2351 = vmatpush.msra.mxu0 %v2119
  %2352 = vmatpush.msra.mxu0 %v2113
  %2353 = vmatpush.msra.mxu0 %v2107
  %2354 = vmatpush.msra.mxu0 %v2101
  %2355 = vmatpush.msra.mxu0 %v2095
  %2356 = vmatpush.msra.mxu0 %v2089
  %2357 = vmatpush.msra.mxu0 %v2083
  %2358 = vmatpush.msra.mxu0 %v2077
  %2359 = vmatpush.msra.mxu0 %v2071
  %2360 = vmatpush.msra.mxu0 %v2065
  %2361 = vmatpush.msra.mxu0 %v2059
  %2362 = vmatpush.msra.mxu0 %v2053
  %2363 = vmatpush.msra.mxu0 %v2047
  %2364 = vmatpush.msra.mxu0 %v2041
  %2365 = vmatpush.msra.mxu0 %v2035
  %2366 = vmatpush.msra.mxu0 %v2029
  %2367 = vmatmul.f32.gmra.mxu0 %v1918
  %v2368 = vpop.f32.mrf.mxu0
  %v2369 = vadd.f32 %v2349, %v2368
  %2370 = vdwg.mxu0
  %2371 = vmatpush.msra.mxu0 %v2215
  %2372 = vmatpush.msra.mxu0 %v2209
  %2373 = vmatpush.msra.mxu0 %v2203
  %2374 = vmatpush.msra.mxu0 %v2197
  %2375 = vmatpush.msra.mxu0 %v2191
  %2376 = vmatpush.msra.mxu0 %v2185
  %2377 = vmatpush.msra.mxu0 %v2179
  %2378 = vmatpush.msra.mxu0 %v2173
  %2379 = vmatpush.msra.mxu0 %v2167
  %2380 = vmatpush.msra.mxu0 %v2161
  %2381 = vmatpush.msra.mxu0 %v2155
  %2382 = vmatpush.msra.mxu0 %v2149
  %2383 = vmatpush.msra.mxu0 %v2143
  %2384 = vmatpush.msra.mxu0 %v2137
  %2385 = vmatpush.msra.mxu0 %v2131
  %2386 = vmatpush.msra.mxu0 %v2125
  %2387 = vmatmul.f32.gmra.mxu0 %v1919
  %v2388 = vpop.f32.mrf.mxu0
  %v2389 = vadd.f32 %v2369, %v2388
  %2390 = vdwg.mxu0
  %2391 = vmatpush.msra.mxu0 %v2311
  %2392 = vmatpush.msra.mxu0 %v2305
  %2393 = vmatpush.msra.mxu0 %v2299
  %2394 = vmatpush.msra.mxu0 %v2293
  %2395 = vmatpush.msra.mxu0 %v2287
  %2396 = vmatpush.msra.mxu0 %v2281
  %2397 = vmatpush.msra.mxu0 %v2275
  %2398 = vmatpush.msra.mxu0 %v2269
  %2399 = vmatpush.msra.mxu0 %v2263
  %2400 = vmatpush.msra.mxu0 %v2257
  %2401 = vmatpush.msra.mxu0 %v2251
  %2402 = vmatpush.msra.mxu0 %v2245
  %2403 = vmatpush.msra.mxu0 %v2239
  %2404 = vmatpush.msra.mxu0 %v2233
  %2405 = vmatpush.msra.mxu0 %v2227
  %2406 = vmatpush.msra.mxu0 %v2221
  %2407 = vmatmul.f32.gmra.mxu0 %v1920
  %v2408 = vpop.f32.mrf.mxu0
  %v2409 = vadd.f32 %v2389, %v2408
  %2410 = vdwg.mxu0
  %2411 = vmatpush.msra.mxu0 %v2024
  %2412 = vmatpush.msra.mxu0 %v2018
  %2413 = vmatpush.msra.mxu0 %v2012
  %2414 = vmatpush.msra.mxu0 %v2006
  %2415 = vmatpush.msra.mxu0 %v2000
  %2416 = vmatpush.msra.mxu0 %v1994
  %2417 = vmatpush.msra.mxu0 %v1988
  %2418 = vmatpush.msra.mxu0 %v1982
  %2419 = vmatpush.msra.mxu0 %v1976
  %2420 = vmatpush.msra.mxu0 %v1970
  %2421 = vmatpush.msra.mxu0 %v1964
  %2422 = vmatpush.msra.mxu0 %v1958
  %2423 = vmatpush.msra.mxu0 %v1952
  %2424 = vmatpush.msra.mxu0 %v1946
  %2425 = vmatpush.msra.mxu0 %v1940
  %2426 = vmatpush.msra.mxu0 %v1934
  %2427 = vmatmul.f32.gmra.mxu0 %v1917
  %v2428 = vpop.f32.mrf.mxu0
  %v2429 = vadd.f32 %v2320, %v2428
  %2430 = vdwg.mxu0
  %2431 = vmatpush.msra.mxu0 %v2120
  %2432 = vmatpush.msra.mxu0 %v2114
  %2433 = vmatpush.msra.mxu0 %v2108
  %2434 = vmatpush.msra.mxu0 %v2102
  %2435 = vmatpush.msra.mxu0 %v2096
  %2436 = vmatpush.msra.mxu0 %v2090
  %2437 = vmatpush.msra.mxu0 %v2084
  %2438 = vmatpush.msra.mxu0 %v2078
  %2439 = vmatpush.msra.mxu0 %v2072
  %2440 = vmatpush.msra.mxu0 %v2066
  %2441 = vmatpush.msra.mxu0 %v2060
  %2442 = vmatpush.msra.mxu0 %v2054
  %2443 = vmatpush.msra.mxu0 %v2048
  %2444 = vmatpush.msra.mxu0 %v2042
  %2445 = vmatpush.msra.mxu0 %v2036
  %2446 = vmatpush.msra.mxu0 %v2030
  %2447 = vmatmul.f32.gmra.mxu0 %v1918
  %v2448 = vpop.f32.mrf.mxu0
  %v2449 = vadd.f32 %v2429, %v2448
  %2450 = vdwg.mxu0
  %2451 = vmatpush.msra.mxu0 %v2216
  %2452 = vmatpush.msra.mxu0 %v2210
  %2453 = vmatpush.msra.mxu0 %v2204
  %2454 = vmatpush.msra.mxu0 %v2198
  %2455 = vmatpush.msra.mxu0 %v2192
  %2456 = vmatpush.msra.mxu0 %v2186
  %2457 = vmatpush.msra.mxu0 %v2180
  %2458 = vmatpush.msra.mxu0 %v2174
  %2459 = vmatpush.msra.mxu0 %v2168
  %2460 = vmatpush.msra.mxu0 %v2162
  %2461 = vmatpush.msra.mxu0 %v2156
  %2462 = vmatpush.msra.mxu0 %v2150
  %2463 = vmatpush.msra.mxu0 %v2144
  %2464 = vmatpush.msra.mxu0 %v2138
  %2465 = vmatpush.msra.mxu0 %v2132
  %2466 = vmatpush.msra.mxu0 %v2126
  %2467 = vmatmul.f32.gmra.mxu0 %v1919
  %v2468 = vpop.f32.mrf.mxu0
  %v2469 = vadd.f32 %v2449, %v2468
  %2470 = vdwg.mxu0
  %2471 = vmatpush.msra.mxu0 %v2312
  %2472 = vmatpush.msra.mxu0 %v2306
  %2473 = vmatpush.msra.mxu0 %v2300
  %2474 = vmatpush.msra.mxu0 %v2294
  %2475 = vmatpush.msra.mxu0 %v2288
  %2476 = vmatpush.msra.mxu0 %v2282
  %2477 = vmatpush.msra.mxu0 %v2276
  %2478 = vmatpush.msra.mxu0 %v2270
  %2479 = vmatpush.msra.mxu0 %v2264
  %2480 = vmatpush.msra.mxu0 %v2258
  %2481 = vmatpush.msra.mxu0 %v2252
  %2482 = vmatpush.msra.mxu0 %v2246
  %2483 = vmatpush.msra.mxu0 %v2240
  %2484 = vmatpush.msra.mxu0 %v2234
  %2485 = vmatpush.msra.mxu0 %v2228
  %2486 = vmatpush.msra.mxu0 %v2222
  %2487 = vmatmul.f32.gmra.mxu0 %v1920
  %v2488 = vpop.f32.mrf.mxu0
  %v2489 = vadd.f32 %v2469, %v2488
  %2490 = vdwg.mxu0
  %2491 = vmatpush.msra.mxu0 %v2025
  %2492 = vmatpush.msra.mxu0 %v2019
  %2493 = vmatpush.msra.mxu0 %v2013
  %2494 = vmatpush.msra.mxu0 %v2007
  %2495 = vmatpush.msra.mxu0 %v2001
  %2496 = vmatpush.msra.mxu0 %v1995
  %2497 = vmatpush.msra.mxu0 %v1989
  %2498 = vmatpush.msra.mxu0 %v1983
  %2499 = vmatpush.msra.mxu0 %v1977
  %2500 = vmatpush.msra.mxu0 %v1971
  %2501 = vmatpush.msra.mxu0 %v1965
  %2502 = vmatpush.msra.mxu0 %v1959
  %2503 = vmatpush.msra.mxu0 %v1953
  %2504 = vmatpush.msra.mxu0 %v1947
  %2505 = vmatpush.msra.mxu0 %v1941
  %2506 = vmatpush.msra.mxu0 %v1935
  %2507 = vmatmul.f32.gmra.mxu0 %v1917
  %v2508 = vpop.f32.mrf.mxu0
  %v2509 = vadd.f32 %v2321, %v2508
  %2510 = vdwg.mxu0
  %2511 = vmatpush.msra.mxu0 %v2121
  %2512 = vmatpush.msra.mxu0 %v2115
  %2513 = vmatpush.msra.mxu0 %v2109
  %2514 = vmatpush.msra.mxu0 %v2103
  %2515 = vmatpush.msra.mxu0 %v2097
  %2516 = vmatpush.msra.mxu0 %v2091
  %2517 = vmatpush.msra.mxu0 %v2085
  %2518 = vmatpush.msra.mxu0 %v2079
  %2519 = vmatpush.msra.mxu0 %v2073
  %2520 = vmatpush.msra.mxu0 %v2067
  %2521 = vmatpush.msra.mxu0 %v2061
  %2522 = vmatpush.msra.mxu0 %v2055
  %2523 = vmatpush.msra.mxu0 %v2049
  %2524 = vmatpush.msra.mxu0 %v2043
  %2525 = vmatpush.msra.mxu0 %v2037
  %2526 = vmatpush.msra.mxu0 %v2031
  %2527 = vmatmul.f32.gmra.mxu0 %v1918
  %v2528 = vpop.f32.mrf.mxu0
  %v2529 = vadd.f32 %v2509, %v2528
  %2530 = vdwg.mxu0
  %2531 = vmatpush.msra.mxu0 %v2217
  %2532 = vmatpush.msra.mxu0 %v2211
  %2533 = vmatpush.msra.mxu0 %v2205
  %2534 = vmatpush.msra.mxu0 %v2199
  %2535 = vmatpush.msra.mxu0 %v2193
  %2536 = vmatpush.msra.mxu0 %v2187
  %2537 = vmatpush.msra.mxu0 %v2181
  %2538 = vmatpush.msra.mxu0 %v2175
  %2539 = vmatpush.msra.mxu0 %v2169
  %2540 = vmatpush.msra.mxu0 %v2163
  %2541 = vmatpush.msra.mxu0 %v2157
  %2542 = vmatpush.msra.mxu0 %v2151
  %2543 = vmatpush.msra.mxu0 %v2145
  %2544 = vmatpush.msra.mxu0 %v2139
  %2545 = vmatpush.msra.mxu0 %v2133
  %2546 = vmatpush.msra.mxu0 %v2127
  %2547 = vmatmul.f32.gmra.mxu0 %v1919
  %v2548 = vpop.f32.mrf.mxu0
  %v2549 = vadd.f32 %v2529, %v2548
  %2550 = vdwg.mxu0
  %2551 = vmatpush.msra.mxu0 %v2313
  %2552 = vmatpush.msra.mxu0 %v2307
  %2553 = vmatpush.msra.mxu0 %v2301
  %2554 = vmatpush.msra.mxu0 %v2295
  %2555 = vmatpush.msra.mxu0 %v2289
  %2556 = vmatpush.msra.mxu0 %v2283
  %2557 = vmatpush.msra.mxu0 %v2277
  %2558 = vmatpush.msra.mxu0 %v2271
  %2559 = vmatpush.msra.mxu0 %v2265
  %2560 = vmatpush.msra.mxu0 %v2259
  %2561 = vmatpush.msra.mxu0 %v2253
  %2562 = vmatpush.msra.mxu0 %v2247
  %2563 = vmatpush.msra.mxu0 %v2241
  %2564 = vmatpush.msra.mxu0 %v2235
  %2565 = vmatpush.msra.mxu0 %v2229
  %2566 = vmatpush.msra.mxu0 %v2223
  %2567 = vmatmul.f32.gmra.mxu0 %v1920
  %v2568 = vpop.f32.mrf.mxu0
  %v2569 = vadd.f32 %v2549, %v2568
  %2570 = vdwg.mxu0
  %2571 = vmatpush.msra.mxu0 %v2026
  %2572 = vmatpush.msra.mxu0 %v2020
  %2573 = vmatpush.msra.mxu0 %v2014
  %2574 = vmatpush.msra.mxu0 %v2008
  %2575 = vmatpush.msra.mxu0 %v2002
  %2576 = vmatpush.msra.mxu0 %v1996
  %2577 = vmatpush.msra.mxu0 %v1990
  %2578 = vmatpush.msra.mxu0 %v1984
  %2579 = vmatpush.msra.mxu0 %v1978
  %2580 = vmatpush.msra.mxu0 %v1972
  %2581 = vmatpush.msra.mxu0 %v1966
  %2582 = vmatpush.msra.mxu0 %v1960
  %2583 = vmatpush.msra.mxu0 %v1954
  %2584 = vmatpush.msra.mxu0 %v1948
  %2585 = vmatpush.msra.mxu0 %v1942
  %2586 = vmatpush.msra.mxu0 %v1936
  %2587 = vmatmul.f32.gmra.mxu0 %v1917
  %v2588 = vpop.f32.mrf.mxu0
  %v2589 = vadd.f32 %v2322, %v2588
  %2590 = vdwg.mxu0
  %2591 = vmatpush.msra.mxu0 %v2122
  %2592 = vmatpush.msra.mxu0 %v2116
  %2593 = vmatpush.msra.mxu0 %v2110
  %2594 = vmatpush.msra.mxu0 %v2104
  %2595 = vmatpush.msra.mxu0 %v2098
  %2596 = vmatpush.msra.mxu0 %v2092
  %2597 = vmatpush.msra.mxu0 %v2086
  %2598 = vmatpush.msra.mxu0 %v2080
  %2599 = vmatpush.msra.mxu0 %v2074
  %2600 = vmatpush.msra.mxu0 %v2068
  %2601 = vmatpush.msra.mxu0 %v2062
  %2602 = vmatpush.msra.mxu0 %v2056
  %2603 = vmatpush.msra.mxu0 %v2050
  %2604 = vmatpush.msra.mxu0 %v2044
  %2605 = vmatpush.msra.mxu0 %v2038
  %2606 = vmatpush.msra.mxu0 %v2032
  %2607 = vmatmul.f32.gmra.mxu0 %v1918
  %v2608 = vpop.f32.mrf.mxu0
  %v2609 = vadd.f32 %v2589, %v2608
  %2610 = vdwg.mxu0
  %2611 = vmatpush.msra.mxu0 %v2218
  %2612 = vmatpush.msra.mxu0 %v2212
  %2613 = vmatpush.msra.mxu0 %v2206
  %2614 = vmatpush.msra.mxu0 %v2200
  %2615 = vmatpush.msra.mxu0 %v2194
  %2616 = vmatpush.msra.mxu0 %v2188
  %2617 = vmatpush.msra.mxu0 %v2182
  %2618 = vmatpush.msra.mxu0 %v2176
  %2619 = vmatpush.msra.mxu0 %v2170
  %2620 = vmatpush.msra.mxu0 %v2164
  %2621 = vmatpush.msra.mxu0 %v2158
  %2622 = vmatpush.msra.mxu0 %v2152
  %2623 = vmatpush.msra.mxu0 %v2146
  %2624 = vmatpush.msra.mxu0 %v2140
  %2625 = vmatpush.msra.mxu0 %v2134
  %2626 = vmatpush.msra.mxu0 %v2128
  %2627 = vmatmul.f32.gmra.mxu0 %v1919
  %v2628 = vpop.f32.mrf.mxu0
  %v2629 = vadd.f32 %v2609, %v2628
  %2630 = vdwg.mxu0
  %2631 = vmatpush.msra.mxu0 %v2314
  %2632 = vmatpush.msra.mxu0 %v2308
  %2633 = vmatpush.msra.mxu0 %v2302
  %2634 = vmatpush.msra.mxu0 %v2296
  %2635 = vmatpush.msra.mxu0 %v2290
  %2636 = vmatpush.msra.mxu0 %v2284
  %2637 = vmatpush.msra.mxu0 %v2278
  %2638 = vmatpush.msra.mxu0 %v2272
  %2639 = vmatpush.msra.mxu0 %v2266
  %2640 = vmatpush.msra.mxu0 %v2260
  %2641 = vmatpush.msra.mxu0 %v2254
  %2642 = vmatpush.msra.mxu0 %v2248
  %2643 = vmatpush.msra.mxu0 %v2242
  %2644 = vmatpush.msra.mxu0 %v2236
  %2645 = vmatpush.msra.mxu0 %v2230
  %2646 = vmatpush.msra.mxu0 %v2224
  %2647 = vmatmul.f32.gmra.mxu0 %v1920
  %v2648 = vpop.f32.mrf.mxu0
  %v2649 = vadd.f32 %v2629, %v2648
  %2650 = vdwg.mxu0
  %2651 = vmatpush.msra.mxu0 %v2027
  %2652 = vmatpush.msra.mxu0 %v2021
  %2653 = vmatpush.msra.mxu0 %v2015
  %2654 = vmatpush.msra.mxu0 %v2009
  %2655 = vmatpush.msra.mxu0 %v2003
  %2656 = vmatpush.msra.mxu0 %v1997
  %2657 = vmatpush.msra.mxu0 %v1991
  %2658 = vmatpush.msra.mxu0 %v1985
  %2659 = vmatpush.msra.mxu0 %v1979
  %2660 = vmatpush.msra.mxu0 %v1973
  %2661 = vmatpush.msra.mxu0 %v1967
  %2662 = vmatpush.msra.mxu0 %v1961
  %2663 = vmatpush.msra.mxu0 %v1955
  %2664 = vmatpush.msra.mxu0 %v1949
  %2665 = vmatpush.msra.mxu0 %v1943
  %2666 = vmatpush.msra.mxu0 %v1937
  %2667 = vmatmul.f32.gmra.mxu0 %v1917
  %v2668 = vpop.f32.mrf.mxu0
  %v2669 = vadd.f32 %v2323, %v2668
  %2670 = vdwg.mxu0
  %2671 = vmatpush.msra.mxu0 %v2123
  %2672 = vmatpush.msra.mxu0 %v2117
  %2673 = vmatpush.msra.mxu0 %v2111
  %2674 = vmatpush.msra.mxu0 %v2105
  %2675 = vmatpush.msra.mxu0 %v2099
  %2676 = vmatpush.msra.mxu0 %v2093
  %2677 = vmatpush.msra.mxu0 %v2087
  %2678 = vmatpush.msra.mxu0 %v2081
  %2679 = vmatpush.msra.mxu0 %v2075
  %2680 = vmatpush.msra.mxu0 %v2069
  %2681 = vmatpush.msra.mxu0 %v2063
  %2682 = vmatpush.msra.mxu0 %v2057
  %2683 = vmatpush.msra.mxu0 %v2051
  %2684 = vmatpush.msra.mxu0 %v2045
  %2685 = vmatpush.msra.mxu0 %v2039
  %2686 = vmatpush.msra.mxu0 %v2033
  %2687 = vmatmul.f32.gmra.mxu0 %v1918
  %v2688 = vpop.f32.mrf.mxu0
  %v2689 = vadd.f32 %v2669, %v2688
  %2690 = vdwg.mxu0
  %2691 = vmatpush.msra.mxu0 %v2219
  %2692 = vmatpush.msra.mxu0 %v2213
  %2693 = vmatpush.msra.mxu0 %v2207
  %2694 = vmatpush.msra.mxu0 %v2201
  %2695 = vmatpush.msra.mxu0 %v2195
  %2696 = vmatpush.msra.mxu0 %v2189
  %2697 = vmatpush.msra.mxu0 %v2183
  %2698 = vmatpush.msra.mxu0 %v2177
  %2699 = vmatpush.msra.mxu0 %v2171
  %2700 = vmatpush.msra.mxu0 %v2165
  %2701 = vmatpush.msra.mxu0 %v2159
  %2702 = vmatpush.msra.mxu0 %v2153
  %2703 = vmatpush.msra.mxu0 %v2147
  %2704 = vmatpush.msra.mxu0 %v2141
  %2705 = vmatpush.msra.mxu0 %v2135
  %2706 = vmatpush.msra.mxu0 %v2129
  %2707 = vmatmul.f32.gmra.mxu0 %v1919
  %v2708 = vpop.f32.mrf.mxu0
  %v2709 = vadd.f32 %v2689, %v2708
  %2710 = vdwg.mxu0
  %2711 = vmatpush.msra.mxu0 %v2315
  %2712 = vmatpush.msra.mxu0 %v2309
  %2713 = vmatpush.msra.mxu0 %v2303
  %2714 = vmatpush.msra.mxu0 %v2297
  %2715 = vmatpush.msra.mxu0 %v2291
  %2716 = vmatpush.msra.mxu0 %v2285
  %2717 = vmatpush.msra.mxu0 %v2279
  %2718 = vmatpush.msra.mxu0 %v2273
  %2719 = vmatpush.msra.mxu0 %v2267
  %2720 = vmatpush.msra.mxu0 %v2261
  %2721 = vmatpush.msra.mxu0 %v2255
  %2722 = vmatpush.msra.mxu0 %v2249
  %2723 = vmatpush.msra.mxu0 %v2243
  %2724 = vmatpush.msra.mxu0 %v2237
  %2725 = vmatpush.msra.mxu0 %v2231
  %2726 = vmatpush.msra.mxu0 %v2225
  %2727 = vmatmul.f32.gmra.mxu0 %v1920
  %v2728 = vpop.f32.mrf.mxu0
  %v2729 = vadd.f32 %v2709, %v2728
  %2730 = vdwg.mxu0
  %2731 = vmatpush.msra.mxu0 %v2028
  %2732 = vmatpush.msra.mxu0 %v2022
  %2733 = vmatpush.msra.mxu0 %v2016
  %2734 = vmatpush.msra.mxu0 %v2010
  %2735 = vmatpush.msra.mxu0 %v2004
  %2736 = vmatpush.msra.mxu0 %v1998
  %2737 = vmatpush.msra.mxu0 %v1992
  %2738 = vmatpush.msra.mxu0 %v1986
  %2739 = vmatpush.msra.mxu0 %v1980
  %2740 = vmatpush.msra.mxu0 %v1974
  %2741 = vmatpush.msra.mxu0 %v1968
  %2742 = vmatpush.msra.mxu0 %v1962
  %2743 = vmatpush.msra.mxu0 %v1956
  %2744 = vmatpush.msra.mxu0 %v1950
  %2745 = vmatpush.msra.mxu0 %v1944
  %2746 = vmatpush.msra.mxu0 %v1938
  %2747 = vmatmul.f32.gmra.mxu0 %v1917
  %v2748 = vpop.f32.mrf.mxu0
  %v2749 = vadd.f32 %v2324, %v2748
  %2750 = vdwg.mxu0
  %2751 = vmatpush.msra.mxu0 %v2124
  %2752 = vmatpush.msra.mxu0 %v2118
  %2753 = vmatpush.msra.mxu0 %v2112
  %2754 = vmatpush.msra.mxu0 %v2106
  %2755 = vmatpush.msra.mxu0 %v2100
  %2756 = vmatpush.msra.mxu0 %v2094
  %2757 = vmatpush.msra.mxu0 %v2088
  %2758 = vmatpush.msra.mxu0 %v2082
  %2759 = vmatpush.msra.mxu0 %v2076
  %2760 = vmatpush.msra.mxu0 %v2070
  %2761 = vmatpush.msra.mxu0 %v2064
  %2762 = vmatpush.msra.mxu0 %v2058
  %2763 = vmatpush.msra.mxu0 %v2052
  %2764 = vmatpush.msra.mxu0 %v2046
  %2765 = vmatpush.msra.mxu0 %v2040
  %2766 = vmatpush.msra.mxu0 %v2034
  %2767 = vmatmul.f32.gmra.mxu0 %v1918
  %v2768 = vpop.f32.mrf.mxu0
  %v2769 = vadd.f32 %v2749, %v2768
  %2770 = vdwg.mxu0
  %2771 = vmatpush.msra.mxu0 %v2220
  %2772 = vmatpush.msra.mxu0 %v2214
  %2773 = vmatpush.msra.mxu0 %v2208
  %2774 = vmatpush.msra.mxu0 %v2202
  %2775 = vmatpush.msra.mxu0 %v2196
  %2776 = vmatpush.msra.mxu0 %v2190
  %2777 = vmatpush.msra.mxu0 %v2184
  %2778 = vmatpush.msra.mxu0 %v2178
  %2779 = vmatpush.msra.mxu0 %v2172
  %2780 = vmatpush.msra.mxu0 %v2166
  %2781 = vmatpush.msra.mxu0 %v2160
  %2782 = vmatpush.msra.mxu0 %v2154
  %2783 = vmatpush.msra.mxu0 %v2148
  %2784 = vmatpush.msra.mxu0 %v2142
  %2785 = vmatpush.msra.mxu0 %v2136
  %2786 = vmatpush.msra.mxu0 %v2130
  %2787 = vmatmul.f32.gmra.mxu0 %v1919
  %v2788 = vpop.f32.mrf.mxu0
  %v2789 = vadd.f32 %v2769, %v2788
  %2790 = vdwg.mxu0
  %2791 = vmatpush.msra.mxu0 %v2316
  %2792 = vmatpush.msra.mxu0 %v2310
  %2793 = vmatpush.msra.mxu0 %v2304
  %2794 = vmatpush.msra.mxu0 %v2298
  %2795 = vmatpush.msra.mxu0 %v2292
  %2796 = vmatpush.msra.mxu0 %v2286
  %2797 = vmatpush.msra.mxu0 %v2280
  %2798 = vmatpush.msra.mxu0 %v2274
  %2799 = vmatpush.msra.mxu0 %v2268
  %2800 = vmatpush.msra.mxu0 %v2262
  %2801 = vmatpush.msra.mxu0 %v2256
  %2802 = vmatpush.msra.mxu0 %v2250
  %2803 = vmatpush.msra.mxu0 %v2244
  %2804 = vmatpush.msra.mxu0 %v2238
  %2805 = vmatpush.msra.mxu0 %v2232
  %2806 = vmatpush.msra.mxu0 %v2226
  %2807 = vmatmul.f32.gmra.mxu0 %v1920
  %v2808 = vpop.f32.mrf.mxu0
  %v2809 = vadd.f32 %v2789, %v2808
  %2810 = vdwg.mxu0
  %v2811 = vld [vmem:[%s6] sm:$0xff]
  %v2812 = vld [vmem:[%s6 + $0x8] sm:$0xff]
  %v2813 = vld [vmem:[%s6 + $0x10] sm:$0xff]
  %v2814 = vld [vmem:[%s6 + $0x18] sm:$0xff]
  %v2815 = vld [vmem:[%s6 + $0x20] sm:$0xff]
  %v2816 = vld [vmem:[%s6 + $0x28] sm:$0xff]
  %v2817 = vld [vmem:[%s6 + $0x30] sm:$0xff]
  %v2818 = vld [vmem:[%s6 + $0x38] sm:$0xff]
  %v2819 = vld [vmem:[%s6 + $0x40] sm:$0xff]
  %v2820 = vld [vmem:[%s6 + $0x48] sm:$0xff]
  %v2821 = vld [vmem:[%s6 + $0x50] sm:$0xff]
  %v2822 = vld [vmem:[%s6 + $0x58] sm:$0xff]
  %v2823 = vld [vmem:[%s6 + $0x60] sm:$0xff]
  %v2824 = vld [vmem:[%s6 + $0x68] sm:$0xff]
  %v2825 = vld [vmem:[%s6 + $0x70] sm:$0xff]
  %v2826 = vld [vmem:[%s6 + $0x78] sm:$0xff]
  %v2827 = vld [vmem:[%s6 + $0x80] sm:$0xff]
  %v2828 = vld [vmem:[%s6 + $0x88] sm:$0xff]
  %v2829 = vld [vmem:[%s6 + $0x90] sm:$0xff]
  %v2830 = vld [vmem:[%s6 + $0x98] sm:$0xff]
  %v2831 = vld [vmem:[%s6 + $0xa0] sm:$0xff]
  %v2832 = vld [vmem:[%s6 + $0xa8] sm:$0xff]
  %v2833 = vld [vmem:[%s6 + $0xb0] sm:$0xff]
  %v2834 = vld [vmem:[%s6 + $0xb8] sm:$0xff]
  %v2835 = vld [vmem:[%s6 + $0xc0] sm:$0xff]
  %v2836 = vld [vmem:[%s6 + $0xc8] sm:$0xff]
  %v2837 = vld [vmem:[%s6 + $0xd0] sm:$0xff]
  %v2838 = vld [vmem:[%s6 + $0xd8] sm:$0xff]
  %v2839 = vld [vmem:[%s6 + $0xe0] sm:$0xff]
  %v2840 = vld [vmem:[%s6 + $0xe8] sm:$0xff]
  %v2841 = vld [vmem:[%s6 + $0xf0] sm:$0xff]
  %v2842 = vld [vmem:[%s6 + $0xf8] sm:$0xff]
  %v2843 = vld [vmem:[%s6 + $0x100] sm:$0xff]
  %v2844 = vld [vmem:[%s6 + $0x108] sm:$0xff]
  %v2845 = vld [vmem:[%s6 + $0x110] sm:$0xff]
  %v2846 = vld [vmem:[%s6 + $0x118] sm:$0xff]
  %v2847 = vld [vmem:[%s6 + $0x120] sm:$0xff]
  %v2848 = vld [vmem:[%s6 + $0x128] sm:$0xff]
  %v2849 = vld [vmem:[%s6 + $0x130] sm:$0xff]
  %v2850 = vld [vmem:[%s6 + $0x138] sm:$0xff]
  %v2851 = vld [vmem:[%s6 + $0x140] sm:$0xff]
  %v2852 = vld [vmem:[%s6 + $0x148] sm:$0xff]
  %v2853 = vld [vmem:[%s6 + $0x150] sm:$0xff]
  %v2854 = vld [vmem:[%s6 + $0x158] sm:$0xff]
  %v2855 = vld [vmem:[%s6 + $0x160] sm:$0xff]
  %v2856 = vld [vmem:[%s6 + $0x168] sm:$0xff]
  %v2857 = vld [vmem:[%s6 + $0x170] sm:$0xff]
  %v2858 = vld [vmem:[%s6 + $0x178] sm:$0xff]
  %v2859 = vld [vmem:[%s6 + $0x180] sm:$0xff]
  %v2860 = vld [vmem:[%s6 + $0x188] sm:$0xff]
  %v2861 = vld [vmem:[%s6 + $0x190] sm:$0xff]
  %v2862 = vld [vmem:[%s6 + $0x198] sm:$0xff]
  %v2863 = vld [vmem:[%s6 + $0x1a0] sm:$0xff]
  %v2864 = vld [vmem:[%s6 + $0x1a8] sm:$0xff]
  %v2865 = vld [vmem:[%s6 + $0x1b0] sm:$0xff]
  %v2866 = vld [vmem:[%s6 + $0x1b8] sm:$0xff]
  %v2867 = vld [vmem:[%s6 + $0x1c0] sm:$0xff]
  %v2868 = vld [vmem:[%s6 + $0x1c8] sm:$0xff]
  %v2869 = vld [vmem:[%s6 + $0x1d0] sm:$0xff]
  %v2870 = vld [vmem:[%s6 + $0x1d8] sm:$0xff]
  %v2871 = vld [vmem:[%s6 + $0x1e0] sm:$0xff]
  %v2872 = vld [vmem:[%s6 + $0x1e8] sm:$0xff]
  %v2873 = vld [vmem:[%s6 + $0x1f0] sm:$0xff]
  %v2874 = vld [vmem:[%s6 + $0x1f8] sm:$0xff]
  %v2875 = vld [vmem:[%s6 + $0x200] sm:$0xff]
  %v2876 = vld [vmem:[%s6 + $0x208] sm:$0xff]
  %v2877 = vld [vmem:[%s6 + $0x210] sm:$0xff]
  %v2878 = vld [vmem:[%s6 + $0x218] sm:$0xff]
  %v2879 = vld [vmem:[%s6 + $0x220] sm:$0xff]
  %v2880 = vld [vmem:[%s6 + $0x228] sm:$0xff]
  %v2881 = vld [vmem:[%s6 + $0x230] sm:$0xff]
  %v2882 = vld [vmem:[%s6 + $0x238] sm:$0xff]
  %v2883 = vld [vmem:[%s6 + $0x240] sm:$0xff]
  %v2884 = vld [vmem:[%s6 + $0x248] sm:$0xff]
  %v2885 = vld [vmem:[%s6 + $0x250] sm:$0xff]
  %v2886 = vld [vmem:[%s6 + $0x258] sm:$0xff]
  %v2887 = vld [vmem:[%s6 + $0x260] sm:$0xff]
  %v2888 = vld [vmem:[%s6 + $0x268] sm:$0xff]
  %v2889 = vld [vmem:[%s6 + $0x270] sm:$0xff]
  %v2890 = vld [vmem:[%s6 + $0x278] sm:$0xff]
  %v2891 = vld [vmem:[%s6 + $0x280] sm:$0xff]
  %v2892 = vld [vmem:[%s6 + $0x288] sm:$0xff]
  %v2893 = vld [vmem:[%s6 + $0x290] sm:$0xff]
  %v2894 = vld [vmem:[%s6 + $0x298] sm:$0xff]
  %v2895 = vld [vmem:[%s6 + $0x2a0] sm:$0xff]
  %v2896 = vld [vmem:[%s6 + $0x2a8] sm:$0xff]
  %v2897 = vld [vmem:[%s6 + $0x2b0] sm:$0xff]
  %v2898 = vld [vmem:[%s6 + $0x2b8] sm:$0xff]
  %v2899 = vld [vmem:[%s6 + $0x2c0] sm:$0xff]
  %v2900 = vld [vmem:[%s6 + $0x2c8] sm:$0xff]
  %v2901 = vld [vmem:[%s6 + $0x2d0] sm:$0xff]
  %v2902 = vld [vmem:[%s6 + $0x2d8] sm:$0xff]
  %v2903 = vld [vmem:[%s6 + $0x2e0] sm:$0xff]
  %v2904 = vld [vmem:[%s6 + $0x2e8] sm:$0xff]
  %v2905 = vld [vmem:[%s6 + $0x2f0] sm:$0xff]
  %v2906 = vld [vmem:[%s6 + $0x2f8] sm:$0xff]
  %v2907 = vld [vmem:[%s6 + $0x300] sm:$0xff]
  %v2908 = vld [vmem:[%s6 + $0x308] sm:$0xff]
  %v2909 = vld [vmem:[%s6 + $0x310] sm:$0xff]
  %v2910 = vld [vmem:[%s6 + $0x318] sm:$0xff]
  %v2911 = vld [vmem:[%s6 + $0x320] sm:$0xff]
  %v2912 = vld [vmem:[%s6 + $0x328] sm:$0xff]
  %v2913 = vld [vmem:[%s6 + $0x330] sm:$0xff]
  %v2914 = vld [vmem:[%s6 + $0x338] sm:$0xff]
  %v2915 = vld [vmem:[%s6 + $0x340] sm:$0xff]
  %v2916 = vld [vmem:[%s6 + $0x348] sm:$0xff]
  %v2917 = vld [vmem:[%s6 + $0x350] sm:$0xff]
  %v2918 = vld [vmem:[%s6 + $0x358] sm:$0xff]
  %v2919 = vld [vmem:[%s6 + $0x360] sm:$0xff]
  %v2920 = vld [vmem:[%s6 + $0x368] sm:$0xff]
  %v2921 = vld [vmem:[%s6 + $0x370] sm:$0xff]
  %v2922 = vld [vmem:[%s6 + $0x378] sm:$0xff]
  %v2923 = vld [vmem:[%s6 + $0x380] sm:$0xff]
  %v2924 = vld [vmem:[%s6 + $0x388] sm:$0xff]
  %v2925 = vld [vmem:[%s6 + $0x390] sm:$0xff]
  %v2926 = vld [vmem:[%s6 + $0x398] sm:$0xff]
  %v2927 = vld [vmem:[%s6 + $0x3a0] sm:$0xff]
  %v2928 = vld [vmem:[%s6 + $0x3a8] sm:$0xff]
  %v2929 = vld [vmem:[%s6 + $0x3b0] sm:$0xff]
  %v2930 = vld [vmem:[%s6 + $0x3b8] sm:$0xff]
  %v2931 = vld [vmem:[%s6 + $0x3c0] sm:$0xff]
  %v2932 = vld [vmem:[%s6 + $0x3c8] sm:$0xff]
  %v2933 = vld [vmem:[%s6 + $0x3d0] sm:$0xff]
  %v2934 = vld [vmem:[%s6 + $0x3d8] sm:$0xff]
  %v2935 = vld [vmem:[%s6 + $0x3e0] sm:$0xff]
  %v2936 = vld [vmem:[%s6 + $0x3e8] sm:$0xff]
  %v2937 = vld [vmem:[%s6 + $0x3f0] sm:$0xff]
  %v2938 = vld [vmem:[%s6 + $0x3f8] sm:$0xff]
  %v2939 = vld [vmem:[%s6 + $0x400] sm:$0xff]
  %v2940 = vld [vmem:[%s6 + $0x408] sm:$0xff]
  %v2941 = vld [vmem:[%s6 + $0x410] sm:$0xff]
  %v2942 = vld [vmem:[%s6 + $0x418] sm:$0xff]
  %v2943 = vld [vmem:[%s6 + $0x420] sm:$0xff]
  %v2944 = vld [vmem:[%s6 + $0x428] sm:$0xff]
  %v2945 = vld [vmem:[%s6 + $0x430] sm:$0xff]
  %v2946 = vld [vmem:[%s6 + $0x438] sm:$0xff]
  %v2947 = vld [vmem:[%s6 + $0x440] sm:$0xff]
  %v2948 = vld [vmem:[%s6 + $0x448] sm:$0xff]
  %v2949 = vld [vmem:[%s6 + $0x450] sm:$0xff]
  %v2950 = vld [vmem:[%s6 + $0x458] sm:$0xff]
  %v2951 = vld [vmem:[%s6 + $0x460] sm:$0xff]
  %v2952 = vld [vmem:[%s6 + $0x468] sm:$0xff]
  %v2953 = vld [vmem:[%s6 + $0x470] sm:$0xff]
  %v2954 = vld [vmem:[%s6 + $0x478] sm:$0xff]
  %v2955 = vld [vmem:[%s6 + $0x480] sm:$0xff]
  %v2956 = vld [vmem:[%s6 + $0x488] sm:$0xff]
  %v2957 = vld [vmem:[%s6 + $0x490] sm:$0xff]
  %v2958 = vld [vmem:[%s6 + $0x498] sm:$0xff]
  %v2959 = vld [vmem:[%s6 + $0x4a0] sm:$0xff]
  %v2960 = vld [vmem:[%s6 + $0x4a8] sm:$0xff]
  %v2961 = vld [vmem:[%s6 + $0x4b0] sm:$0xff]
  %v2962 = vld [vmem:[%s6 + $0x4b8] sm:$0xff]
  %v2963 = vld [vmem:[%s6 + $0x4c0] sm:$0xff]
  %v2964 = vld [vmem:[%s6 + $0x4c8] sm:$0xff]
  %v2965 = vld [vmem:[%s6 + $0x4d0] sm:$0xff]
  %v2966 = vld [vmem:[%s6 + $0x4d8] sm:$0xff]
  %v2967 = vld [vmem:[%s6 + $0x4e0] sm:$0xff]
  %v2968 = vld [vmem:[%s6 + $0x4e8] sm:$0xff]
  %v2969 = vld [vmem:[%s6 + $0x4f0] sm:$0xff]
  %v2970 = vld [vmem:[%s6 + $0x4f8] sm:$0xff]
  %v2971 = vld [vmem:[%s6 + $0x500] sm:$0xff]
  %v2972 = vld [vmem:[%s6 + $0x508] sm:$0xff]
  %v2973 = vld [vmem:[%s6 + $0x510] sm:$0xff]
  %v2974 = vld [vmem:[%s6 + $0x518] sm:$0xff]
  %v2975 = vld [vmem:[%s6 + $0x520] sm:$0xff]
  %v2976 = vld [vmem:[%s6 + $0x528] sm:$0xff]
  %v2977 = vld [vmem:[%s6 + $0x530] sm:$0xff]
  %v2978 = vld [vmem:[%s6 + $0x538] sm:$0xff]
  %v2979 = vld [vmem:[%s6 + $0x540] sm:$0xff]
  %v2980 = vld [vmem:[%s6 + $0x548] sm:$0xff]
  %v2981 = vld [vmem:[%s6 + $0x550] sm:$0xff]
  %v2982 = vld [vmem:[%s6 + $0x558] sm:$0xff]
  %v2983 = vld [vmem:[%s6 + $0x560] sm:$0xff]
  %v2984 = vld [vmem:[%s6 + $0x568] sm:$0xff]
  %v2985 = vld [vmem:[%s6 + $0x570] sm:$0xff]
  %v2986 = vld [vmem:[%s6 + $0x578] sm:$0xff]
  %v2987 = vld [vmem:[%s6 + $0x580] sm:$0xff]
  %v2988 = vld [vmem:[%s6 + $0x588] sm:$0xff]
  %v2989 = vld [vmem:[%s6 + $0x590] sm:$0xff]
  %v2990 = vld [vmem:[%s6 + $0x598] sm:$0xff]
  %v2991 = vld [vmem:[%s6 + $0x5a0] sm:$0xff]
  %v2992 = vld [vmem:[%s6 + $0x5a8] sm:$0xff]
  %v2993 = vld [vmem:[%s6 + $0x5b0] sm:$0xff]
  %v2994 = vld [vmem:[%s6 + $0x5b8] sm:$0xff]
  %v2995 = vld [vmem:[%s6 + $0x5c0] sm:$0xff]
  %v2996 = vld [vmem:[%s6 + $0x5c8] sm:$0xff]
  %v2997 = vld [vmem:[%s6 + $0x5d0] sm:$0xff]
  %v2998 = vld [vmem:[%s6 + $0x5d8] sm:$0xff]
  %v2999 = vld [vmem:[%s6 + $0x5e0] sm:$0xff]
  %v3000 = vld [vmem:[%s6 + $0x5e8] sm:$0xff]
  %v3001 = vld [vmem:[%s6 + $0x5f0] sm:$0xff]
  %v3002 = vld [vmem:[%s6 + $0x5f8] sm:$0xff]
  %v3003 = vld [vmem:[%s8] sm:$0x3f]
  %v3005 = vperm.slane %v3003, 0
  %v3006 = vperm.slane %v3003, 1
  %v3007 = vperm.slane %v3003, 2
  %v3008 = vperm.slane %v3003, 3
  %v3009 = vperm.slane %v3003, 4
  %v3010 = vperm.slane %v3003, 5
  %3018 = vst [vmem:[#allocation1] ss:$4 sm:$0xff] %v1932
  %v3019 = vld.sshfl [vmem:[#allocation1] sm:$0xff pattern:$0x73625140]
  %v3020 = vld.sshfl [vmem:[#allocation1 + $0x8] sm:$0xff pattern:$0x73625140]
  %3023 = vmatpush.msra.mxu0 %v2901
  %3024 = vmatpush.msra.mxu0 %v2895
  %3025 = vmatpush.msra.mxu0 %v2889
  %3026 = vmatpush.msra.mxu0 %v2883
  %3027 = vmatpush.msra.mxu0 %v2877
  %3028 = vmatpush.msra.mxu0 %v2871
  %3029 = vmatpush.msra.mxu0 %v2865
  %3030 = vmatpush.msra.mxu0 %v2859
  %3031 = vmatpush.msra.mxu0 %v2853
  %3032 = vmatpush.msra.mxu0 %v2847
  %3033 = vmatpush.msra.mxu0 %v2841
  %3034 = vmatpush.msra.mxu0 %v2835
  %3035 = vmatpush.msra.mxu0 %v2829
  %3036 = vmatpush.msra.mxu0 %v2823
  %3037 = vmatpush.msra.mxu0 %v2817
  %3038 = vmatpush.msra.mxu0 %v2811
  %3039 = vmatmul.f32.gmra.mxu0 %v3019
  %v3040 = vpop.f32.mrf.mxu0
  %v3041 = vadd.f32 %v3005, %v3040
  %3042 = vdwg.mxu0
  %3043 = vmatpush.msra.mxu0 %v2997
  %3044 = vmatpush.msra.mxu0 %v2991
  %3045 = vmatpush.msra.mxu0 %v2985
  %3046 = vmatpush.msra.mxu0 %v2979
  %3047 = vmatpush.msra.mxu0 %v2973
  %3048 = vmatpush.msra.mxu0 %v2967
  %3049 = vmatpush.msra.mxu0 %v2961
  %3050 = vmatpush.msra.mxu0 %v2955
  %3051 = vmatpush.msra.mxu0 %v2949
  %3052 = vmatpush.msra.mxu0 %v2943
  %3053 = vmatpush.msra.mxu0 %v2937
  %3054 = vmatpush.msra.mxu0 %v2931
  %3055 = vmatpush.msra.mxu0 %v2925
  %3056 = vmatpush.msra.mxu0 %v2919
  %3057 = vmatpush.msra.mxu0 %v2913
  %3058 = vmatpush.msra.mxu0 %v2907
  %3059 = vmatmul.f32.gmra.mxu0 %v3020
  %v3060 = vpop.f32.mrf.mxu0
  %v3061 = vadd.f32 %v3041, %v3060
  %3062 = vdwg.mxu0
  %3063 = vmatpush.msra.mxu0 %v2902
  %3064 = vmatpush.msra.mxu0 %v2896
  %3065 = vmatpush.msra.mxu0 %v2890
  %3066 = vmatpush.msra.mxu0 %v2884
  %3067 = vmatpush.msra.mxu0 %v2878
  %3068 = vmatpush.msra.mxu0 %v2872
  %3069 = vmatpush.msra.mxu0 %v2866
  %3070 = vmatpush.msra.mxu0 %v2860
  %3071 = vmatpush.msra.mxu0 %v2854
  %3072 = vmatpush.msra.mxu0 %v2848
  %3073 = vmatpush.msra.mxu0 %v2842
  %3074 = vmatpush.msra.mxu0 %v2836
  %3075 = vmatpush.msra.mxu0 %v2830
  %3076 = vmatpush.msra.mxu0 %v2824
  %3077 = vmatpush.msra.mxu0 %v2818
  %3078 = vmatpush.msra.mxu0 %v2812
  %3079 = vmatmul.f32.gmra.mxu0 %v3019
  %v3080 = vpop.f32.mrf.mxu0
  %v3081 = vadd.f32 %v3006, %v3080
  %3082 = vdwg.mxu0
  %3083 = vmatpush.msra.mxu0 %v2998
  %3084 = vmatpush.msra.mxu0 %v2992
  %3085 = vmatpush.msra.mxu0 %v2986
  %3086 = vmatpush.msra.mxu0 %v2980
  %3087 = vmatpush.msra.mxu0 %v2974
  %3088 = vmatpush.msra.mxu0 %v2968
  %3089 = vmatpush.msra.mxu0 %v2962
  %3090 = vmatpush.msra.mxu0 %v2956
  %3091 = vmatpush.msra.mxu0 %v2950
  %3092 = vmatpush.msra.mxu0 %v2944
  %3093 = vmatpush.msra.mxu0 %v2938
  %3094 = vmatpush.msra.mxu0 %v2932
  %3095 = vmatpush.msra.mxu0 %v2926
  %3096 = vmatpush.msra.mxu0 %v2920
  %3097 = vmatpush.msra.mxu0 %v2914
  %3098 = vmatpush.msra.mxu0 %v2908
  %3099 = vmatmul.f32.gmra.mxu0 %v3020
  %v3100 = vpop.f32.mrf.mxu0
  %v3101 = vadd.f32 %v3081, %v3100
  %3102 = vdwg.mxu0
  %3103 = vmatpush.msra.mxu0 %v2903
  %3104 = vmatpush.msra.mxu0 %v2897
  %3105 = vmatpush.msra.mxu0 %v2891
  %3106 = vmatpush.msra.mxu0 %v2885
  %3107 = vmatpush.msra.mxu0 %v2879
  %3108 = vmatpush.msra.mxu0 %v2873
  %3109 = vmatpush.msra.mxu0 %v2867
  %3110 = vmatpush.msra.mxu0 %v2861
  %3111 = vmatpush.msra.mxu0 %v2855
  %3112 = vmatpush.msra.mxu0 %v2849
  %3113 = vmatpush.msra.mxu0 %v2843
  %3114 = vmatpush.msra.mxu0 %v2837
  %3115 = vmatpush.msra.mxu0 %v2831
  %3116 = vmatpush.msra.mxu0 %v2825
  %3117 = vmatpush.msra.mxu0 %v2819
  %3118 = vmatpush.msra.mxu0 %v2813
  %3119 = vmatmul.f32.gmra.mxu0 %v3019
  %v3120 = vpop.f32.mrf.mxu0
  %v3121 = vadd.f32 %v3007, %v3120
  %3122 = vdwg.mxu0
  %3123 = vmatpush.msra.mxu0 %v2999
  %3124 = vmatpush.msra.mxu0 %v2993
  %3125 = vmatpush.msra.mxu0 %v2987
  %3126 = vmatpush.msra.mxu0 %v2981
  %3127 = vmatpush.msra.mxu0 %v2975
  %3128 = vmatpush.msra.mxu0 %v2969
  %3129 = vmatpush.msra.mxu0 %v2963
  %3130 = vmatpush.msra.mxu0 %v2957
  %3131 = vmatpush.msra.mxu0 %v2951
  %3132 = vmatpush.msra.mxu0 %v2945
  %3133 = vmatpush.msra.mxu0 %v2939
  %3134 = vmatpush.msra.mxu0 %v2933
  %3135 = vmatpush.msra.mxu0 %v2927
  %3136 = vmatpush.msra.mxu0 %v2921
  %3137 = vmatpush.msra.mxu0 %v2915
  %3138 = vmatpush.msra.mxu0 %v2909
  %3139 = vmatmul.f32.gmra.mxu0 %v3020
  %v3140 = vpop.f32.mrf.mxu0
  %v3141 = vadd.f32 %v3121, %v3140
  %3142 = vdwg.mxu0
  %3143 = vmatpush.msra.mxu0 %v2904
  %3144 = vmatpush.msra.mxu0 %v2898
  %3145 = vmatpush.msra.mxu0 %v2892
  %3146 = vmatpush.msra.mxu0 %v2886
  %3147 = vmatpush.msra.mxu0 %v2880
  %3148 = vmatpush.msra.mxu0 %v2874
  %3149 = vmatpush.msra.mxu0 %v2868
  %3150 = vmatpush.msra.mxu0 %v2862
  %3151 = vmatpush.msra.mxu0 %v2856
  %3152 = vmatpush.msra.mxu0 %v2850
  %3153 = vmatpush.msra.mxu0 %v2844
  %3154 = vmatpush.msra.mxu0 %v2838
  %3155 = vmatpush.msra.mxu0 %v2832
  %3156 = vmatpush.msra.mxu0 %v2826
  %3157 = vmatpush.msra.mxu0 %v2820
  %3158 = vmatpush.msra.mxu0 %v2814
  %3159 = vmatmul.f32.gmra.mxu0 %v3019
  %v3160 = vpop.f32.mrf.mxu0
  %v3161 = vadd.f32 %v3008, %v3160
  %3162 = vdwg.mxu0
  %3163 = vmatpush.msra.mxu0 %v3000
  %3164 = vmatpush.msra.mxu0 %v2994
  %3165 = vmatpush.msra.mxu0 %v2988
  %3166 = vmatpush.msra.mxu0 %v2982
  %3167 = vmatpush.msra.mxu0 %v2976
  %3168 = vmatpush.msra.mxu0 %v2970
  %3169 = vmatpush.msra.mxu0 %v2964
  %3170 = vmatpush.msra.mxu0 %v2958
  %3171 = vmatpush.msra.mxu0 %v2952
  %3172 = vmatpush.msra.mxu0 %v2946
  %3173 = vmatpush.msra.mxu0 %v2940
  %3174 = vmatpush.msra.mxu0 %v2934
  %3175 = vmatpush.msra.mxu0 %v2928
  %3176 = vmatpush.msra.mxu0 %v2922
  %3177 = vmatpush.msra.mxu0 %v2916
  %3178 = vmatpush.msra.mxu0 %v2910
  %3179 = vmatmul.f32.gmra.mxu0 %v3020
  %v3180 = vpop.f32.mrf.mxu0
  %v3181 = vadd.f32 %v3161, %v3180
  %3182 = vdwg.mxu0
  %3183 = vmatpush.msra.mxu0 %v2905
  %3184 = vmatpush.msra.mxu0 %v2899
  %3185 = vmatpush.msra.mxu0 %v2893
  %3186 = vmatpush.msra.mxu0 %v2887
  %3187 = vmatpush.msra.mxu0 %v2881
  %3188 = vmatpush.msra.mxu0 %v2875
  %3189 = vmatpush.msra.mxu0 %v2869
  %3190 = vmatpush.msra.mxu0 %v2863
  %3191 = vmatpush.msra.mxu0 %v2857
  %3192 = vmatpush.msra.mxu0 %v2851
  %3193 = vmatpush.msra.mxu0 %v2845
  %3194 = vmatpush.msra.mxu0 %v2839
  %3195 = vmatpush.msra.mxu0 %v2833
  %3196 = vmatpush.msra.mxu0 %v2827
  %3197 = vmatpush.msra.mxu0 %v2821
  %3198 = vmatpush.msra.mxu0 %v2815
  %3199 = vmatmul.f32.gmra.mxu0 %v3019
  %v3200 = vpop.f32.mrf.mxu0
  %v3201 = vadd.f32 %v3009, %v3200
  %3202 = vdwg.mxu0
  %3203 = vmatpush.msra.mxu0 %v3001
  %3204 = vmatpush.msra.mxu0 %v2995
  %3205 = vmatpush.msra.mxu0 %v2989
  %3206 = vmatpush.msra.mxu0 %v2983
  %3207 = vmatpush.msra.mxu0 %v2977
  %3208 = vmatpush.msra.mxu0 %v2971
  %3209 = vmatpush.msra.mxu0 %v2965
  %3210 = vmatpush.msra.mxu0 %v2959
  %3211 = vmatpush.msra.mxu0 %v2953
  %3212 = vmatpush.msra.mxu0 %v2947
  %3213 = vmatpush.msra.mxu0 %v2941
  %3214 = vmatpush.msra.mxu0 %v2935
  %3215 = vmatpush.msra.mxu0 %v2929
  %3216 = vmatpush.msra.mxu0 %v2923
  %3217 = vmatpush.msra.mxu0 %v2917
  %3218 = vmatpush.msra.mxu0 %v2911
  %3219 = vmatmul.f32.gmra.mxu0 %v3020
  %v3220 = vpop.f32.mrf.mxu0
  %v3221 = vadd.f32 %v3201, %v3220
  %3222 = vdwg.mxu0
  %3223 = vmatpush.msra.mxu0 %v2906
  %3224 = vmatpush.msra.mxu0 %v2900
  %3225 = vmatpush.msra.mxu0 %v2894
  %3226 = vmatpush.msra.mxu0 %v2888
  %3227 = vmatpush.msra.mxu0 %v2882
  %3228 = vmatpush.msra.mxu0 %v2876
  %3229 = vmatpush.msra.mxu0 %v2870
  %3230 = vmatpush.msra.mxu0 %v2864
  %3231 = vmatpush.msra.mxu0 %v2858
  %3232 = vmatpush.msra.mxu0 %v2852
  %3233 = vmatpush.msra.mxu0 %v2846
  %3234 = vmatpush.msra.mxu0 %v2840
  %3235 = vmatpush.msra.mxu0 %v2834
  %3236 = vmatpush.msra.mxu0 %v2828
  %3237 = vmatpush.msra.mxu0 %v2822
  %3238 = vmatpush.msra.mxu0 %v2816
  %3239 = vmatmul.f32.gmra.mxu0 %v3019
  %v3240 = vpop.f32.mrf.mxu0
  %v3241 = vadd.f32 %v3010, %v3240
  %3242 = vdwg.mxu0
  %3243 = vmatpush.msra.mxu0 %v3002
  %3244 = vmatpush.msra.mxu0 %v2996
  %3245 = vmatpush.msra.mxu0 %v2990
  %3246 = vmatpush.msra.mxu0 %v2984
  %3247 = vmatpush.msra.mxu0 %v2978
  %3248 = vmatpush.msra.mxu0 %v2972
  %3249 = vmatpush.msra.mxu0 %v2966
  %3250 = vmatpush.msra.mxu0 %v2960
  %3251 = vmatpush.msra.mxu0 %v2954
  %3252 = vmatpush.msra.mxu0 %v2948
  %3253 = vmatpush.msra.mxu0 %v2942
  %3254 = vmatpush.msra.mxu0 %v2936
  %3255 = vmatpush.msra.mxu0 %v2930
  %3256 = vmatpush.msra.mxu0 %v2924
  %3257 = vmatpush.msra.mxu0 %v2918
  %3258 = vmatpush.msra.mxu0 %v2912
  %3259 = vmatmul.f32.gmra.mxu0 %v3020
  %v3260 = vpop.f32.mrf.mxu0
  %v3261 = vadd.f32 %v3241, %v3260
  %3262 = vdwg.mxu0
  %v3263 = vadd.f32 %v2409, %v3061
  %v3264 = vadd.f32 %v2489, %v3101
  %v3265 = vxor.u32 %v3263, 2147483648
  %v3266 = vxor.u32 %v3264, 2147483648
  %v3267 = vmul.f32 %v3265, 1.442695
  %v3268 = vpow.pop %v3267
  %v3269 = vmul.f32 %v3266, 1.442695
  %v3270 = vpow.pop %v3269
  %v3271 = vadd.f32 %v3268, 1.0
  %v3272 = vadd.f32 %v3270, 1.0
  %v3273 = vrcp.pop %v3271
  %v3274 = vmul.f32 %v3271, %v3273
  %v3275 = vsub.f32 1.0, %v3274
  %v3276 = vmul.f32 %v3273, %v3275
  %v3277 = vadd.f32 %v3273, %v3276
  %vm3278 = vweird.f32 %v3271
  %vm3279 = vweird.f32 %v3273
  %vm3280 = vmor %vm3278, %vm3279
  %v3281 = vsel %vm3280, %v3273, %v3277
  %v3282 = vand.u32 2147483647, %v3271
  %vm3283 = vcmp.eq.f32.partialorder %v3282, 8.507059e+37
  %v3284 = vand.u32 %v3271, 2147483648
  %v3285 = vor.u32 1.1754944e-38, %v3284
  %v3286 = vsel %vm3283, %v3285, %v3281
  %v3287 = vmul.f32 1.0, %v3286
  %v3288 = vrcp.pop %v3272
  %v3289 = vmul.f32 %v3272, %v3288
  %v3290 = vsub.f32 1.0, %v3289
  %v3291 = vmul.f32 %v3288, %v3290
  %v3292 = vadd.f32 %v3288, %v3291
  %vm3293 = vweird.f32 %v3272
  %vm3294 = vweird.f32 %v3288
  %vm3295 = vmor %vm3293, %vm3294
  %v3296 = vsel %vm3295, %v3288, %v3292
  %v3297 = vand.u32 2147483647, %v3272
  %vm3298 = vcmp.eq.f32.partialorder %v3297, 8.507059e+37
  %v3299 = vand.u32 %v3272, 2147483648
  %v3300 = vor.u32 1.1754944e-38, %v3299
  %v3301 = vsel %vm3298, %v3300, %v3296
  %v3302 = vmul.f32 1.0, %v3301
  %v3303 = vadd.f32 %v2569, %v3141
  %v3304 = vadd.f32 %v2649, %v3181
  %v3305 = vxor.u32 %v3303, 2147483648
  %v3306 = vxor.u32 %v3304, 2147483648
  %v3307 = vmul.f32 %v3305, 1.442695
  %v3308 = vpow.pop %v3307
  %v3309 = vmul.f32 %v3306, 1.442695
  %v3310 = vpow.pop %v3309
  %v3311 = vadd.f32 %v3308, 1.0
  %v3312 = vadd.f32 %v3310, 1.0
  %v3313 = vrcp.pop %v3311
  %v3314 = vmul.f32 %v3311, %v3313
  %v3315 = vsub.f32 1.0, %v3314
  %v3316 = vmul.f32 %v3313, %v3315
  %v3317 = vadd.f32 %v3313, %v3316
  %vm3318 = vweird.f32 %v3311
  %vm3319 = vweird.f32 %v3313
  %vm3320 = vmor %vm3318, %vm3319
  %v3321 = vsel %vm3320, %v3313, %v3317
  %v3322 = vand.u32 2147483647, %v3311
  %vm3323 = vcmp.eq.f32.partialorder %v3322, 8.507059e+37
  %v3324 = vand.u32 %v3311, 2147483648
  %v3325 = vor.u32 1.1754944e-38, %v3324
  %v3326 = vsel %vm3323, %v3325, %v3321
  %v3327 = vmul.f32 1.0, %v3326
  %v3328 = vrcp.pop %v3312
  %v3329 = vmul.f32 %v3312, %v3328
  %v3330 = vsub.f32 1.0, %v3329
  %v3331 = vmul.f32 %v3328, %v3330
  %v3332 = vadd.f32 %v3328, %v3331
  %vm3333 = vweird.f32 %v3312
  %vm3334 = vweird.f32 %v3328
  %vm3335 = vmor %vm3333, %vm3334
  %v3336 = vsel %vm3335, %v3328, %v3332
  %v3337 = vand.u32 2147483647, %v3312
  %vm3338 = vcmp.eq.f32.partialorder %v3337, 8.507059e+37
  %v3339 = vand.u32 %v3312, 2147483648
  %v3340 = vor.u32 1.1754944e-38, %v3339
  %v3341 = vsel %vm3338, %v3340, %v3336
  %v3342 = vmul.f32 1.0, %v3341
  %v3343 = vmul.f32 %v3287, %v3221
  %v3344 = vmul.f32 %v3302, %v3261
  %v3345 = vadd.f32 %v2729, %v3343
  %v3346 = vadd.f32 %v2809, %v3344
  %v3347 = vtanh.pop %v3345
  %v3348 = vtanh.pop %v3346
  %v3349 = vsub.f32 1.0, %v3327
  %v3350 = vsub.f32 1.0, %v3342
  %v3351 = vmul.f32 %v3349, %v3347
  %v3352 = vmul.f32 %v3350, %v3348
  %3353 = vst [vmem:[#allocation1] ss:$4 sm:$0xff] %v1932
  %v3354 = vld.sshfl [vmem:[#allocation1] sm:$0xff pattern:$0x73625140]
  %v3355 = vld.sshfl [vmem:[#allocation1 + $0x8] sm:$0xff pattern:$0x73625140]
  %v3358 = vmul.f32 %v3327, %v3354
  %v3359 = vmul.f32 %v3342, %v3355
  %v3360 = vadd.f32 %v3351, %v3358
  %v3361 = vadd.f32 %v3352, %v3359
  %v3364 = vrot.slane %v3361, 6
  %vm3365 = vcmask 1041408
  %v3366 = vsel %vm3365, %v3360, %v3364
  %3368 = vst [vmem:[%s12] sm:$0xf] %v3366
  %v3369 = vld [vmem:[%s9] sm:$0xff]
  %v3370 = vld [vmem:[%s9 + $0x8] sm:$0xff]
  %v3371 = vld [vmem:[%s9 + $0x10] sm:$0xff]
  %v3372 = vld [vmem:[%s9 + $0x18] sm:$0xff]
  %v3373 = vld [vmem:[%s9 + $0x20] sm:$0xff]
  %v3374 = vld [vmem:[%s9 + $0x28] sm:$0xff]
  %v3375 = vld [vmem:[%s9 + $0x30] sm:$0xff]
  %v3376 = vld [vmem:[%s9 + $0x38] sm:$0xff]
  %v3377 = vld [vmem:[%s9 + $0x40] sm:$0xff]
  %v3378 = vld [vmem:[%s9 + $0x48] sm:$0xff]
  %v3379 = vld [vmem:[%s9 + $0x50] sm:$0xff]
  %v3380 = vld [vmem:[%s9 + $0x58] sm:$0xff]
  %v3381 = vld [vmem:[%s9 + $0x60] sm:$0xff]
  %v3382 = vld [vmem:[%s9 + $0x68] sm:$0xff]
  %v3383 = vld [vmem:[%s9 + $0x70] sm:$0xff]
  %v3384 = vld [vmem:[%s9 + $0x78] sm:$0xff]
  %v3385 = vld [vmem:[%s9 + $0x80] sm:$0xff]
  %v3386 = vld [vmem:[%s9 + $0x88] sm:$0xff]
  %v3387 = vld [vmem:[%s9 + $0x90] sm:$0xff]
  %v3388 = vld [vmem:[%s9 + $0x98] sm:$0xff]
  %v3389 = vld [vmem:[%s9 + $0xa0] sm:$0xff]
  %v3390 = vld [vmem:[%s9 + $0xa8] sm:$0xff]
  %v3391 = vld [vmem:[%s9 + $0xb0] sm:$0xff]
  %v3392 = vld [vmem:[%s9 + $0xb8] sm:$0xff]
  %v3393 = vld [vmem:[%s9 + $0xc0] sm:$0xff]
  %v3394 = vld [vmem:[%s9 + $0xc8] sm:$0xff]
  %v3395 = vld [vmem:[%s9 + $0xd0] sm:$0xff]
  %v3396 = vld [vmem:[%s9 + $0xd8] sm:$0xff]
  %v3397 = vld [vmem:[%s9 + $0xe0] sm:$0xff]
  %v3398 = vld [vmem:[%s9 + $0xe8] sm:$0xff]
  %v3399 = vld [vmem:[%s9 + $0xf0] sm:$0xff]
  %v3400 = vld [vmem:[%s9 + $0xf8] sm:$0xff]
  %v3401 = vld [vmem:[#allocation2] sm:$0x1]
  %v3403 = vperm.slane %v3401, 0
  %3405 = vmatpush.msra.mxu0 %v3384
  %3406 = vmatpush.msra.mxu0 %v3383
  %3407 = vmatpush.msra.mxu0 %v3382
  %3408 = vmatpush.msra.mxu0 %v3381
  %3409 = vmatpush.msra.mxu0 %v3380
  %3410 = vmatpush.msra.mxu0 %v3379
  %3411 = vmatpush.msra.mxu0 %v3378
  %3412 = vmatpush.msra.mxu0 %v3377
  %3413 = vmatpush.msra.mxu0 %v3376
  %3414 = vmatpush.msra.mxu0 %v3375
  %3415 = vmatpush.msra.mxu0 %v3374
  %3416 = vmatpush.msra.mxu0 %v3373
  %3417 = vmatpush.msra.mxu0 %v3372
  %3418 = vmatpush.msra.mxu0 %v3371
  %3419 = vmatpush.msra.mxu0 %v3370
  %3420 = vmatpush.msra.mxu0 %v3369
  %3421 = vmatmul.f32.gmra.mxu0 %v3360
  %v3422 = vpop.f32.mrf.mxu0
  %v3423 = vadd.f32 %v3403, %v3422
  %3424 = vdwg.mxu0
  %3425 = vmatpush.msra.mxu0 %v3400
  %3426 = vmatpush.msra.mxu0 %v3399
  %3427 = vmatpush.msra.mxu0 %v3398
  %3428 = vmatpush.msra.mxu0 %v3397
  %3429 = vmatpush.msra.mxu0 %v3396
  %3430 = vmatpush.msra.mxu0 %v3395
  %3431 = vmatpush.msra.mxu0 %v3394
  %3432 = vmatpush.msra.mxu0 %v3393
  %3433 = vmatpush.msra.mxu0 %v3392
  %3434 = vmatpush.msra.mxu0 %v3391
  %3435 = vmatpush.msra.mxu0 %v3390
  %3436 = vmatpush.msra.mxu0 %v3389
  %3437 = vmatpush.msra.mxu0 %v3388
  %3438 = vmatpush.msra.mxu0 %v3387
  %3439 = vmatpush.msra.mxu0 %v3386
  %3440 = vmatpush.msra.mxu0 %v3385
  %3441 = vmatmul.f32.gmra.mxu0 %v3361
  %v3442 = vpop.f32.mrf.mxu0
  %v3443 = vadd.f32 %v3423, %v3442
  %3444 = vdwg.mxu0
  %vm3445 = vcmask 1024
  %3446 = vst.msk [vmem:[%s11] sm:$0x3] %vm3445, %v3443
  // Predicated region
  $region46: #{cnn_policy_forward.7} parent=0 // pred_check
    _
  $region47: #{cnn_policy_forward.7} parent=0 // pred_check_branch
    %3448 = sbr.rel (0) target = $region49
  $region48: #{cnn_policy_forward.7} parent=0 // pred_region
    _
  $region49: #{cnn_policy_forward.7} parent=0 // pred_fallthru
    _
  // Predicated region
  $region50: #{cnn_policy_forward.7} parent=0 // pred_check
    _
  $region51: #{cnn_policy_forward.7} parent=0 // pred_check_branch
    %3450 = sbr.rel (0) target = $region53
  $region52: #{cnn_policy_forward.7} parent=0 // pred_region
    _
  $region53: #{cnn_policy_forward.7} parent=0 // pred_fallthru
    _
  // Predicated region
  $region54: #{cnn_policy_forward.7} parent=0 // pred_check
    _
  $region55: #{cnn_policy_forward.7} parent=0 // pred_check_branch
    %3452 = sbr.rel (0) target = $region57
  $region56: #{cnn_policy_forward.7} parent=0 // pred_region
    _
  $region57: #{cnn_policy_forward.7} parent=0 // pred_fallthru
    _
  // Predicated region
  $region58: #{cnn_policy_forward.7} parent=0 // pred_check
    _
  $region59: #{cnn_policy_forward.7} parent=0 // pred_check_branch
    %3454 = sbr.rel (0) target = $region61
  $region60: #{cnn_policy_forward.7} parent=0 // pred_region
    _
  $region61: #{cnn_policy_forward.7} parent=0 // pred_fallthru
    _

</llo_original>
